<compile_context>
chip_gen: v5e
topology: v5e:2x2
jax: 0.10.0
libtpu: 0.0.40
codegen_flags: <defaults>
</compile_context>

<pallas_src>
import functools

import jax
import jax.numpy as jnp
from jax.experimental import pallas as pl
from jax.experimental.pallas import tpu as pltpu

# ---- model hyper-parameters (from model.py) ----
N_EMBD = 384
BLOCK_SIZE = 128
N_HEAD = 1          # single head -> head_size == n_embd
N_LAYER = 1
VOCAB_SIZE = 65     # len(chars) is 0 in the snippet; pick a small synthetic vocab
LN_EPS = 1e-5

LANE = 128
N_FFN_CHUNKS = 4    # 4C = 1536 -> 4 chunks of 384


def _layernorm(x, g, b):
    mu = jnp.mean(x, axis=-1, keepdims=True)
    var = jnp.mean((x - mu) ** 2, axis=-1, keepdims=True)
    return (x - mu) * jax.lax.rsqrt(var + LN_EPS) * g + b


def gpt_block_kernel(
    x_ref,                       # (b_blk, T, C) f32   tok_emb + pos_emb
    wq_ref, wk_ref, wv_ref,      # (C, C) bf16 each (wq pre-scaled by head_size**-0.5)
    wp_ref, bp_ref,              # (C, C) bf16, (1, C) f32   attention output projection
    g1_ref, b1_ref,              # (1, C) f32  LayerNorm ln1
    w1_ref, bb1_ref,             # (C, 4C) bf16, (1, 4C) f32  ffwd first linear
    w2_ref, bb2_ref,             # (4C, C) bf16, (1, C) f32   ffwd second linear
    g2_ref, b2_ref,              # (1, C) f32  LayerNorm ln2
    gf_ref, bf_ref,              # (1, C) f32  LayerNorm ln_f
    wlm_ref, blm_ref,            # (C, Vp) bf16, (1, Vp) f32  lm_head (vocab padded to Vp)
    out_ref,                     # (b_blk, T, Vp) f32
):
    b_blk, T, C = x_ref.shape
    M = b_blk * T
    Vp = out_ref.shape[-1]
    bf16 = jnp.bfloat16
    f32 = jnp.float32

    x = x_ref[...]                                      # (b_blk, T, C) f32
    x2d = x.reshape(M, C)                               # pack rows -> fill MXU M dim
    xb = x2d.astype(bf16)

    # ---- single-head causal self-attention (Head + MultiHeadAttention.proj) ----
    q = jnp.dot(xb, wq_ref[...], preferred_element_type=f32)   # scale already folded in
    k = jnp.dot(xb, wk_ref[...], preferred_element_type=f32)
    v = jnp.dot(xb, wv_ref[...], preferred_element_type=f32)

    q3 = q.reshape(b_blk, T, C).astype(bf16)
    k3 = k.reshape(b_blk, T, C).astype(bf16)
    v3 = v.reshape(b_blk, T, C).astype(bf16)

    # q @ k^T via batched contraction on the last dims (no explicit transpose).
    wei = jnp.einsum("bqc,bkc->bqk", q3, k3, preferred_element_type=f32)  # (b_blk,T,T)

    row = jax.lax.broadcasted_iota(jnp.int32, (b_blk, T, T), 1)
    col = jax.lax.broadcasted_iota(jnp.int32, (b_blk, T, T), 2)
    wei = jnp.where(row >= col, wei, -jnp.inf)          # causal (tril) mask

    wei = wei - jnp.max(wei, axis=-1, keepdims=True)
    p = jnp.exp(wei)
    p = p * pl.reciprocal(jnp.sum(p, axis=-1, keepdims=True), approx=True)
    # dropout(wei) is identity in eval mode

    attn3 = jnp.einsum("bqk,bkc->bqc", p.astype(bf16), v3,
                       preferred_element_type=f32)      # (b_blk, T, C) f32
    attn = attn3.reshape(M, C)

    sa = jnp.dot(attn.astype(bf16), wp_ref[...], preferred_element_type=f32) + bp_ref[...]
    # dropout(proj) is identity in eval mode

    # ---- Block: post-norm residuals ----
    x1 = _layernorm(x2d + sa, g1_ref[...], b1_ref[...])          # ln1(x + sa), f32

    # ---- feed-forward, chunked over the 4C hidden dim ----
    x1b = x1.astype(bf16)
    H = w1_ref.shape[1]
    chunk = H // N_FFN_CHUNKS                                    # 384 (lane multiple)
    ff = jnp.zeros((M, C), f32)
    for ci in range(N_FFN_CHUNKS):
        c0 = ci * chunk
        hc = jnp.dot(x1b, w1_ref[:, c0:c0 + chunk], preferred_element_type=f32)
        hc = jnp.maximum(hc + bb1_ref[:, c0:c0 + chunk], 0.0)    # ReLU
        ff = ff + jnp.dot(hc.astype(bf16), w2_ref[c0:c0 + chunk, :],
                          preferred_element_type=f32)
    ff = ff + bb2_ref[...]
    # ffwd dropout is identity in eval mode

    x2 = _layernorm(x1 + ff, g2_ref[...], b2_ref[...])           # ln2(x1 + ff)

    # ---- final layernorm + lm_head (lane-dense padded vocab) ----
    xf = _layernorm(x2, gf_ref[...], bf_ref[...])
    logits = jnp.dot(xf.astype(bf16), wlm_ref[...], preferred_element_type=f32) + blm_ref[...]

    out_ref[...] = logits.reshape(b_blk, T, Vp)


def init_params(key, vocab_size=VOCAB_SIZE, n_embd=N_EMBD, block_size=BLOCK_SIZE):
    """Deterministic synthetic init matching GPTLanguageModel._init_weights."""
    ks = jax.random.split(key, 10)
    std = 0.02
    p = {}
    p["tok_emb"] = std * jax.random.normal(ks[0], (vocab_size, n_embd), jnp.float32)
    p["pos_emb"] = std * jax.random.normal(ks[1], (block_size, n_embd), jnp.float32)
    # linear weights stored as (in, out) -> y = x @ W  (PyTorch stores (out, in))
    p["wq"] = std * jax.random.normal(ks[2], (n_embd, n_embd), jnp.float32)
    p["wk"] = std * jax.random.normal(ks[3], (n_embd, n_embd), jnp.float32)
    p["wv"] = std * jax.random.normal(ks[4], (n_embd, n_embd), jnp.float32)
    p["wp"] = std * jax.random.normal(ks[5], (n_embd, n_embd), jnp.float32)
    p["bp"] = jnp.zeros((1, n_embd), jnp.float32)
    p["w1"] = std * jax.random.normal(ks[6], (n_embd, 4 * n_embd), jnp.float32)
    p["bb1"] = jnp.zeros((1, 4 * n_embd), jnp.float32)
    p["w2"] = std * jax.random.normal(ks[7], (4 * n_embd, n_embd), jnp.float32)
    p["bb2"] = jnp.zeros((1, n_embd), jnp.float32)
    p["g1"] = jnp.ones((1, n_embd), jnp.float32)
    p["b1"] = jnp.zeros((1, n_embd), jnp.float32)
    p["g2"] = jnp.ones((1, n_embd), jnp.float32)
    p["b2"] = jnp.zeros((1, n_embd), jnp.float32)
    p["gf"] = jnp.ones((1, n_embd), jnp.float32)
    p["bf"] = jnp.zeros((1, n_embd), jnp.float32)
    p["wlm"] = std * jax.random.normal(ks[8], (n_embd, vocab_size), jnp.float32)
    p["blm"] = jnp.zeros((1, vocab_size), jnp.float32)
    return p


WEIGHT_ORDER = ["wq", "wk", "wv", "wp", "bp", "g1", "b1",
                "w1", "bb1", "w2", "bb2", "g2", "b2", "gf", "bf",
                "wlm", "blm"]


@functools.partial(jax.jit, static_argnames=())
def gpt_forward(index, params):
    """GPTLanguageModel.forward(index, targets=None) -> (logits, None)."""
    B, T = index.shape
    C = params["tok_emb"].shape[1]
    V = params["wlm"].shape[1]
    Vp = pl.cdiv(V, LANE) * LANE        # lane-dense padded vocab (65 -> 128)
    bf16 = jnp.bfloat16

    # glue: embedding gathers stay in plain JAX
    # TODO(synk): fuse the tok/pos embedding gather into the kernel (scalar-prefetch
    #             indices + one-hot matmul) to avoid the (B,T,C) f32 HBM round trip.
    tok_emb = params["tok_emb"][index]                    # (B, T, C)
    pos_emb = params["pos_emb"][:T]                       # (T, C)
    x = (tok_emb + pos_emb).astype(jnp.float32)           # (B, T, C)

    # kernel-ready weights: bf16 matmul operands, f32 biases / LN params,
    # attention scale folded into wq, lm_head padded to lane width.
    head_size = C // N_HEAD
    scale = head_size ** -0.5
    pad_v = Vp - V
    kw = {
        "wq": (params["wq"] * scale).astype(bf16),
        "wk": params["wk"].astype(bf16),
        "wv": params["wv"].astype(bf16),
        "wp": params["wp"].astype(bf16),
        "bp": params["bp"],
        "g1": params["g1"], "b1": params["b1"],
        "w1": params["w1"].astype(bf16), "bb1": params["bb1"],
        "w2": params["w2"].astype(bf16), "bb2": params["bb2"],
        "g2": params["g2"], "b2": params["b2"],
        "gf": params["gf"], "bf": params["bf"],
        "wlm": jnp.pad(params["wlm"], ((0, 0), (0, pad_v))).astype(bf16),
        "blm": jnp.pad(params["blm"], ((0, 0), (0, pad_v))),
    }
    weights = [kw[n] for n in WEIGHT_ORDER]

    # Pack 2 batch rows per grid step when possible (fills MXU M=2T on v6e/v7x);
    # for B == 2 keep b_blk = 1 so the parallel grid axis still spans both v7x TCs.
    b_blk = 2 if (B % 2 == 0 and B >= 4) else 1
    grid = (B // b_blk,)

    def full_spec(w):
        n = w.ndim
        return pl.BlockSpec(w.shape, lambda b: (0,) * n)
    # TODO(synk): mark grid-invariant weight specs single-buffered
    #             (pipeline_mode=pl.Buffered(1)) once verified on the target JAX
    #             version; VMEM headroom is ample here so it is not load-bearing.

    logits_p = pl.pallas_call(
        gpt_block_kernel,
        out_shape=jax.ShapeDtypeStruct((B, T, Vp), jnp.float32),
        grid_spec=pltpu.PrefetchScalarGridSpec(
            num_scalar_prefetch=0,
            grid=grid,
            in_specs=[pl.BlockSpec((b_blk, T, C), lambda b: (b, 0, 0))]
                     + [full_spec(w) for w in weights],
            out_specs=pl.BlockSpec((b_blk, T, Vp), lambda b: (b, 0, 0)),
        ),
        compiler_params=pltpu.CompilerParams(
            dimension_semantics=("parallel",),
            vmem_limit_bytes=32 * 1024 * 1024,   # right-sized; valid on v7x's 64 MiB
        ),
    )(x, *weights)

    logits = logits_p[:, :, :V]                           # drop vocab padding
    return logits, None   # targets=None -> loss is None


def gpt_forward_ref(index, params):
    """Pure-JAX f32 reference for correctness checking."""
    B, T = index.shape
    x = params["tok_emb"][index] + params["pos_emb"][:T]
    q = x @ params["wq"]
    k = x @ params["wk"]
    v = x @ params["wv"]
    wei = jnp.einsum("btc,bsc->bts", q, k) * (k.shape[-1] ** -0.5)
    mask = jnp.tril(jnp.ones((T, T), bool))
    wei = jnp.where(mask, wei, -jnp.inf)
    wei = jax.nn.softmax(wei, axis=-1)
    attn = jnp.einsum("bts,bsc->btc", wei, v)
    sa = attn @ params["wp"] + params["bp"]

    def ln(z, g, b):
        mu = jnp.mean(z, -1, keepdims=True)
        var = jnp.mean((z - mu) ** 2, -1, keepdims=True)
        return (z - mu) * jax.lax.rsqrt(var + LN_EPS) * g + b

    x1 = ln(x + sa, params["g1"], params["b1"])
    h = jnp.maximum(x1 @ params["w1"] + params["bb1"], 0.0)
    ff = h @ params["w2"] + params["bb2"]
    x2 = ln(x1 + ff, params["g2"], params["b2"])
    xf = ln(x2, params["gf"], params["bf"])
    return xf @ params["wlm"] + params["blm"]


if __name__ == "__main__":
    key = jax.random.PRNGKey(0)
    pkey, ikey = jax.random.split(key)

    params = init_params(pkey)

    # Exercise both paths: b_blk=1 (B=2) and packed b_blk=2 (B=4).
    for B, T in ((2, 8), (4, 8)):
        index = jax.random.randint(jax.random.fold_in(ikey, B), (B, T),
                                   0, VOCAB_SIZE, dtype=jnp.int32)

        logits, loss = gpt_forward(index, params)
        logits = jax.block_until_ready(logits)

        ref = gpt_forward_ref(index, params)
        assert logits.shape == (B, T, VOCAB_SIZE)
        assert loss is None
        max_err = float(jnp.max(jnp.abs(logits - ref)))
        # bf16 matmuls (f32 accumulation) vs f32 reference -> relaxed tolerance.
        assert jnp.allclose(logits, ref, rtol=3e-2, atol=3e-2), \
            f"mismatch vs reference (max abs err {max_err})"

    print("KERNEL_OK")
</pallas_src>

<mosaic_0001>
module attributes {stable_mosaic.version = 11 : i64} {
  func.func @gpt_block_kernel(%arg0: i32, %arg1: memref<1x8x384xf32, #tpu.memory_space<vmem>>, %arg2: memref<384x384xbf16, #tpu.memory_space<vmem>>, %arg3: memref<384x384xbf16, #tpu.memory_space<vmem>>, %arg4: memref<384x384xbf16, #tpu.memory_space<vmem>>, %arg5: memref<384x384xbf16, #tpu.memory_space<vmem>>, %arg6: memref<1x384xf32, #tpu.memory_space<vmem>>, %arg7: memref<1x384xf32, #tpu.memory_space<vmem>>, %arg8: memref<1x384xf32, #tpu.memory_space<vmem>>, %arg9: memref<384x1536xbf16, #tpu.memory_space<vmem>>, %arg10: memref<1x1536xf32, #tpu.memory_space<vmem>>, %arg11: memref<1536x384xbf16, #tpu.memory_space<vmem>>, %arg12: memref<1x384xf32, #tpu.memory_space<vmem>>, %arg13: memref<1x384xf32, #tpu.memory_space<vmem>>, %arg14: memref<1x384xf32, #tpu.memory_space<vmem>>, %arg15: memref<1x384xf32, #tpu.memory_space<vmem>>, %arg16: memref<1x384xf32, #tpu.memory_space<vmem>>, %arg17: memref<384x128xbf16, #tpu.memory_space<vmem>>, %arg18: memref<1x128xf32, #tpu.memory_space<vmem>>, %arg19: memref<1x8x128xf32, #tpu.memory_space<vmem>>) attributes {dimension_semantics = [#tpu.dimension_semantics<parallel>], iteration_bounds = array<i64: 2>, scalar_prefetch = 0 : i64, scratch_operands = 0 : i64, tpu.core_type = #tpu.core_type<tc>, window_params = [{transform_indices = @transform_0, window_bounds = array<i64: 1, 8, 384>}, {pipeline_mode = #tpu.pipeline_mode<synchronous>, transform_indices = @transform_1, window_bounds = array<i64: 384, 384>}, {pipeline_mode = #tpu.pipeline_mode<synchronous>, transform_indices = @transform_2, window_bounds = array<i64: 384, 384>}, {pipeline_mode = #tpu.pipeline_mode<synchronous>, transform_indices = @transform_3, window_bounds = array<i64: 384, 384>}, {pipeline_mode = #tpu.pipeline_mode<synchronous>, transform_indices = @transform_4, window_bounds = array<i64: 384, 384>}, {pipeline_mode = #tpu.pipeline_mode<synchronous>, transform_indices = @transform_5, window_bounds = array<i64: 1, 384>}, {pipeline_mode = #tpu.pipeline_mode<synchronous>, transform_indices = @transform_6, window_bounds = array<i64: 1, 384>}, {pipeline_mode = #tpu.pipeline_mode<synchronous>, transform_indices = @transform_7, window_bounds = array<i64: 1, 384>}, {pipeline_mode = #tpu.pipeline_mode<synchronous>, transform_indices = @transform_8, window_bounds = array<i64: 384, 1536>}, {pipeline_mode = #tpu.pipeline_mode<synchronous>, transform_indices = @transform_9, window_bounds = array<i64: 1, 1536>}, {pipeline_mode = #tpu.pipeline_mode<synchronous>, transform_indices = @transform_10, window_bounds = array<i64: 1536, 384>}, {pipeline_mode = #tpu.pipeline_mode<synchronous>, transform_indices = @transform_11, window_bounds = array<i64: 1, 384>}, {pipeline_mode = #tpu.pipeline_mode<synchronous>, transform_indices = @transform_12, window_bounds = array<i64: 1, 384>}, {pipeline_mode = #tpu.pipeline_mode<synchronous>, transform_indices = @transform_13, window_bounds = array<i64: 1, 384>}, {pipeline_mode = #tpu.pipeline_mode<synchronous>, transform_indices = @transform_14, window_bounds = array<i64: 1, 384>}, {pipeline_mode = #tpu.pipeline_mode<synchronous>, transform_indices = @transform_15, window_bounds = array<i64: 1, 384>}, {pipeline_mode = #tpu.pipeline_mode<synchronous>, transform_indices = @transform_16, window_bounds = array<i64: 384, 128>}, {pipeline_mode = #tpu.pipeline_mode<synchronous>, transform_indices = @transform_17, window_bounds = array<i64: 1, 128>}, {transform_indices = @transform_18, window_bounds = array<i64: 1, 8, 128>}]} {
    %c0 = arith.constant 0 : index
    %c0_0 = arith.constant 0 : index
    %c0_1 = arith.constant 0 : index
    %0 = vector.load %arg1[%c0, %c0_0, %c0_1] : memref<1x8x384xf32, #tpu.memory_space<vmem>>, vector<1x8x384xf32>
    %1 = vector.shape_cast %0 : vector<1x8x384xf32> to vector<8x384xf32>
    %2 = arith.truncf %1 : vector<8x384xf32> to vector<8x384xbf16>
    %c0_2 = arith.constant 0 : index
    %c0_3 = arith.constant 0 : index
    %3 = vector.load %arg2[%c0_2, %c0_3] : memref<384x384xbf16, #tpu.memory_space<vmem>>, vector<384x384xbf16>
    %cst = arith.constant dense<0.000000e+00> : vector<8x384xf32>
    %4 = tpu.matmul %2, %3, %cst {dimension_numbers = #tpu.dot_dimension_numbers<[1], [0], [0], [1], [0, 0, 1, 1], [], []>} : vector<8x384xbf16>, vector<384x384xbf16>, vector<8x384xf32> -> vector<8x384xf32>
    %c0_4 = arith.constant 0 : index
    %c0_5 = arith.constant 0 : index
    %5 = vector.load %arg3[%c0_4, %c0_5] : memref<384x384xbf16, #tpu.memory_space<vmem>>, vector<384x384xbf16>
    %cst_6 = arith.constant dense<0.000000e+00> : vector<8x384xf32>
    %6 = tpu.matmul %2, %5, %cst_6 {dimension_numbers = #tpu.dot_dimension_numbers<[1], [0], [0], [1], [0, 0, 1, 1], [], []>} : vector<8x384xbf16>, vector<384x384xbf16>, vector<8x384xf32> -> vector<8x384xf32>
    %c0_7 = arith.constant 0 : index
    %c0_8 = arith.constant 0 : index
    %7 = vector.load %arg4[%c0_7, %c0_8] : memref<384x384xbf16, #tpu.memory_space<vmem>>, vector<384x384xbf16>
    %cst_9 = arith.constant dense<0.000000e+00> : vector<8x384xf32>
    %8 = tpu.matmul %2, %7, %cst_9 {dimension_numbers = #tpu.dot_dimension_numbers<[1], [0], [0], [1], [0, 0, 1, 1], [], []>} : vector<8x384xbf16>, vector<384x384xbf16>, vector<8x384xf32> -> vector<8x384xf32>
    %9 = vector.shape_cast %4 : vector<8x384xf32> to vector<1x8x384xf32>
    %10 = arith.truncf %9 : vector<1x8x384xf32> to vector<1x8x384xbf16>
    %11 = vector.shape_cast %6 : vector<8x384xf32> to vector<1x8x384xf32>
    %12 = arith.truncf %11 : vector<1x8x384xf32> to vector<1x8x384xbf16>
    %13 = vector.shape_cast %8 : vector<8x384xf32> to vector<1x8x384xf32>
    %14 = arith.truncf %13 : vector<1x8x384xf32> to vector<1x8x384xbf16>
    "tpu.trace_start"() <{level = 10 : i32, message = "bqc,bkc->bqk"}> : () -> ()
    %cst_10 = arith.constant dense<0.000000e+00> : vector<1x8x8xf32>
    %15 = tpu.matmul %10, %12, %cst_10 {dimension_numbers = #tpu.dot_dimension_numbers<[2], [2], [1], [1], [0, 0, 0, 1, 1, 1], [0], [0]>} : vector<1x8x384xbf16>, vector<1x8x384xbf16>, vector<1x8x8xf32> -> vector<1x8x8xf32>
    "tpu.trace_stop"() : () -> ()
    %16 = tpu.iota {dimensions = array<i32: 1>} : vector<1x8x8xi32>
    %17 = tpu.iota {dimensions = array<i32: 2>} : vector<1x8x8xi32>
    %18 = arith.cmpi sge, %16, %17 : vector<1x8x8xi32>
    %cst_11 = arith.constant 0xFF800000 : f32
    %19 = vector.broadcast %cst_11 : f32 to vector<1x8x8xf32>
    %20 = arith.select %18, %15, %19 : vector<1x8x8xi1>, vector<1x8x8xf32>
    %cst_12 = arith.constant dense<0xFF800000> : vector<1x8xf32>
    %21 = vector.multi_reduction <maximumf>, %20, %cst_12 [2] : vector<1x8x8xf32> to vector<1x8xf32>
    %22 = vector.shape_cast %21 : vector<1x8xf32> to vector<1x8x1xf32>
    %23 = vector.broadcast %22 : vector<1x8x1xf32> to vector<1x8x8xf32>
    %24 = arith.subf %20, %23 : vector<1x8x8xf32>
    %25 = math.exp %24 : vector<1x8x8xf32>
    %cst_13 = arith.constant dense<0.000000e+00> : vector<1x8xf32>
    %26 = vector.multi_reduction <add>, %25, %cst_13 [2] : vector<1x8x8xf32> to vector<1x8xf32>
    %27 = vector.shape_cast %26 : vector<1x8xf32> to vector<1x8x1xf32>
    %28 = tpu.reciprocal %27 {approx = true} : vector<1x8x1xf32> -> vector<1x8x1xf32>
    %29 = vector.broadcast %28 : vector<1x8x1xf32> to vector<1x8x8xf32>
    %30 = arith.mulf %25, %29 : vector<1x8x8xf32>
    %31 = arith.truncf %30 : vector<1x8x8xf32> to vector<1x8x8xbf16>
    "tpu.trace_start"() <{level = 10 : i32, message = "bqk,bkc->bqc"}> : () -> ()
    %cst_14 = arith.constant dense<0.000000e+00> : vector<1x8x384xf32>
    %32 = tpu.matmul %31, %14, %cst_14 {dimension_numbers = #tpu.dot_dimension_numbers<[2], [1], [1], [2], [0, 0, 0, 1, 1, 2], [0], [0]>} : vector<1x8x8xbf16>, vector<1x8x384xbf16>, vector<1x8x384xf32> -> vector<1x8x384xf32>
    "tpu.trace_stop"() : () -> ()
    %33 = vector.shape_cast %32 : vector<1x8x384xf32> to vector<8x384xf32>
    %34 = arith.truncf %33 : vector<8x384xf32> to vector<8x384xbf16>
    %c0_15 = arith.constant 0 : index
    %c0_16 = arith.constant 0 : index
    %35 = vector.load %arg5[%c0_15, %c0_16] : memref<384x384xbf16, #tpu.memory_space<vmem>>, vector<384x384xbf16>
    %cst_17 = arith.constant dense<0.000000e+00> : vector<8x384xf32>
    %36 = tpu.matmul %34, %35, %cst_17 {dimension_numbers = #tpu.dot_dimension_numbers<[1], [0], [0], [1], [0, 0, 1, 1], [], []>} : vector<8x384xbf16>, vector<384x384xbf16>, vector<8x384xf32> -> vector<8x384xf32>
    %c0_18 = arith.constant 0 : index
    %c0_19 = arith.constant 0 : index
    %37 = vector.load %arg6[%c0_18, %c0_19] : memref<1x384xf32, #tpu.memory_space<vmem>>, vector<1x384xf32>
    %38 = vector.broadcast %37 : vector<1x384xf32> to vector<8x384xf32>
    %39 = arith.addf %36, %38 : vector<8x384xf32>
    %40 = arith.addf %1, %39 : vector<8x384xf32>
    %c0_20 = arith.constant 0 : index
    %c0_21 = arith.constant 0 : index
    %41 = vector.load %arg7[%c0_20, %c0_21] : memref<1x384xf32, #tpu.memory_space<vmem>>, vector<1x384xf32>
    %c0_22 = arith.constant 0 : index
    %c0_23 = arith.constant 0 : index
    %42 = vector.load %arg8[%c0_22, %c0_23] : memref<1x384xf32, #tpu.memory_space<vmem>>, vector<1x384xf32>
    %cst_24 = arith.constant dense<0.000000e+00> : vector<8xf32>
    %43 = vector.multi_reduction <add>, %40, %cst_24 [1] : vector<8x384xf32> to vector<8xf32>
    %44 = vector.shape_cast %43 : vector<8xf32> to vector<8x1xf32>
    %cst_25 = arith.constant 3.840000e+02 : f32
    %45 = vector.broadcast %cst_25 : f32 to vector<8x1xf32>
    %46 = arith.divf %44, %45 : vector<8x1xf32>
    %47 = vector.broadcast %46 : vector<8x1xf32> to vector<8x384xf32>
    %48 = arith.subf %40, %47 : vector<8x384xf32>
    %49 = arith.mulf %48, %48 : vector<8x384xf32>
    %cst_26 = arith.constant dense<0.000000e+00> : vector<8xf32>
    %50 = vector.multi_reduction <add>, %49, %cst_26 [1] : vector<8x384xf32> to vector<8xf32>
    %51 = vector.shape_cast %50 : vector<8xf32> to vector<8x1xf32>
    %cst_27 = arith.constant 3.840000e+02 : f32
    %52 = vector.broadcast %cst_27 : f32 to vector<8x1xf32>
    %53 = arith.divf %51, %52 : vector<8x1xf32>
    %54 = vector.broadcast %46 : vector<8x1xf32> to vector<8x384xf32>
    %55 = arith.subf %40, %54 : vector<8x384xf32>
    %cst_28 = arith.constant 9.99999974E-6 : f32
    %56 = vector.broadcast %cst_28 : f32 to vector<8x1xf32>
    %57 = arith.addf %53, %56 : vector<8x1xf32>
    %58 = math.rsqrt %57 : vector<8x1xf32>
    %59 = vector.broadcast %58 : vector<8x1xf32> to vector<8x384xf32>
    %60 = arith.mulf %55, %59 : vector<8x384xf32>
    %61 = vector.broadcast %41 : vector<1x384xf32> to vector<8x384xf32>
    %62 = arith.mulf %60, %61 : vector<8x384xf32>
    %63 = vector.broadcast %42 : vector<1x384xf32> to vector<8x384xf32>
    %64 = arith.addf %62, %63 : vector<8x384xf32>
    %65 = arith.truncf %64 : vector<8x384xf32> to vector<8x384xbf16>
    %cst_29 = arith.constant 0.000000e+00 : f32
    %66 = vector.broadcast %cst_29 : f32 to vector<8x384xf32>
    %c0_30 = arith.constant 0 : index
    %c0_31 = arith.constant 0 : index
    %67 = vector.load %arg9[%c0_30, %c0_31] : memref<384x1536xbf16, #tpu.memory_space<vmem>>, vector<384x384xbf16>
    %cst_32 = arith.constant dense<0.000000e+00> : vector<8x384xf32>
    %68 = tpu.matmul %65, %67, %cst_32 {dimension_numbers = #tpu.dot_dimension_numbers<[1], [0], [0], [1], [0, 0, 1, 1], [], []>} : vector<8x384xbf16>, vector<384x384xbf16>, vector<8x384xf32> -> vector<8x384xf32>
    %c0_33 = arith.constant 0 : index
    %c0_34 = arith.constant 0 : index
    %69 = vector.load %arg10[%c0_33, %c0_34] : memref<1x1536xf32, #tpu.memory_space<vmem>>, vector<1x384xf32>
    %70 = vector.broadcast %69 : vector<1x384xf32> to vector<8x384xf32>
    %71 = arith.addf %68, %70 : vector<8x384xf32>
    %cst_35 = arith.constant 0.000000e+00 : f32
    %72 = vector.broadcast %cst_35 : f32 to vector<8x384xf32>
    %73 = arith.maximumf %71, %72 : vector<8x384xf32>
    %74 = arith.truncf %73 : vector<8x384xf32> to vector<8x384xbf16>
    %c0_36 = arith.constant 0 : index
    %c0_37 = arith.constant 0 : index
    %75 = vector.load %arg11[%c0_36, %c0_37] : memref<1536x384xbf16, #tpu.memory_space<vmem>>, vector<384x384xbf16>
    %cst_38 = arith.constant dense<0.000000e+00> : vector<8x384xf32>
    %76 = tpu.matmul %74, %75, %cst_38 {dimension_numbers = #tpu.dot_dimension_numbers<[1], [0], [0], [1], [0, 0, 1, 1], [], []>} : vector<8x384xbf16>, vector<384x384xbf16>, vector<8x384xf32> -> vector<8x384xf32>
    %77 = arith.addf %66, %76 : vector<8x384xf32>
    %c0_39 = arith.constant 0 : index
    %c384 = arith.constant 384 : index
    %78 = vector.load %arg9[%c0_39, %c384] : memref<384x1536xbf16, #tpu.memory_space<vmem>>, vector<384x384xbf16>
    %cst_40 = arith.constant dense<0.000000e+00> : vector<8x384xf32>
    %79 = tpu.matmul %65, %78, %cst_40 {dimension_numbers = #tpu.dot_dimension_numbers<[1], [0], [0], [1], [0, 0, 1, 1], [], []>} : vector<8x384xbf16>, vector<384x384xbf16>, vector<8x384xf32> -> vector<8x384xf32>
    %c0_41 = arith.constant 0 : index
    %c384_42 = arith.constant 384 : index
    %80 = vector.load %arg10[%c0_41, %c384_42] : memref<1x1536xf32, #tpu.memory_space<vmem>>, vector<1x384xf32>
    %81 = vector.broadcast %80 : vector<1x384xf32> to vector<8x384xf32>
    %82 = arith.addf %79, %81 : vector<8x384xf32>
    %cst_43 = arith.constant 0.000000e+00 : f32
    %83 = vector.broadcast %cst_43 : f32 to vector<8x384xf32>
    %84 = arith.maximumf %82, %83 : vector<8x384xf32>
    %85 = arith.truncf %84 : vector<8x384xf32> to vector<8x384xbf16>
    %c384_44 = arith.constant 384 : index
    %c0_45 = arith.constant 0 : index
    %86 = vector.load %arg11[%c384_44, %c0_45] : memref<1536x384xbf16, #tpu.memory_space<vmem>>, vector<384x384xbf16>
    %cst_46 = arith.constant dense<0.000000e+00> : vector<8x384xf32>
    %87 = tpu.matmul %85, %86, %cst_46 {dimension_numbers = #tpu.dot_dimension_numbers<[1], [0], [0], [1], [0, 0, 1, 1], [], []>} : vector<8x384xbf16>, vector<384x384xbf16>, vector<8x384xf32> -> vector<8x384xf32>
    %88 = arith.addf %77, %87 : vector<8x384xf32>
    %c0_47 = arith.constant 0 : index
    %c768 = arith.constant 768 : index
    %89 = vector.load %arg9[%c0_47, %c768] : memref<384x1536xbf16, #tpu.memory_space<vmem>>, vector<384x384xbf16>
    %cst_48 = arith.constant dense<0.000000e+00> : vector<8x384xf32>
    %90 = tpu.matmul %65, %89, %cst_48 {dimension_numbers = #tpu.dot_dimension_numbers<[1], [0], [0], [1], [0, 0, 1, 1], [], []>} : vector<8x384xbf16>, vector<384x384xbf16>, vector<8x384xf32> -> vector<8x384xf32>
    %c0_49 = arith.constant 0 : index
    %c768_50 = arith.constant 768 : index
    %91 = vector.load %arg10[%c0_49, %c768_50] : memref<1x1536xf32, #tpu.memory_space<vmem>>, vector<1x384xf32>
    %92 = vector.broadcast %91 : vector<1x384xf32> to vector<8x384xf32>
    %93 = arith.addf %90, %92 : vector<8x384xf32>
    %cst_51 = arith.constant 0.000000e+00 : f32
    %94 = vector.broadcast %cst_51 : f32 to vector<8x384xf32>
    %95 = arith.maximumf %93, %94 : vector<8x384xf32>
    %96 = arith.truncf %95 : vector<8x384xf32> to vector<8x384xbf16>
    %c768_52 = arith.constant 768 : index
    %c0_53 = arith.constant 0 : index
    %97 = vector.load %arg11[%c768_52, %c0_53] : memref<1536x384xbf16, #tpu.memory_space<vmem>>, vector<384x384xbf16>
    %cst_54 = arith.constant dense<0.000000e+00> : vector<8x384xf32>
    %98 = tpu.matmul %96, %97, %cst_54 {dimension_numbers = #tpu.dot_dimension_numbers<[1], [0], [0], [1], [0, 0, 1, 1], [], []>} : vector<8x384xbf16>, vector<384x384xbf16>, vector<8x384xf32> -> vector<8x384xf32>
    %99 = arith.addf %88, %98 : vector<8x384xf32>
    %c0_55 = arith.constant 0 : index
    %c1152 = arith.constant 1152 : index
    %100 = vector.load %arg9[%c0_55, %c1152] : memref<384x1536xbf16, #tpu.memory_space<vmem>>, vector<384x384xbf16>
    %cst_56 = arith.constant dense<0.000000e+00> : vector<8x384xf32>
    %101 = tpu.matmul %65, %100, %cst_56 {dimension_numbers = #tpu.dot_dimension_numbers<[1], [0], [0], [1], [0, 0, 1, 1], [], []>} : vector<8x384xbf16>, vector<384x384xbf16>, vector<8x384xf32> -> vector<8x384xf32>
    %c0_57 = arith.constant 0 : index
    %c1152_58 = arith.constant 1152 : index
    %102 = vector.load %arg10[%c0_57, %c1152_58] : memref<1x1536xf32, #tpu.memory_space<vmem>>, vector<1x384xf32>
    %103 = vector.broadcast %102 : vector<1x384xf32> to vector<8x384xf32>
    %104 = arith.addf %101, %103 : vector<8x384xf32>
    %cst_59 = arith.constant 0.000000e+00 : f32
    %105 = vector.broadcast %cst_59 : f32 to vector<8x384xf32>
    %106 = arith.maximumf %104, %105 : vector<8x384xf32>
    %107 = arith.truncf %106 : vector<8x384xf32> to vector<8x384xbf16>
    %c1152_60 = arith.constant 1152 : index
    %c0_61 = arith.constant 0 : index
    %108 = vector.load %arg11[%c1152_60, %c0_61] : memref<1536x384xbf16, #tpu.memory_space<vmem>>, vector<384x384xbf16>
    %cst_62 = arith.constant dense<0.000000e+00> : vector<8x384xf32>
    %109 = tpu.matmul %107, %108, %cst_62 {dimension_numbers = #tpu.dot_dimension_numbers<[1], [0], [0], [1], [0, 0, 1, 1], [], []>} : vector<8x384xbf16>, vector<384x384xbf16>, vector<8x384xf32> -> vector<8x384xf32>
    %110 = arith.addf %99, %109 : vector<8x384xf32>
    %c0_63 = arith.constant 0 : index
    %c0_64 = arith.constant 0 : index
    %111 = vector.load %arg12[%c0_63, %c0_64] : memref<1x384xf32, #tpu.memory_space<vmem>>, vector<1x384xf32>
    %112 = vector.broadcast %111 : vector<1x384xf32> to vector<8x384xf32>
    %113 = arith.addf %110, %112 : vector<8x384xf32>
    %114 = arith.addf %64, %113 : vector<8x384xf32>
    %c0_65 = arith.constant 0 : index
    %c0_66 = arith.constant 0 : index
    %115 = vector.load %arg13[%c0_65, %c0_66] : memref<1x384xf32, #tpu.memory_space<vmem>>, vector<1x384xf32>
    %c0_67 = arith.constant 0 : index
    %c0_68 = arith.constant 0 : index
    %116 = vector.load %arg14[%c0_67, %c0_68] : memref<1x384xf32, #tpu.memory_space<vmem>>, vector<1x384xf32>
    %cst_69 = arith.constant dense<0.000000e+00> : vector<8xf32>
    %117 = vector.multi_reduction <add>, %114, %cst_69 [1] : vector<8x384xf32> to vector<8xf32>
    %118 = vector.shape_cast %117 : vector<8xf32> to vector<8x1xf32>
    %cst_70 = arith.constant 3.840000e+02 : f32
    %119 = vector.broadcast %cst_70 : f32 to vector<8x1xf32>
    %120 = arith.divf %118, %119 : vector<8x1xf32>
    %121 = vector.broadcast %120 : vector<8x1xf32> to vector<8x384xf32>
    %122 = arith.subf %114, %121 : vector<8x384xf32>
    %123 = arith.mulf %122, %122 : vector<8x384xf32>
    %cst_71 = arith.constant dense<0.000000e+00> : vector<8xf32>
    %124 = vector.multi_reduction <add>, %123, %cst_71 [1] : vector<8x384xf32> to vector<8xf32>
    %125 = vector.shape_cast %124 : vector<8xf32> to vector<8x1xf32>
    %cst_72 = arith.constant 3.840000e+02 : f32
    %126 = vector.broadcast %cst_72 : f32 to vector<8x1xf32>
    %127 = arith.divf %125, %126 : vector<8x1xf32>
    %128 = vector.broadcast %120 : vector<8x1xf32> to vector<8x384xf32>
    %129 = arith.subf %114, %128 : vector<8x384xf32>
    %cst_73 = arith.constant 9.99999974E-6 : f32
    %130 = vector.broadcast %cst_73 : f32 to vector<8x1xf32>
    %131 = arith.addf %127, %130 : vector<8x1xf32>
    %132 = math.rsqrt %131 : vector<8x1xf32>
    %133 = vector.broadcast %132 : vector<8x1xf32> to vector<8x384xf32>
    %134 = arith.mulf %129, %133 : vector<8x384xf32>
    %135 = vector.broadcast %115 : vector<1x384xf32> to vector<8x384xf32>
    %136 = arith.mulf %134, %135 : vector<8x384xf32>
    %137 = vector.broadcast %116 : vector<1x384xf32> to vector<8x384xf32>
    %138 = arith.addf %136, %137 : vector<8x384xf32>
    %c0_74 = arith.constant 0 : index
    %c0_75 = arith.constant 0 : index
    %139 = vector.load %arg15[%c0_74, %c0_75] : memref<1x384xf32, #tpu.memory_space<vmem>>, vector<1x384xf32>
    %c0_76 = arith.constant 0 : index
    %c0_77 = arith.constant 0 : index
    %140 = vector.load %arg16[%c0_76, %c0_77] : memref<1x384xf32, #tpu.memory_space<vmem>>, vector<1x384xf32>
    %cst_78 = arith.constant dense<0.000000e+00> : vector<8xf32>
    %141 = vector.multi_reduction <add>, %138, %cst_78 [1] : vector<8x384xf32> to vector<8xf32>
    %142 = vector.shape_cast %141 : vector<8xf32> to vector<8x1xf32>
    %cst_79 = arith.constant 3.840000e+02 : f32
    %143 = vector.broadcast %cst_79 : f32 to vector<8x1xf32>
    %144 = arith.divf %142, %143 : vector<8x1xf32>
    %145 = vector.broadcast %144 : vector<8x1xf32> to vector<8x384xf32>
    %146 = arith.subf %138, %145 : vector<8x384xf32>
    %147 = arith.mulf %146, %146 : vector<8x384xf32>
    %cst_80 = arith.constant dense<0.000000e+00> : vector<8xf32>
    %148 = vector.multi_reduction <add>, %147, %cst_80 [1] : vector<8x384xf32> to vector<8xf32>
    %149 = vector.shape_cast %148 : vector<8xf32> to vector<8x1xf32>
    %cst_81 = arith.constant 3.840000e+02 : f32
    %150 = vector.broadcast %cst_81 : f32 to vector<8x1xf32>
    %151 = arith.divf %149, %150 : vector<8x1xf32>
    %152 = vector.broadcast %144 : vector<8x1xf32> to vector<8x384xf32>
    %153 = arith.subf %138, %152 : vector<8x384xf32>
    %cst_82 = arith.constant 9.99999974E-6 : f32
    %154 = vector.broadcast %cst_82 : f32 to vector<8x1xf32>
    %155 = arith.addf %151, %154 : vector<8x1xf32>
    %156 = math.rsqrt %155 : vector<8x1xf32>
    %157 = vector.broadcast %156 : vector<8x1xf32> to vector<8x384xf32>
    %158 = arith.mulf %153, %157 : vector<8x384xf32>
    %159 = vector.broadcast %139 : vector<1x384xf32> to vector<8x384xf32>
    %160 = arith.mulf %158, %159 : vector<8x384xf32>
    %161 = vector.broadcast %140 : vector<1x384xf32> to vector<8x384xf32>
    %162 = arith.addf %160, %161 : vector<8x384xf32>
    %163 = arith.truncf %162 : vector<8x384xf32> to vector<8x384xbf16>
    %c0_83 = arith.constant 0 : index
    %c0_84 = arith.constant 0 : index
    %164 = vector.load %arg17[%c0_83, %c0_84] : memref<384x128xbf16, #tpu.memory_space<vmem>>, vector<384x128xbf16>
    %cst_85 = arith.constant dense<0.000000e+00> : vector<8x128xf32>
    %165 = tpu.matmul %163, %164, %cst_85 {dimension_numbers = #tpu.dot_dimension_numbers<[1], [0], [0], [1], [0, 0, 1, 1], [], []>} : vector<8x384xbf16>, vector<384x128xbf16>, vector<8x128xf32> -> vector<8x128xf32>
    %c0_86 = arith.constant 0 : index
    %c0_87 = arith.constant 0 : index
    %166 = vector.load %arg18[%c0_86, %c0_87] : memref<1x128xf32, #tpu.memory_space<vmem>>, vector<1x128xf32>
    %167 = vector.broadcast %166 : vector<1x128xf32> to vector<8x128xf32>
    %168 = arith.addf %165, %167 : vector<8x128xf32>
    %169 = vector.shape_cast %168 : vector<8x128xf32> to vector<1x8x128xf32>
    %c0_88 = arith.constant 0 : index
    %c0_89 = arith.constant 0 : index
    %c0_90 = arith.constant 0 : index
    %170 = vector.load %arg19[%c0_88, %c0_89, %c0_90] : memref<1x8x128xf32, #tpu.memory_space<vmem>>, vector<1x8x128xf32>
    tpu.vector_store %arg19[%c0_88, %c0_89, %c0_90], %169 {strides = array<i32>} : memref<1x8x128xf32, #tpu.memory_space<vmem>>, vector<1x8x128xf32>,
    return
  }
  func.func @transform_0(%arg0: i32) -> (i32, i32, i32) {
    %c0_i32 = arith.constant 0 : i32
    %c0_i32_0 = arith.constant 0 : i32
    %c0_i32_1 = arith.constant 0 : i32
    return %arg0, %c0_i32, %c0_i32_0 : i32, i32, i32
  }
  func.func @transform_1(%arg0: i32) -> (i32, i32) {
    %c0_i32 = arith.constant 0 : i32
    %c0_i32_0 = arith.constant 0 : i32
    %c0_i32_1 = arith.constant 0 : i32
    return %c0_i32, %c0_i32_0 : i32, i32
  }
  func.func @transform_2(%arg0: i32) -> (i32, i32) {
    %c0_i32 = arith.constant 0 : i32
    %c0_i32_0 = arith.constant 0 : i32
    %c0_i32_1 = arith.constant 0 : i32
    return %c0_i32, %c0_i32_0 : i32, i32
  }
  func.func @transform_3(%arg0: i32) -> (i32, i32) {
    %c0_i32 = arith.constant 0 : i32
    %c0_i32_0 = arith.constant 0 : i32
    %c0_i32_1 = arith.constant 0 : i32
    return %c0_i32, %c0_i32_0 : i32, i32
  }
  func.func @transform_4(%arg0: i32) -> (i32, i32) {
    %c0_i32 = arith.constant 0 : i32
    %c0_i32_0 = arith.constant 0 : i32
    %c0_i32_1 = arith.constant 0 : i32
    return %c0_i32, %c0_i32_0 : i32, i32
  }
  func.func @transform_5(%arg0: i32) -> (i32, i32) {
    %c0_i32 = arith.constant 0 : i32
    %c0_i32_0 = arith.constant 0 : i32
    %c0_i32_1 = arith.constant 0 : i32
    return %c0_i32, %c0_i32_0 : i32, i32
  }
  func.func @transform_6(%arg0: i32) -> (i32, i32) {
    %c0_i32 = arith.constant 0 : i32
    %c0_i32_0 = arith.constant 0 : i32
    %c0_i32_1 = arith.constant 0 : i32
    return %c0_i32, %c0_i32_0 : i32, i32
  }
  func.func @transform_7(%arg0: i32) -> (i32, i32) {
    %c0_i32 = arith.constant 0 : i32
    %c0_i32_0 = arith.constant 0 : i32
    %c0_i32_1 = arith.constant 0 : i32
    return %c0_i32, %c0_i32_0 : i32, i32
  }
  func.func @transform_8(%arg0: i32) -> (i32, i32) {
    %c0_i32 = arith.constant 0 : i32
    %c0_i32_0 = arith.constant 0 : i32
    %c0_i32_1 = arith.constant 0 : i32
    return %c0_i32, %c0_i32_0 : i32, i32
  }
  func.func @transform_9(%arg0: i32) -> (i32, i32) {
    %c0_i32 = arith.constant 0 : i32
    %c0_i32_0 = arith.constant 0 : i32
    %c0_i32_1 = arith.constant 0 : i32
    return %c0_i32, %c0_i32_0 : i32, i32
  }
  func.func @transform_10(%arg0: i32) -> (i32, i32) {
    %c0_i32 = arith.constant 0 : i32
    %c0_i32_0 = arith.constant 0 : i32
    %c0_i32_1 = arith.constant 0 : i32
    return %c0_i32, %c0_i32_0 : i32, i32
  }
  func.func @transform_11(%arg0: i32) -> (i32, i32) {
    %c0_i32 = arith.constant 0 : i32
    %c0_i32_0 = arith.constant 0 : i32
    %c0_i32_1 = arith.constant 0 : i32
    return %c0_i32, %c0_i32_0 : i32, i32
  }
  func.func @transform_12(%arg0: i32) -> (i32, i32) {
    %c0_i32 = arith.constant 0 : i32
    %c0_i32_0 = arith.constant 0 : i32
    %c0_i32_1 = arith.constant 0 : i32
    return %c0_i32, %c0_i32_0 : i32, i32
  }
  func.func @transform_13(%arg0: i32) -> (i32, i32) {
    %c0_i32 = arith.constant 0 : i32
    %c0_i32_0 = arith.constant 0 : i32
    %c0_i32_1 = arith.constant 0 : i32
    return %c0_i32, %c0_i32_0 : i32, i32
  }
  func.func @transform_14(%arg0: i32) -> (i32, i32) {
    %c0_i32 = arith.constant 0 : i32
    %c0_i32_0 = arith.constant 0 : i32
    %c0_i32_1 = arith.constant 0 : i32
    return %c0_i32, %c0_i32_0 : i32, i32
  }
  func.func @transform_15(%arg0: i32) -> (i32, i32) {
    %c0_i32 = arith.constant 0 : i32
    %c0_i32_0 = arith.constant 0 : i32
    %c0_i32_1 = arith.constant 0 : i32
    return %c0_i32, %c0_i32_0 : i32, i32
  }
  func.func @transform_16(%arg0: i32) -> (i32, i32) {
    %c0_i32 = arith.constant 0 : i32
    %c0_i32_0 = arith.constant 0 : i32
    %c0_i32_1 = arith.constant 0 : i32
    return %c0_i32, %c0_i32_0 : i32, i32
  }
  func.func @transform_17(%arg0: i32) -> (i32, i32) {
    %c0_i32 = arith.constant 0 : i32
    %c0_i32_0 = arith.constant 0 : i32
    %c0_i32_1 = arith.constant 0 : i32
    return %c0_i32, %c0_i32_0 : i32, i32
  }
  func.func @transform_18(%arg0: i32) -> (i32, i32, i32) {
    %c0_i32 = arith.constant 0 : i32
    %c0_i32_0 = arith.constant 0 : i32
    %c0_i32_1 = arith.constant 0 : i32
    return %arg0, %c0_i32, %c0_i32_0 : i32, i32, i32
  }
}

</mosaic_0001>

<llo_original>
// kernel: gpt_forward.1
$region0: #{gpt_forward.1}
  #allocation0 [shape = 'u32[]', space=smem, size = 0x4, offset = 0x4, fixed_abs, tag = 'smem constant byte address 0x4 - core index']
  #allocation1 [shape = 'u32[72,128]{1,0:T(1,128)}', space=vmem, size = 0x9000, scoped, tag = 'internal scratch']
  %s0 = inlined_call_operand.vmem [shape: f32[2,8,384], index: 0, kind: input, shape index: {}]
  %s1 = inlined_call_operand.vmem [shape: bf16[384,384], index: 1, kind: input, shape index: {}]
  %s2 = inlined_call_operand.vmem [shape: bf16[384,384], index: 2, kind: input, shape index: {}]
  %s3 = inlined_call_operand.vmem [shape: bf16[384,384], index: 3, kind: input, shape index: {}]
  %s4 = inlined_call_operand.vmem [shape: bf16[384,384], index: 4, kind: input, shape index: {}]
  %s5 = inlined_call_operand.vmem [shape: f32[1,384], index: 5, kind: input, shape index: {}]
  %s6 = inlined_call_operand.vmem [shape: f32[1,384], index: 6, kind: input, shape index: {}]
  %s7 = inlined_call_operand.vmem [shape: f32[1,384], index: 7, kind: input, shape index: {}]
  %s8 = inlined_call_operand.vmem [shape: bf16[384,1536], index: 8, kind: input, shape index: {}]
  %s9 = inlined_call_operand.vmem [shape: f32[1,1536], index: 9, kind: input, shape index: {}]
  %s10 = inlined_call_operand.vmem [shape: bf16[1536,384], index: 10, kind: input, shape index: {}]
  %s11 = inlined_call_operand.vmem [shape: f32[1,384], index: 11, kind: input, shape index: {}]
  %s12 = inlined_call_operand.vmem [shape: f32[1,384], index: 12, kind: input, shape index: {}]
  %s13 = inlined_call_operand.vmem [shape: f32[1,384], index: 13, kind: input, shape index: {}]
  %s14 = inlined_call_operand.vmem [shape: f32[1,384], index: 14, kind: input, shape index: {}]
  %s15 = inlined_call_operand.vmem [shape: f32[1,384], index: 15, kind: input, shape index: {}]
  %s16 = inlined_call_operand.vmem [shape: bf16[384,128], index: 16, kind: input, shape index: {}]
  %s17 = inlined_call_operand.vmem [shape: f32[1,128], index: 17, kind: input, shape index: {}]
  %s18 = inlined_call_operand.hbm [shape: f32[2,8,128], index: 18, kind: output, shape index: {}]
  %s19 = sld [smem:[#allocation0]]
  $region105: #{gpt_forward.1} parent=0
    _
  %s21 = ssub.s32 1, %s19
  %s22 = scalar_select 0, %s21, %s19
  $region1: #{gpt_forward.1} parent=0
    #allocation2 [shape = 'u8[8192]{0}', space=vmem, size = 0x2000, scoped, tag = 'output window, operand 0']
    #allocation3 [shape = 's32[2]{0}', space=sflag, size = 0x8, scoped, tag = 'scoped memory for gpt_forward.1']
    %23 = vsyncpa [#allocation3], 0
    %s24 = scalar_lea.sflag [#allocation3], 1
    %25 = vsyncpa %s24, 0
    loop: start=0, step=1, limit=4
    $region2: #{gpt_forward.1} parent=1 // loop_pre_header
      _
    $region3: #{gpt_forward.1} parent=1 // loop_header
      %s27 = sphi 0, %s31
      %p28 = scmp.ge.s32.totalorder %s27, 4
      %s37 = sphi 0, %s39
      %s40 = sphi 0, %s37
      %s41 = sphi 0, %s40
      %s57 = sphi 0, %s41
      %s61 = sphi 0, %s61
      %s63 = sphi 0, %s61
      %s64 = sphi 0, %s63
      %s78 = sphi 0, %s64
      %s82 = sphi 0, %s82
      %s84 = sphi 0, %s82
      %s85 = sphi 0, %s84
      %s99 = sphi 0, %s85
      %s103 = sphi 0, %s103
      %s105 = sphi 0, %s103
      %s106 = sphi 0, %s105
      %s120 = sphi 0, %s106
      %s124 = sphi 0, %s124
      %s126 = sphi 0, %s124
      %s127 = sphi 0, %s126
      %s141 = sphi 0, %s127
      %s145 = sphi 0, %s145
      %s147 = sphi 0, %s145
      %s148 = sphi 0, %s147
      %s162 = sphi 0, %s148
      %s166 = sphi 0, %s166
      %s168 = sphi 0, %s166
      %s169 = sphi 0, %s168
      %s183 = sphi 0, %s169
      %s187 = sphi 0, %s187
      %s189 = sphi 0, %s187
      %s190 = sphi 0, %s189
      %s204 = sphi 0, %s190
      %s208 = sphi 0, %s208
      %s210 = sphi 0, %s208
      %s211 = sphi 0, %s210
      %s225 = sphi 0, %s211
      %s229 = sphi 0, %s229
      %s231 = sphi 0, %s229
      %s232 = sphi 0, %s231
      %s246 = sphi 0, %s232
      %s250 = sphi 0, %s250
      %s252 = sphi 0, %s250
      %s253 = sphi 0, %s252
      %s267 = sphi 0, %s253
      %s271 = sphi 0, %s271
      %s273 = sphi 0, %s271
      %s274 = sphi 0, %s273
      %s288 = sphi 0, %s274
      %s292 = sphi 0, %s292
      %s294 = sphi 0, %s292
      %s295 = sphi 0, %s294
      %s309 = sphi 0, %s295
      %s313 = sphi 0, %s313
      %s315 = sphi 0, %s313
      %s316 = sphi 0, %s315
      %s330 = sphi 0, %s316
      %s334 = sphi 0, %s334
      %s336 = sphi 0, %s334
      %s337 = sphi 0, %s336
      %s351 = sphi 0, %s337
      %s355 = sphi 0, %s355
      %s357 = sphi 0, %s355
      %s358 = sphi 0, %s357
      %s372 = sphi 0, %s358
      %s376 = sphi 0, %s376
      %s378 = sphi 0, %s376
      %s379 = sphi 0, %s378
      %s393 = sphi 0, %s379
      %s397 = sphi 0, %s397
      %s399 = sphi 0, %s397
      %s400 = sphi 0, %s399
      %s414 = sphi 0, %s400
      %s420 = sphi 0, %s422
      %s423 = sphi 0, %s420
      %s424 = sphi 0, %s423
      %s440 = sphi 0, %s424
    $region4: #{gpt_forward.1} parent=1 // loop_header_branch
      %30 = sbr.rel (%p28) target = $region8
    $region5: #{gpt_forward.1} parent=1 // loop_body
      %s32 = ssub.s32 %s27, 1
      %s33 = ssub.s32 %s27, 2
      %s34 = sadd.s32 %s27, 1
      %s35 = ssub.s32 %s27, %s34
      %p36 = scmp.eq.s32.totalorder %s35, 0
      %s38 = sadd.s32 %s37, 1
      %s39 = scalar_select %p36, %s37, %s38
      %p42 = pneg %p36
      %p43 = scmp.eq.s32.totalorder %s27, 1
      %p44 = por %p42, %p43
      %p45 = scmp.ne.s32.totalorder %s37, %s40
      %p46 = scmp.eq.s32.totalorder %s27, 0
      %p47 = por %p45, %p46
      %p48 = scmp.ne.s32.totalorder %s37, %s40
      %p49 = scmp.eq.s32.totalorder %s32, 1
      %p50 = por %p48, %p49
      %p51 = scmp.ne.s32.totalorder %s40, %s41
      %p52 = scmp.eq.s32.totalorder %s32, 0
      %p53 = por %p51, %p52
      %p54 = scmp.ne.s32.totalorder %s40, %s41
      %p55 = scmp.eq.s32.totalorder %s33, 1
      %p56 = por %p54, %p55
      %p58 = scmp.ne.s32.totalorder %s41, %s57
      %p59 = scmp.eq.s32.totalorder %s33, 0
      %p60 = por %p58, %p59
      %s62 = sadd.s32 %s61, 1
      %p65 = scmp.eq.s32.totalorder %s27, 1
      %p66 = scmp.ne.s32.totalorder %s61, %s63
      %p67 = scmp.eq.s32.totalorder %s27, 0
      %p68 = por %p66, %p67
      %p69 = scmp.ne.s32.totalorder %s61, %s63
      %p70 = scmp.eq.s32.totalorder %s32, 1
      %p71 = por %p69, %p70
      %p72 = scmp.ne.s32.totalorder %s63, %s64
      %p73 = scmp.eq.s32.totalorder %s32, 0
      %p74 = por %p72, %p73
      %p75 = scmp.ne.s32.totalorder %s63, %s64
      %p76 = scmp.eq.s32.totalorder %s33, 1
      %p77 = por %p75, %p76
      %p79 = scmp.ne.s32.totalorder %s64, %s78
      %p80 = scmp.eq.s32.totalorder %s33, 0
      %p81 = por %p79, %p80
      %s83 = sadd.s32 %s82, 1
      %p86 = scmp.eq.s32.totalorder %s27, 1
      %p87 = scmp.ne.s32.totalorder %s82, %s84
      %p88 = scmp.eq.s32.totalorder %s27, 0
      %p89 = por %p87, %p88
      %p90 = scmp.ne.s32.totalorder %s82, %s84
      %p91 = scmp.eq.s32.totalorder %s32, 1
      %p92 = por %p90, %p91
      %p93 = scmp.ne.s32.totalorder %s84, %s85
      %p94 = scmp.eq.s32.totalorder %s32, 0
      %p95 = por %p93, %p94
      %p96 = scmp.ne.s32.totalorder %s84, %s85
      %p97 = scmp.eq.s32.totalorder %s33, 1
      %p98 = por %p96, %p97
      %p100 = scmp.ne.s32.totalorder %s85, %s99
      %p101 = scmp.eq.s32.totalorder %s33, 0
      %p102 = por %p100, %p101
      %s104 = sadd.s32 %s103, 1
      %p107 = scmp.eq.s32.totalorder %s27, 1
      %p108 = scmp.ne.s32.totalorder %s103, %s105
      %p109 = scmp.eq.s32.totalorder %s27, 0
      %p110 = por %p108, %p109
      %p111 = scmp.ne.s32.totalorder %s103, %s105
      %p112 = scmp.eq.s32.totalorder %s32, 1
      %p113 = por %p111, %p112
      %p114 = scmp.ne.s32.totalorder %s105, %s106
      %p115 = scmp.eq.s32.totalorder %s32, 0
      %p116 = por %p114, %p115
      %p117 = scmp.ne.s32.totalorder %s105, %s106
      %p118 = scmp.eq.s32.totalorder %s33, 1
      %p119 = por %p117, %p118
      %p121 = scmp.ne.s32.totalorder %s106, %s120
      %p122 = scmp.eq.s32.totalorder %s33, 0
      %p123 = por %p121, %p122
      %s125 = sadd.s32 %s124, 1
      %p128 = scmp.eq.s32.totalorder %s27, 1
      %p129 = scmp.ne.s32.totalorder %s124, %s126
      %p130 = scmp.eq.s32.totalorder %s27, 0
      %p131 = por %p129, %p130
      %p132 = scmp.ne.s32.totalorder %s124, %s126
      %p133 = scmp.eq.s32.totalorder %s32, 1
      %p134 = por %p132, %p133
      %p135 = scmp.ne.s32.totalorder %s126, %s127
      %p136 = scmp.eq.s32.totalorder %s32, 0
      %p137 = por %p135, %p136
      %p138 = scmp.ne.s32.totalorder %s126, %s127
      %p139 = scmp.eq.s32.totalorder %s33, 1
      %p140 = por %p138, %p139
      %p142 = scmp.ne.s32.totalorder %s127, %s141
      %p143 = scmp.eq.s32.totalorder %s33, 0
      %p144 = por %p142, %p143
      %s146 = sadd.s32 %s145, 1
      %p149 = scmp.eq.s32.totalorder %s27, 1
      %p150 = scmp.ne.s32.totalorder %s145, %s147
      %p151 = scmp.eq.s32.totalorder %s27, 0
      %p152 = por %p150, %p151
      %p153 = scmp.ne.s32.totalorder %s145, %s147
      %p154 = scmp.eq.s32.totalorder %s32, 1
      %p155 = por %p153, %p154
      %p156 = scmp.ne.s32.totalorder %s147, %s148
      %p157 = scmp.eq.s32.totalorder %s32, 0
      %p158 = por %p156, %p157
      %p159 = scmp.ne.s32.totalorder %s147, %s148
      %p160 = scmp.eq.s32.totalorder %s33, 1
      %p161 = por %p159, %p160
      %p163 = scmp.ne.s32.totalorder %s148, %s162
      %p164 = scmp.eq.s32.totalorder %s33, 0
      %p165 = por %p163, %p164
      %s167 = sadd.s32 %s166, 1
      %p170 = scmp.eq.s32.totalorder %s27, 1
      %p171 = scmp.ne.s32.totalorder %s166, %s168
      %p172 = scmp.eq.s32.totalorder %s27, 0
      %p173 = por %p171, %p172
      %p174 = scmp.ne.s32.totalorder %s166, %s168
      %p175 = scmp.eq.s32.totalorder %s32, 1
      %p176 = por %p174, %p175
      %p177 = scmp.ne.s32.totalorder %s168, %s169
      %p178 = scmp.eq.s32.totalorder %s32, 0
      %p179 = por %p177, %p178
      %p180 = scmp.ne.s32.totalorder %s168, %s169
      %p181 = scmp.eq.s32.totalorder %s33, 1
      %p182 = por %p180, %p181
      %p184 = scmp.ne.s32.totalorder %s169, %s183
      %p185 = scmp.eq.s32.totalorder %s33, 0
      %p186 = por %p184, %p185
      %s188 = sadd.s32 %s187, 1
      %p191 = scmp.eq.s32.totalorder %s27, 1
      %p192 = scmp.ne.s32.totalorder %s187, %s189
      %p193 = scmp.eq.s32.totalorder %s27, 0
      %p194 = por %p192, %p193
      %p195 = scmp.ne.s32.totalorder %s187, %s189
      %p196 = scmp.eq.s32.totalorder %s32, 1
      %p197 = por %p195, %p196
      %p198 = scmp.ne.s32.totalorder %s189, %s190
      %p199 = scmp.eq.s32.totalorder %s32, 0
      %p200 = por %p198, %p199
      %p201 = scmp.ne.s32.totalorder %s189, %s190
      %p202 = scmp.eq.s32.totalorder %s33, 1
      %p203 = por %p201, %p202
      %p205 = scmp.ne.s32.totalorder %s190, %s204
      %p206 = scmp.eq.s32.totalorder %s33, 0
      %p207 = por %p205, %p206
      %s209 = sadd.s32 %s208, 1
      %p212 = scmp.eq.s32.totalorder %s27, 1
      %p213 = scmp.ne.s32.totalorder %s208, %s210
      %p214 = scmp.eq.s32.totalorder %s27, 0
      %p215 = por %p213, %p214
      %p216 = scmp.ne.s32.totalorder %s208, %s210
      %p217 = scmp.eq.s32.totalorder %s32, 1
      %p218 = por %p216, %p217
      %p219 = scmp.ne.s32.totalorder %s210, %s211
      %p220 = scmp.eq.s32.totalorder %s32, 0
      %p221 = por %p219, %p220
      %p222 = scmp.ne.s32.totalorder %s210, %s211
      %p223 = scmp.eq.s32.totalorder %s33, 1
      %p224 = por %p222, %p223
      %p226 = scmp.ne.s32.totalorder %s211, %s225
      %p227 = scmp.eq.s32.totalorder %s33, 0
      %p228 = por %p226, %p227
      %s230 = sadd.s32 %s229, 1
      %p233 = scmp.eq.s32.totalorder %s27, 1
      %p234 = scmp.ne.s32.totalorder %s229, %s231
      %p235 = scmp.eq.s32.totalorder %s27, 0
      %p236 = por %p234, %p235
      %p237 = scmp.ne.s32.totalorder %s229, %s231
      %p238 = scmp.eq.s32.totalorder %s32, 1
      %p239 = por %p237, %p238
      %p240 = scmp.ne.s32.totalorder %s231, %s232
      %p241 = scmp.eq.s32.totalorder %s32, 0
      %p242 = por %p240, %p241
      %p243 = scmp.ne.s32.totalorder %s231, %s232
      %p244 = scmp.eq.s32.totalorder %s33, 1
      %p245 = por %p243, %p244
      %p247 = scmp.ne.s32.totalorder %s232, %s246
      %p248 = scmp.eq.s32.totalorder %s33, 0
      %p249 = por %p247, %p248
      %s251 = sadd.s32 %s250, 1
      %p254 = scmp.eq.s32.totalorder %s27, 1
      %p255 = scmp.ne.s32.totalorder %s250, %s252
      %p256 = scmp.eq.s32.totalorder %s27, 0
      %p257 = por %p255, %p256
      %p258 = scmp.ne.s32.totalorder %s250, %s252
      %p259 = scmp.eq.s32.totalorder %s32, 1
      %p260 = por %p258, %p259
      %p261 = scmp.ne.s32.totalorder %s252, %s253
      %p262 = scmp.eq.s32.totalorder %s32, 0
      %p263 = por %p261, %p262
      %p264 = scmp.ne.s32.totalorder %s252, %s253
      %p265 = scmp.eq.s32.totalorder %s33, 1
      %p266 = por %p264, %p265
      %p268 = scmp.ne.s32.totalorder %s253, %s267
      %p269 = scmp.eq.s32.totalorder %s33, 0
      %p270 = por %p268, %p269
      %s272 = sadd.s32 %s271, 1
      %p275 = scmp.eq.s32.totalorder %s27, 1
      %p276 = scmp.ne.s32.totalorder %s271, %s273
      %p277 = scmp.eq.s32.totalorder %s27, 0
      %p278 = por %p276, %p277
      %p279 = scmp.ne.s32.totalorder %s271, %s273
      %p280 = scmp.eq.s32.totalorder %s32, 1
      %p281 = por %p279, %p280
      %p282 = scmp.ne.s32.totalorder %s273, %s274
      %p283 = scmp.eq.s32.totalorder %s32, 0
      %p284 = por %p282, %p283
      %p285 = scmp.ne.s32.totalorder %s273, %s274
      %p286 = scmp.eq.s32.totalorder %s33, 1
      %p287 = por %p285, %p286
      %p289 = scmp.ne.s32.totalorder %s274, %s288
      %p290 = scmp.eq.s32.totalorder %s33, 0
      %p291 = por %p289, %p290
      %s293 = sadd.s32 %s292, 1
      %p296 = scmp.eq.s32.totalorder %s27, 1
      %p297 = scmp.ne.s32.totalorder %s292, %s294
      %p298 = scmp.eq.s32.totalorder %s27, 0
      %p299 = por %p297, %p298
      %p300 = scmp.ne.s32.totalorder %s292, %s294
      %p301 = scmp.eq.s32.totalorder %s32, 1
      %p302 = por %p300, %p301
      %p303 = scmp.ne.s32.totalorder %s294, %s295
      %p304 = scmp.eq.s32.totalorder %s32, 0
      %p305 = por %p303, %p304
      %p306 = scmp.ne.s32.totalorder %s294, %s295
      %p307 = scmp.eq.s32.totalorder %s33, 1
      %p308 = por %p306, %p307
      %p310 = scmp.ne.s32.totalorder %s295, %s309
      %p311 = scmp.eq.s32.totalorder %s33, 0
      %p312 = por %p310, %p311
      %s314 = sadd.s32 %s313, 1
      %p317 = scmp.eq.s32.totalorder %s27, 1
      %p318 = scmp.ne.s32.totalorder %s313, %s315
      %p319 = scmp.eq.s32.totalorder %s27, 0
      %p320 = por %p318, %p319
      %p321 = scmp.ne.s32.totalorder %s313, %s315
      %p322 = scmp.eq.s32.totalorder %s32, 1
      %p323 = por %p321, %p322
      %p324 = scmp.ne.s32.totalorder %s315, %s316
      %p325 = scmp.eq.s32.totalorder %s32, 0
      %p326 = por %p324, %p325
      %p327 = scmp.ne.s32.totalorder %s315, %s316
      %p328 = scmp.eq.s32.totalorder %s33, 1
      %p329 = por %p327, %p328
      %p331 = scmp.ne.s32.totalorder %s316, %s330
      %p332 = scmp.eq.s32.totalorder %s33, 0
      %p333 = por %p331, %p332
      %s335 = sadd.s32 %s334, 1
      %p338 = scmp.eq.s32.totalorder %s27, 1
      %p339 = scmp.ne.s32.totalorder %s334, %s336
      %p340 = scmp.eq.s32.totalorder %s27, 0
      %p341 = por %p339, %p340
      %p342 = scmp.ne.s32.totalorder %s334, %s336
      %p343 = scmp.eq.s32.totalorder %s32, 1
      %p344 = por %p342, %p343
      %p345 = scmp.ne.s32.totalorder %s336, %s337
      %p346 = scmp.eq.s32.totalorder %s32, 0
      %p347 = por %p345, %p346
      %p348 = scmp.ne.s32.totalorder %s336, %s337
      %p349 = scmp.eq.s32.totalorder %s33, 1
      %p350 = por %p348, %p349
      %p352 = scmp.ne.s32.totalorder %s337, %s351
      %p353 = scmp.eq.s32.totalorder %s33, 0
      %p354 = por %p352, %p353
      %s356 = sadd.s32 %s355, 1
      %p359 = scmp.eq.s32.totalorder %s27, 1
      %p360 = scmp.ne.s32.totalorder %s355, %s357
      %p361 = scmp.eq.s32.totalorder %s27, 0
      %p362 = por %p360, %p361
      %p363 = scmp.ne.s32.totalorder %s355, %s357
      %p364 = scmp.eq.s32.totalorder %s32, 1
      %p365 = por %p363, %p364
      %p366 = scmp.ne.s32.totalorder %s357, %s358
      %p367 = scmp.eq.s32.totalorder %s32, 0
      %p368 = por %p366, %p367
      %p369 = scmp.ne.s32.totalorder %s357, %s358
      %p370 = scmp.eq.s32.totalorder %s33, 1
      %p371 = por %p369, %p370
      %p373 = scmp.ne.s32.totalorder %s358, %s372
      %p374 = scmp.eq.s32.totalorder %s33, 0
      %p375 = por %p373, %p374
      %s377 = sadd.s32 %s376, 1
      %p380 = scmp.eq.s32.totalorder %s27, 1
      %p381 = scmp.ne.s32.totalorder %s376, %s378
      %p382 = scmp.eq.s32.totalorder %s27, 0
      %p383 = por %p381, %p382
      %p384 = scmp.ne.s32.totalorder %s376, %s378
      %p385 = scmp.eq.s32.totalorder %s32, 1
      %p386 = por %p384, %p385
      %p387 = scmp.ne.s32.totalorder %s378, %s379
      %p388 = scmp.eq.s32.totalorder %s32, 0
      %p389 = por %p387, %p388
      %p390 = scmp.ne.s32.totalorder %s378, %s379
      %p391 = scmp.eq.s32.totalorder %s33, 1
      %p392 = por %p390, %p391
      %p394 = scmp.ne.s32.totalorder %s379, %s393
      %p395 = scmp.eq.s32.totalorder %s33, 0
      %p396 = por %p394, %p395
      %s398 = sadd.s32 %s397, 1
      %p401 = scmp.eq.s32.totalorder %s27, 1
      %p402 = scmp.ne.s32.totalorder %s397, %s399
      %p403 = scmp.eq.s32.totalorder %s27, 0
      %p404 = por %p402, %p403
      %p405 = scmp.ne.s32.totalorder %s397, %s399
      %p406 = scmp.eq.s32.totalorder %s32, 1
      %p407 = por %p405, %p406
      %p408 = scmp.ne.s32.totalorder %s399, %s400
      %p409 = scmp.eq.s32.totalorder %s32, 0
      %p410 = por %p408, %p409
      %p411 = scmp.ne.s32.totalorder %s399, %s400
      %p412 = scmp.eq.s32.totalorder %s33, 1
      %p413 = por %p411, %p412
      %p415 = scmp.ne.s32.totalorder %s400, %s414
      %p416 = scmp.eq.s32.totalorder %s33, 0
      %p417 = por %p415, %p416
      %s418 = ssub.s32 %s27, %s34
      %p419 = scmp.eq.s32.totalorder %s418, 0
      %s421 = sadd.s32 %s420, 1
      %s422 = scalar_select %p419, %s420, %s421
      %p425 = pneg %p419
      %p426 = scmp.eq.s32.totalorder %s27, 1
      %p427 = por %p425, %p426
      %p428 = scmp.ne.s32.totalorder %s420, %s423
      %p429 = scmp.eq.s32.totalorder %s27, 0
      %p430 = por %p428, %p429
      %p431 = scmp.ne.s32.totalorder %s420, %s423
      %p432 = scmp.eq.s32.totalorder %s32, 1
      %p433 = por %p431, %p432
      %p434 = scmp.ne.s32.totalorder %s423, %s424
      %p435 = scmp.eq.s32.totalorder %s32, 0
      %p436 = por %p434, %p435
      %p437 = scmp.ne.s32.totalorder %s423, %s424
      %p438 = scmp.eq.s32.totalorder %s33, 1
      %p439 = por %p437, %p438
      %p441 = scmp.ne.s32.totalorder %s424, %s440
      %p442 = scmp.eq.s32.totalorder %s33, 0
      %p443 = por %p441, %p442
      %p444 = scmp.le.s32.totalorder 1, %s27
      %p445 = scmp.lt.s32.totalorder %s27, 3
      %p446 = pnand %p444, %p445
      %p447 = pneg %p446
      // Predicated region
      $region9: #{gpt_forward.1} parent=5 // pred_check
        _
      $region10: #{gpt_forward.1} parent=5 // pred_check_branch
        %449 = sbr.rel (%p446) target = $region12
      $region11: #{gpt_forward.1} parent=5 // pred_region
        %s450 = ssub.s32 %s27, 1
        // Predicated region
        $region13: #{gpt_forward.1} parent=11 // pred_check
          %p451 = pneg %p74
        $region14: #{gpt_forward.1} parent=11 // pred_check_branch
          %453 = sbr.rel (%p451) target = $region16
        $region15: #{gpt_forward.1} parent=11 // pred_region
          _
        $region16: #{gpt_forward.1} parent=11 // pred_fallthru
          _
        // Predicated region
        $region17: #{gpt_forward.1} parent=11 // pred_check
          %p454 = pneg %p95
        $region18: #{gpt_forward.1} parent=11 // pred_check_branch
          %456 = sbr.rel (%p454) target = $region20
        $region19: #{gpt_forward.1} parent=11 // pred_region
          _
        $region20: #{gpt_forward.1} parent=11 // pred_fallthru
          _
        // Predicated region
        $region21: #{gpt_forward.1} parent=11 // pred_check
          %p457 = pneg %p116
        $region22: #{gpt_forward.1} parent=11 // pred_check_branch
          %459 = sbr.rel (%p457) target = $region24
        $region23: #{gpt_forward.1} parent=11 // pred_region
          _
        $region24: #{gpt_forward.1} parent=11 // pred_fallthru
          _
        // Predicated region
        $region25: #{gpt_forward.1} parent=11 // pred_check
          %p460 = pneg %p137
        $region26: #{gpt_forward.1} parent=11 // pred_check_branch
          %462 = sbr.rel (%p460) target = $region28
        $region27: #{gpt_forward.1} parent=11 // pred_region
          _
        $region28: #{gpt_forward.1} parent=11 // pred_fallthru
          _
        // Predicated region
        $region29: #{gpt_forward.1} parent=11 // pred_check
          %p463 = pneg %p158
        $region30: #{gpt_forward.1} parent=11 // pred_check_branch
          %465 = sbr.rel (%p463) target = $region32
        $region31: #{gpt_forward.1} parent=11 // pred_region
          _
        $region32: #{gpt_forward.1} parent=11 // pred_fallthru
          _
        // Predicated region
        $region33: #{gpt_forward.1} parent=11 // pred_check
          %p466 = pneg %p179
        $region34: #{gpt_forward.1} parent=11 // pred_check_branch
          %468 = sbr.rel (%p466) target = $region36
        $region35: #{gpt_forward.1} parent=11 // pred_region
          _
        $region36: #{gpt_forward.1} parent=11 // pred_fallthru
          _
        // Predicated region
        $region37: #{gpt_forward.1} parent=11 // pred_check
          %p469 = pneg %p200
        $region38: #{gpt_forward.1} parent=11 // pred_check_branch
          %471 = sbr.rel (%p469) target = $region40
        $region39: #{gpt_forward.1} parent=11 // pred_region
          _
        $region40: #{gpt_forward.1} parent=11 // pred_fallthru
          _
        // Predicated region
        $region41: #{gpt_forward.1} parent=11 // pred_check
          %p472 = pneg %p221
        $region42: #{gpt_forward.1} parent=11 // pred_check_branch
          %474 = sbr.rel (%p472) target = $region44
        $region43: #{gpt_forward.1} parent=11 // pred_region
          _
        $region44: #{gpt_forward.1} parent=11 // pred_fallthru
          _
        // Predicated region
        $region45: #{gpt_forward.1} parent=11 // pred_check
          %p475 = pneg %p242
        $region46: #{gpt_forward.1} parent=11 // pred_check_branch
          %477 = sbr.rel (%p475) target = $region48
        $region47: #{gpt_forward.1} parent=11 // pred_region
          _
        $region48: #{gpt_forward.1} parent=11 // pred_fallthru
          _
        // Predicated region
        $region49: #{gpt_forward.1} parent=11 // pred_check
          %p478 = pneg %p263
        $region50: #{gpt_forward.1} parent=11 // pred_check_branch
          %480 = sbr.rel (%p478) target = $region52
        $region51: #{gpt_forward.1} parent=11 // pred_region
          _
        $region52: #{gpt_forward.1} parent=11 // pred_fallthru
          _
        // Predicated region
        $region53: #{gpt_forward.1} parent=11 // pred_check
          %p481 = pneg %p284
        $region54: #{gpt_forward.1} parent=11 // pred_check_branch
          %483 = sbr.rel (%p481) target = $region56
        $region55: #{gpt_forward.1} parent=11 // pred_region
          _
        $region56: #{gpt_forward.1} parent=11 // pred_fallthru
          _
        // Predicated region
        $region57: #{gpt_forward.1} parent=11 // pred_check
          %p484 = pneg %p305
        $region58: #{gpt_forward.1} parent=11 // pred_check_branch
          %486 = sbr.rel (%p484) target = $region60
        $region59: #{gpt_forward.1} parent=11 // pred_region
          _
        $region60: #{gpt_forward.1} parent=11 // pred_fallthru
          _
        // Predicated region
        $region61: #{gpt_forward.1} parent=11 // pred_check
          %p487 = pneg %p326
        $region62: #{gpt_forward.1} parent=11 // pred_check_branch
          %489 = sbr.rel (%p487) target = $region64
        $region63: #{gpt_forward.1} parent=11 // pred_region
          _
        $region64: #{gpt_forward.1} parent=11 // pred_fallthru
          _
        // Predicated region
        $region65: #{gpt_forward.1} parent=11 // pred_check
          %p490 = pneg %p347
        $region66: #{gpt_forward.1} parent=11 // pred_check_branch
          %492 = sbr.rel (%p490) target = $region68
        $region67: #{gpt_forward.1} parent=11 // pred_region
          _
        $region68: #{gpt_forward.1} parent=11 // pred_fallthru
          _
        // Predicated region
        $region69: #{gpt_forward.1} parent=11 // pred_check
          %p493 = pneg %p368
        $region70: #{gpt_forward.1} parent=11 // pred_check_branch
          %495 = sbr.rel (%p493) target = $region72
        $region71: #{gpt_forward.1} parent=11 // pred_region
          _
        $region72: #{gpt_forward.1} parent=11 // pred_fallthru
          _
        // Predicated region
        $region73: #{gpt_forward.1} parent=11 // pred_check
          %p496 = pneg %p389
        $region74: #{gpt_forward.1} parent=11 // pred_check_branch
          %498 = sbr.rel (%p496) target = $region76
        $region75: #{gpt_forward.1} parent=11 // pred_region
          _
        $region76: #{gpt_forward.1} parent=11 // pred_fallthru
          _
        // Predicated region
        $region77: #{gpt_forward.1} parent=11 // pred_check
          %p499 = pneg %p410
        $region78: #{gpt_forward.1} parent=11 // pred_check_branch
          %501 = sbr.rel (%p499) target = $region80
        $region79: #{gpt_forward.1} parent=11 // pred_region
          _
        $region80: #{gpt_forward.1} parent=11 // pred_fallthru
          _
      $region12: #{gpt_forward.1} parent=5 // pred_fallthru
        _
      %p502 = scmp.lt.s32.totalorder %s27, 2
      // Predicated region
      $region81: #{gpt_forward.1} parent=5 // pred_check
        %p503 = pneg %p502
      $region82: #{gpt_forward.1} parent=5 // pred_check_branch
        %505 = sbr.rel (%p503) target = $region84
      $region83: #{gpt_forward.1} parent=5 // pred_region
        // Predicated region
        $region85: #{gpt_forward.1} parent=83 // pred_check
          %p506 = pneg %p47
        $region86: #{gpt_forward.1} parent=83 // pred_check_branch
          %508 = sbr.rel (%p506) target = $region88
        $region87: #{gpt_forward.1} parent=83 // pred_region
          %p509 = scmp.lt.s32.totalorder %s27, 1
          %s510 = scalar_select %p509, %s27, 1
          %s511 = smul.addr %s510, 3
          %s512 = smul.addr %s511, 8
          %s513 = scalar_lea.vmem %s0, %s512
        $region88: #{gpt_forward.1} parent=83 // pred_fallthru
          _
      $region84: #{gpt_forward.1} parent=5 // pred_fallthru
        _
      %p514 = scmp.le.s32.totalorder 1, %s27
      %p515 = scmp.lt.s32.totalorder %s27, 3
      %p516 = pnand %p514, %p515
      %p517 = pneg %p516
      // Predicated region
      $region89: #{gpt_forward.1} parent=5 // pred_check
        _
      $region90: #{gpt_forward.1} parent=5 // pred_check_branch
        %519 = sbr.rel (%p516) target = $region92
      $region91: #{gpt_forward.1} parent=5 // pred_region
        %s520 = ssub.s32 %s27, 1
        %p521 = scmp.lt.s32.totalorder %s32, 1
        %s522 = scalar_select %p521, %s32, 1
        %s523 = smul.addr %s522, 3
        %s524 = smul.addr %s523, 8
        %s525 = scalar_lea.vmem %s0, %s524
        %p526 = pneg %p53
        %p527 = pneg %p50
        %p528 = pneg %p74
        %p529 = pneg %p71
        %p530 = pneg %p95
        %p531 = pneg %p92
        %p532 = pneg %p116
        %p533 = pneg %p113
        %p534 = pneg %p137
        %p535 = pneg %p134
        %p536 = pneg %p158
        %p537 = pneg %p155
        %p538 = pneg %p179
        %p539 = pneg %p176
        %p540 = pneg %p200
        %p541 = pneg %p197
        %p542 = pneg %p221
        %p543 = pneg %p218
        %p544 = pneg %p242
        %p545 = pneg %p239
        %p546 = pneg %p263
        %p547 = pneg %p260
        %p548 = pneg %p284
        %p549 = pneg %p281
        %p550 = pneg %p305
        %p551 = pneg %p302
        %p552 = pneg %p326
        %p553 = pneg %p323
        %p554 = pneg %p347
        %p555 = pneg %p344
        %p556 = pneg %p368
        %p557 = pneg %p365
        %p558 = pneg %p389
        %p559 = pneg %p386
        %p560 = pneg %p410
        %p561 = pneg %p407
        %p562 = pneg %p436
        %p563 = pneg %p433
        %s564 = sand.u32 %s423, 1
        %s565 = scalar_lea.sflag [#allocation3], %s564
        %s566 = sand.u32 %s423, 1
        %s567 = smul.addr %s566, 8
        %s568 = scalar_lea.vmem [#allocation2], %s567
        %p569 = scmp.lt.s32.totalorder %s32, 1
        %s570 = scalar_select %p569, %s32, 1
        %s571 = smul.addr %s570, 3
        %s572 = smul.addr %s571, 8
        %s573 = scalar_lea.vmem %s0, %s572
        %v575 = vld [vmem:[%s573] sm:$0xff]
        %v576 = vld [vmem:[%s573 + $0x8] sm:$0xff]
        %v577 = vld [vmem:[%s573 + $0x10] sm:$0xff]
        %v578 = vpack.c.bf16 %v575, %v575
        %v579 = vpack.c.bf16 %v576, %v576
        %v580 = vpack.c.bf16 %v577, %v577
        %v581 = vld [vmem:[%s1] sm:$0xff]
        %v582 = vld [vmem:[%s1 + $0x8] sm:$0xf]
        %v583 = vld [vmem:[%s1 + $0xc] sm:$0xff]
        %v584 = vld [vmem:[%s1 + $0x14] sm:$0xf]
        %v585 = vld [vmem:[%s1 + $0x18] sm:$0xff]
        %v586 = vld [vmem:[%s1 + $0x20] sm:$0xf]
        %v587 = vld [vmem:[%s1 + $0x24] sm:$0xff]
        %v588 = vld [vmem:[%s1 + $0x2c] sm:$0xf]
        %v589 = vld [vmem:[%s1 + $0x30] sm:$0xff]
        %v590 = vld [vmem:[%s1 + $0x38] sm:$0xf]
        %v591 = vld [vmem:[%s1 + $0x3c] sm:$0xff]
        %v592 = vld [vmem:[%s1 + $0x44] sm:$0xf]
        %v593 = vld [vmem:[%s1 + $0x48] sm:$0xff]
        %v594 = vld [vmem:[%s1 + $0x50] sm:$0xf]
        %v595 = vld [vmem:[%s1 + $0x54] sm:$0xff]
        %v596 = vld [vmem:[%s1 + $0x5c] sm:$0xf]
        %v597 = vld [vmem:[%s1 + $0x60] sm:$0xff]
        %v598 = vld [vmem:[%s1 + $0x68] sm:$0xf]
        %v599 = vld [vmem:[%s1 + $0x6c] sm:$0xff]
        %v600 = vld [vmem:[%s1 + $0x74] sm:$0xf]
        %v601 = vld [vmem:[%s1 + $0x78] sm:$0xff]
        %v602 = vld [vmem:[%s1 + $0x80] sm:$0xf]
        %v603 = vld [vmem:[%s1 + $0x84] sm:$0xff]
        %v604 = vld [vmem:[%s1 + $0x8c] sm:$0xf]
        %v605 = vld [vmem:[%s1 + $0x90] sm:$0xff]
        %v606 = vld [vmem:[%s1 + $0x98] sm:$0xf]
        %v607 = vld [vmem:[%s1 + $0x9c] sm:$0xff]
        %v608 = vld [vmem:[%s1 + $0xa4] sm:$0xf]
        %v609 = vld [vmem:[%s1 + $0xa8] sm:$0xff]
        %v610 = vld [vmem:[%s1 + $0xb0] sm:$0xf]
        %v611 = vld [vmem:[%s1 + $0xb4] sm:$0xff]
        %v612 = vld [vmem:[%s1 + $0xbc] sm:$0xf]
        %v613 = vld [vmem:[%s1 + $0xc0] sm:$0xff]
        %v614 = vld [vmem:[%s1 + $0xc8] sm:$0xf]
        %v615 = vld [vmem:[%s1 + $0xcc] sm:$0xff]
        %v616 = vld [vmem:[%s1 + $0xd4] sm:$0xf]
        %v617 = vld [vmem:[%s1 + $0xd8] sm:$0xff]
        %v618 = vld [vmem:[%s1 + $0xe0] sm:$0xf]
        %v619 = vld [vmem:[%s1 + $0xe4] sm:$0xff]
        %v620 = vld [vmem:[%s1 + $0xec] sm:$0xf]
        %v621 = vld [vmem:[%s1 + $0xf0] sm:$0xff]
        %v622 = vld [vmem:[%s1 + $0xf8] sm:$0xf]
        %v623 = vld [vmem:[%s1 + $0xfc] sm:$0xff]
        %v624 = vld [vmem:[%s1 + $0x104] sm:$0xf]
        %v625 = vld [vmem:[%s1 + $0x108] sm:$0xff]
        %v626 = vld [vmem:[%s1 + $0x110] sm:$0xf]
        %v627 = vld [vmem:[%s1 + $0x114] sm:$0xff]
        %v628 = vld [vmem:[%s1 + $0x11c] sm:$0xf]
        %v629 = vld [vmem:[%s1 + $0x120] sm:$0xff]
        %v630 = vld [vmem:[%s1 + $0x128] sm:$0xf]
        %v631 = vld [vmem:[%s1 + $0x12c] sm:$0xff]
        %v632 = vld [vmem:[%s1 + $0x134] sm:$0xf]
        %v633 = vld [vmem:[%s1 + $0x138] sm:$0xff]
        %v634 = vld [vmem:[%s1 + $0x140] sm:$0xf]
        %v635 = vld [vmem:[%s1 + $0x144] sm:$0xff]
        %v636 = vld [vmem:[%s1 + $0x14c] sm:$0xf]
        %v637 = vld [vmem:[%s1 + $0x150] sm:$0xff]
        %v638 = vld [vmem:[%s1 + $0x158] sm:$0xf]
        %v639 = vld [vmem:[%s1 + $0x15c] sm:$0xff]
        %v640 = vld [vmem:[%s1 + $0x164] sm:$0xf]
        %v641 = vld [vmem:[%s1 + $0x168] sm:$0xff]
        %v642 = vld [vmem:[%s1 + $0x170] sm:$0xf]
        %v643 = vld [vmem:[%s1 + $0x174] sm:$0xff]
        %v644 = vld [vmem:[%s1 + $0x17c] sm:$0xf]
        %v645 = vld [vmem:[%s1 + $0x180] sm:$0xff]
        %v646 = vld [vmem:[%s1 + $0x188] sm:$0xf]
        %v647 = vld [vmem:[%s1 + $0x18c] sm:$0xff]
        %v648 = vld [vmem:[%s1 + $0x194] sm:$0xf]
        %v649 = vld [vmem:[%s1 + $0x198] sm:$0xff]
        %v650 = vld [vmem:[%s1 + $0x1a0] sm:$0xf]
        %v651 = vld [vmem:[%s1 + $0x1a4] sm:$0xff]
        %v652 = vld [vmem:[%s1 + $0x1ac] sm:$0xf]
        %v653 = vld [vmem:[%s1 + $0x1b0] sm:$0xff]
        %v654 = vld [vmem:[%s1 + $0x1b8] sm:$0xf]
        %v655 = vld [vmem:[%s1 + $0x1bc] sm:$0xff]
        %v656 = vld [vmem:[%s1 + $0x1c4] sm:$0xf]
        %v657 = vld [vmem:[%s1 + $0x1c8] sm:$0xff]
        %v658 = vld [vmem:[%s1 + $0x1d0] sm:$0xf]
        %v659 = vld [vmem:[%s1 + $0x1d4] sm:$0xff]
        %v660 = vld [vmem:[%s1 + $0x1dc] sm:$0xf]
        %v661 = vld [vmem:[%s1 + $0x1e0] sm:$0xff]
        %v662 = vld [vmem:[%s1 + $0x1e8] sm:$0xf]
        %v663 = vld [vmem:[%s1 + $0x1ec] sm:$0xff]
        %v664 = vld [vmem:[%s1 + $0x1f4] sm:$0xf]
        %v665 = vld [vmem:[%s1 + $0x1f8] sm:$0xff]
        %v666 = vld [vmem:[%s1 + $0x200] sm:$0xf]
        %v667 = vld [vmem:[%s1 + $0x204] sm:$0xff]
        %v668 = vld [vmem:[%s1 + $0x20c] sm:$0xf]
        %v669 = vld [vmem:[%s1 + $0x210] sm:$0xff]
        %v670 = vld [vmem:[%s1 + $0x218] sm:$0xf]
        %v671 = vld [vmem:[%s1 + $0x21c] sm:$0xff]
        %v672 = vld [vmem:[%s1 + $0x224] sm:$0xf]
        %v673 = vld [vmem:[%s1 + $0x228] sm:$0xff]
        %v674 = vld [vmem:[%s1 + $0x230] sm:$0xf]
        %v675 = vld [vmem:[%s1 + $0x234] sm:$0xff]
        %v676 = vld [vmem:[%s1 + $0x23c] sm:$0xf]
        %v773 = vunpack.c.l.b16 %v581
        %v774 = vunpack.c.h.b16 %v581
        %v775 = vunpack.c.l.b16 %v582
        %v776 = vunpack.c.l.b16 %v583
        %v777 = vunpack.c.h.b16 %v583
        %v778 = vunpack.c.l.b16 %v584
        %v779 = vunpack.c.l.b16 %v585
        %v780 = vunpack.c.h.b16 %v585
        %v781 = vunpack.c.l.b16 %v586
        %v782 = vunpack.c.l.b16 %v587
        %v783 = vunpack.c.h.b16 %v587
        %v784 = vunpack.c.l.b16 %v588
        %v785 = vunpack.c.l.b16 %v589
        %v786 = vunpack.c.h.b16 %v589
        %v787 = vunpack.c.l.b16 %v590
        %v788 = vunpack.c.l.b16 %v591
        %v789 = vunpack.c.h.b16 %v591
        %v790 = vunpack.c.l.b16 %v592
        %v791 = vunpack.c.l.b16 %v593
        %v792 = vunpack.c.h.b16 %v593
        %v793 = vunpack.c.l.b16 %v594
        %v794 = vunpack.c.l.b16 %v595
        %v795 = vunpack.c.h.b16 %v595
        %v796 = vunpack.c.l.b16 %v596
        %v797 = vunpack.c.l.b16 %v597
        %v798 = vunpack.c.h.b16 %v597
        %v799 = vunpack.c.l.b16 %v598
        %v800 = vunpack.c.l.b16 %v599
        %v801 = vunpack.c.h.b16 %v599
        %v802 = vunpack.c.l.b16 %v600
        %v803 = vunpack.c.l.b16 %v601
        %v804 = vunpack.c.h.b16 %v601
        %v805 = vunpack.c.l.b16 %v602
        %v806 = vunpack.c.l.b16 %v603
        %v807 = vunpack.c.h.b16 %v603
        %v808 = vunpack.c.l.b16 %v604
        %v809 = vunpack.c.l.b16 %v605
        %v810 = vunpack.c.h.b16 %v605
        %v811 = vunpack.c.l.b16 %v606
        %v812 = vunpack.c.l.b16 %v607
        %v813 = vunpack.c.h.b16 %v607
        %v814 = vunpack.c.l.b16 %v608
        %v815 = vunpack.c.l.b16 %v609
        %v816 = vunpack.c.h.b16 %v609
        %v817 = vunpack.c.l.b16 %v610
        %v818 = vunpack.c.l.b16 %v611
        %v819 = vunpack.c.h.b16 %v611
        %v820 = vunpack.c.l.b16 %v612
        %v821 = vunpack.c.l.b16 %v613
        %v822 = vunpack.c.h.b16 %v613
        %v823 = vunpack.c.l.b16 %v614
        %v824 = vunpack.c.l.b16 %v615
        %v825 = vunpack.c.h.b16 %v615
        %v826 = vunpack.c.l.b16 %v616
        %v827 = vunpack.c.l.b16 %v617
        %v828 = vunpack.c.h.b16 %v617
        %v829 = vunpack.c.l.b16 %v618
        %v830 = vunpack.c.l.b16 %v619
        %v831 = vunpack.c.h.b16 %v619
        %v832 = vunpack.c.l.b16 %v620
        %v833 = vunpack.c.l.b16 %v621
        %v834 = vunpack.c.h.b16 %v621
        %v835 = vunpack.c.l.b16 %v622
        %v836 = vunpack.c.l.b16 %v623
        %v837 = vunpack.c.h.b16 %v623
        %v838 = vunpack.c.l.b16 %v624
        %v839 = vunpack.c.l.b16 %v625
        %v840 = vunpack.c.h.b16 %v625
        %v841 = vunpack.c.l.b16 %v626
        %v842 = vunpack.c.l.b16 %v627
        %v843 = vunpack.c.h.b16 %v627
        %v844 = vunpack.c.l.b16 %v628
        %v845 = vunpack.c.l.b16 %v629
        %v846 = vunpack.c.h.b16 %v629
        %v847 = vunpack.c.l.b16 %v630
        %v848 = vunpack.c.l.b16 %v631
        %v849 = vunpack.c.h.b16 %v631
        %v850 = vunpack.c.l.b16 %v632
        %v851 = vunpack.c.l.b16 %v633
        %v852 = vunpack.c.h.b16 %v633
        %v853 = vunpack.c.l.b16 %v634
        %v854 = vunpack.c.l.b16 %v635
        %v855 = vunpack.c.h.b16 %v635
        %v856 = vunpack.c.l.b16 %v636
        %v857 = vunpack.c.l.b16 %v637
        %v858 = vunpack.c.h.b16 %v637
        %v859 = vunpack.c.l.b16 %v638
        %v860 = vunpack.c.l.b16 %v639
        %v861 = vunpack.c.h.b16 %v639
        %v862 = vunpack.c.l.b16 %v640
        %v863 = vunpack.c.l.b16 %v641
        %v864 = vunpack.c.h.b16 %v641
        %v865 = vunpack.c.l.b16 %v642
        %v866 = vunpack.c.l.b16 %v643
        %v867 = vunpack.c.h.b16 %v643
        %v868 = vunpack.c.l.b16 %v644
        %v869 = vunpack.c.l.b16 %v645
        %v870 = vunpack.c.h.b16 %v645
        %v871 = vunpack.c.l.b16 %v646
        %v872 = vunpack.c.l.b16 %v647
        %v873 = vunpack.c.h.b16 %v647
        %v874 = vunpack.c.l.b16 %v648
        %v875 = vunpack.c.l.b16 %v649
        %v876 = vunpack.c.h.b16 %v649
        %v877 = vunpack.c.l.b16 %v650
        %v878 = vunpack.c.l.b16 %v651
        %v879 = vunpack.c.h.b16 %v651
        %v880 = vunpack.c.l.b16 %v652
        %v881 = vunpack.c.l.b16 %v653
        %v882 = vunpack.c.h.b16 %v653
        %v883 = vunpack.c.l.b16 %v654
        %v884 = vunpack.c.l.b16 %v655
        %v885 = vunpack.c.h.b16 %v655
        %v886 = vunpack.c.l.b16 %v656
        %v887 = vunpack.c.l.b16 %v657
        %v888 = vunpack.c.h.b16 %v657
        %v889 = vunpack.c.l.b16 %v658
        %v890 = vunpack.c.l.b16 %v659
        %v891 = vunpack.c.h.b16 %v659
        %v892 = vunpack.c.l.b16 %v660
        %v893 = vunpack.c.l.b16 %v661
        %v894 = vunpack.c.h.b16 %v661
        %v895 = vunpack.c.l.b16 %v662
        %v896 = vunpack.c.l.b16 %v663
        %v897 = vunpack.c.h.b16 %v663
        %v898 = vunpack.c.l.b16 %v664
        %v899 = vunpack.c.l.b16 %v665
        %v900 = vunpack.c.h.b16 %v665
        %v901 = vunpack.c.l.b16 %v666
        %v902 = vunpack.c.l.b16 %v667
        %v903 = vunpack.c.h.b16 %v667
        %v904 = vunpack.c.l.b16 %v668
        %v905 = vunpack.c.l.b16 %v669
        %v906 = vunpack.c.h.b16 %v669
        %v907 = vunpack.c.l.b16 %v670
        %v908 = vunpack.c.l.b16 %v671
        %v909 = vunpack.c.h.b16 %v671
        %v910 = vunpack.c.l.b16 %v672
        %v911 = vunpack.c.l.b16 %v673
        %v912 = vunpack.c.h.b16 %v673
        %v913 = vunpack.c.l.b16 %v674
        %v914 = vunpack.c.l.b16 %v675
        %v915 = vunpack.c.h.b16 %v675
        %v916 = vunpack.c.l.b16 %v676
        %v917 = vpack.c.b16 %v776, %v773
        %v918 = vpack.c.b16 %v777, %v774
        %v919 = vpack.c.b16 %v778, %v775
        %v920 = vpack.c.b16 %v782, %v779
        %v921 = vpack.c.b16 %v783, %v780
        %v922 = vpack.c.b16 %v784, %v781
        %v923 = vpack.c.b16 %v788, %v785
        %v924 = vpack.c.b16 %v789, %v786
        %v925 = vpack.c.b16 %v790, %v787
        %v926 = vpack.c.b16 %v794, %v791
        %v927 = vpack.c.b16 %v795, %v792
        %v928 = vpack.c.b16 %v796, %v793
        %v929 = vpack.c.b16 %v800, %v797
        %v930 = vpack.c.b16 %v801, %v798
        %v931 = vpack.c.b16 %v802, %v799
        %v932 = vpack.c.b16 %v806, %v803
        %v933 = vpack.c.b16 %v807, %v804
        %v934 = vpack.c.b16 %v808, %v805
        %v935 = vpack.c.b16 %v812, %v809
        %v936 = vpack.c.b16 %v813, %v810
        %v937 = vpack.c.b16 %v814, %v811
        %v938 = vpack.c.b16 %v818, %v815
        %v939 = vpack.c.b16 %v819, %v816
        %v940 = vpack.c.b16 %v820, %v817
        %v941 = vpack.c.b16 %v824, %v821
        %v942 = vpack.c.b16 %v825, %v822
        %v943 = vpack.c.b16 %v826, %v823
        %v944 = vpack.c.b16 %v830, %v827
        %v945 = vpack.c.b16 %v831, %v828
        %v946 = vpack.c.b16 %v832, %v829
        %v947 = vpack.c.b16 %v836, %v833
        %v948 = vpack.c.b16 %v837, %v834
        %v949 = vpack.c.b16 %v838, %v835
        %v950 = vpack.c.b16 %v842, %v839
        %v951 = vpack.c.b16 %v843, %v840
        %v952 = vpack.c.b16 %v844, %v841
        %v953 = vpack.c.b16 %v848, %v845
        %v954 = vpack.c.b16 %v849, %v846
        %v955 = vpack.c.b16 %v850, %v847
        %v956 = vpack.c.b16 %v854, %v851
        %v957 = vpack.c.b16 %v855, %v852
        %v958 = vpack.c.b16 %v856, %v853
        %v959 = vpack.c.b16 %v860, %v857
        %v960 = vpack.c.b16 %v861, %v858
        %v961 = vpack.c.b16 %v862, %v859
        %v962 = vpack.c.b16 %v866, %v863
        %v963 = vpack.c.b16 %v867, %v864
        %v964 = vpack.c.b16 %v868, %v865
        %v965 = vpack.c.b16 %v872, %v869
        %v966 = vpack.c.b16 %v873, %v870
        %v967 = vpack.c.b16 %v874, %v871
        %v968 = vpack.c.b16 %v878, %v875
        %v969 = vpack.c.b16 %v879, %v876
        %v970 = vpack.c.b16 %v880, %v877
        %v971 = vpack.c.b16 %v884, %v881
        %v972 = vpack.c.b16 %v885, %v882
        %v973 = vpack.c.b16 %v886, %v883
        %v974 = vpack.c.b16 %v890, %v887
        %v975 = vpack.c.b16 %v891, %v888
        %v976 = vpack.c.b16 %v892, %v889
        %v977 = vpack.c.b16 %v896, %v893
        %v978 = vpack.c.b16 %v897, %v894
        %v979 = vpack.c.b16 %v898, %v895
        %v980 = vpack.c.b16 %v902, %v899
        %v981 = vpack.c.b16 %v903, %v900
        %v982 = vpack.c.b16 %v904, %v901
        %v983 = vpack.c.b16 %v908, %v905
        %v984 = vpack.c.b16 %v909, %v906
        %v985 = vpack.c.b16 %v910, %v907
        %v986 = vpack.c.b16 %v914, %v911
        %v987 = vpack.c.b16 %v915, %v912
        %v988 = vpack.c.b16 %v916, %v913
        %1061 = vmatpush.bf16.msra.mxu0 %v938
        %1062 = vmatpush.bf16.msra.mxu0 %v935
        %1063 = vmatpush.bf16.msra.mxu0 %v932
        %1064 = vmatpush.bf16.msra.mxu0 %v929
        %1065 = vmatpush.bf16.msra.mxu0 %v926
        %1066 = vmatpush.bf16.msra.mxu0 %v923
        %1067 = vmatpush.bf16.msra.mxu0 %v920
        %1068 = vmatpush.bf16.msra.mxu0 %v917
        %1069 = vmatmul.bf16.gmra.mxu0 %v578
        %v1070 = vpop.f32.mrf.mxu0
        %v1071 = vadd.f32 0.0, %v1070
        %v1072 = vpop.f32.mrf.mxu0
        %1073 = vdwg.mxu0
        %1074 = vmatpush.bf16.msra.mxu0 %v962
        %1075 = vmatpush.bf16.msra.mxu0 %v959
        %1076 = vmatpush.bf16.msra.mxu0 %v956
        %1077 = vmatpush.bf16.msra.mxu0 %v953
        %1078 = vmatpush.bf16.msra.mxu0 %v950
        %1079 = vmatpush.bf16.msra.mxu0 %v947
        %1080 = vmatpush.bf16.msra.mxu0 %v944
        %1081 = vmatpush.bf16.msra.mxu0 %v941
        %1082 = vmatmul.bf16.gmra.mxu0 %v579
        %v1083 = vpop.f32.mrf.mxu0
        %v1084 = vadd.f32 %v1071, %v1083
        %v1085 = vpop.f32.mrf.mxu0
        %1086 = vdwg.mxu0
        %1087 = vmatpush.bf16.msra.mxu0 %v986
        %1088 = vmatpush.bf16.msra.mxu0 %v983
        %1089 = vmatpush.bf16.msra.mxu0 %v980
        %1090 = vmatpush.bf16.msra.mxu0 %v977
        %1091 = vmatpush.bf16.msra.mxu0 %v974
        %1092 = vmatpush.bf16.msra.mxu0 %v971
        %1093 = vmatpush.bf16.msra.mxu0 %v968
        %1094 = vmatpush.bf16.msra.mxu0 %v965
        %1095 = vmatmul.bf16.gmra.mxu0 %v580
        %v1096 = vpop.f32.mrf.mxu0
        %v1097 = vadd.f32 %v1084, %v1096
        %v1098 = vpop.f32.mrf.mxu0
        %1099 = vdwg.mxu0
        %1100 = vmatpush.bf16.msra.mxu0 %v939
        %1101 = vmatpush.bf16.msra.mxu0 %v936
        %1102 = vmatpush.bf16.msra.mxu0 %v933
        %1103 = vmatpush.bf16.msra.mxu0 %v930
        %1104 = vmatpush.bf16.msra.mxu0 %v927
        %1105 = vmatpush.bf16.msra.mxu0 %v924
        %1106 = vmatpush.bf16.msra.mxu0 %v921
        %1107 = vmatpush.bf16.msra.mxu0 %v918
        %1108 = vmatmul.bf16.gmra.mxu0 %v578
        %v1109 = vpop.f32.mrf.mxu0
        %v1110 = vadd.f32 0.0, %v1109
        %v1111 = vpop.f32.mrf.mxu0
        %1112 = vdwg.mxu0
        %1113 = vmatpush.bf16.msra.mxu0 %v963
        %1114 = vmatpush.bf16.msra.mxu0 %v960
        %1115 = vmatpush.bf16.msra.mxu0 %v957
        %1116 = vmatpush.bf16.msra.mxu0 %v954
        %1117 = vmatpush.bf16.msra.mxu0 %v951
        %1118 = vmatpush.bf16.msra.mxu0 %v948
        %1119 = vmatpush.bf16.msra.mxu0 %v945
        %1120 = vmatpush.bf16.msra.mxu0 %v942
        %1121 = vmatmul.bf16.gmra.mxu0 %v579
        %v1122 = vpop.f32.mrf.mxu0
        %v1123 = vadd.f32 %v1110, %v1122
        %v1124 = vpop.f32.mrf.mxu0
        %1125 = vdwg.mxu0
        %1126 = vmatpush.bf16.msra.mxu0 %v987
        %1127 = vmatpush.bf16.msra.mxu0 %v984
        %1128 = vmatpush.bf16.msra.mxu0 %v981
        %1129 = vmatpush.bf16.msra.mxu0 %v978
        %1130 = vmatpush.bf16.msra.mxu0 %v975
        %1131 = vmatpush.bf16.msra.mxu0 %v972
        %1132 = vmatpush.bf16.msra.mxu0 %v969
        %1133 = vmatpush.bf16.msra.mxu0 %v966
        %1134 = vmatmul.bf16.gmra.mxu0 %v580
        %v1135 = vpop.f32.mrf.mxu0
        %v1136 = vadd.f32 %v1123, %v1135
        %v1137 = vpop.f32.mrf.mxu0
        %1138 = vdwg.mxu0
        %1139 = vmatpush.bf16.msra.mxu0 %v940
        %1140 = vmatpush.bf16.msra.mxu0 %v937
        %1141 = vmatpush.bf16.msra.mxu0 %v934
        %1142 = vmatpush.bf16.msra.mxu0 %v931
        %1143 = vmatpush.bf16.msra.mxu0 %v928
        %1144 = vmatpush.bf16.msra.mxu0 %v925
        %1145 = vmatpush.bf16.msra.mxu0 %v922
        %1146 = vmatpush.bf16.msra.mxu0 %v919
        %1147 = vmatmul.bf16.gmra.mxu0 %v578
        %v1148 = vpop.f32.mrf.mxu0
        %v1149 = vadd.f32 0.0, %v1148
        %v1150 = vpop.f32.mrf.mxu0
        %1151 = vdwg.mxu0
        %1152 = vmatpush.bf16.msra.mxu0 %v964
        %1153 = vmatpush.bf16.msra.mxu0 %v961
        %1154 = vmatpush.bf16.msra.mxu0 %v958
        %1155 = vmatpush.bf16.msra.mxu0 %v955
        %1156 = vmatpush.bf16.msra.mxu0 %v952
        %1157 = vmatpush.bf16.msra.mxu0 %v949
        %1158 = vmatpush.bf16.msra.mxu0 %v946
        %1159 = vmatpush.bf16.msra.mxu0 %v943
        %1160 = vmatmul.bf16.gmra.mxu0 %v579
        %v1161 = vpop.f32.mrf.mxu0
        %v1162 = vadd.f32 %v1149, %v1161
        %v1163 = vpop.f32.mrf.mxu0
        %1164 = vdwg.mxu0
        %1165 = vmatpush.bf16.msra.mxu0 %v988
        %1166 = vmatpush.bf16.msra.mxu0 %v985
        %1167 = vmatpush.bf16.msra.mxu0 %v982
        %1168 = vmatpush.bf16.msra.mxu0 %v979
        %1169 = vmatpush.bf16.msra.mxu0 %v976
        %1170 = vmatpush.bf16.msra.mxu0 %v973
        %1171 = vmatpush.bf16.msra.mxu0 %v970
        %1172 = vmatpush.bf16.msra.mxu0 %v967
        %1173 = vmatmul.bf16.gmra.mxu0 %v580
        %v1174 = vpop.f32.mrf.mxu0
        %v1175 = vadd.f32 %v1162, %v1174
        %v1176 = vpop.f32.mrf.mxu0
        %1177 = vdwg.mxu0
        %v1178 = vld [vmem:[%s2] sm:$0xff]
        %v1179 = vld [vmem:[%s2 + $0x8] sm:$0xf]
        %v1180 = vld [vmem:[%s2 + $0xc] sm:$0xff]
        %v1181 = vld [vmem:[%s2 + $0x14] sm:$0xf]
        %v1182 = vld [vmem:[%s2 + $0x18] sm:$0xff]
        %v1183 = vld [vmem:[%s2 + $0x20] sm:$0xf]
        %v1184 = vld [vmem:[%s2 + $0x24] sm:$0xff]
        %v1185 = vld [vmem:[%s2 + $0x2c] sm:$0xf]
        %v1186 = vld [vmem:[%s2 + $0x30] sm:$0xff]
        %v1187 = vld [vmem:[%s2 + $0x38] sm:$0xf]
        %v1188 = vld [vmem:[%s2 + $0x3c] sm:$0xff]
        %v1189 = vld [vmem:[%s2 + $0x44] sm:$0xf]
        %v1190 = vld [vmem:[%s2 + $0x48] sm:$0xff]
        %v1191 = vld [vmem:[%s2 + $0x50] sm:$0xf]
        %v1192 = vld [vmem:[%s2 + $0x54] sm:$0xff]
        %v1193 = vld [vmem:[%s2 + $0x5c] sm:$0xf]
        %v1194 = vld [vmem:[%s2 + $0x60] sm:$0xff]
        %v1195 = vld [vmem:[%s2 + $0x68] sm:$0xf]
        %v1196 = vld [vmem:[%s2 + $0x6c] sm:$0xff]
        %v1197 = vld [vmem:[%s2 + $0x74] sm:$0xf]
        %v1198 = vld [vmem:[%s2 + $0x78] sm:$0xff]
        %v1199 = vld [vmem:[%s2 + $0x80] sm:$0xf]
        %v1200 = vld [vmem:[%s2 + $0x84] sm:$0xff]
        %v1201 = vld [vmem:[%s2 + $0x8c] sm:$0xf]
        %v1202 = vld [vmem:[%s2 + $0x90] sm:$0xff]
        %v1203 = vld [vmem:[%s2 + $0x98] sm:$0xf]
        %v1204 = vld [vmem:[%s2 + $0x9c] sm:$0xff]
        %v1205 = vld [vmem:[%s2 + $0xa4] sm:$0xf]
        %v1206 = vld [vmem:[%s2 + $0xa8] sm:$0xff]
        %v1207 = vld [vmem:[%s2 + $0xb0] sm:$0xf]
        %v1208 = vld [vmem:[%s2 + $0xb4] sm:$0xff]
        %v1209 = vld [vmem:[%s2 + $0xbc] sm:$0xf]
        %v1210 = vld [vmem:[%s2 + $0xc0] sm:$0xff]
        %v1211 = vld [vmem:[%s2 + $0xc8] sm:$0xf]
        %v1212 = vld [vmem:[%s2 + $0xcc] sm:$0xff]
        %v1213 = vld [vmem:[%s2 + $0xd4] sm:$0xf]
        %v1214 = vld [vmem:[%s2 + $0xd8] sm:$0xff]
        %v1215 = vld [vmem:[%s2 + $0xe0] sm:$0xf]
        %v1216 = vld [vmem:[%s2 + $0xe4] sm:$0xff]
        %v1217 = vld [vmem:[%s2 + $0xec] sm:$0xf]
        %v1218 = vld [vmem:[%s2 + $0xf0] sm:$0xff]
        %v1219 = vld [vmem:[%s2 + $0xf8] sm:$0xf]
        %v1220 = vld [vmem:[%s2 + $0xfc] sm:$0xff]
        %v1221 = vld [vmem:[%s2 + $0x104] sm:$0xf]
        %v1222 = vld [vmem:[%s2 + $0x108] sm:$0xff]
        %v1223 = vld [vmem:[%s2 + $0x110] sm:$0xf]
        %v1224 = vld [vmem:[%s2 + $0x114] sm:$0xff]
        %v1225 = vld [vmem:[%s2 + $0x11c] sm:$0xf]
        %v1226 = vld [vmem:[%s2 + $0x120] sm:$0xff]
        %v1227 = vld [vmem:[%s2 + $0x128] sm:$0xf]
        %v1228 = vld [vmem:[%s2 + $0x12c] sm:$0xff]
        %v1229 = vld [vmem:[%s2 + $0x134] sm:$0xf]
        %v1230 = vld [vmem:[%s2 + $0x138] sm:$0xff]
        %v1231 = vld [vmem:[%s2 + $0x140] sm:$0xf]
        %v1232 = vld [vmem:[%s2 + $0x144] sm:$0xff]
        %v1233 = vld [vmem:[%s2 + $0x14c] sm:$0xf]
        %v1234 = vld [vmem:[%s2 + $0x150] sm:$0xff]
        %v1235 = vld [vmem:[%s2 + $0x158] sm:$0xf]
        %v1236 = vld [vmem:[%s2 + $0x15c] sm:$0xff]
        %v1237 = vld [vmem:[%s2 + $0x164] sm:$0xf]
        %v1238 = vld [vmem:[%s2 + $0x168] sm:$0xff]
        %v1239 = vld [vmem:[%s2 + $0x170] sm:$0xf]
        %v1240 = vld [vmem:[%s2 + $0x174] sm:$0xff]
        %v1241 = vld [vmem:[%s2 + $0x17c] sm:$0xf]
        %v1242 = vld [vmem:[%s2 + $0x180] sm:$0xff]
        %v1243 = vld [vmem:[%s2 + $0x188] sm:$0xf]
        %v1244 = vld [vmem:[%s2 + $0x18c] sm:$0xff]
        %v1245 = vld [vmem:[%s2 + $0x194] sm:$0xf]
        %v1246 = vld [vmem:[%s2 + $0x198] sm:$0xff]
        %v1247 = vld [vmem:[%s2 + $0x1a0] sm:$0xf]
        %v1248 = vld [vmem:[%s2 + $0x1a4] sm:$0xff]
        %v1249 = vld [vmem:[%s2 + $0x1ac] sm:$0xf]
        %v1250 = vld [vmem:[%s2 + $0x1b0] sm:$0xff]
        %v1251 = vld [vmem:[%s2 + $0x1b8] sm:$0xf]
        %v1252 = vld [vmem:[%s2 + $0x1bc] sm:$0xff]
        %v1253 = vld [vmem:[%s2 + $0x1c4] sm:$0xf]
        %v1254 = vld [vmem:[%s2 + $0x1c8] sm:$0xff]
        %v1255 = vld [vmem:[%s2 + $0x1d0] sm:$0xf]
        %v1256 = vld [vmem:[%s2 + $0x1d4] sm:$0xff]
        %v1257 = vld [vmem:[%s2 + $0x1dc] sm:$0xf]
        %v1258 = vld [vmem:[%s2 + $0x1e0] sm:$0xff]
        %v1259 = vld [vmem:[%s2 + $0x1e8] sm:$0xf]
        %v1260 = vld [vmem:[%s2 + $0x1ec] sm:$0xff]
        %v1261 = vld [vmem:[%s2 + $0x1f4] sm:$0xf]
        %v1262 = vld [vmem:[%s2 + $0x1f8] sm:$0xff]
        %v1263 = vld [vmem:[%s2 + $0x200] sm:$0xf]
        %v1264 = vld [vmem:[%s2 + $0x204] sm:$0xff]
        %v1265 = vld [vmem:[%s2 + $0x20c] sm:$0xf]
        %v1266 = vld [vmem:[%s2 + $0x210] sm:$0xff]
        %v1267 = vld [vmem:[%s2 + $0x218] sm:$0xf]
        %v1268 = vld [vmem:[%s2 + $0x21c] sm:$0xff]
        %v1269 = vld [vmem:[%s2 + $0x224] sm:$0xf]
        %v1270 = vld [vmem:[%s2 + $0x228] sm:$0xff]
        %v1271 = vld [vmem:[%s2 + $0x230] sm:$0xf]
        %v1272 = vld [vmem:[%s2 + $0x234] sm:$0xff]
        %v1273 = vld [vmem:[%s2 + $0x23c] sm:$0xf]
        %v1370 = vunpack.c.l.b16 %v1178
        %v1371 = vunpack.c.h.b16 %v1178
        %v1372 = vunpack.c.l.b16 %v1179
        %v1373 = vunpack.c.l.b16 %v1180
        %v1374 = vunpack.c.h.b16 %v1180
        %v1375 = vunpack.c.l.b16 %v1181
        %v1376 = vunpack.c.l.b16 %v1182
        %v1377 = vunpack.c.h.b16 %v1182
        %v1378 = vunpack.c.l.b16 %v1183
        %v1379 = vunpack.c.l.b16 %v1184
        %v1380 = vunpack.c.h.b16 %v1184
        %v1381 = vunpack.c.l.b16 %v1185
        %v1382 = vunpack.c.l.b16 %v1186
        %v1383 = vunpack.c.h.b16 %v1186
        %v1384 = vunpack.c.l.b16 %v1187
        %v1385 = vunpack.c.l.b16 %v1188
        %v1386 = vunpack.c.h.b16 %v1188
        %v1387 = vunpack.c.l.b16 %v1189
        %v1388 = vunpack.c.l.b16 %v1190
        %v1389 = vunpack.c.h.b16 %v1190
        %v1390 = vunpack.c.l.b16 %v1191
        %v1391 = vunpack.c.l.b16 %v1192
        %v1392 = vunpack.c.h.b16 %v1192
        %v1393 = vunpack.c.l.b16 %v1193
        %v1394 = vunpack.c.l.b16 %v1194
        %v1395 = vunpack.c.h.b16 %v1194
        %v1396 = vunpack.c.l.b16 %v1195
        %v1397 = vunpack.c.l.b16 %v1196
        %v1398 = vunpack.c.h.b16 %v1196
        %v1399 = vunpack.c.l.b16 %v1197
        %v1400 = vunpack.c.l.b16 %v1198
        %v1401 = vunpack.c.h.b16 %v1198
        %v1402 = vunpack.c.l.b16 %v1199
        %v1403 = vunpack.c.l.b16 %v1200
        %v1404 = vunpack.c.h.b16 %v1200
        %v1405 = vunpack.c.l.b16 %v1201
        %v1406 = vunpack.c.l.b16 %v1202
        %v1407 = vunpack.c.h.b16 %v1202
        %v1408 = vunpack.c.l.b16 %v1203
        %v1409 = vunpack.c.l.b16 %v1204
        %v1410 = vunpack.c.h.b16 %v1204
        %v1411 = vunpack.c.l.b16 %v1205
        %v1412 = vunpack.c.l.b16 %v1206
        %v1413 = vunpack.c.h.b16 %v1206
        %v1414 = vunpack.c.l.b16 %v1207
        %v1415 = vunpack.c.l.b16 %v1208
        %v1416 = vunpack.c.h.b16 %v1208
        %v1417 = vunpack.c.l.b16 %v1209
        %v1418 = vunpack.c.l.b16 %v1210
        %v1419 = vunpack.c.h.b16 %v1210
        %v1420 = vunpack.c.l.b16 %v1211
        %v1421 = vunpack.c.l.b16 %v1212
        %v1422 = vunpack.c.h.b16 %v1212
        %v1423 = vunpack.c.l.b16 %v1213
        %v1424 = vunpack.c.l.b16 %v1214
        %v1425 = vunpack.c.h.b16 %v1214
        %v1426 = vunpack.c.l.b16 %v1215
        %v1427 = vunpack.c.l.b16 %v1216
        %v1428 = vunpack.c.h.b16 %v1216
        %v1429 = vunpack.c.l.b16 %v1217
        %v1430 = vunpack.c.l.b16 %v1218
        %v1431 = vunpack.c.h.b16 %v1218
        %v1432 = vunpack.c.l.b16 %v1219
        %v1433 = vunpack.c.l.b16 %v1220
        %v1434 = vunpack.c.h.b16 %v1220
        %v1435 = vunpack.c.l.b16 %v1221
        %v1436 = vunpack.c.l.b16 %v1222
        %v1437 = vunpack.c.h.b16 %v1222
        %v1438 = vunpack.c.l.b16 %v1223
        %v1439 = vunpack.c.l.b16 %v1224
        %v1440 = vunpack.c.h.b16 %v1224
        %v1441 = vunpack.c.l.b16 %v1225
        %v1442 = vunpack.c.l.b16 %v1226
        %v1443 = vunpack.c.h.b16 %v1226
        %v1444 = vunpack.c.l.b16 %v1227
        %v1445 = vunpack.c.l.b16 %v1228
        %v1446 = vunpack.c.h.b16 %v1228
        %v1447 = vunpack.c.l.b16 %v1229
        %v1448 = vunpack.c.l.b16 %v1230
        %v1449 = vunpack.c.h.b16 %v1230
        %v1450 = vunpack.c.l.b16 %v1231
        %v1451 = vunpack.c.l.b16 %v1232
        %v1452 = vunpack.c.h.b16 %v1232
        %v1453 = vunpack.c.l.b16 %v1233
        %v1454 = vunpack.c.l.b16 %v1234
        %v1455 = vunpack.c.h.b16 %v1234
        %v1456 = vunpack.c.l.b16 %v1235
        %v1457 = vunpack.c.l.b16 %v1236
        %v1458 = vunpack.c.h.b16 %v1236
        %v1459 = vunpack.c.l.b16 %v1237
        %v1460 = vunpack.c.l.b16 %v1238
        %v1461 = vunpack.c.h.b16 %v1238
        %v1462 = vunpack.c.l.b16 %v1239
        %v1463 = vunpack.c.l.b16 %v1240
        %v1464 = vunpack.c.h.b16 %v1240
        %v1465 = vunpack.c.l.b16 %v1241
        %v1466 = vunpack.c.l.b16 %v1242
        %v1467 = vunpack.c.h.b16 %v1242
        %v1468 = vunpack.c.l.b16 %v1243
        %v1469 = vunpack.c.l.b16 %v1244
        %v1470 = vunpack.c.h.b16 %v1244
        %v1471 = vunpack.c.l.b16 %v1245
        %v1472 = vunpack.c.l.b16 %v1246
        %v1473 = vunpack.c.h.b16 %v1246
        %v1474 = vunpack.c.l.b16 %v1247
        %v1475 = vunpack.c.l.b16 %v1248
        %v1476 = vunpack.c.h.b16 %v1248
        %v1477 = vunpack.c.l.b16 %v1249
        %v1478 = vunpack.c.l.b16 %v1250
        %v1479 = vunpack.c.h.b16 %v1250
        %v1480 = vunpack.c.l.b16 %v1251
        %v1481 = vunpack.c.l.b16 %v1252
        %v1482 = vunpack.c.h.b16 %v1252
        %v1483 = vunpack.c.l.b16 %v1253
        %v1484 = vunpack.c.l.b16 %v1254
        %v1485 = vunpack.c.h.b16 %v1254
        %v1486 = vunpack.c.l.b16 %v1255
        %v1487 = vunpack.c.l.b16 %v1256
        %v1488 = vunpack.c.h.b16 %v1256
        %v1489 = vunpack.c.l.b16 %v1257
        %v1490 = vunpack.c.l.b16 %v1258
        %v1491 = vunpack.c.h.b16 %v1258
        %v1492 = vunpack.c.l.b16 %v1259
        %v1493 = vunpack.c.l.b16 %v1260
        %v1494 = vunpack.c.h.b16 %v1260
        %v1495 = vunpack.c.l.b16 %v1261
        %v1496 = vunpack.c.l.b16 %v1262
        %v1497 = vunpack.c.h.b16 %v1262
        %v1498 = vunpack.c.l.b16 %v1263
        %v1499 = vunpack.c.l.b16 %v1264
        %v1500 = vunpack.c.h.b16 %v1264
        %v1501 = vunpack.c.l.b16 %v1265
        %v1502 = vunpack.c.l.b16 %v1266
        %v1503 = vunpack.c.h.b16 %v1266
        %v1504 = vunpack.c.l.b16 %v1267
        %v1505 = vunpack.c.l.b16 %v1268
        %v1506 = vunpack.c.h.b16 %v1268
        %v1507 = vunpack.c.l.b16 %v1269
        %v1508 = vunpack.c.l.b16 %v1270
        %v1509 = vunpack.c.h.b16 %v1270
        %v1510 = vunpack.c.l.b16 %v1271
        %v1511 = vunpack.c.l.b16 %v1272
        %v1512 = vunpack.c.h.b16 %v1272
        %v1513 = vunpack.c.l.b16 %v1273
        %v1514 = vpack.c.b16 %v1373, %v1370
        %v1515 = vpack.c.b16 %v1374, %v1371
        %v1516 = vpack.c.b16 %v1375, %v1372
        %v1517 = vpack.c.b16 %v1379, %v1376
        %v1518 = vpack.c.b16 %v1380, %v1377
        %v1519 = vpack.c.b16 %v1381, %v1378
        %v1520 = vpack.c.b16 %v1385, %v1382
        %v1521 = vpack.c.b16 %v1386, %v1383
        %v1522 = vpack.c.b16 %v1387, %v1384
        %v1523 = vpack.c.b16 %v1391, %v1388
        %v1524 = vpack.c.b16 %v1392, %v1389
        %v1525 = vpack.c.b16 %v1393, %v1390
        %v1526 = vpack.c.b16 %v1397, %v1394
        %v1527 = vpack.c.b16 %v1398, %v1395
        %v1528 = vpack.c.b16 %v1399, %v1396
        %v1529 = vpack.c.b16 %v1403, %v1400
        %v1530 = vpack.c.b16 %v1404, %v1401
        %v1531 = vpack.c.b16 %v1405, %v1402
        %v1532 = vpack.c.b16 %v1409, %v1406
        %v1533 = vpack.c.b16 %v1410, %v1407
        %v1534 = vpack.c.b16 %v1411, %v1408
        %v1535 = vpack.c.b16 %v1415, %v1412
        %v1536 = vpack.c.b16 %v1416, %v1413
        %v1537 = vpack.c.b16 %v1417, %v1414
        %v1538 = vpack.c.b16 %v1421, %v1418
        %v1539 = vpack.c.b16 %v1422, %v1419
        %v1540 = vpack.c.b16 %v1423, %v1420
        %v1541 = vpack.c.b16 %v1427, %v1424
        %v1542 = vpack.c.b16 %v1428, %v1425
        %v1543 = vpack.c.b16 %v1429, %v1426
        %v1544 = vpack.c.b16 %v1433, %v1430
        %v1545 = vpack.c.b16 %v1434, %v1431
        %v1546 = vpack.c.b16 %v1435, %v1432
        %v1547 = vpack.c.b16 %v1439, %v1436
        %v1548 = vpack.c.b16 %v1440, %v1437
        %v1549 = vpack.c.b16 %v1441, %v1438
        %v1550 = vpack.c.b16 %v1445, %v1442
        %v1551 = vpack.c.b16 %v1446, %v1443
        %v1552 = vpack.c.b16 %v1447, %v1444
        %v1553 = vpack.c.b16 %v1451, %v1448
        %v1554 = vpack.c.b16 %v1452, %v1449
        %v1555 = vpack.c.b16 %v1453, %v1450
        %v1556 = vpack.c.b16 %v1457, %v1454
        %v1557 = vpack.c.b16 %v1458, %v1455
        %v1558 = vpack.c.b16 %v1459, %v1456
        %v1559 = vpack.c.b16 %v1463, %v1460
        %v1560 = vpack.c.b16 %v1464, %v1461
        %v1561 = vpack.c.b16 %v1465, %v1462
        %v1562 = vpack.c.b16 %v1469, %v1466
        %v1563 = vpack.c.b16 %v1470, %v1467
        %v1564 = vpack.c.b16 %v1471, %v1468
        %v1565 = vpack.c.b16 %v1475, %v1472
        %v1566 = vpack.c.b16 %v1476, %v1473
        %v1567 = vpack.c.b16 %v1477, %v1474
        %v1568 = vpack.c.b16 %v1481, %v1478
        %v1569 = vpack.c.b16 %v1482, %v1479
        %v1570 = vpack.c.b16 %v1483, %v1480
        %v1571 = vpack.c.b16 %v1487, %v1484
        %v1572 = vpack.c.b16 %v1488, %v1485
        %v1573 = vpack.c.b16 %v1489, %v1486
        %v1574 = vpack.c.b16 %v1493, %v1490
        %v1575 = vpack.c.b16 %v1494, %v1491
        %v1576 = vpack.c.b16 %v1495, %v1492
        %v1577 = vpack.c.b16 %v1499, %v1496
        %v1578 = vpack.c.b16 %v1500, %v1497
        %v1579 = vpack.c.b16 %v1501, %v1498
        %v1580 = vpack.c.b16 %v1505, %v1502
        %v1581 = vpack.c.b16 %v1506, %v1503
        %v1582 = vpack.c.b16 %v1507, %v1504
        %v1583 = vpack.c.b16 %v1511, %v1508
        %v1584 = vpack.c.b16 %v1512, %v1509
        %v1585 = vpack.c.b16 %v1513, %v1510
        %1658 = vmatpush.bf16.msra.mxu0 %v1535
        %1659 = vmatpush.bf16.msra.mxu0 %v1532
        %1660 = vmatpush.bf16.msra.mxu0 %v1529
        %1661 = vmatpush.bf16.msra.mxu0 %v1526
        %1662 = vmatpush.bf16.msra.mxu0 %v1523
        %1663 = vmatpush.bf16.msra.mxu0 %v1520
        %1664 = vmatpush.bf16.msra.mxu0 %v1517
        %1665 = vmatpush.bf16.msra.mxu0 %v1514
        %1666 = vmatmul.bf16.gmra.mxu0 %v578
        %v1667 = vpop.f32.mrf.mxu0
        %v1668 = vadd.f32 0.0, %v1667
        %v1669 = vpop.f32.mrf.mxu0
        %1670 = vdwg.mxu0
        %1671 = vmatpush.bf16.msra.mxu0 %v1559
        %1672 = vmatpush.bf16.msra.mxu0 %v1556
        %1673 = vmatpush.bf16.msra.mxu0 %v1553
        %1674 = vmatpush.bf16.msra.mxu0 %v1550
        %1675 = vmatpush.bf16.msra.mxu0 %v1547
        %1676 = vmatpush.bf16.msra.mxu0 %v1544
        %1677 = vmatpush.bf16.msra.mxu0 %v1541
        %1678 = vmatpush.bf16.msra.mxu0 %v1538
        %1679 = vmatmul.bf16.gmra.mxu0 %v579
        %v1680 = vpop.f32.mrf.mxu0
        %v1681 = vadd.f32 %v1668, %v1680
        %v1682 = vpop.f32.mrf.mxu0
        %1683 = vdwg.mxu0
        %1684 = vmatpush.bf16.msra.mxu0 %v1583
        %1685 = vmatpush.bf16.msra.mxu0 %v1580
        %1686 = vmatpush.bf16.msra.mxu0 %v1577
        %1687 = vmatpush.bf16.msra.mxu0 %v1574
        %1688 = vmatpush.bf16.msra.mxu0 %v1571
        %1689 = vmatpush.bf16.msra.mxu0 %v1568
        %1690 = vmatpush.bf16.msra.mxu0 %v1565
        %1691 = vmatpush.bf16.msra.mxu0 %v1562
        %1692 = vmatmul.bf16.gmra.mxu0 %v580
        %v1693 = vpop.f32.mrf.mxu0
        %v1694 = vadd.f32 %v1681, %v1693
        %v1695 = vpop.f32.mrf.mxu0
        %1696 = vdwg.mxu0
        %1697 = vmatpush.bf16.msra.mxu0 %v1536
        %1698 = vmatpush.bf16.msra.mxu0 %v1533
        %1699 = vmatpush.bf16.msra.mxu0 %v1530
        %1700 = vmatpush.bf16.msra.mxu0 %v1527
        %1701 = vmatpush.bf16.msra.mxu0 %v1524
        %1702 = vmatpush.bf16.msra.mxu0 %v1521
        %1703 = vmatpush.bf16.msra.mxu0 %v1518
        %1704 = vmatpush.bf16.msra.mxu0 %v1515
        %1705 = vmatmul.bf16.gmra.mxu0 %v578
        %v1706 = vpop.f32.mrf.mxu0
        %v1707 = vadd.f32 0.0, %v1706
        %v1708 = vpop.f32.mrf.mxu0
        %1709 = vdwg.mxu0
        %1710 = vmatpush.bf16.msra.mxu0 %v1560
        %1711 = vmatpush.bf16.msra.mxu0 %v1557
        %1712 = vmatpush.bf16.msra.mxu0 %v1554
        %1713 = vmatpush.bf16.msra.mxu0 %v1551
        %1714 = vmatpush.bf16.msra.mxu0 %v1548
        %1715 = vmatpush.bf16.msra.mxu0 %v1545
        %1716 = vmatpush.bf16.msra.mxu0 %v1542
        %1717 = vmatpush.bf16.msra.mxu0 %v1539
        %1718 = vmatmul.bf16.gmra.mxu0 %v579
        %v1719 = vpop.f32.mrf.mxu0
        %v1720 = vadd.f32 %v1707, %v1719
        %v1721 = vpop.f32.mrf.mxu0
        %1722 = vdwg.mxu0
        %1723 = vmatpush.bf16.msra.mxu0 %v1584
        %1724 = vmatpush.bf16.msra.mxu0 %v1581
        %1725 = vmatpush.bf16.msra.mxu0 %v1578
        %1726 = vmatpush.bf16.msra.mxu0 %v1575
        %1727 = vmatpush.bf16.msra.mxu0 %v1572
        %1728 = vmatpush.bf16.msra.mxu0 %v1569
        %1729 = vmatpush.bf16.msra.mxu0 %v1566
        %1730 = vmatpush.bf16.msra.mxu0 %v1563
        %1731 = vmatmul.bf16.gmra.mxu0 %v580
        %v1732 = vpop.f32.mrf.mxu0
        %v1733 = vadd.f32 %v1720, %v1732
        %v1734 = vpop.f32.mrf.mxu0
        %1735 = vdwg.mxu0
        %1736 = vmatpush.bf16.msra.mxu0 %v1537
        %1737 = vmatpush.bf16.msra.mxu0 %v1534
        %1738 = vmatpush.bf16.msra.mxu0 %v1531
        %1739 = vmatpush.bf16.msra.mxu0 %v1528
        %1740 = vmatpush.bf16.msra.mxu0 %v1525
        %1741 = vmatpush.bf16.msra.mxu0 %v1522
        %1742 = vmatpush.bf16.msra.mxu0 %v1519
        %1743 = vmatpush.bf16.msra.mxu0 %v1516
        %1744 = vmatmul.bf16.gmra.mxu0 %v578
        %v1745 = vpop.f32.mrf.mxu0
        %v1746 = vadd.f32 0.0, %v1745
        %v1747 = vpop.f32.mrf.mxu0
        %1748 = vdwg.mxu0
        %1749 = vmatpush.bf16.msra.mxu0 %v1561
        %1750 = vmatpush.bf16.msra.mxu0 %v1558
        %1751 = vmatpush.bf16.msra.mxu0 %v1555
        %1752 = vmatpush.bf16.msra.mxu0 %v1552
        %1753 = vmatpush.bf16.msra.mxu0 %v1549
        %1754 = vmatpush.bf16.msra.mxu0 %v1546
        %1755 = vmatpush.bf16.msra.mxu0 %v1543
        %1756 = vmatpush.bf16.msra.mxu0 %v1540
        %1757 = vmatmul.bf16.gmra.mxu0 %v579
        %v1758 = vpop.f32.mrf.mxu0
        %v1759 = vadd.f32 %v1746, %v1758
        %v1760 = vpop.f32.mrf.mxu0
        %1761 = vdwg.mxu0
        %1762 = vmatpush.bf16.msra.mxu0 %v1585
        %1763 = vmatpush.bf16.msra.mxu0 %v1582
        %1764 = vmatpush.bf16.msra.mxu0 %v1579
        %1765 = vmatpush.bf16.msra.mxu0 %v1576
        %1766 = vmatpush.bf16.msra.mxu0 %v1573
        %1767 = vmatpush.bf16.msra.mxu0 %v1570
        %1768 = vmatpush.bf16.msra.mxu0 %v1567
        %1769 = vmatpush.bf16.msra.mxu0 %v1564
        %1770 = vmatmul.bf16.gmra.mxu0 %v580
        %v1771 = vpop.f32.mrf.mxu0
        %v1772 = vadd.f32 %v1759, %v1771
        %v1773 = vpop.f32.mrf.mxu0
        %1774 = vdwg.mxu0
        %v1775 = vld [vmem:[%s3] sm:$0xff]
        %v1776 = vld [vmem:[%s3 + $0x8] sm:$0xf]
        %v1777 = vld [vmem:[%s3 + $0xc] sm:$0xff]
        %v1778 = vld [vmem:[%s3 + $0x14] sm:$0xf]
        %v1779 = vld [vmem:[%s3 + $0x18] sm:$0xff]
        %v1780 = vld [vmem:[%s3 + $0x20] sm:$0xf]
        %v1781 = vld [vmem:[%s3 + $0x24] sm:$0xff]
        %v1782 = vld [vmem:[%s3 + $0x2c] sm:$0xf]
        %v1783 = vld [vmem:[%s3 + $0x30] sm:$0xff]
        %v1784 = vld [vmem:[%s3 + $0x38] sm:$0xf]
        %v1785 = vld [vmem:[%s3 + $0x3c] sm:$0xff]
        %v1786 = vld [vmem:[%s3 + $0x44] sm:$0xf]
        %v1787 = vld [vmem:[%s3 + $0x48] sm:$0xff]
        %v1788 = vld [vmem:[%s3 + $0x50] sm:$0xf]
        %v1789 = vld [vmem:[%s3 + $0x54] sm:$0xff]
        %v1790 = vld [vmem:[%s3 + $0x5c] sm:$0xf]
        %v1791 = vld [vmem:[%s3 + $0x60] sm:$0xff]
        %v1792 = vld [vmem:[%s3 + $0x68] sm:$0xf]
        %v1793 = vld [vmem:[%s3 + $0x6c] sm:$0xff]
        %v1794 = vld [vmem:[%s3 + $0x74] sm:$0xf]
        %v1795 = vld [vmem:[%s3 + $0x78] sm:$0xff]
        %v1796 = vld [vmem:[%s3 + $0x80] sm:$0xf]
        %v1797 = vld [vmem:[%s3 + $0x84] sm:$0xff]
        %v1798 = vld [vmem:[%s3 + $0x8c] sm:$0xf]
        %v1799 = vld [vmem:[%s3 + $0x90] sm:$0xff]
        %v1800 = vld [vmem:[%s3 + $0x98] sm:$0xf]
        %v1801 = vld [vmem:[%s3 + $0x9c] sm:$0xff]
        %v1802 = vld [vmem:[%s3 + $0xa4] sm:$0xf]
        %v1803 = vld [vmem:[%s3 + $0xa8] sm:$0xff]
        %v1804 = vld [vmem:[%s3 + $0xb0] sm:$0xf]
        %v1805 = vld [vmem:[%s3 + $0xb4] sm:$0xff]
        %v1806 = vld [vmem:[%s3 + $0xbc] sm:$0xf]
        %v1807 = vld [vmem:[%s3 + $0xc0] sm:$0xff]
        %v1808 = vld [vmem:[%s3 + $0xc8] sm:$0xf]
        %v1809 = vld [vmem:[%s3 + $0xcc] sm:$0xff]
        %v1810 = vld [vmem:[%s3 + $0xd4] sm:$0xf]
        %v1811 = vld [vmem:[%s3 + $0xd8] sm:$0xff]
        %v1812 = vld [vmem:[%s3 + $0xe0] sm:$0xf]
        %v1813 = vld [vmem:[%s3 + $0xe4] sm:$0xff]
        %v1814 = vld [vmem:[%s3 + $0xec] sm:$0xf]
        %v1815 = vld [vmem:[%s3 + $0xf0] sm:$0xff]
        %v1816 = vld [vmem:[%s3 + $0xf8] sm:$0xf]
        %v1817 = vld [vmem:[%s3 + $0xfc] sm:$0xff]
        %v1818 = vld [vmem:[%s3 + $0x104] sm:$0xf]
        %v1819 = vld [vmem:[%s3 + $0x108] sm:$0xff]
        %v1820 = vld [vmem:[%s3 + $0x110] sm:$0xf]
        %v1821 = vld [vmem:[%s3 + $0x114] sm:$0xff]
        %v1822 = vld [vmem:[%s3 + $0x11c] sm:$0xf]
        %v1823 = vld [vmem:[%s3 + $0x120] sm:$0xff]
        %v1824 = vld [vmem:[%s3 + $0x128] sm:$0xf]
        %v1825 = vld [vmem:[%s3 + $0x12c] sm:$0xff]
        %v1826 = vld [vmem:[%s3 + $0x134] sm:$0xf]
        %v1827 = vld [vmem:[%s3 + $0x138] sm:$0xff]
        %v1828 = vld [vmem:[%s3 + $0x140] sm:$0xf]
        %v1829 = vld [vmem:[%s3 + $0x144] sm:$0xff]
        %v1830 = vld [vmem:[%s3 + $0x14c] sm:$0xf]
        %v1831 = vld [vmem:[%s3 + $0x150] sm:$0xff]
        %v1832 = vld [vmem:[%s3 + $0x158] sm:$0xf]
        %v1833 = vld [vmem:[%s3 + $0x15c] sm:$0xff]
        %v1834 = vld [vmem:[%s3 + $0x164] sm:$0xf]
        %v1835 = vld [vmem:[%s3 + $0x168] sm:$0xff]
        %v1836 = vld [vmem:[%s3 + $0x170] sm:$0xf]
        %v1837 = vld [vmem:[%s3 + $0x174] sm:$0xff]
        %v1838 = vld [vmem:[%s3 + $0x17c] sm:$0xf]
        %v1839 = vld [vmem:[%s3 + $0x180] sm:$0xff]
        %v1840 = vld [vmem:[%s3 + $0x188] sm:$0xf]
        %v1841 = vld [vmem:[%s3 + $0x18c] sm:$0xff]
        %v1842 = vld [vmem:[%s3 + $0x194] sm:$0xf]
        %v1843 = vld [vmem:[%s3 + $0x198] sm:$0xff]
        %v1844 = vld [vmem:[%s3 + $0x1a0] sm:$0xf]
        %v1845 = vld [vmem:[%s3 + $0x1a4] sm:$0xff]
        %v1846 = vld [vmem:[%s3 + $0x1ac] sm:$0xf]
        %v1847 = vld [vmem:[%s3 + $0x1b0] sm:$0xff]
        %v1848 = vld [vmem:[%s3 + $0x1b8] sm:$0xf]
        %v1849 = vld [vmem:[%s3 + $0x1bc] sm:$0xff]
        %v1850 = vld [vmem:[%s3 + $0x1c4] sm:$0xf]
        %v1851 = vld [vmem:[%s3 + $0x1c8] sm:$0xff]
        %v1852 = vld [vmem:[%s3 + $0x1d0] sm:$0xf]
        %v1853 = vld [vmem:[%s3 + $0x1d4] sm:$0xff]
        %v1854 = vld [vmem:[%s3 + $0x1dc] sm:$0xf]
        %v1855 = vld [vmem:[%s3 + $0x1e0] sm:$0xff]
        %v1856 = vld [vmem:[%s3 + $0x1e8] sm:$0xf]
        %v1857 = vld [vmem:[%s3 + $0x1ec] sm:$0xff]
        %v1858 = vld [vmem:[%s3 + $0x1f4] sm:$0xf]
        %v1859 = vld [vmem:[%s3 + $0x1f8] sm:$0xff]
        %v1860 = vld [vmem:[%s3 + $0x200] sm:$0xf]
        %v1861 = vld [vmem:[%s3 + $0x204] sm:$0xff]
        %v1862 = vld [vmem:[%s3 + $0x20c] sm:$0xf]
        %v1863 = vld [vmem:[%s3 + $0x210] sm:$0xff]
        %v1864 = vld [vmem:[%s3 + $0x218] sm:$0xf]
        %v1865 = vld [vmem:[%s3 + $0x21c] sm:$0xff]
        %v1866 = vld [vmem:[%s3 + $0x224] sm:$0xf]
        %v1867 = vld [vmem:[%s3 + $0x228] sm:$0xff]
        %v1868 = vld [vmem:[%s3 + $0x230] sm:$0xf]
        %v1869 = vld [vmem:[%s3 + $0x234] sm:$0xff]
        %v1870 = vld [vmem:[%s3 + $0x23c] sm:$0xf]
        %v1967 = vunpack.c.l.b16 %v1775
        %v1968 = vunpack.c.h.b16 %v1775
        %v1969 = vunpack.c.l.b16 %v1776
        %v1970 = vunpack.c.l.b16 %v1777
        %v1971 = vunpack.c.h.b16 %v1777
        %v1972 = vunpack.c.l.b16 %v1778
        %v1973 = vunpack.c.l.b16 %v1779
        %v1974 = vunpack.c.h.b16 %v1779
        %v1975 = vunpack.c.l.b16 %v1780
        %v1976 = vunpack.c.l.b16 %v1781
        %v1977 = vunpack.c.h.b16 %v1781
        %v1978 = vunpack.c.l.b16 %v1782
        %v1979 = vunpack.c.l.b16 %v1783
        %v1980 = vunpack.c.h.b16 %v1783
        %v1981 = vunpack.c.l.b16 %v1784
        %v1982 = vunpack.c.l.b16 %v1785
        %v1983 = vunpack.c.h.b16 %v1785
        %v1984 = vunpack.c.l.b16 %v1786
        %v1985 = vunpack.c.l.b16 %v1787
        %v1986 = vunpack.c.h.b16 %v1787
        %v1987 = vunpack.c.l.b16 %v1788
        %v1988 = vunpack.c.l.b16 %v1789
        %v1989 = vunpack.c.h.b16 %v1789
        %v1990 = vunpack.c.l.b16 %v1790
        %v1991 = vunpack.c.l.b16 %v1791
        %v1992 = vunpack.c.h.b16 %v1791
        %v1993 = vunpack.c.l.b16 %v1792
        %v1994 = vunpack.c.l.b16 %v1793
        %v1995 = vunpack.c.h.b16 %v1793
        %v1996 = vunpack.c.l.b16 %v1794
        %v1997 = vunpack.c.l.b16 %v1795
        %v1998 = vunpack.c.h.b16 %v1795
        %v1999 = vunpack.c.l.b16 %v1796
        %v2000 = vunpack.c.l.b16 %v1797
        %v2001 = vunpack.c.h.b16 %v1797
        %v2002 = vunpack.c.l.b16 %v1798
        %v2003 = vunpack.c.l.b16 %v1799
        %v2004 = vunpack.c.h.b16 %v1799
        %v2005 = vunpack.c.l.b16 %v1800
        %v2006 = vunpack.c.l.b16 %v1801
        %v2007 = vunpack.c.h.b16 %v1801
        %v2008 = vunpack.c.l.b16 %v1802
        %v2009 = vunpack.c.l.b16 %v1803
        %v2010 = vunpack.c.h.b16 %v1803
        %v2011 = vunpack.c.l.b16 %v1804
        %v2012 = vunpack.c.l.b16 %v1805
        %v2013 = vunpack.c.h.b16 %v1805
        %v2014 = vunpack.c.l.b16 %v1806
        %v2015 = vunpack.c.l.b16 %v1807
        %v2016 = vunpack.c.h.b16 %v1807
        %v2017 = vunpack.c.l.b16 %v1808
        %v2018 = vunpack.c.l.b16 %v1809
        %v2019 = vunpack.c.h.b16 %v1809
        %v2020 = vunpack.c.l.b16 %v1810
        %v2021 = vunpack.c.l.b16 %v1811
        %v2022 = vunpack.c.h.b16 %v1811
        %v2023 = vunpack.c.l.b16 %v1812
        %v2024 = vunpack.c.l.b16 %v1813
        %v2025 = vunpack.c.h.b16 %v1813
        %v2026 = vunpack.c.l.b16 %v1814
        %v2027 = vunpack.c.l.b16 %v1815
        %v2028 = vunpack.c.h.b16 %v1815
        %v2029 = vunpack.c.l.b16 %v1816
        %v2030 = vunpack.c.l.b16 %v1817
        %v2031 = vunpack.c.h.b16 %v1817
        %v2032 = vunpack.c.l.b16 %v1818
        %v2033 = vunpack.c.l.b16 %v1819
        %v2034 = vunpack.c.h.b16 %v1819
        %v2035 = vunpack.c.l.b16 %v1820
        %v2036 = vunpack.c.l.b16 %v1821
        %v2037 = vunpack.c.h.b16 %v1821
        %v2038 = vunpack.c.l.b16 %v1822
        %v2039 = vunpack.c.l.b16 %v1823
        %v2040 = vunpack.c.h.b16 %v1823
        %v2041 = vunpack.c.l.b16 %v1824
        %v2042 = vunpack.c.l.b16 %v1825
        %v2043 = vunpack.c.h.b16 %v1825
        %v2044 = vunpack.c.l.b16 %v1826
        %v2045 = vunpack.c.l.b16 %v1827
        %v2046 = vunpack.c.h.b16 %v1827
        %v2047 = vunpack.c.l.b16 %v1828
        %v2048 = vunpack.c.l.b16 %v1829
        %v2049 = vunpack.c.h.b16 %v1829
        %v2050 = vunpack.c.l.b16 %v1830
        %v2051 = vunpack.c.l.b16 %v1831
        %v2052 = vunpack.c.h.b16 %v1831
        %v2053 = vunpack.c.l.b16 %v1832
        %v2054 = vunpack.c.l.b16 %v1833
        %v2055 = vunpack.c.h.b16 %v1833
        %v2056 = vunpack.c.l.b16 %v1834
        %v2057 = vunpack.c.l.b16 %v1835
        %v2058 = vunpack.c.h.b16 %v1835
        %v2059 = vunpack.c.l.b16 %v1836
        %v2060 = vunpack.c.l.b16 %v1837
        %v2061 = vunpack.c.h.b16 %v1837
        %v2062 = vunpack.c.l.b16 %v1838
        %v2063 = vunpack.c.l.b16 %v1839
        %v2064 = vunpack.c.h.b16 %v1839
        %v2065 = vunpack.c.l.b16 %v1840
        %v2066 = vunpack.c.l.b16 %v1841
        %v2067 = vunpack.c.h.b16 %v1841
        %v2068 = vunpack.c.l.b16 %v1842
        %v2069 = vunpack.c.l.b16 %v1843
        %v2070 = vunpack.c.h.b16 %v1843
        %v2071 = vunpack.c.l.b16 %v1844
        %v2072 = vunpack.c.l.b16 %v1845
        %v2073 = vunpack.c.h.b16 %v1845
        %v2074 = vunpack.c.l.b16 %v1846
        %v2075 = vunpack.c.l.b16 %v1847
        %v2076 = vunpack.c.h.b16 %v1847
        %v2077 = vunpack.c.l.b16 %v1848
        %v2078 = vunpack.c.l.b16 %v1849
        %v2079 = vunpack.c.h.b16 %v1849
        %v2080 = vunpack.c.l.b16 %v1850
        %v2081 = vunpack.c.l.b16 %v1851
        %v2082 = vunpack.c.h.b16 %v1851
        %v2083 = vunpack.c.l.b16 %v1852
        %v2084 = vunpack.c.l.b16 %v1853
        %v2085 = vunpack.c.h.b16 %v1853
        %v2086 = vunpack.c.l.b16 %v1854
        %v2087 = vunpack.c.l.b16 %v1855
        %v2088 = vunpack.c.h.b16 %v1855
        %v2089 = vunpack.c.l.b16 %v1856
        %v2090 = vunpack.c.l.b16 %v1857
        %v2091 = vunpack.c.h.b16 %v1857
        %v2092 = vunpack.c.l.b16 %v1858
        %v2093 = vunpack.c.l.b16 %v1859
        %v2094 = vunpack.c.h.b16 %v1859
        %v2095 = vunpack.c.l.b16 %v1860
        %v2096 = vunpack.c.l.b16 %v1861
        %v2097 = vunpack.c.h.b16 %v1861
        %v2098 = vunpack.c.l.b16 %v1862
        %v2099 = vunpack.c.l.b16 %v1863
        %v2100 = vunpack.c.h.b16 %v1863
        %v2101 = vunpack.c.l.b16 %v1864
        %v2102 = vunpack.c.l.b16 %v1865
        %v2103 = vunpack.c.h.b16 %v1865
        %v2104 = vunpack.c.l.b16 %v1866
        %v2105 = vunpack.c.l.b16 %v1867
        %v2106 = vunpack.c.h.b16 %v1867
        %v2107 = vunpack.c.l.b16 %v1868
        %v2108 = vunpack.c.l.b16 %v1869
        %v2109 = vunpack.c.h.b16 %v1869
        %v2110 = vunpack.c.l.b16 %v1870
        %v2111 = vpack.c.b16 %v1970, %v1967
        %v2112 = vpack.c.b16 %v1971, %v1968
        %v2113 = vpack.c.b16 %v1972, %v1969
        %v2114 = vpack.c.b16 %v1976, %v1973
        %v2115 = vpack.c.b16 %v1977, %v1974
        %v2116 = vpack.c.b16 %v1978, %v1975
        %v2117 = vpack.c.b16 %v1982, %v1979
        %v2118 = vpack.c.b16 %v1983, %v1980
        %v2119 = vpack.c.b16 %v1984, %v1981
        %v2120 = vpack.c.b16 %v1988, %v1985
        %v2121 = vpack.c.b16 %v1989, %v1986
        %v2122 = vpack.c.b16 %v1990, %v1987
        %v2123 = vpack.c.b16 %v1994, %v1991
        %v2124 = vpack.c.b16 %v1995, %v1992
        %v2125 = vpack.c.b16 %v1996, %v1993
        %v2126 = vpack.c.b16 %v2000, %v1997
        %v2127 = vpack.c.b16 %v2001, %v1998
        %v2128 = vpack.c.b16 %v2002, %v1999
        %v2129 = vpack.c.b16 %v2006, %v2003
        %v2130 = vpack.c.b16 %v2007, %v2004
        %v2131 = vpack.c.b16 %v2008, %v2005
        %v2132 = vpack.c.b16 %v2012, %v2009
        %v2133 = vpack.c.b16 %v2013, %v2010
        %v2134 = vpack.c.b16 %v2014, %v2011
        %v2135 = vpack.c.b16 %v2018, %v2015
        %v2136 = vpack.c.b16 %v2019, %v2016
        %v2137 = vpack.c.b16 %v2020, %v2017
        %v2138 = vpack.c.b16 %v2024, %v2021
        %v2139 = vpack.c.b16 %v2025, %v2022
        %v2140 = vpack.c.b16 %v2026, %v2023
        %v2141 = vpack.c.b16 %v2030, %v2027
        %v2142 = vpack.c.b16 %v2031, %v2028
        %v2143 = vpack.c.b16 %v2032, %v2029
        %v2144 = vpack.c.b16 %v2036, %v2033
        %v2145 = vpack.c.b16 %v2037, %v2034
        %v2146 = vpack.c.b16 %v2038, %v2035
        %v2147 = vpack.c.b16 %v2042, %v2039
        %v2148 = vpack.c.b16 %v2043, %v2040
        %v2149 = vpack.c.b16 %v2044, %v2041
        %v2150 = vpack.c.b16 %v2048, %v2045
        %v2151 = vpack.c.b16 %v2049, %v2046
        %v2152 = vpack.c.b16 %v2050, %v2047
        %v2153 = vpack.c.b16 %v2054, %v2051
        %v2154 = vpack.c.b16 %v2055, %v2052
        %v2155 = vpack.c.b16 %v2056, %v2053
        %v2156 = vpack.c.b16 %v2060, %v2057
        %v2157 = vpack.c.b16 %v2061, %v2058
        %v2158 = vpack.c.b16 %v2062, %v2059
        %v2159 = vpack.c.b16 %v2066, %v2063
        %v2160 = vpack.c.b16 %v2067, %v2064
        %v2161 = vpack.c.b16 %v2068, %v2065
        %v2162 = vpack.c.b16 %v2072, %v2069
        %v2163 = vpack.c.b16 %v2073, %v2070
        %v2164 = vpack.c.b16 %v2074, %v2071
        %v2165 = vpack.c.b16 %v2078, %v2075
        %v2166 = vpack.c.b16 %v2079, %v2076
        %v2167 = vpack.c.b16 %v2080, %v2077
        %v2168 = vpack.c.b16 %v2084, %v2081
        %v2169 = vpack.c.b16 %v2085, %v2082
        %v2170 = vpack.c.b16 %v2086, %v2083
        %v2171 = vpack.c.b16 %v2090, %v2087
        %v2172 = vpack.c.b16 %v2091, %v2088
        %v2173 = vpack.c.b16 %v2092, %v2089
        %v2174 = vpack.c.b16 %v2096, %v2093
        %v2175 = vpack.c.b16 %v2097, %v2094
        %v2176 = vpack.c.b16 %v2098, %v2095
        %v2177 = vpack.c.b16 %v2102, %v2099
        %v2178 = vpack.c.b16 %v2103, %v2100
        %v2179 = vpack.c.b16 %v2104, %v2101
        %v2180 = vpack.c.b16 %v2108, %v2105
        %v2181 = vpack.c.b16 %v2109, %v2106
        %v2182 = vpack.c.b16 %v2110, %v2107
        %2255 = vmatpush.bf16.msra.mxu0 %v2132
        %2256 = vmatpush.bf16.msra.mxu0 %v2129
        %2257 = vmatpush.bf16.msra.mxu0 %v2126
        %2258 = vmatpush.bf16.msra.mxu0 %v2123
        %2259 = vmatpush.bf16.msra.mxu0 %v2120
        %2260 = vmatpush.bf16.msra.mxu0 %v2117
        %2261 = vmatpush.bf16.msra.mxu0 %v2114
        %2262 = vmatpush.bf16.msra.mxu0 %v2111
        %2263 = vmatmul.bf16.gmra.mxu0 %v578
        %v2264 = vpop.f32.mrf.mxu0
        %v2265 = vadd.f32 0.0, %v2264
        %v2266 = vpop.f32.mrf.mxu0
        %2267 = vdwg.mxu0
        %2268 = vmatpush.bf16.msra.mxu0 %v2156
        %2269 = vmatpush.bf16.msra.mxu0 %v2153
        %2270 = vmatpush.bf16.msra.mxu0 %v2150
        %2271 = vmatpush.bf16.msra.mxu0 %v2147
        %2272 = vmatpush.bf16.msra.mxu0 %v2144
        %2273 = vmatpush.bf16.msra.mxu0 %v2141
        %2274 = vmatpush.bf16.msra.mxu0 %v2138
        %2275 = vmatpush.bf16.msra.mxu0 %v2135
        %2276 = vmatmul.bf16.gmra.mxu0 %v579
        %v2277 = vpop.f32.mrf.mxu0
        %v2278 = vadd.f32 %v2265, %v2277
        %v2279 = vpop.f32.mrf.mxu0
        %2280 = vdwg.mxu0
        %2281 = vmatpush.bf16.msra.mxu0 %v2180
        %2282 = vmatpush.bf16.msra.mxu0 %v2177
        %2283 = vmatpush.bf16.msra.mxu0 %v2174
        %2284 = vmatpush.bf16.msra.mxu0 %v2171
        %2285 = vmatpush.bf16.msra.mxu0 %v2168
        %2286 = vmatpush.bf16.msra.mxu0 %v2165
        %2287 = vmatpush.bf16.msra.mxu0 %v2162
        %2288 = vmatpush.bf16.msra.mxu0 %v2159
        %2289 = vmatmul.bf16.gmra.mxu0 %v580
        %v2290 = vpop.f32.mrf.mxu0
        %v2291 = vadd.f32 %v2278, %v2290
        %v2292 = vpop.f32.mrf.mxu0
        %2293 = vdwg.mxu0
        %2294 = vmatpush.bf16.msra.mxu0 %v2133
        %2295 = vmatpush.bf16.msra.mxu0 %v2130
        %2296 = vmatpush.bf16.msra.mxu0 %v2127
        %2297 = vmatpush.bf16.msra.mxu0 %v2124
        %2298 = vmatpush.bf16.msra.mxu0 %v2121
        %2299 = vmatpush.bf16.msra.mxu0 %v2118
        %2300 = vmatpush.bf16.msra.mxu0 %v2115
        %2301 = vmatpush.bf16.msra.mxu0 %v2112
        %2302 = vmatmul.bf16.gmra.mxu0 %v578
        %v2303 = vpop.f32.mrf.mxu0
        %v2304 = vadd.f32 0.0, %v2303
        %v2305 = vpop.f32.mrf.mxu0
        %2306 = vdwg.mxu0
        %2307 = vmatpush.bf16.msra.mxu0 %v2157
        %2308 = vmatpush.bf16.msra.mxu0 %v2154
        %2309 = vmatpush.bf16.msra.mxu0 %v2151
        %2310 = vmatpush.bf16.msra.mxu0 %v2148
        %2311 = vmatpush.bf16.msra.mxu0 %v2145
        %2312 = vmatpush.bf16.msra.mxu0 %v2142
        %2313 = vmatpush.bf16.msra.mxu0 %v2139
        %2314 = vmatpush.bf16.msra.mxu0 %v2136
        %2315 = vmatmul.bf16.gmra.mxu0 %v579
        %v2316 = vpop.f32.mrf.mxu0
        %v2317 = vadd.f32 %v2304, %v2316
        %v2318 = vpop.f32.mrf.mxu0
        %2319 = vdwg.mxu0
        %2320 = vmatpush.bf16.msra.mxu0 %v2181
        %2321 = vmatpush.bf16.msra.mxu0 %v2178
        %2322 = vmatpush.bf16.msra.mxu0 %v2175
        %2323 = vmatpush.bf16.msra.mxu0 %v2172
        %2324 = vmatpush.bf16.msra.mxu0 %v2169
        %2325 = vmatpush.bf16.msra.mxu0 %v2166
        %2326 = vmatpush.bf16.msra.mxu0 %v2163
        %2327 = vmatpush.bf16.msra.mxu0 %v2160
        %2328 = vmatmul.bf16.gmra.mxu0 %v580
        %v2329 = vpop.f32.mrf.mxu0
        %v2330 = vadd.f32 %v2317, %v2329
        %v2331 = vpop.f32.mrf.mxu0
        %2332 = vdwg.mxu0
        %2333 = vmatpush.bf16.msra.mxu0 %v2134
        %2334 = vmatpush.bf16.msra.mxu0 %v2131
        %2335 = vmatpush.bf16.msra.mxu0 %v2128
        %2336 = vmatpush.bf16.msra.mxu0 %v2125
        %2337 = vmatpush.bf16.msra.mxu0 %v2122
        %2338 = vmatpush.bf16.msra.mxu0 %v2119
        %2339 = vmatpush.bf16.msra.mxu0 %v2116
        %2340 = vmatpush.bf16.msra.mxu0 %v2113
        %2341 = vmatmul.bf16.gmra.mxu0 %v578
        %v2342 = vpop.f32.mrf.mxu0
        %v2343 = vadd.f32 0.0, %v2342
        %v2344 = vpop.f32.mrf.mxu0
        %2345 = vdwg.mxu0
        %2346 = vmatpush.bf16.msra.mxu0 %v2158
        %2347 = vmatpush.bf16.msra.mxu0 %v2155
        %2348 = vmatpush.bf16.msra.mxu0 %v2152
        %2349 = vmatpush.bf16.msra.mxu0 %v2149
        %2350 = vmatpush.bf16.msra.mxu0 %v2146
        %2351 = vmatpush.bf16.msra.mxu0 %v2143
        %2352 = vmatpush.bf16.msra.mxu0 %v2140
        %2353 = vmatpush.bf16.msra.mxu0 %v2137
        %2354 = vmatmul.bf16.gmra.mxu0 %v579
        %v2355 = vpop.f32.mrf.mxu0
        %v2356 = vadd.f32 %v2343, %v2355
        %v2357 = vpop.f32.mrf.mxu0
        %2358 = vdwg.mxu0
        %2359 = vmatpush.bf16.msra.mxu0 %v2182
        %2360 = vmatpush.bf16.msra.mxu0 %v2179
        %2361 = vmatpush.bf16.msra.mxu0 %v2176
        %2362 = vmatpush.bf16.msra.mxu0 %v2173
        %2363 = vmatpush.bf16.msra.mxu0 %v2170
        %2364 = vmatpush.bf16.msra.mxu0 %v2167
        %2365 = vmatpush.bf16.msra.mxu0 %v2164
        %2366 = vmatpush.bf16.msra.mxu0 %v2161
        %2367 = vmatmul.bf16.gmra.mxu0 %v580
        %v2368 = vpop.f32.mrf.mxu0
        %v2369 = vadd.f32 %v2356, %v2368
        %v2370 = vpop.f32.mrf.mxu0
        %2371 = vdwg.mxu0
        %v2372 = vpack.c.bf16 %v1136, %v1097
        %v2373 = vpack.c.bf16 %v1175, %v1175
        %v2374 = vpack.c.bf16 %v1733, %v1694
        %v2375 = vpack.c.bf16 %v1772, %v1772
        %v2376 = vpack.c.bf16 %v2330, %v2291
        %v2377 = vpack.c.bf16 %v2369, %v2369
        %v2380 = vunpack.c.l.b16 %v2372
        %v2381 = vunpack.c.h.b16 %v2372
        %v2382 = vunpack.c.l.b16 %v2373
        %v2383 = vpack.c.b16 %v2380, %v2380
        %v2384 = vpack.c.b16 %v2381, %v2381
        %v2385 = vpack.c.b16 %v2382, %v2382
        %v2391 = vunpack.c.l.b16 %v2374
        %v2392 = vunpack.c.h.b16 %v2374
        %v2393 = vunpack.c.l.b16 %v2375
        %v2394 = vpack.c.b16 %v2391, %v2391
        %v2395 = vpack.c.b16 %v2392, %v2392
        %v2396 = vpack.c.b16 %v2393, %v2393
        %2400 = vmatpush.bf16.xpose.msra.mxu0 0
        %2401 = vmatpush.bf16.xpose.msra.mxu0 0
        %2402 = vmatpush.bf16.xpose.msra.mxu0 0
        %2403 = vmatpush.bf16.xpose.msra.mxu0 0
        %2404 = vmatpush.bf16.xpose.msra.mxu0 0
        %2405 = vmatpush.bf16.xpose.msra.mxu0 0
        %2406 = vmatpush.bf16.xpose.msra.mxu0 0
        %2407 = vmatpush.bf16.xpose.msra.mxu0 %v2394
        %2408 = vmatmul.bf16.gmra.mxu0 %v2383
        %v2409 = vpop.f32.mrf.mxu0
        %v2410 = vadd.f32 0.0, %v2409
        %v2411 = vpop.f32.mrf.mxu0
        %2412 = vdwg.mxu0
        %2413 = vmatpush.bf16.xpose.msra.mxu0 0
        %2414 = vmatpush.bf16.xpose.msra.mxu0 0
        %2415 = vmatpush.bf16.xpose.msra.mxu0 0
        %2416 = vmatpush.bf16.xpose.msra.mxu0 0
        %2417 = vmatpush.bf16.xpose.msra.mxu0 0
        %2418 = vmatpush.bf16.xpose.msra.mxu0 0
        %2419 = vmatpush.bf16.xpose.msra.mxu0 0
        %2420 = vmatpush.bf16.xpose.msra.mxu0 %v2395
        %2421 = vmatmul.bf16.gmra.mxu0 %v2384
        %v2422 = vpop.f32.mrf.mxu0
        %v2423 = vadd.f32 %v2410, %v2422
        %v2424 = vpop.f32.mrf.mxu0
        %2425 = vdwg.mxu0
        %2426 = vmatpush.bf16.xpose.msra.mxu0 0
        %2427 = vmatpush.bf16.xpose.msra.mxu0 0
        %2428 = vmatpush.bf16.xpose.msra.mxu0 0
        %2429 = vmatpush.bf16.xpose.msra.mxu0 0
        %2430 = vmatpush.bf16.xpose.msra.mxu0 0
        %2431 = vmatpush.bf16.xpose.msra.mxu0 0
        %2432 = vmatpush.bf16.xpose.msra.mxu0 0
        %2433 = vmatpush.bf16.xpose.msra.mxu0 %v2396
        %2434 = vmatmul.bf16.gmra.mxu0 %v2385
        %v2435 = vpop.f32.mrf.mxu0
        %v2436 = vadd.f32 %v2423, %v2435
        %v2437 = vpop.f32.mrf.mxu0
        %2438 = vdwg.mxu0
        %v2439 = vlaneseq
        %v2440 = vshrl.u32 %v2439, 7
        %v2441 = vlaneseq
        %v2442 = vand.u32 %v2441, 127
        %vm2443 = vcmp.ge.s32.totalorder %v2440, %v2442
        %v2444 = vsel %vm2443, %v2436, -inf
        %vm2445 = vcmask 64512
        %v2446 = vsel %vm2445, %v2444, -inf
        %2447 = vmax.xlane.f32.xlu0 %v2446
        %v2448 = vpop.xlane.xlu0 %2447
        %v2449 = vsub.f32 %v2444, %v2448
        %v2450 = vmul.f32 %v2449, 1.442695
        %v2451 = vpow.pop %v2450
        %v2452 = vsel %vm2445, %v2451, 0.0
        %2453 = vadd.xlane.f32.xlu0 %v2452
        %v2454 = vpop.xlane.xlu0 %2453
        %v2455 = vrcp.pop %v2454
        %v2456 = vmul.f32 %v2451, %v2455
        %v2457 = vpack.c.bf16 %v2456, %v2456
        %v2460 = vunpack.c.l.b16 %v2376
        %v2461 = vunpack.c.h.b16 %v2376
        %v2462 = vunpack.c.l.b16 %v2377
        %v2463 = vpack.c.b16 %v2460, %v2460
        %v2464 = vpack.c.b16 %v2461, %v2461
        %v2465 = vpack.c.b16 %v2462, %v2462
        %v2467 = vsel %vm2445, %v2457, 0
        %vm2469 = vcmask 1043456
        %v2471 = vsel %vm2469, %v2463, 0
        %v2474 = vsel %vm2469, %v2464, 0
        %v2477 = vsel %vm2469, %v2465, 0
        %2479 = vmatpush.bf16.msra.mxu0 0
        %2480 = vmatpush.bf16.msra.mxu0 0
        %2481 = vmatpush.bf16.msra.mxu0 0
        %2482 = vmatpush.bf16.msra.mxu0 0
        %2483 = vmatpush.bf16.msra.mxu0 0
        %2484 = vmatpush.bf16.msra.mxu0 0
        %2485 = vmatpush.bf16.msra.mxu0 0
        %2486 = vmatpush.bf16.msra.mxu0 %v2471
        %2487 = vmatmul.bf16.gmra.mxu0 %v2467
        %v2488 = vpop.f32.mrf.mxu0
        %v2489 = vadd.f32 0.0, %v2488
        %v2490 = vpop.f32.mrf.mxu0
        %2491 = vdwg.mxu0
        %2492 = vmatpush.bf16.msra.mxu0 0
        %2493 = vmatpush.bf16.msra.mxu0 0
        %2494 = vmatpush.bf16.msra.mxu0 0
        %2495 = vmatpush.bf16.msra.mxu0 0
        %2496 = vmatpush.bf16.msra.mxu0 0
        %2497 = vmatpush.bf16.msra.mxu0 0
        %2498 = vmatpush.bf16.msra.mxu0 0
        %2499 = vmatpush.bf16.msra.mxu0 %v2474
        %2500 = vmatmul.bf16.gmra.mxu0 %v2467
        %v2501 = vpop.f32.mrf.mxu0
        %v2502 = vadd.f32 0.0, %v2501
        %v2503 = vpop.f32.mrf.mxu0
        %2504 = vdwg.mxu0
        %2505 = vmatpush.bf16.msra.mxu0 0
        %2506 = vmatpush.bf16.msra.mxu0 0
        %2507 = vmatpush.bf16.msra.mxu0 0
        %2508 = vmatpush.bf16.msra.mxu0 0
        %2509 = vmatpush.bf16.msra.mxu0 0
        %2510 = vmatpush.bf16.msra.mxu0 0
        %2511 = vmatpush.bf16.msra.mxu0 0
        %2512 = vmatpush.bf16.msra.mxu0 %v2477
        %2513 = vmatmul.bf16.gmra.mxu0 %v2467
        %v2514 = vpop.f32.mrf.mxu0
        %v2515 = vadd.f32 0.0, %v2514
        %v2516 = vpop.f32.mrf.mxu0
        %2517 = vdwg.mxu0
        %v2518 = vpack.c.bf16 %v2489, %v2489
        %v2519 = vpack.c.bf16 %v2502, %v2502
        %v2520 = vpack.c.bf16 %v2515, %v2515
        %v2521 = vld [vmem:[%s4] sm:$0xff]
        %v2522 = vld [vmem:[%s4 + $0x8] sm:$0xf]
        %v2523 = vld [vmem:[%s4 + $0xc] sm:$0xff]
        %v2524 = vld [vmem:[%s4 + $0x14] sm:$0xf]
        %v2525 = vld [vmem:[%s4 + $0x18] sm:$0xff]
        %v2526 = vld [vmem:[%s4 + $0x20] sm:$0xf]
        %v2527 = vld [vmem:[%s4 + $0x24] sm:$0xff]
        %v2528 = vld [vmem:[%s4 + $0x2c] sm:$0xf]
        %v2529 = vld [vmem:[%s4 + $0x30] sm:$0xff]
        %v2530 = vld [vmem:[%s4 + $0x38] sm:$0xf]
        %v2531 = vld [vmem:[%s4 + $0x3c] sm:$0xff]
        %v2532 = vld [vmem:[%s4 + $0x44] sm:$0xf]
        %v2533 = vld [vmem:[%s4 + $0x48] sm:$0xff]
        %v2534 = vld [vmem:[%s4 + $0x50] sm:$0xf]
        %v2535 = vld [vmem:[%s4 + $0x54] sm:$0xff]
        %v2536 = vld [vmem:[%s4 + $0x5c] sm:$0xf]
        %v2537 = vld [vmem:[%s4 + $0x60] sm:$0xff]
        %v2538 = vld [vmem:[%s4 + $0x68] sm:$0xf]
        %v2539 = vld [vmem:[%s4 + $0x6c] sm:$0xff]
        %v2540 = vld [vmem:[%s4 + $0x74] sm:$0xf]
        %v2541 = vld [vmem:[%s4 + $0x78] sm:$0xff]
        %v2542 = vld [vmem:[%s4 + $0x80] sm:$0xf]
        %v2543 = vld [vmem:[%s4 + $0x84] sm:$0xff]
        %v2544 = vld [vmem:[%s4 + $0x8c] sm:$0xf]
        %v2545 = vld [vmem:[%s4 + $0x90] sm:$0xff]
        %v2546 = vld [vmem:[%s4 + $0x98] sm:$0xf]
        %v2547 = vld [vmem:[%s4 + $0x9c] sm:$0xff]
        %v2548 = vld [vmem:[%s4 + $0xa4] sm:$0xf]
        %v2549 = vld [vmem:[%s4 + $0xa8] sm:$0xff]
        %v2550 = vld [vmem:[%s4 + $0xb0] sm:$0xf]
        %v2551 = vld [vmem:[%s4 + $0xb4] sm:$0xff]
        %v2552 = vld [vmem:[%s4 + $0xbc] sm:$0xf]
        %v2553 = vld [vmem:[%s4 + $0xc0] sm:$0xff]
        %v2554 = vld [vmem:[%s4 + $0xc8] sm:$0xf]
        %v2555 = vld [vmem:[%s4 + $0xcc] sm:$0xff]
        %v2556 = vld [vmem:[%s4 + $0xd4] sm:$0xf]
        %v2557 = vld [vmem:[%s4 + $0xd8] sm:$0xff]
        %v2558 = vld [vmem:[%s4 + $0xe0] sm:$0xf]
        %v2559 = vld [vmem:[%s4 + $0xe4] sm:$0xff]
        %v2560 = vld [vmem:[%s4 + $0xec] sm:$0xf]
        %v2561 = vld [vmem:[%s4 + $0xf0] sm:$0xff]
        %v2562 = vld [vmem:[%s4 + $0xf8] sm:$0xf]
        %v2563 = vld [vmem:[%s4 + $0xfc] sm:$0xff]
        %v2564 = vld [vmem:[%s4 + $0x104] sm:$0xf]
        %v2565 = vld [vmem:[%s4 + $0x108] sm:$0xff]
        %v2566 = vld [vmem:[%s4 + $0x110] sm:$0xf]
        %v2567 = vld [vmem:[%s4 + $0x114] sm:$0xff]
        %v2568 = vld [vmem:[%s4 + $0x11c] sm:$0xf]
        %v2569 = vld [vmem:[%s4 + $0x120] sm:$0xff]
        %v2570 = vld [vmem:[%s4 + $0x128] sm:$0xf]
        %v2571 = vld [vmem:[%s4 + $0x12c] sm:$0xff]
        %v2572 = vld [vmem:[%s4 + $0x134] sm:$0xf]
        %v2573 = vld [vmem:[%s4 + $0x138] sm:$0xff]
        %v2574 = vld [vmem:[%s4 + $0x140] sm:$0xf]
        %v2575 = vld [vmem:[%s4 + $0x144] sm:$0xff]
        %v2576 = vld [vmem:[%s4 + $0x14c] sm:$0xf]
        %v2577 = vld [vmem:[%s4 + $0x150] sm:$0xff]
        %v2578 = vld [vmem:[%s4 + $0x158] sm:$0xf]
        %v2579 = vld [vmem:[%s4 + $0x15c] sm:$0xff]
        %v2580 = vld [vmem:[%s4 + $0x164] sm:$0xf]
        %v2581 = vld [vmem:[%s4 + $0x168] sm:$0xff]
        %v2582 = vld [vmem:[%s4 + $0x170] sm:$0xf]
        %v2583 = vld [vmem:[%s4 + $0x174] sm:$0xff]
        %v2584 = vld [vmem:[%s4 + $0x17c] sm:$0xf]
        %v2585 = vld [vmem:[%s4 + $0x180] sm:$0xff]
        %v2586 = vld [vmem:[%s4 + $0x188] sm:$0xf]
        %v2587 = vld [vmem:[%s4 + $0x18c] sm:$0xff]
        %v2588 = vld [vmem:[%s4 + $0x194] sm:$0xf]
        %v2589 = vld [vmem:[%s4 + $0x198] sm:$0xff]
        %v2590 = vld [vmem:[%s4 + $0x1a0] sm:$0xf]
        %v2591 = vld [vmem:[%s4 + $0x1a4] sm:$0xff]
        %v2592 = vld [vmem:[%s4 + $0x1ac] sm:$0xf]
        %v2593 = vld [vmem:[%s4 + $0x1b0] sm:$0xff]
        %v2594 = vld [vmem:[%s4 + $0x1b8] sm:$0xf]
        %v2595 = vld [vmem:[%s4 + $0x1bc] sm:$0xff]
        %v2596 = vld [vmem:[%s4 + $0x1c4] sm:$0xf]
        %v2597 = vld [vmem:[%s4 + $0x1c8] sm:$0xff]
        %v2598 = vld [vmem:[%s4 + $0x1d0] sm:$0xf]
        %v2599 = vld [vmem:[%s4 + $0x1d4] sm:$0xff]
        %v2600 = vld [vmem:[%s4 + $0x1dc] sm:$0xf]
        %v2601 = vld [vmem:[%s4 + $0x1e0] sm:$0xff]
        %v2602 = vld [vmem:[%s4 + $0x1e8] sm:$0xf]
        %v2603 = vld [vmem:[%s4 + $0x1ec] sm:$0xff]
        %v2604 = vld [vmem:[%s4 + $0x1f4] sm:$0xf]
        %v2605 = vld [vmem:[%s4 + $0x1f8] sm:$0xff]
        %v2606 = vld [vmem:[%s4 + $0x200] sm:$0xf]
        %v2607 = vld [vmem:[%s4 + $0x204] sm:$0xff]
        %v2608 = vld [vmem:[%s4 + $0x20c] sm:$0xf]
        %v2609 = vld [vmem:[%s4 + $0x210] sm:$0xff]
        %v2610 = vld [vmem:[%s4 + $0x218] sm:$0xf]
        %v2611 = vld [vmem:[%s4 + $0x21c] sm:$0xff]
        %v2612 = vld [vmem:[%s4 + $0x224] sm:$0xf]
        %v2613 = vld [vmem:[%s4 + $0x228] sm:$0xff]
        %v2614 = vld [vmem:[%s4 + $0x230] sm:$0xf]
        %v2615 = vld [vmem:[%s4 + $0x234] sm:$0xff]
        %v2616 = vld [vmem:[%s4 + $0x23c] sm:$0xf]
        %v2617 = vld [vmem:[%s5] sm:$0x7]
        %v2619 = vperm.slane %v2617, 0
        %v2620 = vperm.slane %v2617, 1
        %v2621 = vperm.slane %v2617, 2
        %v2721 = vunpack.c.l.b16 %v2521
        %v2722 = vunpack.c.h.b16 %v2521
        %v2723 = vunpack.c.l.b16 %v2522
        %v2724 = vunpack.c.l.b16 %v2523
        %v2725 = vunpack.c.h.b16 %v2523
        %v2726 = vunpack.c.l.b16 %v2524
        %v2727 = vunpack.c.l.b16 %v2525
        %v2728 = vunpack.c.h.b16 %v2525
        %v2729 = vunpack.c.l.b16 %v2526
        %v2730 = vunpack.c.l.b16 %v2527
        %v2731 = vunpack.c.h.b16 %v2527
        %v2732 = vunpack.c.l.b16 %v2528
        %v2733 = vunpack.c.l.b16 %v2529
        %v2734 = vunpack.c.h.b16 %v2529
        %v2735 = vunpack.c.l.b16 %v2530
        %v2736 = vunpack.c.l.b16 %v2531
        %v2737 = vunpack.c.h.b16 %v2531
        %v2738 = vunpack.c.l.b16 %v2532
        %v2739 = vunpack.c.l.b16 %v2533
        %v2740 = vunpack.c.h.b16 %v2533
        %v2741 = vunpack.c.l.b16 %v2534
        %v2742 = vunpack.c.l.b16 %v2535
        %v2743 = vunpack.c.h.b16 %v2535
        %v2744 = vunpack.c.l.b16 %v2536
        %v2745 = vunpack.c.l.b16 %v2537
        %v2746 = vunpack.c.h.b16 %v2537
        %v2747 = vunpack.c.l.b16 %v2538
        %v2748 = vunpack.c.l.b16 %v2539
        %v2749 = vunpack.c.h.b16 %v2539
        %v2750 = vunpack.c.l.b16 %v2540
        %v2751 = vunpack.c.l.b16 %v2541
        %v2752 = vunpack.c.h.b16 %v2541
        %v2753 = vunpack.c.l.b16 %v2542
        %v2754 = vunpack.c.l.b16 %v2543
        %v2755 = vunpack.c.h.b16 %v2543
        %v2756 = vunpack.c.l.b16 %v2544
        %v2757 = vunpack.c.l.b16 %v2545
        %v2758 = vunpack.c.h.b16 %v2545
        %v2759 = vunpack.c.l.b16 %v2546
        %v2760 = vunpack.c.l.b16 %v2547
        %v2761 = vunpack.c.h.b16 %v2547
        %v2762 = vunpack.c.l.b16 %v2548
        %v2763 = vunpack.c.l.b16 %v2549
        %v2764 = vunpack.c.h.b16 %v2549
        %v2765 = vunpack.c.l.b16 %v2550
        %v2766 = vunpack.c.l.b16 %v2551
        %v2767 = vunpack.c.h.b16 %v2551
        %v2768 = vunpack.c.l.b16 %v2552
        %v2769 = vunpack.c.l.b16 %v2553
        %v2770 = vunpack.c.h.b16 %v2553
        %v2771 = vunpack.c.l.b16 %v2554
        %v2772 = vunpack.c.l.b16 %v2555
        %v2773 = vunpack.c.h.b16 %v2555
        %v2774 = vunpack.c.l.b16 %v2556
        %v2775 = vunpack.c.l.b16 %v2557
        %v2776 = vunpack.c.h.b16 %v2557
        %v2777 = vunpack.c.l.b16 %v2558
        %v2778 = vunpack.c.l.b16 %v2559
        %v2779 = vunpack.c.h.b16 %v2559
        %v2780 = vunpack.c.l.b16 %v2560
        %v2781 = vunpack.c.l.b16 %v2561
        %v2782 = vunpack.c.h.b16 %v2561
        %v2783 = vunpack.c.l.b16 %v2562
        %v2784 = vunpack.c.l.b16 %v2563
        %v2785 = vunpack.c.h.b16 %v2563
        %v2786 = vunpack.c.l.b16 %v2564
        %v2787 = vunpack.c.l.b16 %v2565
        %v2788 = vunpack.c.h.b16 %v2565
        %v2789 = vunpack.c.l.b16 %v2566
        %v2790 = vunpack.c.l.b16 %v2567
        %v2791 = vunpack.c.h.b16 %v2567
        %v2792 = vunpack.c.l.b16 %v2568
        %v2793 = vunpack.c.l.b16 %v2569
        %v2794 = vunpack.c.h.b16 %v2569
        %v2795 = vunpack.c.l.b16 %v2570
        %v2796 = vunpack.c.l.b16 %v2571
        %v2797 = vunpack.c.h.b16 %v2571
        %v2798 = vunpack.c.l.b16 %v2572
        %v2799 = vunpack.c.l.b16 %v2573
        %v2800 = vunpack.c.h.b16 %v2573
        %v2801 = vunpack.c.l.b16 %v2574
        %v2802 = vunpack.c.l.b16 %v2575
        %v2803 = vunpack.c.h.b16 %v2575
        %v2804 = vunpack.c.l.b16 %v2576
        %v2805 = vunpack.c.l.b16 %v2577
        %v2806 = vunpack.c.h.b16 %v2577
        %v2807 = vunpack.c.l.b16 %v2578
        %v2808 = vunpack.c.l.b16 %v2579
        %v2809 = vunpack.c.h.b16 %v2579
        %v2810 = vunpack.c.l.b16 %v2580
        %v2811 = vunpack.c.l.b16 %v2581
        %v2812 = vunpack.c.h.b16 %v2581
        %v2813 = vunpack.c.l.b16 %v2582
        %v2814 = vunpack.c.l.b16 %v2583
        %v2815 = vunpack.c.h.b16 %v2583
        %v2816 = vunpack.c.l.b16 %v2584
        %v2817 = vunpack.c.l.b16 %v2585
        %v2818 = vunpack.c.h.b16 %v2585
        %v2819 = vunpack.c.l.b16 %v2586
        %v2820 = vunpack.c.l.b16 %v2587
        %v2821 = vunpack.c.h.b16 %v2587
        %v2822 = vunpack.c.l.b16 %v2588
        %v2823 = vunpack.c.l.b16 %v2589
        %v2824 = vunpack.c.h.b16 %v2589
        %v2825 = vunpack.c.l.b16 %v2590
        %v2826 = vunpack.c.l.b16 %v2591
        %v2827 = vunpack.c.h.b16 %v2591
        %v2828 = vunpack.c.l.b16 %v2592
        %v2829 = vunpack.c.l.b16 %v2593
        %v2830 = vunpack.c.h.b16 %v2593
        %v2831 = vunpack.c.l.b16 %v2594
        %v2832 = vunpack.c.l.b16 %v2595
        %v2833 = vunpack.c.h.b16 %v2595
        %v2834 = vunpack.c.l.b16 %v2596
        %v2835 = vunpack.c.l.b16 %v2597
        %v2836 = vunpack.c.h.b16 %v2597
        %v2837 = vunpack.c.l.b16 %v2598
        %v2838 = vunpack.c.l.b16 %v2599
        %v2839 = vunpack.c.h.b16 %v2599
        %v2840 = vunpack.c.l.b16 %v2600
        %v2841 = vunpack.c.l.b16 %v2601
        %v2842 = vunpack.c.h.b16 %v2601
        %v2843 = vunpack.c.l.b16 %v2602
        %v2844 = vunpack.c.l.b16 %v2603
        %v2845 = vunpack.c.h.b16 %v2603
        %v2846 = vunpack.c.l.b16 %v2604
        %v2847 = vunpack.c.l.b16 %v2605
        %v2848 = vunpack.c.h.b16 %v2605
        %v2849 = vunpack.c.l.b16 %v2606
        %v2850 = vunpack.c.l.b16 %v2607
        %v2851 = vunpack.c.h.b16 %v2607
        %v2852 = vunpack.c.l.b16 %v2608
        %v2853 = vunpack.c.l.b16 %v2609
        %v2854 = vunpack.c.h.b16 %v2609
        %v2855 = vunpack.c.l.b16 %v2610
        %v2856 = vunpack.c.l.b16 %v2611
        %v2857 = vunpack.c.h.b16 %v2611
        %v2858 = vunpack.c.l.b16 %v2612
        %v2859 = vunpack.c.l.b16 %v2613
        %v2860 = vunpack.c.h.b16 %v2613
        %v2861 = vunpack.c.l.b16 %v2614
        %v2862 = vunpack.c.l.b16 %v2615
        %v2863 = vunpack.c.h.b16 %v2615
        %v2864 = vunpack.c.l.b16 %v2616
        %v2865 = vpack.c.b16 %v2724, %v2721
        %v2866 = vpack.c.b16 %v2725, %v2722
        %v2867 = vpack.c.b16 %v2726, %v2723
        %v2868 = vpack.c.b16 %v2730, %v2727
        %v2869 = vpack.c.b16 %v2731, %v2728
        %v2870 = vpack.c.b16 %v2732, %v2729
        %v2871 = vpack.c.b16 %v2736, %v2733
        %v2872 = vpack.c.b16 %v2737, %v2734
        %v2873 = vpack.c.b16 %v2738, %v2735
        %v2874 = vpack.c.b16 %v2742, %v2739
        %v2875 = vpack.c.b16 %v2743, %v2740
        %v2876 = vpack.c.b16 %v2744, %v2741
        %v2877 = vpack.c.b16 %v2748, %v2745
        %v2878 = vpack.c.b16 %v2749, %v2746
        %v2879 = vpack.c.b16 %v2750, %v2747
        %v2880 = vpack.c.b16 %v2754, %v2751
        %v2881 = vpack.c.b16 %v2755, %v2752
        %v2882 = vpack.c.b16 %v2756, %v2753
        %v2883 = vpack.c.b16 %v2760, %v2757
        %v2884 = vpack.c.b16 %v2761, %v2758
        %v2885 = vpack.c.b16 %v2762, %v2759
        %v2886 = vpack.c.b16 %v2766, %v2763
        %v2887 = vpack.c.b16 %v2767, %v2764
        %v2888 = vpack.c.b16 %v2768, %v2765
        %v2889 = vpack.c.b16 %v2772, %v2769
        %v2890 = vpack.c.b16 %v2773, %v2770
        %v2891 = vpack.c.b16 %v2774, %v2771
        %v2892 = vpack.c.b16 %v2778, %v2775
        %v2893 = vpack.c.b16 %v2779, %v2776
        %v2894 = vpack.c.b16 %v2780, %v2777
        %v2895 = vpack.c.b16 %v2784, %v2781
        %v2896 = vpack.c.b16 %v2785, %v2782
        %v2897 = vpack.c.b16 %v2786, %v2783
        %v2898 = vpack.c.b16 %v2790, %v2787
        %v2899 = vpack.c.b16 %v2791, %v2788
        %v2900 = vpack.c.b16 %v2792, %v2789
        %v2901 = vpack.c.b16 %v2796, %v2793
        %v2902 = vpack.c.b16 %v2797, %v2794
        %v2903 = vpack.c.b16 %v2798, %v2795
        %v2904 = vpack.c.b16 %v2802, %v2799
        %v2905 = vpack.c.b16 %v2803, %v2800
        %v2906 = vpack.c.b16 %v2804, %v2801
        %v2907 = vpack.c.b16 %v2808, %v2805
        %v2908 = vpack.c.b16 %v2809, %v2806
        %v2909 = vpack.c.b16 %v2810, %v2807
        %v2910 = vpack.c.b16 %v2814, %v2811
        %v2911 = vpack.c.b16 %v2815, %v2812
        %v2912 = vpack.c.b16 %v2816, %v2813
        %v2913 = vpack.c.b16 %v2820, %v2817
        %v2914 = vpack.c.b16 %v2821, %v2818
        %v2915 = vpack.c.b16 %v2822, %v2819
        %v2916 = vpack.c.b16 %v2826, %v2823
        %v2917 = vpack.c.b16 %v2827, %v2824
        %v2918 = vpack.c.b16 %v2828, %v2825
        %v2919 = vpack.c.b16 %v2832, %v2829
        %v2920 = vpack.c.b16 %v2833, %v2830
        %v2921 = vpack.c.b16 %v2834, %v2831
        %v2922 = vpack.c.b16 %v2838, %v2835
        %v2923 = vpack.c.b16 %v2839, %v2836
        %v2924 = vpack.c.b16 %v2840, %v2837
        %v2925 = vpack.c.b16 %v2844, %v2841
        %v2926 = vpack.c.b16 %v2845, %v2842
        %v2927 = vpack.c.b16 %v2846, %v2843
        %v2928 = vpack.c.b16 %v2850, %v2847
        %v2929 = vpack.c.b16 %v2851, %v2848
        %v2930 = vpack.c.b16 %v2852, %v2849
        %v2931 = vpack.c.b16 %v2856, %v2853
        %v2932 = vpack.c.b16 %v2857, %v2854
        %v2933 = vpack.c.b16 %v2858, %v2855
        %v2934 = vpack.c.b16 %v2862, %v2859
        %v2935 = vpack.c.b16 %v2863, %v2860
        %v2936 = vpack.c.b16 %v2864, %v2861
        %3009 = vmatpush.bf16.msra.mxu0 %v2886
        %3010 = vmatpush.bf16.msra.mxu0 %v2883
        %3011 = vmatpush.bf16.msra.mxu0 %v2880
        %3012 = vmatpush.bf16.msra.mxu0 %v2877
        %3013 = vmatpush.bf16.msra.mxu0 %v2874
        %3014 = vmatpush.bf16.msra.mxu0 %v2871
        %3015 = vmatpush.bf16.msra.mxu0 %v2868
        %3016 = vmatpush.bf16.msra.mxu0 %v2865
        %3017 = vmatmul.bf16.gmra.mxu0 %v2518
        %v3018 = vpop.f32.mrf.mxu0
        %v3019 = vadd.f32 %v2619, %v3018
        %v3020 = vpop.f32.mrf.mxu0
        %3021 = vdwg.mxu0
        %3022 = vmatpush.bf16.msra.mxu0 %v2910
        %3023 = vmatpush.bf16.msra.mxu0 %v2907
        %3024 = vmatpush.bf16.msra.mxu0 %v2904
        %3025 = vmatpush.bf16.msra.mxu0 %v2901
        %3026 = vmatpush.bf16.msra.mxu0 %v2898
        %3027 = vmatpush.bf16.msra.mxu0 %v2895
        %3028 = vmatpush.bf16.msra.mxu0 %v2892
        %3029 = vmatpush.bf16.msra.mxu0 %v2889
        %3030 = vmatmul.bf16.gmra.mxu0 %v2519
        %v3031 = vpop.f32.mrf.mxu0
        %v3032 = vadd.f32 %v3019, %v3031
        %v3033 = vpop.f32.mrf.mxu0
        %3034 = vdwg.mxu0
        %3035 = vmatpush.bf16.msra.mxu0 %v2934
        %3036 = vmatpush.bf16.msra.mxu0 %v2931
        %3037 = vmatpush.bf16.msra.mxu0 %v2928
        %3038 = vmatpush.bf16.msra.mxu0 %v2925
        %3039 = vmatpush.bf16.msra.mxu0 %v2922
        %3040 = vmatpush.bf16.msra.mxu0 %v2919
        %3041 = vmatpush.bf16.msra.mxu0 %v2916
        %3042 = vmatpush.bf16.msra.mxu0 %v2913
        %3043 = vmatmul.bf16.gmra.mxu0 %v2520
        %v3044 = vpop.f32.mrf.mxu0
        %v3045 = vadd.f32 %v3032, %v3044
        %v3046 = vpop.f32.mrf.mxu0
        %3047 = vdwg.mxu0
        %3048 = vmatpush.bf16.msra.mxu0 %v2887
        %3049 = vmatpush.bf16.msra.mxu0 %v2884
        %3050 = vmatpush.bf16.msra.mxu0 %v2881
        %3051 = vmatpush.bf16.msra.mxu0 %v2878
        %3052 = vmatpush.bf16.msra.mxu0 %v2875
        %3053 = vmatpush.bf16.msra.mxu0 %v2872
        %3054 = vmatpush.bf16.msra.mxu0 %v2869
        %3055 = vmatpush.bf16.msra.mxu0 %v2866
        %3056 = vmatmul.bf16.gmra.mxu0 %v2518
        %v3057 = vpop.f32.mrf.mxu0
        %v3058 = vadd.f32 %v2620, %v3057
        %v3059 = vpop.f32.mrf.mxu0
        %3060 = vdwg.mxu0
        %3061 = vmatpush.bf16.msra.mxu0 %v2911
        %3062 = vmatpush.bf16.msra.mxu0 %v2908
        %3063 = vmatpush.bf16.msra.mxu0 %v2905
        %3064 = vmatpush.bf16.msra.mxu0 %v2902
        %3065 = vmatpush.bf16.msra.mxu0 %v2899
        %3066 = vmatpush.bf16.msra.mxu0 %v2896
        %3067 = vmatpush.bf16.msra.mxu0 %v2893
        %3068 = vmatpush.bf16.msra.mxu0 %v2890
        %3069 = vmatmul.bf16.gmra.mxu0 %v2519
        %v3070 = vpop.f32.mrf.mxu0
        %v3071 = vadd.f32 %v3058, %v3070
        %v3072 = vpop.f32.mrf.mxu0
        %3073 = vdwg.mxu0
        %3074 = vmatpush.bf16.msra.mxu0 %v2935
        %3075 = vmatpush.bf16.msra.mxu0 %v2932
        %3076 = vmatpush.bf16.msra.mxu0 %v2929
        %3077 = vmatpush.bf16.msra.mxu0 %v2926
        %3078 = vmatpush.bf16.msra.mxu0 %v2923
        %3079 = vmatpush.bf16.msra.mxu0 %v2920
        %3080 = vmatpush.bf16.msra.mxu0 %v2917
        %3081 = vmatpush.bf16.msra.mxu0 %v2914
        %3082 = vmatmul.bf16.gmra.mxu0 %v2520
        %v3083 = vpop.f32.mrf.mxu0
        %v3084 = vadd.f32 %v3071, %v3083
        %v3085 = vpop.f32.mrf.mxu0
        %3086 = vdwg.mxu0
        %3087 = vmatpush.bf16.msra.mxu0 %v2888
        %3088 = vmatpush.bf16.msra.mxu0 %v2885
        %3089 = vmatpush.bf16.msra.mxu0 %v2882
        %3090 = vmatpush.bf16.msra.mxu0 %v2879
        %3091 = vmatpush.bf16.msra.mxu0 %v2876
        %3092 = vmatpush.bf16.msra.mxu0 %v2873
        %3093 = vmatpush.bf16.msra.mxu0 %v2870
        %3094 = vmatpush.bf16.msra.mxu0 %v2867
        %3095 = vmatmul.bf16.gmra.mxu0 %v2518
        %v3096 = vpop.f32.mrf.mxu0
        %v3097 = vadd.f32 %v2621, %v3096
        %v3098 = vpop.f32.mrf.mxu0
        %3099 = vdwg.mxu0
        %3100 = vmatpush.bf16.msra.mxu0 %v2912
        %3101 = vmatpush.bf16.msra.mxu0 %v2909
        %3102 = vmatpush.bf16.msra.mxu0 %v2906
        %3103 = vmatpush.bf16.msra.mxu0 %v2903
        %3104 = vmatpush.bf16.msra.mxu0 %v2900
        %3105 = vmatpush.bf16.msra.mxu0 %v2897
        %3106 = vmatpush.bf16.msra.mxu0 %v2894
        %3107 = vmatpush.bf16.msra.mxu0 %v2891
        %3108 = vmatmul.bf16.gmra.mxu0 %v2519
        %v3109 = vpop.f32.mrf.mxu0
        %v3110 = vadd.f32 %v3097, %v3109
        %v3111 = vpop.f32.mrf.mxu0
        %3112 = vdwg.mxu0
        %3113 = vmatpush.bf16.msra.mxu0 %v2936
        %3114 = vmatpush.bf16.msra.mxu0 %v2933
        %3115 = vmatpush.bf16.msra.mxu0 %v2930
        %3116 = vmatpush.bf16.msra.mxu0 %v2927
        %3117 = vmatpush.bf16.msra.mxu0 %v2924
        %3118 = vmatpush.bf16.msra.mxu0 %v2921
        %3119 = vmatpush.bf16.msra.mxu0 %v2918
        %3120 = vmatpush.bf16.msra.mxu0 %v2915
        %3121 = vmatmul.bf16.gmra.mxu0 %v2520
        %v3122 = vpop.f32.mrf.mxu0
        %v3123 = vadd.f32 %v3110, %v3122
        %v3124 = vpop.f32.mrf.mxu0
        %3125 = vdwg.mxu0
        %v3126 = vadd.f32 %v575, %v3045
        %v3127 = vadd.f32 %v576, %v3084
        %v3128 = vadd.f32 %v577, %v3123
        %v3129 = vld [vmem:[%s6] sm:$0x7]
        %v3130 = vld [vmem:[%s7] sm:$0x7]
        %v3131 = vadd.f32 %v3126, %v3127
        %v3132 = vadd.f32 %v3131, %v3128
        %3133 = vadd.xlane.f32.xlu0 %v3132
        %v3134 = vpop.xlane.xlu0 %3133
        %v3135 = vrcp.pop 384.0
        %v3136 = vmul.f32 384.0, %v3135
        %v3137 = vsub.f32 1.0, %v3136
        %v3138 = vmul.f32 %v3135, %v3137
        %v3139 = vadd.f32 %v3135, %v3138
        %vm3140 = vweird.f32 %v3135
        %v3141 = vsel %vm3140, %v3135, %v3139
        %v3142 = vmul.f32 %v3134, %v3141
        %v3143 = vsub.f32 %v3126, %v3142
        %v3144 = vsub.f32 %v3127, %v3142
        %v3145 = vsub.f32 %v3128, %v3142
        %v3146 = vmul.f32 %v3143, %v3143
        %v3147 = vmul.f32 %v3144, %v3144
        %v3148 = vmul.f32 %v3145, %v3145
        %v3149 = vadd.f32 %v3146, %v3147
        %v3150 = vadd.f32 %v3149, %v3148
        %3151 = vadd.xlane.f32.xlu0 %v3150
        %v3152 = vpop.xlane.xlu0 %3151
        %v3153 = vmul.f32 %v3152, %v3141
        %v3154 = vadd.f32 %v3153, 1e-05
        %v3155 = vrsqrt.pop %v3154
        %v3156 = vmul.f32 %v3155, %v3154
        %v3157 = vmul.f32 %v3156, %v3155
        %v3158 = vmul.f32 0.5, %v3157
        %v3159 = vsub.f32 1.5, %v3158
        %v3160 = vmul.f32 %v3155, %v3159
        %vm3161 = vweird.f32 %v3154
        %vm3162 = vweird.f32 %v3155
        %vm3163 = vmor %vm3161, %vm3162
        %v3164 = vsel %vm3163, %v3155, %v3160
        %v3165 = vmul.f32 %v3143, %v3164
        %v3166 = vmul.f32 %v3144, %v3164
        %v3167 = vmul.f32 %v3145, %v3164
        %v3169 = vperm.slane %v3129, 0
        %v3170 = vperm.slane %v3129, 1
        %v3171 = vperm.slane %v3129, 2
        %v3175 = vmul.f32 %v3165, %v3169
        %v3176 = vmul.f32 %v3166, %v3170
        %v3177 = vmul.f32 %v3167, %v3171
        %v3179 = vperm.slane %v3130, 0
        %v3180 = vperm.slane %v3130, 1
        %v3181 = vperm.slane %v3130, 2
        %v3185 = vadd.f32 %v3175, %v3179
        %v3186 = vadd.f32 %v3176, %v3180
        %v3187 = vadd.f32 %v3177, %v3181
        %v3188 = vpack.c.bf16 %v3185, %v3185
        %v3189 = vpack.c.bf16 %v3186, %v3186
        %v3190 = vpack.c.bf16 %v3187, %v3187
        %v3191 = vld [vmem:[%s8] sm:$0xff]
        %v3192 = vld [vmem:[%s8 + $0x8] sm:$0xf]
        %v3193 = vld [vmem:[%s8 + $0x30] sm:$0xff]
        %v3194 = vld [vmem:[%s8 + $0x38] sm:$0xf]
        %v3195 = vld [vmem:[%s8 + $0x60] sm:$0xff]
        %v3196 = vld [vmem:[%s8 + $0x68] sm:$0xf]
        %v3197 = vld [vmem:[%s8 + $0x90] sm:$0xff]
        %v3198 = vld [vmem:[%s8 + $0x98] sm:$0xf]
        %v3199 = vld [vmem:[%s8 + $0xc0] sm:$0xff]
        %v3200 = vld [vmem:[%s8 + $0xc8] sm:$0xf]
        %v3201 = vld [vmem:[%s8 + $0xf0] sm:$0xff]
        %v3202 = vld [vmem:[%s8 + $0xf8] sm:$0xf]
        %v3203 = vld [vmem:[%s8 + $0x120] sm:$0xff]
        %v3204 = vld [vmem:[%s8 + $0x128] sm:$0xf]
        %v3205 = vld [vmem:[%s8 + $0x150] sm:$0xff]
        %v3206 = vld [vmem:[%s8 + $0x158] sm:$0xf]
        %v3207 = vld [vmem:[%s8 + $0x180] sm:$0xff]
        %v3208 = vld [vmem:[%s8 + $0x188] sm:$0xf]
        %v3209 = vld [vmem:[%s8 + $0x1b0] sm:$0xff]
        %v3210 = vld [vmem:[%s8 + $0x1b8] sm:$0xf]
        %v3211 = vld [vmem:[%s8 + $0x1e0] sm:$0xff]
        %v3212 = vld [vmem:[%s8 + $0x1e8] sm:$0xf]
        %v3213 = vld [vmem:[%s8 + $0x210] sm:$0xff]
        %v3214 = vld [vmem:[%s8 + $0x218] sm:$0xf]
        %v3215 = vld [vmem:[%s8 + $0x240] sm:$0xff]
        %v3216 = vld [vmem:[%s8 + $0x248] sm:$0xf]
        %v3217 = vld [vmem:[%s8 + $0x270] sm:$0xff]
        %v3218 = vld [vmem:[%s8 + $0x278] sm:$0xf]
        %v3219 = vld [vmem:[%s8 + $0x2a0] sm:$0xff]
        %v3220 = vld [vmem:[%s8 + $0x2a8] sm:$0xf]
        %v3221 = vld [vmem:[%s8 + $0x2d0] sm:$0xff]
        %v3222 = vld [vmem:[%s8 + $0x2d8] sm:$0xf]
        %v3223 = vld [vmem:[%s8 + $0x300] sm:$0xff]
        %v3224 = vld [vmem:[%s8 + $0x308] sm:$0xf]
        %v3225 = vld [vmem:[%s8 + $0x330] sm:$0xff]
        %v3226 = vld [vmem:[%s8 + $0x338] sm:$0xf]
        %v3227 = vld [vmem:[%s8 + $0x360] sm:$0xff]
        %v3228 = vld [vmem:[%s8 + $0x368] sm:$0xf]
        %v3229 = vld [vmem:[%s8 + $0x390] sm:$0xff]
        %v3230 = vld [vmem:[%s8 + $0x398] sm:$0xf]
        %v3231 = vld [vmem:[%s8 + $0x3c0] sm:$0xff]
        %v3232 = vld [vmem:[%s8 + $0x3c8] sm:$0xf]
        %v3233 = vld [vmem:[%s8 + $0x3f0] sm:$0xff]
        %v3234 = vld [vmem:[%s8 + $0x3f8] sm:$0xf]
        %v3235 = vld [vmem:[%s8 + $0x420] sm:$0xff]
        %v3236 = vld [vmem:[%s8 + $0x428] sm:$0xf]
        %v3237 = vld [vmem:[%s8 + $0x450] sm:$0xff]
        %v3238 = vld [vmem:[%s8 + $0x458] sm:$0xf]
        %v3239 = vld [vmem:[%s8 + $0x480] sm:$0xff]
        %v3240 = vld [vmem:[%s8 + $0x488] sm:$0xf]
        %v3241 = vld [vmem:[%s8 + $0x4b0] sm:$0xff]
        %v3242 = vld [vmem:[%s8 + $0x4b8] sm:$0xf]
        %v3243 = vld [vmem:[%s8 + $0x4e0] sm:$0xff]
        %v3244 = vld [vmem:[%s8 + $0x4e8] sm:$0xf]
        %v3245 = vld [vmem:[%s8 + $0x510] sm:$0xff]
        %v3246 = vld [vmem:[%s8 + $0x518] sm:$0xf]
        %v3247 = vld [vmem:[%s8 + $0x540] sm:$0xff]
        %v3248 = vld [vmem:[%s8 + $0x548] sm:$0xf]
        %v3249 = vld [vmem:[%s8 + $0x570] sm:$0xff]
        %v3250 = vld [vmem:[%s8 + $0x578] sm:$0xf]
        %v3251 = vld [vmem:[%s8 + $0x5a0] sm:$0xff]
        %v3252 = vld [vmem:[%s8 + $0x5a8] sm:$0xf]
        %v3253 = vld [vmem:[%s8 + $0x5d0] sm:$0xff]
        %v3254 = vld [vmem:[%s8 + $0x5d8] sm:$0xf]
        %v3255 = vld [vmem:[%s8 + $0x600] sm:$0xff]
        %v3256 = vld [vmem:[%s8 + $0x608] sm:$0xf]
        %v3257 = vld [vmem:[%s8 + $0x630] sm:$0xff]
        %v3258 = vld [vmem:[%s8 + $0x638] sm:$0xf]
        %v3259 = vld [vmem:[%s8 + $0x660] sm:$0xff]
        %v3260 = vld [vmem:[%s8 + $0x668] sm:$0xf]
        %v3261 = vld [vmem:[%s8 + $0x690] sm:$0xff]
        %v3262 = vld [vmem:[%s8 + $0x698] sm:$0xf]
        %v3263 = vld [vmem:[%s8 + $0x6c0] sm:$0xff]
        %v3264 = vld [vmem:[%s8 + $0x6c8] sm:$0xf]
        %v3265 = vld [vmem:[%s8 + $0x6f0] sm:$0xff]
        %v3266 = vld [vmem:[%s8 + $0x6f8] sm:$0xf]
        %v3267 = vld [vmem:[%s8 + $0x720] sm:$0xff]
        %v3268 = vld [vmem:[%s8 + $0x728] sm:$0xf]
        %v3269 = vld [vmem:[%s8 + $0x750] sm:$0xff]
        %v3270 = vld [vmem:[%s8 + $0x758] sm:$0xf]
        %v3271 = vld [vmem:[%s8 + $0x780] sm:$0xff]
        %v3272 = vld [vmem:[%s8 + $0x788] sm:$0xf]
        %v3273 = vld [vmem:[%s8 + $0x7b0] sm:$0xff]
        %v3274 = vld [vmem:[%s8 + $0x7b8] sm:$0xf]
        %v3275 = vld [vmem:[%s8 + $0x7e0] sm:$0xff]
        %v3276 = vld [vmem:[%s8 + $0x7e8] sm:$0xf]
        %v3277 = vld [vmem:[%s8 + $0x810] sm:$0xff]
        %v3278 = vld [vmem:[%s8 + $0x818] sm:$0xf]
        %v3279 = vld [vmem:[%s8 + $0x840] sm:$0xff]
        %v3280 = vld [vmem:[%s8 + $0x848] sm:$0xf]
        %v3281 = vld [vmem:[%s8 + $0x870] sm:$0xff]
        %v3282 = vld [vmem:[%s8 + $0x878] sm:$0xf]
        %v3283 = vld [vmem:[%s8 + $0x8a0] sm:$0xff]
        %v3284 = vld [vmem:[%s8 + $0x8a8] sm:$0xf]
        %v3285 = vld [vmem:[%s8 + $0x8d0] sm:$0xff]
        %v3286 = vld [vmem:[%s8 + $0x8d8] sm:$0xf]
        %v3287 = vld [vmem:[%s9] sm:$0x7]
        %v3289 = vperm.slane %v3287, 0
        %v3290 = vperm.slane %v3287, 1
        %v3291 = vperm.slane %v3287, 2
        %v3391 = vunpack.c.l.b16 %v3191
        %v3392 = vunpack.c.h.b16 %v3191
        %v3393 = vunpack.c.l.b16 %v3192
        %v3394 = vunpack.c.l.b16 %v3193
        %v3395 = vunpack.c.h.b16 %v3193
        %v3396 = vunpack.c.l.b16 %v3194
        %v3397 = vunpack.c.l.b16 %v3195
        %v3398 = vunpack.c.h.b16 %v3195
        %v3399 = vunpack.c.l.b16 %v3196
        %v3400 = vunpack.c.l.b16 %v3197
        %v3401 = vunpack.c.h.b16 %v3197
        %v3402 = vunpack.c.l.b16 %v3198
        %v3403 = vunpack.c.l.b16 %v3199
        %v3404 = vunpack.c.h.b16 %v3199
        %v3405 = vunpack.c.l.b16 %v3200
        %v3406 = vunpack.c.l.b16 %v3201
        %v3407 = vunpack.c.h.b16 %v3201
        %v3408 = vunpack.c.l.b16 %v3202
        %v3409 = vunpack.c.l.b16 %v3203
        %v3410 = vunpack.c.h.b16 %v3203
        %v3411 = vunpack.c.l.b16 %v3204
        %v3412 = vunpack.c.l.b16 %v3205
        %v3413 = vunpack.c.h.b16 %v3205
        %v3414 = vunpack.c.l.b16 %v3206
        %v3415 = vunpack.c.l.b16 %v3207
        %v3416 = vunpack.c.h.b16 %v3207
        %v3417 = vunpack.c.l.b16 %v3208
        %v3418 = vunpack.c.l.b16 %v3209
        %v3419 = vunpack.c.h.b16 %v3209
        %v3420 = vunpack.c.l.b16 %v3210
        %v3421 = vunpack.c.l.b16 %v3211
        %v3422 = vunpack.c.h.b16 %v3211
        %v3423 = vunpack.c.l.b16 %v3212
        %v3424 = vunpack.c.l.b16 %v3213
        %v3425 = vunpack.c.h.b16 %v3213
        %v3426 = vunpack.c.l.b16 %v3214
        %v3427 = vunpack.c.l.b16 %v3215
        %v3428 = vunpack.c.h.b16 %v3215
        %v3429 = vunpack.c.l.b16 %v3216
        %v3430 = vunpack.c.l.b16 %v3217
        %v3431 = vunpack.c.h.b16 %v3217
        %v3432 = vunpack.c.l.b16 %v3218
        %v3433 = vunpack.c.l.b16 %v3219
        %v3434 = vunpack.c.h.b16 %v3219
        %v3435 = vunpack.c.l.b16 %v3220
        %v3436 = vunpack.c.l.b16 %v3221
        %v3437 = vunpack.c.h.b16 %v3221
        %v3438 = vunpack.c.l.b16 %v3222
        %v3439 = vunpack.c.l.b16 %v3223
        %v3440 = vunpack.c.h.b16 %v3223
        %v3441 = vunpack.c.l.b16 %v3224
        %v3442 = vunpack.c.l.b16 %v3225
        %v3443 = vunpack.c.h.b16 %v3225
        %v3444 = vunpack.c.l.b16 %v3226
        %v3445 = vunpack.c.l.b16 %v3227
        %v3446 = vunpack.c.h.b16 %v3227
        %v3447 = vunpack.c.l.b16 %v3228
        %v3448 = vunpack.c.l.b16 %v3229
        %v3449 = vunpack.c.h.b16 %v3229
        %v3450 = vunpack.c.l.b16 %v3230
        %v3451 = vunpack.c.l.b16 %v3231
        %v3452 = vunpack.c.h.b16 %v3231
        %v3453 = vunpack.c.l.b16 %v3232
        %v3454 = vunpack.c.l.b16 %v3233
        %v3455 = vunpack.c.h.b16 %v3233
        %v3456 = vunpack.c.l.b16 %v3234
        %v3457 = vunpack.c.l.b16 %v3235
        %v3458 = vunpack.c.h.b16 %v3235
        %v3459 = vunpack.c.l.b16 %v3236
        %v3460 = vunpack.c.l.b16 %v3237
        %v3461 = vunpack.c.h.b16 %v3237
        %v3462 = vunpack.c.l.b16 %v3238
        %v3463 = vunpack.c.l.b16 %v3239
        %v3464 = vunpack.c.h.b16 %v3239
        %v3465 = vunpack.c.l.b16 %v3240
        %v3466 = vunpack.c.l.b16 %v3241
        %v3467 = vunpack.c.h.b16 %v3241
        %v3468 = vunpack.c.l.b16 %v3242
        %v3469 = vunpack.c.l.b16 %v3243
        %v3470 = vunpack.c.h.b16 %v3243
        %v3471 = vunpack.c.l.b16 %v3244
        %v3472 = vunpack.c.l.b16 %v3245
        %v3473 = vunpack.c.h.b16 %v3245
        %v3474 = vunpack.c.l.b16 %v3246
        %v3475 = vunpack.c.l.b16 %v3247
        %v3476 = vunpack.c.h.b16 %v3247
        %v3477 = vunpack.c.l.b16 %v3248
        %v3478 = vunpack.c.l.b16 %v3249
        %v3479 = vunpack.c.h.b16 %v3249
        %v3480 = vunpack.c.l.b16 %v3250
        %v3481 = vunpack.c.l.b16 %v3251
        %v3482 = vunpack.c.h.b16 %v3251
        %v3483 = vunpack.c.l.b16 %v3252
        %v3484 = vunpack.c.l.b16 %v3253
        %v3485 = vunpack.c.h.b16 %v3253
        %v3486 = vunpack.c.l.b16 %v3254
        %v3487 = vunpack.c.l.b16 %v3255
        %v3488 = vunpack.c.h.b16 %v3255
        %v3489 = vunpack.c.l.b16 %v3256
        %v3490 = vunpack.c.l.b16 %v3257
        %v3491 = vunpack.c.h.b16 %v3257
        %v3492 = vunpack.c.l.b16 %v3258
        %v3493 = vunpack.c.l.b16 %v3259
        %v3494 = vunpack.c.h.b16 %v3259
        %v3495 = vunpack.c.l.b16 %v3260
        %v3496 = vunpack.c.l.b16 %v3261
        %v3497 = vunpack.c.h.b16 %v3261
        %v3498 = vunpack.c.l.b16 %v3262
        %v3499 = vunpack.c.l.b16 %v3263
        %v3500 = vunpack.c.h.b16 %v3263
        %v3501 = vunpack.c.l.b16 %v3264
        %v3502 = vunpack.c.l.b16 %v3265
        %v3503 = vunpack.c.h.b16 %v3265
        %v3504 = vunpack.c.l.b16 %v3266
        %v3505 = vunpack.c.l.b16 %v3267
        %v3506 = vunpack.c.h.b16 %v3267
        %v3507 = vunpack.c.l.b16 %v3268
        %v3508 = vunpack.c.l.b16 %v3269
        %v3509 = vunpack.c.h.b16 %v3269
        %v3510 = vunpack.c.l.b16 %v3270
        %v3511 = vunpack.c.l.b16 %v3271
        %v3512 = vunpack.c.h.b16 %v3271
        %v3513 = vunpack.c.l.b16 %v3272
        %v3514 = vunpack.c.l.b16 %v3273
        %v3515 = vunpack.c.h.b16 %v3273
        %v3516 = vunpack.c.l.b16 %v3274
        %v3517 = vunpack.c.l.b16 %v3275
        %v3518 = vunpack.c.h.b16 %v3275
        %v3519 = vunpack.c.l.b16 %v3276
        %v3520 = vunpack.c.l.b16 %v3277
        %v3521 = vunpack.c.h.b16 %v3277
        %v3522 = vunpack.c.l.b16 %v3278
        %v3523 = vunpack.c.l.b16 %v3279
        %v3524 = vunpack.c.h.b16 %v3279
        %v3525 = vunpack.c.l.b16 %v3280
        %v3526 = vunpack.c.l.b16 %v3281
        %v3527 = vunpack.c.h.b16 %v3281
        %v3528 = vunpack.c.l.b16 %v3282
        %v3529 = vunpack.c.l.b16 %v3283
        %v3530 = vunpack.c.h.b16 %v3283
        %v3531 = vunpack.c.l.b16 %v3284
        %v3532 = vunpack.c.l.b16 %v3285
        %v3533 = vunpack.c.h.b16 %v3285
        %v3534 = vunpack.c.l.b16 %v3286
        %v3535 = vpack.c.b16 %v3394, %v3391
        %v3536 = vpack.c.b16 %v3395, %v3392
        %v3537 = vpack.c.b16 %v3396, %v3393
        %v3538 = vpack.c.b16 %v3400, %v3397
        %v3539 = vpack.c.b16 %v3401, %v3398
        %v3540 = vpack.c.b16 %v3402, %v3399
        %v3541 = vpack.c.b16 %v3406, %v3403
        %v3542 = vpack.c.b16 %v3407, %v3404
        %v3543 = vpack.c.b16 %v3408, %v3405
        %v3544 = vpack.c.b16 %v3412, %v3409
        %v3545 = vpack.c.b16 %v3413, %v3410
        %v3546 = vpack.c.b16 %v3414, %v3411
        %v3547 = vpack.c.b16 %v3418, %v3415
        %v3548 = vpack.c.b16 %v3419, %v3416
        %v3549 = vpack.c.b16 %v3420, %v3417
        %v3550 = vpack.c.b16 %v3424, %v3421
        %v3551 = vpack.c.b16 %v3425, %v3422
        %v3552 = vpack.c.b16 %v3426, %v3423
        %v3553 = vpack.c.b16 %v3430, %v3427
        %v3554 = vpack.c.b16 %v3431, %v3428
        %v3555 = vpack.c.b16 %v3432, %v3429
        %v3556 = vpack.c.b16 %v3436, %v3433
        %v3557 = vpack.c.b16 %v3437, %v3434
        %v3558 = vpack.c.b16 %v3438, %v3435
        %v3559 = vpack.c.b16 %v3442, %v3439
        %v3560 = vpack.c.b16 %v3443, %v3440
        %v3561 = vpack.c.b16 %v3444, %v3441
        %v3562 = vpack.c.b16 %v3448, %v3445
        %v3563 = vpack.c.b16 %v3449, %v3446
        %v3564 = vpack.c.b16 %v3450, %v3447
        %v3565 = vpack.c.b16 %v3454, %v3451
        %v3566 = vpack.c.b16 %v3455, %v3452
        %v3567 = vpack.c.b16 %v3456, %v3453
        %v3568 = vpack.c.b16 %v3460, %v3457
        %v3569 = vpack.c.b16 %v3461, %v3458
        %v3570 = vpack.c.b16 %v3462, %v3459
        %v3571 = vpack.c.b16 %v3466, %v3463
        %v3572 = vpack.c.b16 %v3467, %v3464
        %v3573 = vpack.c.b16 %v3468, %v3465
        %v3574 = vpack.c.b16 %v3472, %v3469
        %v3575 = vpack.c.b16 %v3473, %v3470
        %v3576 = vpack.c.b16 %v3474, %v3471
        %v3577 = vpack.c.b16 %v3478, %v3475
        %v3578 = vpack.c.b16 %v3479, %v3476
        %v3579 = vpack.c.b16 %v3480, %v3477
        %v3580 = vpack.c.b16 %v3484, %v3481
        %v3581 = vpack.c.b16 %v3485, %v3482
        %v3582 = vpack.c.b16 %v3486, %v3483
        %v3583 = vpack.c.b16 %v3490, %v3487
        %v3584 = vpack.c.b16 %v3491, %v3488
        %v3585 = vpack.c.b16 %v3492, %v3489
        %v3586 = vpack.c.b16 %v3496, %v3493
        %v3587 = vpack.c.b16 %v3497, %v3494
        %v3588 = vpack.c.b16 %v3498, %v3495
        %v3589 = vpack.c.b16 %v3502, %v3499
        %v3590 = vpack.c.b16 %v3503, %v3500
        %v3591 = vpack.c.b16 %v3504, %v3501
        %v3592 = vpack.c.b16 %v3508, %v3505
        %v3593 = vpack.c.b16 %v3509, %v3506
        %v3594 = vpack.c.b16 %v3510, %v3507
        %v3595 = vpack.c.b16 %v3514, %v3511
        %v3596 = vpack.c.b16 %v3515, %v3512
        %v3597 = vpack.c.b16 %v3516, %v3513
        %v3598 = vpack.c.b16 %v3520, %v3517
        %v3599 = vpack.c.b16 %v3521, %v3518
        %v3600 = vpack.c.b16 %v3522, %v3519
        %v3601 = vpack.c.b16 %v3526, %v3523
        %v3602 = vpack.c.b16 %v3527, %v3524
        %v3603 = vpack.c.b16 %v3528, %v3525
        %v3604 = vpack.c.b16 %v3532, %v3529
        %v3605 = vpack.c.b16 %v3533, %v3530
        %v3606 = vpack.c.b16 %v3534, %v3531
        %3679 = vmatpush.bf16.msra.mxu0 %v3556
        %3680 = vmatpush.bf16.msra.mxu0 %v3553
        %3681 = vmatpush.bf16.msra.mxu0 %v3550
        %3682 = vmatpush.bf16.msra.mxu0 %v3547
        %3683 = vmatpush.bf16.msra.mxu0 %v3544
        %3684 = vmatpush.bf16.msra.mxu0 %v3541
        %3685 = vmatpush.bf16.msra.mxu0 %v3538
        %3686 = vmatpush.bf16.msra.mxu0 %v3535
        %3687 = vmatmul.bf16.gmra.mxu0 %v3188
        %v3688 = vpop.f32.mrf.mxu0
        %v3689 = vadd.f32 %v3289, %v3688
        %v3690 = vpop.f32.mrf.mxu0
        %3691 = vdwg.mxu0
        %3692 = vmatpush.bf16.msra.mxu0 %v3580
        %3693 = vmatpush.bf16.msra.mxu0 %v3577
        %3694 = vmatpush.bf16.msra.mxu0 %v3574
        %3695 = vmatpush.bf16.msra.mxu0 %v3571
        %3696 = vmatpush.bf16.msra.mxu0 %v3568
        %3697 = vmatpush.bf16.msra.mxu0 %v3565
        %3698 = vmatpush.bf16.msra.mxu0 %v3562
        %3699 = vmatpush.bf16.msra.mxu0 %v3559
        %3700 = vmatmul.bf16.gmra.mxu0 %v3189
        %v3701 = vpop.f32.mrf.mxu0
        %v3702 = vadd.f32 %v3689, %v3701
        %v3703 = vpop.f32.mrf.mxu0
        %3704 = vdwg.mxu0
        %3705 = vmatpush.bf16.msra.mxu0 %v3604
        %3706 = vmatpush.bf16.msra.mxu0 %v3601
        %3707 = vmatpush.bf16.msra.mxu0 %v3598
        %3708 = vmatpush.bf16.msra.mxu0 %v3595
        %3709 = vmatpush.bf16.msra.mxu0 %v3592
        %3710 = vmatpush.bf16.msra.mxu0 %v3589
        %3711 = vmatpush.bf16.msra.mxu0 %v3586
        %3712 = vmatpush.bf16.msra.mxu0 %v3583
        %3713 = vmatmul.bf16.gmra.mxu0 %v3190
        %v3714 = vpop.f32.mrf.mxu0
        %v3715 = vadd.f32 %v3702, %v3714
        %v3716 = vpop.f32.mrf.mxu0
        %3717 = vdwg.mxu0
        %3718 = vmatpush.bf16.msra.mxu0 %v3557
        %3719 = vmatpush.bf16.msra.mxu0 %v3554
        %3720 = vmatpush.bf16.msra.mxu0 %v3551
        %3721 = vmatpush.bf16.msra.mxu0 %v3548
        %3722 = vmatpush.bf16.msra.mxu0 %v3545
        %3723 = vmatpush.bf16.msra.mxu0 %v3542
        %3724 = vmatpush.bf16.msra.mxu0 %v3539
        %3725 = vmatpush.bf16.msra.mxu0 %v3536
        %3726 = vmatmul.bf16.gmra.mxu0 %v3188
        %v3727 = vpop.f32.mrf.mxu0
        %v3728 = vadd.f32 %v3290, %v3727
        %v3729 = vpop.f32.mrf.mxu0
        %3730 = vdwg.mxu0
        %3731 = vmatpush.bf16.msra.mxu0 %v3581
        %3732 = vmatpush.bf16.msra.mxu0 %v3578
        %3733 = vmatpush.bf16.msra.mxu0 %v3575
        %3734 = vmatpush.bf16.msra.mxu0 %v3572
        %3735 = vmatpush.bf16.msra.mxu0 %v3569
        %3736 = vmatpush.bf16.msra.mxu0 %v3566
        %3737 = vmatpush.bf16.msra.mxu0 %v3563
        %3738 = vmatpush.bf16.msra.mxu0 %v3560
        %3739 = vmatmul.bf16.gmra.mxu0 %v3189
        %v3740 = vpop.f32.mrf.mxu0
        %v3741 = vadd.f32 %v3728, %v3740
        %v3742 = vpop.f32.mrf.mxu0
        %3743 = vdwg.mxu0
        %3744 = vmatpush.bf16.msra.mxu0 %v3605
        %3745 = vmatpush.bf16.msra.mxu0 %v3602
        %3746 = vmatpush.bf16.msra.mxu0 %v3599
        %3747 = vmatpush.bf16.msra.mxu0 %v3596
        %3748 = vmatpush.bf16.msra.mxu0 %v3593
        %3749 = vmatpush.bf16.msra.mxu0 %v3590
        %3750 = vmatpush.bf16.msra.mxu0 %v3587
        %3751 = vmatpush.bf16.msra.mxu0 %v3584
        %3752 = vmatmul.bf16.gmra.mxu0 %v3190
        %v3753 = vpop.f32.mrf.mxu0
        %v3754 = vadd.f32 %v3741, %v3753
        %v3755 = vpop.f32.mrf.mxu0
        %3756 = vdwg.mxu0
        %3757 = vmatpush.bf16.msra.mxu0 %v3558
        %3758 = vmatpush.bf16.msra.mxu0 %v3555
        %3759 = vmatpush.bf16.msra.mxu0 %v3552
        %3760 = vmatpush.bf16.msra.mxu0 %v3549
        %3761 = vmatpush.bf16.msra.mxu0 %v3546
        %3762 = vmatpush.bf16.msra.mxu0 %v3543
        %3763 = vmatpush.bf16.msra.mxu0 %v3540
        %3764 = vmatpush.bf16.msra.mxu0 %v3537
        %3765 = vmatmul.bf16.gmra.mxu0 %v3188
        %v3766 = vpop.f32.mrf.mxu0
        %v3767 = vadd.f32 %v3291, %v3766
        %v3768 = vpop.f32.mrf.mxu0
        %3769 = vdwg.mxu0
        %3770 = vmatpush.bf16.msra.mxu0 %v3582
        %3771 = vmatpush.bf16.msra.mxu0 %v3579
        %3772 = vmatpush.bf16.msra.mxu0 %v3576
        %3773 = vmatpush.bf16.msra.mxu0 %v3573
        %3774 = vmatpush.bf16.msra.mxu0 %v3570
        %3775 = vmatpush.bf16.msra.mxu0 %v3567
        %3776 = vmatpush.bf16.msra.mxu0 %v3564
        %3777 = vmatpush.bf16.msra.mxu0 %v3561
        %3778 = vmatmul.bf16.gmra.mxu0 %v3189
        %v3779 = vpop.f32.mrf.mxu0
        %v3780 = vadd.f32 %v3767, %v3779
        %v3781 = vpop.f32.mrf.mxu0
        %3782 = vdwg.mxu0
        %3783 = vmatpush.bf16.msra.mxu0 %v3606
        %3784 = vmatpush.bf16.msra.mxu0 %v3603
        %3785 = vmatpush.bf16.msra.mxu0 %v3600
        %3786 = vmatpush.bf16.msra.mxu0 %v3597
        %3787 = vmatpush.bf16.msra.mxu0 %v3594
        %3788 = vmatpush.bf16.msra.mxu0 %v3591
        %3789 = vmatpush.bf16.msra.mxu0 %v3588
        %3790 = vmatpush.bf16.msra.mxu0 %v3585
        %3791 = vmatmul.bf16.gmra.mxu0 %v3190
        %v3792 = vpop.f32.mrf.mxu0
        %v3793 = vadd.f32 %v3780, %v3792
        %v3794 = vpop.f32.mrf.mxu0
        %3795 = vdwg.mxu0
        %v3796 = vmax.f32 %v3715, 0.0
        %v3797 = vmax.f32 %v3754, 0.0
        %v3798 = vmax.f32 %v3793, 0.0
        %v3799 = vpack.c.bf16 %v3796, %v3796
        %v3800 = vpack.c.bf16 %v3797, %v3797
        %v3801 = vpack.c.bf16 %v3798, %v3798
        %v3802 = vld [vmem:[%s10] sm:$0xff]
        %v3803 = vld [vmem:[%s10 + $0x8] sm:$0xf]
        %v3804 = vld [vmem:[%s10 + $0xc] sm:$0xff]
        %v3805 = vld [vmem:[%s10 + $0x14] sm:$0xf]
        %v3806 = vld [vmem:[%s10 + $0x18] sm:$0xff]
        %v3807 = vld [vmem:[%s10 + $0x20] sm:$0xf]
        %v3808 = vld [vmem:[%s10 + $0x24] sm:$0xff]
        %v3809 = vld [vmem:[%s10 + $0x2c] sm:$0xf]
        %v3810 = vld [vmem:[%s10 + $0x30] sm:$0xff]
        %v3811 = vld [vmem:[%s10 + $0x38] sm:$0xf]
        %v3812 = vld [vmem:[%s10 + $0x3c] sm:$0xff]
        %v3813 = vld [vmem:[%s10 + $0x44] sm:$0xf]
        %v3814 = vld [vmem:[%s10 + $0x48] sm:$0xff]
        %v3815 = vld [vmem:[%s10 + $0x50] sm:$0xf]
        %v3816 = vld [vmem:[%s10 + $0x54] sm:$0xff]
        %v3817 = vld [vmem:[%s10 + $0x5c] sm:$0xf]
        %v3818 = vld [vmem:[%s10 + $0x60] sm:$0xff]
        %v3819 = vld [vmem:[%s10 + $0x68] sm:$0xf]
        %v3820 = vld [vmem:[%s10 + $0x6c] sm:$0xff]
        %v3821 = vld [vmem:[%s10 + $0x74] sm:$0xf]
        %v3822 = vld [vmem:[%s10 + $0x78] sm:$0xff]
        %v3823 = vld [vmem:[%s10 + $0x80] sm:$0xf]
        %v3824 = vld [vmem:[%s10 + $0x84] sm:$0xff]
        %v3825 = vld [vmem:[%s10 + $0x8c] sm:$0xf]
        %v3826 = vld [vmem:[%s10 + $0x90] sm:$0xff]
        %v3827 = vld [vmem:[%s10 + $0x98] sm:$0xf]
        %v3828 = vld [vmem:[%s10 + $0x9c] sm:$0xff]
        %v3829 = vld [vmem:[%s10 + $0xa4] sm:$0xf]
        %v3830 = vld [vmem:[%s10 + $0xa8] sm:$0xff]
        %v3831 = vld [vmem:[%s10 + $0xb0] sm:$0xf]
        %v3832 = vld [vmem:[%s10 + $0xb4] sm:$0xff]
        %v3833 = vld [vmem:[%s10 + $0xbc] sm:$0xf]
        %v3834 = vld [vmem:[%s10 + $0xc0] sm:$0xff]
        %v3835 = vld [vmem:[%s10 + $0xc8] sm:$0xf]
        %v3836 = vld [vmem:[%s10 + $0xcc] sm:$0xff]
        %v3837 = vld [vmem:[%s10 + $0xd4] sm:$0xf]
        %v3838 = vld [vmem:[%s10 + $0xd8] sm:$0xff]
        %v3839 = vld [vmem:[%s10 + $0xe0] sm:$0xf]
        %v3840 = vld [vmem:[%s10 + $0xe4] sm:$0xff]
        %v3841 = vld [vmem:[%s10 + $0xec] sm:$0xf]
        %v3842 = vld [vmem:[%s10 + $0xf0] sm:$0xff]
        %v3843 = vld [vmem:[%s10 + $0xf8] sm:$0xf]
        %v3844 = vld [vmem:[%s10 + $0xfc] sm:$0xff]
        %v3845 = vld [vmem:[%s10 + $0x104] sm:$0xf]
        %v3846 = vld [vmem:[%s10 + $0x108] sm:$0xff]
        %v3847 = vld [vmem:[%s10 + $0x110] sm:$0xf]
        %v3848 = vld [vmem:[%s10 + $0x114] sm:$0xff]
        %v3849 = vld [vmem:[%s10 + $0x11c] sm:$0xf]
        %v3850 = vld [vmem:[%s10 + $0x120] sm:$0xff]
        %v3851 = vld [vmem:[%s10 + $0x128] sm:$0xf]
        %v3852 = vld [vmem:[%s10 + $0x12c] sm:$0xff]
        %v3853 = vld [vmem:[%s10 + $0x134] sm:$0xf]
        %v3854 = vld [vmem:[%s10 + $0x138] sm:$0xff]
        %v3855 = vld [vmem:[%s10 + $0x140] sm:$0xf]
        %v3856 = vld [vmem:[%s10 + $0x144] sm:$0xff]
        %v3857 = vld [vmem:[%s10 + $0x14c] sm:$0xf]
        %v3858 = vld [vmem:[%s10 + $0x150] sm:$0xff]
        %v3859 = vld [vmem:[%s10 + $0x158] sm:$0xf]
        %v3860 = vld [vmem:[%s10 + $0x15c] sm:$0xff]
        %v3861 = vld [vmem:[%s10 + $0x164] sm:$0xf]
        %v3862 = vld [vmem:[%s10 + $0x168] sm:$0xff]
        %v3863 = vld [vmem:[%s10 + $0x170] sm:$0xf]
        %v3864 = vld [vmem:[%s10 + $0x174] sm:$0xff]
        %v3865 = vld [vmem:[%s10 + $0x17c] sm:$0xf]
        %v3866 = vld [vmem:[%s10 + $0x180] sm:$0xff]
        %v3867 = vld [vmem:[%s10 + $0x188] sm:$0xf]
        %v3868 = vld [vmem:[%s10 + $0x18c] sm:$0xff]
        %v3869 = vld [vmem:[%s10 + $0x194] sm:$0xf]
        %v3870 = vld [vmem:[%s10 + $0x198] sm:$0xff]
        %v3871 = vld [vmem:[%s10 + $0x1a0] sm:$0xf]
        %v3872 = vld [vmem:[%s10 + $0x1a4] sm:$0xff]
        %v3873 = vld [vmem:[%s10 + $0x1ac] sm:$0xf]
        %v3874 = vld [vmem:[%s10 + $0x1b0] sm:$0xff]
        %v3875 = vld [vmem:[%s10 + $0x1b8] sm:$0xf]
        %v3876 = vld [vmem:[%s10 + $0x1bc] sm:$0xff]
        %v3877 = vld [vmem:[%s10 + $0x1c4] sm:$0xf]
        %v3878 = vld [vmem:[%s10 + $0x1c8] sm:$0xff]
        %v3879 = vld [vmem:[%s10 + $0x1d0] sm:$0xf]
        %v3880 = vld [vmem:[%s10 + $0x1d4] sm:$0xff]
        %v3881 = vld [vmem:[%s10 + $0x1dc] sm:$0xf]
        %v3882 = vld [vmem:[%s10 + $0x1e0] sm:$0xff]
        %v3883 = vld [vmem:[%s10 + $0x1e8] sm:$0xf]
        %v3884 = vld [vmem:[%s10 + $0x1ec] sm:$0xff]
        %v3885 = vld [vmem:[%s10 + $0x1f4] sm:$0xf]
        %v3886 = vld [vmem:[%s10 + $0x1f8] sm:$0xff]
        %v3887 = vld [vmem:[%s10 + $0x200] sm:$0xf]
        %v3888 = vld [vmem:[%s10 + $0x204] sm:$0xff]
        %v3889 = vld [vmem:[%s10 + $0x20c] sm:$0xf]
        %v3890 = vld [vmem:[%s10 + $0x210] sm:$0xff]
        %v3891 = vld [vmem:[%s10 + $0x218] sm:$0xf]
        %v3892 = vld [vmem:[%s10 + $0x21c] sm:$0xff]
        %v3893 = vld [vmem:[%s10 + $0x224] sm:$0xf]
        %v3894 = vld [vmem:[%s10 + $0x228] sm:$0xff]
        %v3895 = vld [vmem:[%s10 + $0x230] sm:$0xf]
        %v3896 = vld [vmem:[%s10 + $0x234] sm:$0xff]
        %v3897 = vld [vmem:[%s10 + $0x23c] sm:$0xf]
        %v3898 = vld [vmem:[%s8 + $0xc] sm:$0xff]
        %v3899 = vld [vmem:[%s8 + $0x14] sm:$0xf]
        %v3900 = vld [vmem:[%s8 + $0x3c] sm:$0xff]
        %v3901 = vld [vmem:[%s8 + $0x44] sm:$0xf]
        %v3902 = vld [vmem:[%s8 + $0x6c] sm:$0xff]
        %v3903 = vld [vmem:[%s8 + $0x74] sm:$0xf]
        %v3904 = vld [vmem:[%s8 + $0x9c] sm:$0xff]
        %v3905 = vld [vmem:[%s8 + $0xa4] sm:$0xf]
        %v3906 = vld [vmem:[%s8 + $0xcc] sm:$0xff]
        %v3907 = vld [vmem:[%s8 + $0xd4] sm:$0xf]
        %v3908 = vld [vmem:[%s8 + $0xfc] sm:$0xff]
        %v3909 = vld [vmem:[%s8 + $0x104] sm:$0xf]
        %v3910 = vld [vmem:[%s8 + $0x12c] sm:$0xff]
        %v3911 = vld [vmem:[%s8 + $0x134] sm:$0xf]
        %v3912 = vld [vmem:[%s8 + $0x15c] sm:$0xff]
        %v3913 = vld [vmem:[%s8 + $0x164] sm:$0xf]
        %v3914 = vld [vmem:[%s8 + $0x18c] sm:$0xff]
        %v3915 = vld [vmem:[%s8 + $0x194] sm:$0xf]
        %v3916 = vld [vmem:[%s8 + $0x1bc] sm:$0xff]
        %v3917 = vld [vmem:[%s8 + $0x1c4] sm:$0xf]
        %v3918 = vld [vmem:[%s8 + $0x1ec] sm:$0xff]
        %v3919 = vld [vmem:[%s8 + $0x1f4] sm:$0xf]
        %v3920 = vld [vmem:[%s8 + $0x21c] sm:$0xff]
        %v3921 = vld [vmem:[%s8 + $0x224] sm:$0xf]
        %v3922 = vld [vmem:[%s8 + $0x24c] sm:$0xff]
        %v3923 = vld [vmem:[%s8 + $0x254] sm:$0xf]
        %v3924 = vld [vmem:[%s8 + $0x27c] sm:$0xff]
        %v3925 = vld [vmem:[%s8 + $0x284] sm:$0xf]
        %v3926 = vld [vmem:[%s8 + $0x2ac] sm:$0xff]
        %v3927 = vld [vmem:[%s8 + $0x2b4] sm:$0xf]
        %v3928 = vld [vmem:[%s8 + $0x2dc] sm:$0xff]
        %v3929 = vld [vmem:[%s8 + $0x2e4] sm:$0xf]
        %v3930 = vld [vmem:[%s8 + $0x30c] sm:$0xff]
        %v3931 = vld [vmem:[%s8 + $0x314] sm:$0xf]
        %v3932 = vld [vmem:[%s8 + $0x33c] sm:$0xff]
        %v3933 = vld [vmem:[%s8 + $0x344] sm:$0xf]
        %v3934 = vld [vmem:[%s8 + $0x36c] sm:$0xff]
        %v3935 = vld [vmem:[%s8 + $0x374] sm:$0xf]
        %v3936 = vld [vmem:[%s8 + $0x39c] sm:$0xff]
        %v3937 = vld [vmem:[%s8 + $0x3a4] sm:$0xf]
        %v3938 = vld [vmem:[%s8 + $0x3cc] sm:$0xff]
        %v3939 = vld [vmem:[%s8 + $0x3d4] sm:$0xf]
        %v3940 = vld [vmem:[%s8 + $0x3fc] sm:$0xff]
        %v3941 = vld [vmem:[%s8 + $0x404] sm:$0xf]
        %v3942 = vld [vmem:[%s8 + $0x42c] sm:$0xff]
        %v3943 = vld [vmem:[%s8 + $0x434] sm:$0xf]
        %v3944 = vld [vmem:[%s8 + $0x45c] sm:$0xff]
        %v3945 = vld [vmem:[%s8 + $0x464] sm:$0xf]
        %v3946 = vld [vmem:[%s8 + $0x48c] sm:$0xff]
        %v3947 = vld [vmem:[%s8 + $0x494] sm:$0xf]
        %v3948 = vld [vmem:[%s8 + $0x4bc] sm:$0xff]
        %v3949 = vld [vmem:[%s8 + $0x4c4] sm:$0xf]
        %v3950 = vld [vmem:[%s8 + $0x4ec] sm:$0xff]
        %v3951 = vld [vmem:[%s8 + $0x4f4] sm:$0xf]
        %v3952 = vld [vmem:[%s8 + $0x51c] sm:$0xff]
        %v3953 = vld [vmem:[%s8 + $0x524] sm:$0xf]
        %v3954 = vld [vmem:[%s8 + $0x54c] sm:$0xff]
        %v3955 = vld [vmem:[%s8 + $0x554] sm:$0xf]
        %v3956 = vld [vmem:[%s8 + $0x57c] sm:$0xff]
        %v3957 = vld [vmem:[%s8 + $0x584] sm:$0xf]
        %v3958 = vld [vmem:[%s8 + $0x5ac] sm:$0xff]
        %v3959 = vld [vmem:[%s8 + $0x5b4] sm:$0xf]
        %v3960 = vld [vmem:[%s8 + $0x5dc] sm:$0xff]
        %v3961 = vld [vmem:[%s8 + $0x5e4] sm:$0xf]
        %v3962 = vld [vmem:[%s8 + $0x60c] sm:$0xff]
        %v3963 = vld [vmem:[%s8 + $0x614] sm:$0xf]
        %v3964 = vld [vmem:[%s8 + $0x63c] sm:$0xff]
        %v3965 = vld [vmem:[%s8 + $0x644] sm:$0xf]
        %v3966 = vld [vmem:[%s8 + $0x66c] sm:$0xff]
        %v3967 = vld [vmem:[%s8 + $0x674] sm:$0xf]
        %v3968 = vld [vmem:[%s8 + $0x69c] sm:$0xff]
        %v3969 = vld [vmem:[%s8 + $0x6a4] sm:$0xf]
        %v3970 = vld [vmem:[%s8 + $0x6cc] sm:$0xff]
        %v3971 = vld [vmem:[%s8 + $0x6d4] sm:$0xf]
        %v3972 = vld [vmem:[%s8 + $0x6fc] sm:$0xff]
        %v3973 = vld [vmem:[%s8 + $0x704] sm:$0xf]
        %v3974 = vld [vmem:[%s8 + $0x72c] sm:$0xff]
        %v3975 = vld [vmem:[%s8 + $0x734] sm:$0xf]
        %v3976 = vld [vmem:[%s8 + $0x75c] sm:$0xff]
        %v3977 = vld [vmem:[%s8 + $0x764] sm:$0xf]
        %v3978 = vld [vmem:[%s8 + $0x78c] sm:$0xff]
        %v3979 = vld [vmem:[%s8 + $0x794] sm:$0xf]
        %v3980 = vld [vmem:[%s8 + $0x7bc] sm:$0xff]
        %v3981 = vld [vmem:[%s8 + $0x7c4] sm:$0xf]
        %v3982 = vld [vmem:[%s8 + $0x7ec] sm:$0xff]
        %v3983 = vld [vmem:[%s8 + $0x7f4] sm:$0xf]
        %v3984 = vld [vmem:[%s8 + $0x81c] sm:$0xff]
        %v3985 = vld [vmem:[%s8 + $0x824] sm:$0xf]
        %v3986 = vld [vmem:[%s8 + $0x84c] sm:$0xff]
        %v3987 = vld [vmem:[%s8 + $0x854] sm:$0xf]
        %v3988 = vld [vmem:[%s8 + $0x87c] sm:$0xff]
        %v3989 = vld [vmem:[%s8 + $0x884] sm:$0xf]
        %v3990 = vld [vmem:[%s8 + $0x8ac] sm:$0xff]
        %v3991 = vld [vmem:[%s8 + $0x8b4] sm:$0xf]
        %v3992 = vld [vmem:[%s8 + $0x8dc] sm:$0xff]
        %v3993 = vld [vmem:[%s8 + $0x8e4] sm:$0xf]
        %v3994 = vld [vmem:[%s9 + $0x3] sm:$0x7]
        %v3996 = vperm.slane %v3994, 0
        %v3997 = vperm.slane %v3994, 1
        %v3998 = vperm.slane %v3994, 2
        %v4098 = vunpack.c.l.b16 %v3898
        %v4099 = vunpack.c.h.b16 %v3898
        %v4100 = vunpack.c.l.b16 %v3899
        %v4101 = vunpack.c.l.b16 %v3900
        %v4102 = vunpack.c.h.b16 %v3900
        %v4103 = vunpack.c.l.b16 %v3901
        %v4104 = vunpack.c.l.b16 %v3902
        %v4105 = vunpack.c.h.b16 %v3902
        %v4106 = vunpack.c.l.b16 %v3903
        %v4107 = vunpack.c.l.b16 %v3904
        %v4108 = vunpack.c.h.b16 %v3904
        %v4109 = vunpack.c.l.b16 %v3905
        %v4110 = vunpack.c.l.b16 %v3906
        %v4111 = vunpack.c.h.b16 %v3906
        %v4112 = vunpack.c.l.b16 %v3907
        %v4113 = vunpack.c.l.b16 %v3908
        %v4114 = vunpack.c.h.b16 %v3908
        %v4115 = vunpack.c.l.b16 %v3909
        %v4116 = vunpack.c.l.b16 %v3910
        %v4117 = vunpack.c.h.b16 %v3910
        %v4118 = vunpack.c.l.b16 %v3911
        %v4119 = vunpack.c.l.b16 %v3912
        %v4120 = vunpack.c.h.b16 %v3912
        %v4121 = vunpack.c.l.b16 %v3913
        %v4122 = vunpack.c.l.b16 %v3914
        %v4123 = vunpack.c.h.b16 %v3914
        %v4124 = vunpack.c.l.b16 %v3915
        %v4125 = vunpack.c.l.b16 %v3916
        %v4126 = vunpack.c.h.b16 %v3916
        %v4127 = vunpack.c.l.b16 %v3917
        %v4128 = vunpack.c.l.b16 %v3918
        %v4129 = vunpack.c.h.b16 %v3918
        %v4130 = vunpack.c.l.b16 %v3919
        %v4131 = vunpack.c.l.b16 %v3920
        %v4132 = vunpack.c.h.b16 %v3920
        %v4133 = vunpack.c.l.b16 %v3921
        %v4134 = vunpack.c.l.b16 %v3922
        %v4135 = vunpack.c.h.b16 %v3922
        %v4136 = vunpack.c.l.b16 %v3923
        %v4137 = vunpack.c.l.b16 %v3924
        %v4138 = vunpack.c.h.b16 %v3924
        %v4139 = vunpack.c.l.b16 %v3925
        %v4140 = vunpack.c.l.b16 %v3926
        %v4141 = vunpack.c.h.b16 %v3926
        %v4142 = vunpack.c.l.b16 %v3927
        %v4143 = vunpack.c.l.b16 %v3928
        %v4144 = vunpack.c.h.b16 %v3928
        %v4145 = vunpack.c.l.b16 %v3929
        %v4146 = vunpack.c.l.b16 %v3930
        %v4147 = vunpack.c.h.b16 %v3930
        %v4148 = vunpack.c.l.b16 %v3931
        %v4149 = vunpack.c.l.b16 %v3932
        %v4150 = vunpack.c.h.b16 %v3932
        %v4151 = vunpack.c.l.b16 %v3933
        %v4152 = vunpack.c.l.b16 %v3934
        %v4153 = vunpack.c.h.b16 %v3934
        %v4154 = vunpack.c.l.b16 %v3935
        %v4155 = vunpack.c.l.b16 %v3936
        %v4156 = vunpack.c.h.b16 %v3936
        %v4157 = vunpack.c.l.b16 %v3937
        %v4158 = vunpack.c.l.b16 %v3938
        %v4159 = vunpack.c.h.b16 %v3938
        %v4160 = vunpack.c.l.b16 %v3939
        %v4161 = vunpack.c.l.b16 %v3940
        %v4162 = vunpack.c.h.b16 %v3940
        %v4163 = vunpack.c.l.b16 %v3941
        %v4164 = vunpack.c.l.b16 %v3942
        %v4165 = vunpack.c.h.b16 %v3942
        %v4166 = vunpack.c.l.b16 %v3943
        %v4167 = vunpack.c.l.b16 %v3944
        %v4168 = vunpack.c.h.b16 %v3944
        %v4169 = vunpack.c.l.b16 %v3945
        %v4170 = vunpack.c.l.b16 %v3946
        %v4171 = vunpack.c.h.b16 %v3946
        %v4172 = vunpack.c.l.b16 %v3947
        %v4173 = vunpack.c.l.b16 %v3948
        %v4174 = vunpack.c.h.b16 %v3948
        %v4175 = vunpack.c.l.b16 %v3949
        %v4176 = vunpack.c.l.b16 %v3950
        %v4177 = vunpack.c.h.b16 %v3950
        %v4178 = vunpack.c.l.b16 %v3951
        %v4179 = vunpack.c.l.b16 %v3952
        %v4180 = vunpack.c.h.b16 %v3952
        %v4181 = vunpack.c.l.b16 %v3953
        %v4182 = vunpack.c.l.b16 %v3954
        %v4183 = vunpack.c.h.b16 %v3954
        %v4184 = vunpack.c.l.b16 %v3955
        %v4185 = vunpack.c.l.b16 %v3956
        %v4186 = vunpack.c.h.b16 %v3956
        %v4187 = vunpack.c.l.b16 %v3957
        %v4188 = vunpack.c.l.b16 %v3958
        %v4189 = vunpack.c.h.b16 %v3958
        %v4190 = vunpack.c.l.b16 %v3959
        %v4191 = vunpack.c.l.b16 %v3960
        %v4192 = vunpack.c.h.b16 %v3960
        %v4193 = vunpack.c.l.b16 %v3961
        %v4194 = vunpack.c.l.b16 %v3962
        %v4195 = vunpack.c.h.b16 %v3962
        %v4196 = vunpack.c.l.b16 %v3963
        %v4197 = vunpack.c.l.b16 %v3964
        %v4198 = vunpack.c.h.b16 %v3964
        %v4199 = vunpack.c.l.b16 %v3965
        %v4200 = vunpack.c.l.b16 %v3966
        %v4201 = vunpack.c.h.b16 %v3966
        %v4202 = vunpack.c.l.b16 %v3967
        %v4203 = vunpack.c.l.b16 %v3968
        %v4204 = vunpack.c.h.b16 %v3968
        %v4205 = vunpack.c.l.b16 %v3969
        %v4206 = vunpack.c.l.b16 %v3970
        %v4207 = vunpack.c.h.b16 %v3970
        %v4208 = vunpack.c.l.b16 %v3971
        %v4209 = vunpack.c.l.b16 %v3972
        %v4210 = vunpack.c.h.b16 %v3972
        %v4211 = vunpack.c.l.b16 %v3973
        %v4212 = vunpack.c.l.b16 %v3974
        %v4213 = vunpack.c.h.b16 %v3974
        %v4214 = vunpack.c.l.b16 %v3975
        %v4215 = vunpack.c.l.b16 %v3976
        %v4216 = vunpack.c.h.b16 %v3976
        %v4217 = vunpack.c.l.b16 %v3977
        %v4218 = vunpack.c.l.b16 %v3978
        %v4219 = vunpack.c.h.b16 %v3978
        %v4220 = vunpack.c.l.b16 %v3979
        %v4221 = vunpack.c.l.b16 %v3980
        %v4222 = vunpack.c.h.b16 %v3980
        %v4223 = vunpack.c.l.b16 %v3981
        %v4224 = vunpack.c.l.b16 %v3982
        %v4225 = vunpack.c.h.b16 %v3982
        %v4226 = vunpack.c.l.b16 %v3983
        %v4227 = vunpack.c.l.b16 %v3984
        %v4228 = vunpack.c.h.b16 %v3984
        %v4229 = vunpack.c.l.b16 %v3985
        %v4230 = vunpack.c.l.b16 %v3986
        %v4231 = vunpack.c.h.b16 %v3986
        %v4232 = vunpack.c.l.b16 %v3987
        %v4233 = vunpack.c.l.b16 %v3988
        %v4234 = vunpack.c.h.b16 %v3988
        %v4235 = vunpack.c.l.b16 %v3989
        %v4236 = vunpack.c.l.b16 %v3990
        %v4237 = vunpack.c.h.b16 %v3990
        %v4238 = vunpack.c.l.b16 %v3991
        %v4239 = vunpack.c.l.b16 %v3992
        %v4240 = vunpack.c.h.b16 %v3992
        %v4241 = vunpack.c.l.b16 %v3993
        %v4242 = vpack.c.b16 %v4101, %v4098
        %v4243 = vpack.c.b16 %v4102, %v4099
        %v4244 = vpack.c.b16 %v4103, %v4100
        %v4245 = vpack.c.b16 %v4107, %v4104
        %v4246 = vpack.c.b16 %v4108, %v4105
        %v4247 = vpack.c.b16 %v4109, %v4106
        %v4248 = vpack.c.b16 %v4113, %v4110
        %v4249 = vpack.c.b16 %v4114, %v4111
        %v4250 = vpack.c.b16 %v4115, %v4112
        %v4251 = vpack.c.b16 %v4119, %v4116
        %v4252 = vpack.c.b16 %v4120, %v4117
        %v4253 = vpack.c.b16 %v4121, %v4118
        %v4254 = vpack.c.b16 %v4125, %v4122
        %v4255 = vpack.c.b16 %v4126, %v4123
        %v4256 = vpack.c.b16 %v4127, %v4124
        %v4257 = vpack.c.b16 %v4131, %v4128
        %v4258 = vpack.c.b16 %v4132, %v4129
        %v4259 = vpack.c.b16 %v4133, %v4130
        %v4260 = vpack.c.b16 %v4137, %v4134
        %v4261 = vpack.c.b16 %v4138, %v4135
        %v4262 = vpack.c.b16 %v4139, %v4136
        %v4263 = vpack.c.b16 %v4143, %v4140
        %v4264 = vpack.c.b16 %v4144, %v4141
        %v4265 = vpack.c.b16 %v4145, %v4142
        %v4266 = vpack.c.b16 %v4149, %v4146
        %v4267 = vpack.c.b16 %v4150, %v4147
        %v4268 = vpack.c.b16 %v4151, %v4148
        %v4269 = vpack.c.b16 %v4155, %v4152
        %v4270 = vpack.c.b16 %v4156, %v4153
        %v4271 = vpack.c.b16 %v4157, %v4154
        %v4272 = vpack.c.b16 %v4161, %v4158
        %v4273 = vpack.c.b16 %v4162, %v4159
        %v4274 = vpack.c.b16 %v4163, %v4160
        %v4275 = vpack.c.b16 %v4167, %v4164
        %v4276 = vpack.c.b16 %v4168, %v4165
        %v4277 = vpack.c.b16 %v4169, %v4166
        %v4278 = vpack.c.b16 %v4173, %v4170
        %v4279 = vpack.c.b16 %v4174, %v4171
        %v4280 = vpack.c.b16 %v4175, %v4172
        %v4281 = vpack.c.b16 %v4179, %v4176
        %v4282 = vpack.c.b16 %v4180, %v4177
        %v4283 = vpack.c.b16 %v4181, %v4178
        %v4284 = vpack.c.b16 %v4185, %v4182
        %v4285 = vpack.c.b16 %v4186, %v4183
        %v4286 = vpack.c.b16 %v4187, %v4184
        %v4287 = vpack.c.b16 %v4191, %v4188
        %v4288 = vpack.c.b16 %v4192, %v4189
        %v4289 = vpack.c.b16 %v4193, %v4190
        %v4290 = vpack.c.b16 %v4197, %v4194
        %v4291 = vpack.c.b16 %v4198, %v4195
        %v4292 = vpack.c.b16 %v4199, %v4196
        %v4293 = vpack.c.b16 %v4203, %v4200
        %v4294 = vpack.c.b16 %v4204, %v4201
        %v4295 = vpack.c.b16 %v4205, %v4202
        %v4296 = vpack.c.b16 %v4209, %v4206
        %v4297 = vpack.c.b16 %v4210, %v4207
        %v4298 = vpack.c.b16 %v4211, %v4208
        %v4299 = vpack.c.b16 %v4215, %v4212
        %v4300 = vpack.c.b16 %v4216, %v4213
        %v4301 = vpack.c.b16 %v4217, %v4214
        %v4302 = vpack.c.b16 %v4221, %v4218
        %v4303 = vpack.c.b16 %v4222, %v4219
        %v4304 = vpack.c.b16 %v4223, %v4220
        %v4305 = vpack.c.b16 %v4227, %v4224
        %v4306 = vpack.c.b16 %v4228, %v4225
        %v4307 = vpack.c.b16 %v4229, %v4226
        %v4308 = vpack.c.b16 %v4233, %v4230
        %v4309 = vpack.c.b16 %v4234, %v4231
        %v4310 = vpack.c.b16 %v4235, %v4232
        %v4311 = vpack.c.b16 %v4239, %v4236
        %v4312 = vpack.c.b16 %v4240, %v4237
        %v4313 = vpack.c.b16 %v4241, %v4238
        %4386 = vmatpush.bf16.msra.mxu0 %v4263
        %4387 = vmatpush.bf16.msra.mxu0 %v4260
        %4388 = vmatpush.bf16.msra.mxu0 %v4257
        %4389 = vmatpush.bf16.msra.mxu0 %v4254
        %4390 = vmatpush.bf16.msra.mxu0 %v4251
        %4391 = vmatpush.bf16.msra.mxu0 %v4248
        %4392 = vmatpush.bf16.msra.mxu0 %v4245
        %4393 = vmatpush.bf16.msra.mxu0 %v4242
        %4394 = vmatmul.bf16.gmra.mxu0 %v3188
        %v4395 = vpop.f32.mrf.mxu0
        %v4396 = vadd.f32 %v3996, %v4395
        %v4397 = vpop.f32.mrf.mxu0
        %4398 = vdwg.mxu0
        %4399 = vmatpush.bf16.msra.mxu0 %v4287
        %4400 = vmatpush.bf16.msra.mxu0 %v4284
        %4401 = vmatpush.bf16.msra.mxu0 %v4281
        %4402 = vmatpush.bf16.msra.mxu0 %v4278
        %4403 = vmatpush.bf16.msra.mxu0 %v4275
        %4404 = vmatpush.bf16.msra.mxu0 %v4272
        %4405 = vmatpush.bf16.msra.mxu0 %v4269
        %4406 = vmatpush.bf16.msra.mxu0 %v4266
        %4407 = vmatmul.bf16.gmra.mxu0 %v3189
        %v4408 = vpop.f32.mrf.mxu0
        %v4409 = vadd.f32 %v4396, %v4408
        %v4410 = vpop.f32.mrf.mxu0
        %4411 = vdwg.mxu0
        %4412 = vmatpush.bf16.msra.mxu0 %v4311
        %4413 = vmatpush.bf16.msra.mxu0 %v4308
        %4414 = vmatpush.bf16.msra.mxu0 %v4305
        %4415 = vmatpush.bf16.msra.mxu0 %v4302
        %4416 = vmatpush.bf16.msra.mxu0 %v4299
        %4417 = vmatpush.bf16.msra.mxu0 %v4296
        %4418 = vmatpush.bf16.msra.mxu0 %v4293
        %4419 = vmatpush.bf16.msra.mxu0 %v4290
        %4420 = vmatmul.bf16.gmra.mxu0 %v3190
        %v4421 = vpop.f32.mrf.mxu0
        %v4422 = vadd.f32 %v4409, %v4421
        %v4423 = vpop.f32.mrf.mxu0
        %4424 = vdwg.mxu0
        %4425 = vmatpush.bf16.msra.mxu0 %v4264
        %4426 = vmatpush.bf16.msra.mxu0 %v4261
        %4427 = vmatpush.bf16.msra.mxu0 %v4258
        %4428 = vmatpush.bf16.msra.mxu0 %v4255
        %4429 = vmatpush.bf16.msra.mxu0 %v4252
        %4430 = vmatpush.bf16.msra.mxu0 %v4249
        %4431 = vmatpush.bf16.msra.mxu0 %v4246
        %4432 = vmatpush.bf16.msra.mxu0 %v4243
        %4433 = vmatmul.bf16.gmra.mxu0 %v3188
        %v4434 = vpop.f32.mrf.mxu0
        %v4435 = vadd.f32 %v3997, %v4434
        %v4436 = vpop.f32.mrf.mxu0
        %4437 = vdwg.mxu0
        %4438 = vmatpush.bf16.msra.mxu0 %v4288
        %4439 = vmatpush.bf16.msra.mxu0 %v4285
        %4440 = vmatpush.bf16.msra.mxu0 %v4282
        %4441 = vmatpush.bf16.msra.mxu0 %v4279
        %4442 = vmatpush.bf16.msra.mxu0 %v4276
        %4443 = vmatpush.bf16.msra.mxu0 %v4273
        %4444 = vmatpush.bf16.msra.mxu0 %v4270
        %4445 = vmatpush.bf16.msra.mxu0 %v4267
        %4446 = vmatmul.bf16.gmra.mxu0 %v3189
        %v4447 = vpop.f32.mrf.mxu0
        %v4448 = vadd.f32 %v4435, %v4447
        %v4449 = vpop.f32.mrf.mxu0
        %4450 = vdwg.mxu0
        %4451 = vmatpush.bf16.msra.mxu0 %v4312
        %4452 = vmatpush.bf16.msra.mxu0 %v4309
        %4453 = vmatpush.bf16.msra.mxu0 %v4306
        %4454 = vmatpush.bf16.msra.mxu0 %v4303
        %4455 = vmatpush.bf16.msra.mxu0 %v4300
        %4456 = vmatpush.bf16.msra.mxu0 %v4297
        %4457 = vmatpush.bf16.msra.mxu0 %v4294
        %4458 = vmatpush.bf16.msra.mxu0 %v4291
        %4459 = vmatmul.bf16.gmra.mxu0 %v3190
        %v4460 = vpop.f32.mrf.mxu0
        %v4461 = vadd.f32 %v4448, %v4460
        %v4462 = vpop.f32.mrf.mxu0
        %4463 = vdwg.mxu0
        %4464 = vmatpush.bf16.msra.mxu0 %v4265
        %4465 = vmatpush.bf16.msra.mxu0 %v4262
        %4466 = vmatpush.bf16.msra.mxu0 %v4259
        %4467 = vmatpush.bf16.msra.mxu0 %v4256
        %4468 = vmatpush.bf16.msra.mxu0 %v4253
        %4469 = vmatpush.bf16.msra.mxu0 %v4250
        %4470 = vmatpush.bf16.msra.mxu0 %v4247
        %4471 = vmatpush.bf16.msra.mxu0 %v4244
        %4472 = vmatmul.bf16.gmra.mxu0 %v3188
        %v4473 = vpop.f32.mrf.mxu0
        %v4474 = vadd.f32 %v3998, %v4473
        %v4475 = vpop.f32.mrf.mxu0
        %4476 = vdwg.mxu0
        %4477 = vmatpush.bf16.msra.mxu0 %v4289
        %4478 = vmatpush.bf16.msra.mxu0 %v4286
        %4479 = vmatpush.bf16.msra.mxu0 %v4283
        %4480 = vmatpush.bf16.msra.mxu0 %v4280
        %4481 = vmatpush.bf16.msra.mxu0 %v4277
        %4482 = vmatpush.bf16.msra.mxu0 %v4274
        %4483 = vmatpush.bf16.msra.mxu0 %v4271
        %4484 = vmatpush.bf16.msra.mxu0 %v4268
        %4485 = vmatmul.bf16.gmra.mxu0 %v3189
        %v4486 = vpop.f32.mrf.mxu0
        %v4487 = vadd.f32 %v4474, %v4486
        %v4488 = vpop.f32.mrf.mxu0
        %4489 = vdwg.mxu0
        %4490 = vmatpush.bf16.msra.mxu0 %v4313
        %4491 = vmatpush.bf16.msra.mxu0 %v4310
        %4492 = vmatpush.bf16.msra.mxu0 %v4307
        %4493 = vmatpush.bf16.msra.mxu0 %v4304
        %4494 = vmatpush.bf16.msra.mxu0 %v4301
        %4495 = vmatpush.bf16.msra.mxu0 %v4298
        %4496 = vmatpush.bf16.msra.mxu0 %v4295
        %4497 = vmatpush.bf16.msra.mxu0 %v4292
        %4498 = vmatmul.bf16.gmra.mxu0 %v3190
        %v4499 = vpop.f32.mrf.mxu0
        %v4500 = vadd.f32 %v4487, %v4499
        %v4501 = vpop.f32.mrf.mxu0
        %4502 = vdwg.mxu0
        %v4503 = vmax.f32 %v4422, 0.0
        %v4504 = vmax.f32 %v4461, 0.0
        %v4505 = vmax.f32 %v4500, 0.0
        %v4506 = vpack.c.bf16 %v4503, %v4503
        %v4507 = vpack.c.bf16 %v4504, %v4504
        %v4508 = vpack.c.bf16 %v4505, %v4505
        %v4509 = vld [vmem:[%s10 + $0x240] sm:$0xff]
        %v4510 = vld [vmem:[%s10 + $0x248] sm:$0xf]
        %v4511 = vld [vmem:[%s10 + $0x24c] sm:$0xff]
        %v4512 = vld [vmem:[%s10 + $0x254] sm:$0xf]
        %v4513 = vld [vmem:[%s10 + $0x258] sm:$0xff]
        %v4514 = vld [vmem:[%s10 + $0x260] sm:$0xf]
        %v4515 = vld [vmem:[%s10 + $0x264] sm:$0xff]
        %v4516 = vld [vmem:[%s10 + $0x26c] sm:$0xf]
        %v4517 = vld [vmem:[%s10 + $0x270] sm:$0xff]
        %v4518 = vld [vmem:[%s10 + $0x278] sm:$0xf]
        %v4519 = vld [vmem:[%s10 + $0x27c] sm:$0xff]
        %v4520 = vld [vmem:[%s10 + $0x284] sm:$0xf]
        %v4521 = vld [vmem:[%s10 + $0x288] sm:$0xff]
        %v4522 = vld [vmem:[%s10 + $0x290] sm:$0xf]
        %v4523 = vld [vmem:[%s10 + $0x294] sm:$0xff]
        %v4524 = vld [vmem:[%s10 + $0x29c] sm:$0xf]
        %v4525 = vld [vmem:[%s10 + $0x2a0] sm:$0xff]
        %v4526 = vld [vmem:[%s10 + $0x2a8] sm:$0xf]
        %v4527 = vld [vmem:[%s10 + $0x2ac] sm:$0xff]
        %v4528 = vld [vmem:[%s10 + $0x2b4] sm:$0xf]
        %v4529 = vld [vmem:[%s10 + $0x2b8] sm:$0xff]
        %v4530 = vld [vmem:[%s10 + $0x2c0] sm:$0xf]
        %v4531 = vld [vmem:[%s10 + $0x2c4] sm:$0xff]
        %v4532 = vld [vmem:[%s10 + $0x2cc] sm:$0xf]
        %v4533 = vld [vmem:[%s10 + $0x2d0] sm:$0xff]
        %v4534 = vld [vmem:[%s10 + $0x2d8] sm:$0xf]
        %v4535 = vld [vmem:[%s10 + $0x2dc] sm:$0xff]
        %v4536 = vld [vmem:[%s10 + $0x2e4] sm:$0xf]
        %v4537 = vld [vmem:[%s10 + $0x2e8] sm:$0xff]
        %v4538 = vld [vmem:[%s10 + $0x2f0] sm:$0xf]
        %v4539 = vld [vmem:[%s10 + $0x2f4] sm:$0xff]
        %v4540 = vld [vmem:[%s10 + $0x2fc] sm:$0xf]
        %v4541 = vld [vmem:[%s10 + $0x300] sm:$0xff]
        %v4542 = vld [vmem:[%s10 + $0x308] sm:$0xf]
        %v4543 = vld [vmem:[%s10 + $0x30c] sm:$0xff]
        %v4544 = vld [vmem:[%s10 + $0x314] sm:$0xf]
        %v4545 = vld [vmem:[%s10 + $0x318] sm:$0xff]
        %v4546 = vld [vmem:[%s10 + $0x320] sm:$0xf]
        %v4547 = vld [vmem:[%s10 + $0x324] sm:$0xff]
        %v4548 = vld [vmem:[%s10 + $0x32c] sm:$0xf]
        %v4549 = vld [vmem:[%s10 + $0x330] sm:$0xff]
        %v4550 = vld [vmem:[%s10 + $0x338] sm:$0xf]
        %v4551 = vld [vmem:[%s10 + $0x33c] sm:$0xff]
        %v4552 = vld [vmem:[%s10 + $0x344] sm:$0xf]
        %v4553 = vld [vmem:[%s10 + $0x348] sm:$0xff]
        %v4554 = vld [vmem:[%s10 + $0x350] sm:$0xf]
        %v4555 = vld [vmem:[%s10 + $0x354] sm:$0xff]
        %v4556 = vld [vmem:[%s10 + $0x35c] sm:$0xf]
        %v4557 = vld [vmem:[%s10 + $0x360] sm:$0xff]
        %v4558 = vld [vmem:[%s10 + $0x368] sm:$0xf]
        %v4559 = vld [vmem:[%s10 + $0x36c] sm:$0xff]
        %v4560 = vld [vmem:[%s10 + $0x374] sm:$0xf]
        %v4561 = vld [vmem:[%s10 + $0x378] sm:$0xff]
        %v4562 = vld [vmem:[%s10 + $0x380] sm:$0xf]
        %v4563 = vld [vmem:[%s10 + $0x384] sm:$0xff]
        %v4564 = vld [vmem:[%s10 + $0x38c] sm:$0xf]
        %v4565 = vld [vmem:[%s10 + $0x390] sm:$0xff]
        %v4566 = vld [vmem:[%s10 + $0x398] sm:$0xf]
        %v4567 = vld [vmem:[%s10 + $0x39c] sm:$0xff]
        %v4568 = vld [vmem:[%s10 + $0x3a4] sm:$0xf]
        %v4569 = vld [vmem:[%s10 + $0x3a8] sm:$0xff]
        %v4570 = vld [vmem:[%s10 + $0x3b0] sm:$0xf]
        %v4571 = vld [vmem:[%s10 + $0x3b4] sm:$0xff]
        %v4572 = vld [vmem:[%s10 + $0x3bc] sm:$0xf]
        %v4573 = vld [vmem:[%s10 + $0x3c0] sm:$0xff]
        %v4574 = vld [vmem:[%s10 + $0x3c8] sm:$0xf]
        %v4575 = vld [vmem:[%s10 + $0x3cc] sm:$0xff]
        %v4576 = vld [vmem:[%s10 + $0x3d4] sm:$0xf]
        %v4577 = vld [vmem:[%s10 + $0x3d8] sm:$0xff]
        %v4578 = vld [vmem:[%s10 + $0x3e0] sm:$0xf]
        %v4579 = vld [vmem:[%s10 + $0x3e4] sm:$0xff]
        %v4580 = vld [vmem:[%s10 + $0x3ec] sm:$0xf]
        %v4581 = vld [vmem:[%s10 + $0x3f0] sm:$0xff]
        %v4582 = vld [vmem:[%s10 + $0x3f8] sm:$0xf]
        %v4583 = vld [vmem:[%s10 + $0x3fc] sm:$0xff]
        %v4584 = vld [vmem:[%s10 + $0x404] sm:$0xf]
        %v4585 = vld [vmem:[%s10 + $0x408] sm:$0xff]
        %v4586 = vld [vmem:[%s10 + $0x410] sm:$0xf]
        %v4587 = vld [vmem:[%s10 + $0x414] sm:$0xff]
        %v4588 = vld [vmem:[%s10 + $0x41c] sm:$0xf]
        %v4589 = vld [vmem:[%s10 + $0x420] sm:$0xff]
        %v4590 = vld [vmem:[%s10 + $0x428] sm:$0xf]
        %v4591 = vld [vmem:[%s10 + $0x42c] sm:$0xff]
        %v4592 = vld [vmem:[%s10 + $0x434] sm:$0xf]
        %v4593 = vld [vmem:[%s10 + $0x438] sm:$0xff]
        %v4594 = vld [vmem:[%s10 + $0x440] sm:$0xf]
        %v4595 = vld [vmem:[%s10 + $0x444] sm:$0xff]
        %v4596 = vld [vmem:[%s10 + $0x44c] sm:$0xf]
        %v4597 = vld [vmem:[%s10 + $0x450] sm:$0xff]
        %v4598 = vld [vmem:[%s10 + $0x458] sm:$0xf]
        %v4599 = vld [vmem:[%s10 + $0x45c] sm:$0xff]
        %v4600 = vld [vmem:[%s10 + $0x464] sm:$0xf]
        %v4601 = vld [vmem:[%s10 + $0x468] sm:$0xff]
        %v4602 = vld [vmem:[%s10 + $0x470] sm:$0xf]
        %v4603 = vld [vmem:[%s10 + $0x474] sm:$0xff]
        %v4604 = vld [vmem:[%s10 + $0x47c] sm:$0xf]
        %v4701 = vunpack.c.l.b16 %v4509
        %v4702 = vunpack.c.h.b16 %v4509
        %v4703 = vunpack.c.l.b16 %v4510
        %v4704 = vunpack.c.l.b16 %v4511
        %v4705 = vunpack.c.h.b16 %v4511
        %v4706 = vunpack.c.l.b16 %v4512
        %v4707 = vunpack.c.l.b16 %v4513
        %v4708 = vunpack.c.h.b16 %v4513
        %v4709 = vunpack.c.l.b16 %v4514
        %v4710 = vunpack.c.l.b16 %v4515
        %v4711 = vunpack.c.h.b16 %v4515
        %v4712 = vunpack.c.l.b16 %v4516
        %v4713 = vunpack.c.l.b16 %v4517
        %v4714 = vunpack.c.h.b16 %v4517
        %v4715 = vunpack.c.l.b16 %v4518
        %v4716 = vunpack.c.l.b16 %v4519
        %v4717 = vunpack.c.h.b16 %v4519
        %v4718 = vunpack.c.l.b16 %v4520
        %v4719 = vunpack.c.l.b16 %v4521
        %v4720 = vunpack.c.h.b16 %v4521
        %v4721 = vunpack.c.l.b16 %v4522
        %v4722 = vunpack.c.l.b16 %v4523
        %v4723 = vunpack.c.h.b16 %v4523
        %v4724 = vunpack.c.l.b16 %v4524
        %v4725 = vunpack.c.l.b16 %v4525
        %v4726 = vunpack.c.h.b16 %v4525
        %v4727 = vunpack.c.l.b16 %v4526
        %v4728 = vunpack.c.l.b16 %v4527
        %v4729 = vunpack.c.h.b16 %v4527
        %v4730 = vunpack.c.l.b16 %v4528
        %v4731 = vunpack.c.l.b16 %v4529
        %v4732 = vunpack.c.h.b16 %v4529
        %v4733 = vunpack.c.l.b16 %v4530
        %v4734 = vunpack.c.l.b16 %v4531
        %v4735 = vunpack.c.h.b16 %v4531
        %v4736 = vunpack.c.l.b16 %v4532
        %v4737 = vunpack.c.l.b16 %v4533
        %v4738 = vunpack.c.h.b16 %v4533
        %v4739 = vunpack.c.l.b16 %v4534
        %v4740 = vunpack.c.l.b16 %v4535
        %v4741 = vunpack.c.h.b16 %v4535
        %v4742 = vunpack.c.l.b16 %v4536
        %v4743 = vunpack.c.l.b16 %v4537
        %v4744 = vunpack.c.h.b16 %v4537
        %v4745 = vunpack.c.l.b16 %v4538
        %v4746 = vunpack.c.l.b16 %v4539
        %v4747 = vunpack.c.h.b16 %v4539
        %v4748 = vunpack.c.l.b16 %v4540
        %v4749 = vunpack.c.l.b16 %v4541
        %v4750 = vunpack.c.h.b16 %v4541
        %v4751 = vunpack.c.l.b16 %v4542
        %v4752 = vunpack.c.l.b16 %v4543
        %v4753 = vunpack.c.h.b16 %v4543
        %v4754 = vunpack.c.l.b16 %v4544
        %v4755 = vunpack.c.l.b16 %v4545
        %v4756 = vunpack.c.h.b16 %v4545
        %v4757 = vunpack.c.l.b16 %v4546
        %v4758 = vunpack.c.l.b16 %v4547
        %v4759 = vunpack.c.h.b16 %v4547
        %v4760 = vunpack.c.l.b16 %v4548
        %v4761 = vunpack.c.l.b16 %v4549
        %v4762 = vunpack.c.h.b16 %v4549
        %v4763 = vunpack.c.l.b16 %v4550
        %v4764 = vunpack.c.l.b16 %v4551
        %v4765 = vunpack.c.h.b16 %v4551
        %v4766 = vunpack.c.l.b16 %v4552
        %v4767 = vunpack.c.l.b16 %v4553
        %v4768 = vunpack.c.h.b16 %v4553
        %v4769 = vunpack.c.l.b16 %v4554
        %v4770 = vunpack.c.l.b16 %v4555
        %v4771 = vunpack.c.h.b16 %v4555
        %v4772 = vunpack.c.l.b16 %v4556
        %v4773 = vunpack.c.l.b16 %v4557
        %v4774 = vunpack.c.h.b16 %v4557
        %v4775 = vunpack.c.l.b16 %v4558
        %v4776 = vunpack.c.l.b16 %v4559
        %v4777 = vunpack.c.h.b16 %v4559
        %v4778 = vunpack.c.l.b16 %v4560
        %v4779 = vunpack.c.l.b16 %v4561
        %v4780 = vunpack.c.h.b16 %v4561
        %v4781 = vunpack.c.l.b16 %v4562
        %v4782 = vunpack.c.l.b16 %v4563
        %v4783 = vunpack.c.h.b16 %v4563
        %v4784 = vunpack.c.l.b16 %v4564
        %v4785 = vunpack.c.l.b16 %v4565
        %v4786 = vunpack.c.h.b16 %v4565
        %v4787 = vunpack.c.l.b16 %v4566
        %v4788 = vunpack.c.l.b16 %v4567
        %v4789 = vunpack.c.h.b16 %v4567
        %v4790 = vunpack.c.l.b16 %v4568
        %v4791 = vunpack.c.l.b16 %v4569
        %v4792 = vunpack.c.h.b16 %v4569
        %v4793 = vunpack.c.l.b16 %v4570
        %v4794 = vunpack.c.l.b16 %v4571
        %v4795 = vunpack.c.h.b16 %v4571
        %v4796 = vunpack.c.l.b16 %v4572
        %v4797 = vunpack.c.l.b16 %v4573
        %v4798 = vunpack.c.h.b16 %v4573
        %v4799 = vunpack.c.l.b16 %v4574
        %v4800 = vunpack.c.l.b16 %v4575
        %v4801 = vunpack.c.h.b16 %v4575
        %v4802 = vunpack.c.l.b16 %v4576
        %v4803 = vunpack.c.l.b16 %v4577
        %v4804 = vunpack.c.h.b16 %v4577
        %v4805 = vunpack.c.l.b16 %v4578
        %v4806 = vunpack.c.l.b16 %v4579
        %v4807 = vunpack.c.h.b16 %v4579
        %v4808 = vunpack.c.l.b16 %v4580
        %v4809 = vunpack.c.l.b16 %v4581
        %v4810 = vunpack.c.h.b16 %v4581
        %v4811 = vunpack.c.l.b16 %v4582
        %v4812 = vunpack.c.l.b16 %v4583
        %v4813 = vunpack.c.h.b16 %v4583
        %v4814 = vunpack.c.l.b16 %v4584
        %v4815 = vunpack.c.l.b16 %v4585
        %v4816 = vunpack.c.h.b16 %v4585
        %v4817 = vunpack.c.l.b16 %v4586
        %v4818 = vunpack.c.l.b16 %v4587
        %v4819 = vunpack.c.h.b16 %v4587
        %v4820 = vunpack.c.l.b16 %v4588
        %v4821 = vunpack.c.l.b16 %v4589
        %v4822 = vunpack.c.h.b16 %v4589
        %v4823 = vunpack.c.l.b16 %v4590
        %v4824 = vunpack.c.l.b16 %v4591
        %v4825 = vunpack.c.h.b16 %v4591
        %v4826 = vunpack.c.l.b16 %v4592
        %v4827 = vunpack.c.l.b16 %v4593
        %v4828 = vunpack.c.h.b16 %v4593
        %v4829 = vunpack.c.l.b16 %v4594
        %v4830 = vunpack.c.l.b16 %v4595
        %v4831 = vunpack.c.h.b16 %v4595
        %v4832 = vunpack.c.l.b16 %v4596
        %v4833 = vunpack.c.l.b16 %v4597
        %v4834 = vunpack.c.h.b16 %v4597
        %v4835 = vunpack.c.l.b16 %v4598
        %v4836 = vunpack.c.l.b16 %v4599
        %v4837 = vunpack.c.h.b16 %v4599
        %v4838 = vunpack.c.l.b16 %v4600
        %v4839 = vunpack.c.l.b16 %v4601
        %v4840 = vunpack.c.h.b16 %v4601
        %v4841 = vunpack.c.l.b16 %v4602
        %v4842 = vunpack.c.l.b16 %v4603
        %v4843 = vunpack.c.h.b16 %v4603
        %v4844 = vunpack.c.l.b16 %v4604
        %v4845 = vpack.c.b16 %v4704, %v4701
        %v4846 = vpack.c.b16 %v4705, %v4702
        %v4847 = vpack.c.b16 %v4706, %v4703
        %v4848 = vpack.c.b16 %v4710, %v4707
        %v4849 = vpack.c.b16 %v4711, %v4708
        %v4850 = vpack.c.b16 %v4712, %v4709
        %v4851 = vpack.c.b16 %v4716, %v4713
        %v4852 = vpack.c.b16 %v4717, %v4714
        %v4853 = vpack.c.b16 %v4718, %v4715
        %v4854 = vpack.c.b16 %v4722, %v4719
        %v4855 = vpack.c.b16 %v4723, %v4720
        %v4856 = vpack.c.b16 %v4724, %v4721
        %v4857 = vpack.c.b16 %v4728, %v4725
        %v4858 = vpack.c.b16 %v4729, %v4726
        %v4859 = vpack.c.b16 %v4730, %v4727
        %v4860 = vpack.c.b16 %v4734, %v4731
        %v4861 = vpack.c.b16 %v4735, %v4732
        %v4862 = vpack.c.b16 %v4736, %v4733
        %v4863 = vpack.c.b16 %v4740, %v4737
        %v4864 = vpack.c.b16 %v4741, %v4738
        %v4865 = vpack.c.b16 %v4742, %v4739
        %v4866 = vpack.c.b16 %v4746, %v4743
        %v4867 = vpack.c.b16 %v4747, %v4744
        %v4868 = vpack.c.b16 %v4748, %v4745
        %v4869 = vpack.c.b16 %v4752, %v4749
        %v4870 = vpack.c.b16 %v4753, %v4750
        %v4871 = vpack.c.b16 %v4754, %v4751
        %v4872 = vpack.c.b16 %v4758, %v4755
        %v4873 = vpack.c.b16 %v4759, %v4756
        %v4874 = vpack.c.b16 %v4760, %v4757
        %v4875 = vpack.c.b16 %v4764, %v4761
        %v4876 = vpack.c.b16 %v4765, %v4762
        %v4877 = vpack.c.b16 %v4766, %v4763
        %v4878 = vpack.c.b16 %v4770, %v4767
        %v4879 = vpack.c.b16 %v4771, %v4768
        %v4880 = vpack.c.b16 %v4772, %v4769
        %v4881 = vpack.c.b16 %v4776, %v4773
        %v4882 = vpack.c.b16 %v4777, %v4774
        %v4883 = vpack.c.b16 %v4778, %v4775
        %v4884 = vpack.c.b16 %v4782, %v4779
        %v4885 = vpack.c.b16 %v4783, %v4780
        %v4886 = vpack.c.b16 %v4784, %v4781
        %v4887 = vpack.c.b16 %v4788, %v4785
        %v4888 = vpack.c.b16 %v4789, %v4786
        %v4889 = vpack.c.b16 %v4790, %v4787
        %v4890 = vpack.c.b16 %v4794, %v4791
        %v4891 = vpack.c.b16 %v4795, %v4792
        %v4892 = vpack.c.b16 %v4796, %v4793
        %v4893 = vpack.c.b16 %v4800, %v4797
        %v4894 = vpack.c.b16 %v4801, %v4798
        %v4895 = vpack.c.b16 %v4802, %v4799
        %v4896 = vpack.c.b16 %v4806, %v4803
        %v4897 = vpack.c.b16 %v4807, %v4804
        %v4898 = vpack.c.b16 %v4808, %v4805
        %v4899 = vpack.c.b16 %v4812, %v4809
        %v4900 = vpack.c.b16 %v4813, %v4810
        %v4901 = vpack.c.b16 %v4814, %v4811
        %v4902 = vpack.c.b16 %v4818, %v4815
        %v4903 = vpack.c.b16 %v4819, %v4816
        %v4904 = vpack.c.b16 %v4820, %v4817
        %v4905 = vpack.c.b16 %v4824, %v4821
        %v4906 = vpack.c.b16 %v4825, %v4822
        %v4907 = vpack.c.b16 %v4826, %v4823
        %v4908 = vpack.c.b16 %v4830, %v4827
        %v4909 = vpack.c.b16 %v4831, %v4828
        %v4910 = vpack.c.b16 %v4832, %v4829
        %v4911 = vpack.c.b16 %v4836, %v4833
        %v4912 = vpack.c.b16 %v4837, %v4834
        %v4913 = vpack.c.b16 %v4838, %v4835
        %v4914 = vpack.c.b16 %v4842, %v4839
        %v4915 = vpack.c.b16 %v4843, %v4840
        %v4916 = vpack.c.b16 %v4844, %v4841
        %4989 = vmatpush.bf16.msra.mxu0 %v4866
        %4990 = vmatpush.bf16.msra.mxu0 %v4863
        %4991 = vmatpush.bf16.msra.mxu0 %v4860
        %4992 = vmatpush.bf16.msra.mxu0 %v4857
        %4993 = vmatpush.bf16.msra.mxu0 %v4854
        %4994 = vmatpush.bf16.msra.mxu0 %v4851
        %4995 = vmatpush.bf16.msra.mxu0 %v4848
        %4996 = vmatpush.bf16.msra.mxu0 %v4845
        %4997 = vmatmul.bf16.gmra.mxu0 %v4506
        %v4998 = vpop.f32.mrf.mxu0
        %v4999 = vadd.f32 0.0, %v4998
        %v5000 = vpop.f32.mrf.mxu0
        %5001 = vdwg.mxu0
        %5002 = vmatpush.bf16.msra.mxu0 %v4890
        %5003 = vmatpush.bf16.msra.mxu0 %v4887
        %5004 = vmatpush.bf16.msra.mxu0 %v4884
        %5005 = vmatpush.bf16.msra.mxu0 %v4881
        %5006 = vmatpush.bf16.msra.mxu0 %v4878
        %5007 = vmatpush.bf16.msra.mxu0 %v4875
        %5008 = vmatpush.bf16.msra.mxu0 %v4872
        %5009 = vmatpush.bf16.msra.mxu0 %v4869
        %5010 = vmatmul.bf16.gmra.mxu0 %v4507
        %v5011 = vpop.f32.mrf.mxu0
        %v5012 = vadd.f32 %v4999, %v5011
        %v5013 = vpop.f32.mrf.mxu0
        %5014 = vdwg.mxu0
        %5015 = vmatpush.bf16.msra.mxu0 %v4914
        %5016 = vmatpush.bf16.msra.mxu0 %v4911
        %5017 = vmatpush.bf16.msra.mxu0 %v4908
        %5018 = vmatpush.bf16.msra.mxu0 %v4905
        %5019 = vmatpush.bf16.msra.mxu0 %v4902
        %5020 = vmatpush.bf16.msra.mxu0 %v4899
        %5021 = vmatpush.bf16.msra.mxu0 %v4896
        %5022 = vmatpush.bf16.msra.mxu0 %v4893
        %5023 = vmatmul.bf16.gmra.mxu0 %v4508
        %v5024 = vpop.f32.mrf.mxu0
        %v5025 = vadd.f32 %v5012, %v5024
        %v5026 = vpop.f32.mrf.mxu0
        %5027 = vdwg.mxu0
        %5028 = vmatpush.bf16.msra.mxu0 %v4867
        %5029 = vmatpush.bf16.msra.mxu0 %v4864
        %5030 = vmatpush.bf16.msra.mxu0 %v4861
        %5031 = vmatpush.bf16.msra.mxu0 %v4858
        %5032 = vmatpush.bf16.msra.mxu0 %v4855
        %5033 = vmatpush.bf16.msra.mxu0 %v4852
        %5034 = vmatpush.bf16.msra.mxu0 %v4849
        %5035 = vmatpush.bf16.msra.mxu0 %v4846
        %5036 = vmatmul.bf16.gmra.mxu0 %v4506
        %v5037 = vpop.f32.mrf.mxu0
        %v5038 = vadd.f32 0.0, %v5037
        %v5039 = vpop.f32.mrf.mxu0
        %5040 = vdwg.mxu0
        %5041 = vmatpush.bf16.msra.mxu0 %v4891
        %5042 = vmatpush.bf16.msra.mxu0 %v4888
        %5043 = vmatpush.bf16.msra.mxu0 %v4885
        %5044 = vmatpush.bf16.msra.mxu0 %v4882
        %5045 = vmatpush.bf16.msra.mxu0 %v4879
        %5046 = vmatpush.bf16.msra.mxu0 %v4876
        %5047 = vmatpush.bf16.msra.mxu0 %v4873
        %5048 = vmatpush.bf16.msra.mxu0 %v4870
        %5049 = vmatmul.bf16.gmra.mxu0 %v4507
        %v5050 = vpop.f32.mrf.mxu0
        %v5051 = vadd.f32 %v5038, %v5050
        %v5052 = vpop.f32.mrf.mxu0
        %5053 = vdwg.mxu0
        %5054 = vmatpush.bf16.msra.mxu0 %v4915
        %5055 = vmatpush.bf16.msra.mxu0 %v4912
        %5056 = vmatpush.bf16.msra.mxu0 %v4909
        %5057 = vmatpush.bf16.msra.mxu0 %v4906
        %5058 = vmatpush.bf16.msra.mxu0 %v4903
        %5059 = vmatpush.bf16.msra.mxu0 %v4900
        %5060 = vmatpush.bf16.msra.mxu0 %v4897
        %5061 = vmatpush.bf16.msra.mxu0 %v4894
        %5062 = vmatmul.bf16.gmra.mxu0 %v4508
        %v5063 = vpop.f32.mrf.mxu0
        %v5064 = vadd.f32 %v5051, %v5063
        %v5065 = vpop.f32.mrf.mxu0
        %5066 = vdwg.mxu0
        %5067 = vmatpush.bf16.msra.mxu0 %v4868
        %5068 = vmatpush.bf16.msra.mxu0 %v4865
        %5069 = vmatpush.bf16.msra.mxu0 %v4862
        %5070 = vmatpush.bf16.msra.mxu0 %v4859
        %5071 = vmatpush.bf16.msra.mxu0 %v4856
        %5072 = vmatpush.bf16.msra.mxu0 %v4853
        %5073 = vmatpush.bf16.msra.mxu0 %v4850
        %5074 = vmatpush.bf16.msra.mxu0 %v4847
        %5075 = vmatmul.bf16.gmra.mxu0 %v4506
        %v5076 = vpop.f32.mrf.mxu0
        %v5077 = vadd.f32 0.0, %v5076
        %v5078 = vpop.f32.mrf.mxu0
        %5079 = vdwg.mxu0
        %5080 = vmatpush.bf16.msra.mxu0 %v4892
        %5081 = vmatpush.bf16.msra.mxu0 %v4889
        %5082 = vmatpush.bf16.msra.mxu0 %v4886
        %5083 = vmatpush.bf16.msra.mxu0 %v4883
        %5084 = vmatpush.bf16.msra.mxu0 %v4880
        %5085 = vmatpush.bf16.msra.mxu0 %v4877
        %5086 = vmatpush.bf16.msra.mxu0 %v4874
        %5087 = vmatpush.bf16.msra.mxu0 %v4871
        %5088 = vmatmul.bf16.gmra.mxu0 %v4507
        %v5089 = vpop.f32.mrf.mxu0
        %v5090 = vadd.f32 %v5077, %v5089
        %v5091 = vpop.f32.mrf.mxu0
        %5092 = vdwg.mxu0
        %5093 = vmatpush.bf16.msra.mxu0 %v4916
        %5094 = vmatpush.bf16.msra.mxu0 %v4913
        %5095 = vmatpush.bf16.msra.mxu0 %v4910
        %5096 = vmatpush.bf16.msra.mxu0 %v4907
        %5097 = vmatpush.bf16.msra.mxu0 %v4904
        %5098 = vmatpush.bf16.msra.mxu0 %v4901
        %5099 = vmatpush.bf16.msra.mxu0 %v4898
        %5100 = vmatpush.bf16.msra.mxu0 %v4895
        %5101 = vmatmul.bf16.gmra.mxu0 %v4508
        %v5102 = vpop.f32.mrf.mxu0
        %v5103 = vadd.f32 %v5090, %v5102
        %v5104 = vpop.f32.mrf.mxu0
        %5105 = vdwg.mxu0
        %v5202 = vunpack.c.l.b16 %v3802
        %v5203 = vunpack.c.h.b16 %v3802
        %v5204 = vunpack.c.l.b16 %v3803
        %v5205 = vunpack.c.l.b16 %v3804
        %v5206 = vunpack.c.h.b16 %v3804
        %v5207 = vunpack.c.l.b16 %v3805
        %v5208 = vunpack.c.l.b16 %v3806
        %v5209 = vunpack.c.h.b16 %v3806
        %v5210 = vunpack.c.l.b16 %v3807
        %v5211 = vunpack.c.l.b16 %v3808
        %v5212 = vunpack.c.h.b16 %v3808
        %v5213 = vunpack.c.l.b16 %v3809
        %v5214 = vunpack.c.l.b16 %v3810
        %v5215 = vunpack.c.h.b16 %v3810
        %v5216 = vunpack.c.l.b16 %v3811
        %v5217 = vunpack.c.l.b16 %v3812
        %v5218 = vunpack.c.h.b16 %v3812
        %v5219 = vunpack.c.l.b16 %v3813
        %v5220 = vunpack.c.l.b16 %v3814
        %v5221 = vunpack.c.h.b16 %v3814
        %v5222 = vunpack.c.l.b16 %v3815
        %v5223 = vunpack.c.l.b16 %v3816
        %v5224 = vunpack.c.h.b16 %v3816
        %v5225 = vunpack.c.l.b16 %v3817
        %v5226 = vunpack.c.l.b16 %v3818
        %v5227 = vunpack.c.h.b16 %v3818
        %v5228 = vunpack.c.l.b16 %v3819
        %v5229 = vunpack.c.l.b16 %v3820
        %v5230 = vunpack.c.h.b16 %v3820
        %v5231 = vunpack.c.l.b16 %v3821
        %v5232 = vunpack.c.l.b16 %v3822
        %v5233 = vunpack.c.h.b16 %v3822
        %v5234 = vunpack.c.l.b16 %v3823
        %v5235 = vunpack.c.l.b16 %v3824
        %v5236 = vunpack.c.h.b16 %v3824
        %v5237 = vunpack.c.l.b16 %v3825
        %v5238 = vunpack.c.l.b16 %v3826
        %v5239 = vunpack.c.h.b16 %v3826
        %v5240 = vunpack.c.l.b16 %v3827
        %v5241 = vunpack.c.l.b16 %v3828
        %v5242 = vunpack.c.h.b16 %v3828
        %v5243 = vunpack.c.l.b16 %v3829
        %v5244 = vunpack.c.l.b16 %v3830
        %v5245 = vunpack.c.h.b16 %v3830
        %v5246 = vunpack.c.l.b16 %v3831
        %v5247 = vunpack.c.l.b16 %v3832
        %v5248 = vunpack.c.h.b16 %v3832
        %v5249 = vunpack.c.l.b16 %v3833
        %v5250 = vunpack.c.l.b16 %v3834
        %v5251 = vunpack.c.h.b16 %v3834
        %v5252 = vunpack.c.l.b16 %v3835
        %v5253 = vunpack.c.l.b16 %v3836
        %v5254 = vunpack.c.h.b16 %v3836
        %v5255 = vunpack.c.l.b16 %v3837
        %v5256 = vunpack.c.l.b16 %v3838
        %v5257 = vunpack.c.h.b16 %v3838
        %v5258 = vunpack.c.l.b16 %v3839
        %v5259 = vunpack.c.l.b16 %v3840
        %v5260 = vunpack.c.h.b16 %v3840
        %v5261 = vunpack.c.l.b16 %v3841
        %v5262 = vunpack.c.l.b16 %v3842
        %v5263 = vunpack.c.h.b16 %v3842
        %v5264 = vunpack.c.l.b16 %v3843
        %v5265 = vunpack.c.l.b16 %v3844
        %v5266 = vunpack.c.h.b16 %v3844
        %v5267 = vunpack.c.l.b16 %v3845
        %v5268 = vunpack.c.l.b16 %v3846
        %v5269 = vunpack.c.h.b16 %v3846
        %v5270 = vunpack.c.l.b16 %v3847
        %v5271 = vunpack.c.l.b16 %v3848
        %v5272 = vunpack.c.h.b16 %v3848
        %v5273 = vunpack.c.l.b16 %v3849
        %v5274 = vunpack.c.l.b16 %v3850
        %v5275 = vunpack.c.h.b16 %v3850
        %v5276 = vunpack.c.l.b16 %v3851
        %v5277 = vunpack.c.l.b16 %v3852
        %v5278 = vunpack.c.h.b16 %v3852
        %v5279 = vunpack.c.l.b16 %v3853
        %v5280 = vunpack.c.l.b16 %v3854
        %v5281 = vunpack.c.h.b16 %v3854
        %v5282 = vunpack.c.l.b16 %v3855
        %v5283 = vunpack.c.l.b16 %v3856
        %v5284 = vunpack.c.h.b16 %v3856
        %v5285 = vunpack.c.l.b16 %v3857
        %v5286 = vunpack.c.l.b16 %v3858
        %v5287 = vunpack.c.h.b16 %v3858
        %v5288 = vunpack.c.l.b16 %v3859
        %v5289 = vunpack.c.l.b16 %v3860
        %v5290 = vunpack.c.h.b16 %v3860
        %v5291 = vunpack.c.l.b16 %v3861
        %v5292 = vunpack.c.l.b16 %v3862
        %v5293 = vunpack.c.h.b16 %v3862
        %v5294 = vunpack.c.l.b16 %v3863
        %v5295 = vunpack.c.l.b16 %v3864
        %v5296 = vunpack.c.h.b16 %v3864
        %v5297 = vunpack.c.l.b16 %v3865
        %v5298 = vunpack.c.l.b16 %v3866
        %v5299 = vunpack.c.h.b16 %v3866
        %v5300 = vunpack.c.l.b16 %v3867
        %v5301 = vunpack.c.l.b16 %v3868
        %v5302 = vunpack.c.h.b16 %v3868
        %v5303 = vunpack.c.l.b16 %v3869
        %v5304 = vunpack.c.l.b16 %v3870
        %v5305 = vunpack.c.h.b16 %v3870
        %v5306 = vunpack.c.l.b16 %v3871
        %v5307 = vunpack.c.l.b16 %v3872
        %v5308 = vunpack.c.h.b16 %v3872
        %v5309 = vunpack.c.l.b16 %v3873
        %v5310 = vunpack.c.l.b16 %v3874
        %v5311 = vunpack.c.h.b16 %v3874
        %v5312 = vunpack.c.l.b16 %v3875
        %v5313 = vunpack.c.l.b16 %v3876
        %v5314 = vunpack.c.h.b16 %v3876
        %v5315 = vunpack.c.l.b16 %v3877
        %v5316 = vunpack.c.l.b16 %v3878
        %v5317 = vunpack.c.h.b16 %v3878
        %v5318 = vunpack.c.l.b16 %v3879
        %v5319 = vunpack.c.l.b16 %v3880
        %v5320 = vunpack.c.h.b16 %v3880
        %v5321 = vunpack.c.l.b16 %v3881
        %v5322 = vunpack.c.l.b16 %v3882
        %v5323 = vunpack.c.h.b16 %v3882
        %v5324 = vunpack.c.l.b16 %v3883
        %v5325 = vunpack.c.l.b16 %v3884
        %v5326 = vunpack.c.h.b16 %v3884
        %v5327 = vunpack.c.l.b16 %v3885
        %v5328 = vunpack.c.l.b16 %v3886
        %v5329 = vunpack.c.h.b16 %v3886
        %v5330 = vunpack.c.l.b16 %v3887
        %v5331 = vunpack.c.l.b16 %v3888
        %v5332 = vunpack.c.h.b16 %v3888
        %v5333 = vunpack.c.l.b16 %v3889
        %v5334 = vunpack.c.l.b16 %v3890
        %v5335 = vunpack.c.h.b16 %v3890
        %v5336 = vunpack.c.l.b16 %v3891
        %v5337 = vunpack.c.l.b16 %v3892
        %v5338 = vunpack.c.h.b16 %v3892
        %v5339 = vunpack.c.l.b16 %v3893
        %v5340 = vunpack.c.l.b16 %v3894
        %v5341 = vunpack.c.h.b16 %v3894
        %v5342 = vunpack.c.l.b16 %v3895
        %v5343 = vunpack.c.l.b16 %v3896
        %v5344 = vunpack.c.h.b16 %v3896
        %v5345 = vunpack.c.l.b16 %v3897
        %v5346 = vpack.c.b16 %v5205, %v5202
        %v5347 = vpack.c.b16 %v5206, %v5203
        %v5348 = vpack.c.b16 %v5207, %v5204
        %v5349 = vpack.c.b16 %v5211, %v5208
        %v5350 = vpack.c.b16 %v5212, %v5209
        %v5351 = vpack.c.b16 %v5213, %v5210
        %v5352 = vpack.c.b16 %v5217, %v5214
        %v5353 = vpack.c.b16 %v5218, %v5215
        %v5354 = vpack.c.b16 %v5219, %v5216
        %v5355 = vpack.c.b16 %v5223, %v5220
        %v5356 = vpack.c.b16 %v5224, %v5221
        %v5357 = vpack.c.b16 %v5225, %v5222
        %v5358 = vpack.c.b16 %v5229, %v5226
        %v5359 = vpack.c.b16 %v5230, %v5227
        %v5360 = vpack.c.b16 %v5231, %v5228
        %v5361 = vpack.c.b16 %v5235, %v5232
        %v5362 = vpack.c.b16 %v5236, %v5233
        %v5363 = vpack.c.b16 %v5237, %v5234
        %v5364 = vpack.c.b16 %v5241, %v5238
        %v5365 = vpack.c.b16 %v5242, %v5239
        %v5366 = vpack.c.b16 %v5243, %v5240
        %v5367 = vpack.c.b16 %v5247, %v5244
        %v5368 = vpack.c.b16 %v5248, %v5245
        %v5369 = vpack.c.b16 %v5249, %v5246
        %v5370 = vpack.c.b16 %v5253, %v5250
        %v5371 = vpack.c.b16 %v5254, %v5251
        %v5372 = vpack.c.b16 %v5255, %v5252
        %v5373 = vpack.c.b16 %v5259, %v5256
        %v5374 = vpack.c.b16 %v5260, %v5257
        %v5375 = vpack.c.b16 %v5261, %v5258
        %v5376 = vpack.c.b16 %v5265, %v5262
        %v5377 = vpack.c.b16 %v5266, %v5263
        %v5378 = vpack.c.b16 %v5267, %v5264
        %v5379 = vpack.c.b16 %v5271, %v5268
        %v5380 = vpack.c.b16 %v5272, %v5269
        %v5381 = vpack.c.b16 %v5273, %v5270
        %v5382 = vpack.c.b16 %v5277, %v5274
        %v5383 = vpack.c.b16 %v5278, %v5275
        %v5384 = vpack.c.b16 %v5279, %v5276
        %v5385 = vpack.c.b16 %v5283, %v5280
        %v5386 = vpack.c.b16 %v5284, %v5281
        %v5387 = vpack.c.b16 %v5285, %v5282
        %v5388 = vpack.c.b16 %v5289, %v5286
        %v5389 = vpack.c.b16 %v5290, %v5287
        %v5390 = vpack.c.b16 %v5291, %v5288
        %v5391 = vpack.c.b16 %v5295, %v5292
        %v5392 = vpack.c.b16 %v5296, %v5293
        %v5393 = vpack.c.b16 %v5297, %v5294
        %v5394 = vpack.c.b16 %v5301, %v5298
        %v5395 = vpack.c.b16 %v5302, %v5299
        %v5396 = vpack.c.b16 %v5303, %v5300
        %v5397 = vpack.c.b16 %v5307, %v5304
        %v5398 = vpack.c.b16 %v5308, %v5305
        %v5399 = vpack.c.b16 %v5309, %v5306
        %v5400 = vpack.c.b16 %v5313, %v5310
        %v5401 = vpack.c.b16 %v5314, %v5311
        %v5402 = vpack.c.b16 %v5315, %v5312
        %v5403 = vpack.c.b16 %v5319, %v5316
        %v5404 = vpack.c.b16 %v5320, %v5317
        %v5405 = vpack.c.b16 %v5321, %v5318
        %v5406 = vpack.c.b16 %v5325, %v5322
        %v5407 = vpack.c.b16 %v5326, %v5323
        %v5408 = vpack.c.b16 %v5327, %v5324
        %v5409 = vpack.c.b16 %v5331, %v5328
        %v5410 = vpack.c.b16 %v5332, %v5329
        %v5411 = vpack.c.b16 %v5333, %v5330
        %v5412 = vpack.c.b16 %v5337, %v5334
        %v5413 = vpack.c.b16 %v5338, %v5335
        %v5414 = vpack.c.b16 %v5339, %v5336
        %v5415 = vpack.c.b16 %v5343, %v5340
        %v5416 = vpack.c.b16 %v5344, %v5341
        %v5417 = vpack.c.b16 %v5345, %v5342
        %5490 = vmatpush.bf16.msra.mxu0 %v5367
        %5491 = vmatpush.bf16.msra.mxu0 %v5364
        %5492 = vmatpush.bf16.msra.mxu0 %v5361
        %5493 = vmatpush.bf16.msra.mxu0 %v5358
        %5494 = vmatpush.bf16.msra.mxu0 %v5355
        %5495 = vmatpush.bf16.msra.mxu0 %v5352
        %5496 = vmatpush.bf16.msra.mxu0 %v5349
        %5497 = vmatpush.bf16.msra.mxu0 %v5346
        %5498 = vmatmul.bf16.gmra.mxu0 %v3799
        %v5499 = vpop.f32.mrf.mxu0
        %v5500 = vadd.f32 %v5025, %v5499
        %v5501 = vpop.f32.mrf.mxu0
        %5502 = vdwg.mxu0
        %5503 = vmatpush.bf16.msra.mxu0 %v5391
        %5504 = vmatpush.bf16.msra.mxu0 %v5388
        %5505 = vmatpush.bf16.msra.mxu0 %v5385
        %5506 = vmatpush.bf16.msra.mxu0 %v5382
        %5507 = vmatpush.bf16.msra.mxu0 %v5379
        %5508 = vmatpush.bf16.msra.mxu0 %v5376
        %5509 = vmatpush.bf16.msra.mxu0 %v5373
        %5510 = vmatpush.bf16.msra.mxu0 %v5370
        %5511 = vmatmul.bf16.gmra.mxu0 %v3800
        %v5512 = vpop.f32.mrf.mxu0
        %v5513 = vadd.f32 %v5500, %v5512
        %v5514 = vpop.f32.mrf.mxu0
        %5515 = vdwg.mxu0
        %5516 = vmatpush.bf16.msra.mxu0 %v5415
        %5517 = vmatpush.bf16.msra.mxu0 %v5412
        %5518 = vmatpush.bf16.msra.mxu0 %v5409
        %5519 = vmatpush.bf16.msra.mxu0 %v5406
        %5520 = vmatpush.bf16.msra.mxu0 %v5403
        %5521 = vmatpush.bf16.msra.mxu0 %v5400
        %5522 = vmatpush.bf16.msra.mxu0 %v5397
        %5523 = vmatpush.bf16.msra.mxu0 %v5394
        %5524 = vmatmul.bf16.gmra.mxu0 %v3801
        %v5525 = vpop.f32.mrf.mxu0
        %v5526 = vadd.f32 %v5513, %v5525
        %v5527 = vpop.f32.mrf.mxu0
        %5528 = vdwg.mxu0
        %5529 = vmatpush.bf16.msra.mxu0 %v5368
        %5530 = vmatpush.bf16.msra.mxu0 %v5365
        %5531 = vmatpush.bf16.msra.mxu0 %v5362
        %5532 = vmatpush.bf16.msra.mxu0 %v5359
        %5533 = vmatpush.bf16.msra.mxu0 %v5356
        %5534 = vmatpush.bf16.msra.mxu0 %v5353
        %5535 = vmatpush.bf16.msra.mxu0 %v5350
        %5536 = vmatpush.bf16.msra.mxu0 %v5347
        %5537 = vmatmul.bf16.gmra.mxu0 %v3799
        %v5538 = vpop.f32.mrf.mxu0
        %v5539 = vadd.f32 %v5064, %v5538
        %v5540 = vpop.f32.mrf.mxu0
        %5541 = vdwg.mxu0
        %5542 = vmatpush.bf16.msra.mxu0 %v5392
        %5543 = vmatpush.bf16.msra.mxu0 %v5389
        %5544 = vmatpush.bf16.msra.mxu0 %v5386
        %5545 = vmatpush.bf16.msra.mxu0 %v5383
        %5546 = vmatpush.bf16.msra.mxu0 %v5380
        %5547 = vmatpush.bf16.msra.mxu0 %v5377
        %5548 = vmatpush.bf16.msra.mxu0 %v5374
        %5549 = vmatpush.bf16.msra.mxu0 %v5371
        %5550 = vmatmul.bf16.gmra.mxu0 %v3800
        %v5551 = vpop.f32.mrf.mxu0
        %v5552 = vadd.f32 %v5539, %v5551
        %v5553 = vpop.f32.mrf.mxu0
        %5554 = vdwg.mxu0
        %5555 = vmatpush.bf16.msra.mxu0 %v5416
        %5556 = vmatpush.bf16.msra.mxu0 %v5413
        %5557 = vmatpush.bf16.msra.mxu0 %v5410
        %5558 = vmatpush.bf16.msra.mxu0 %v5407
        %5559 = vmatpush.bf16.msra.mxu0 %v5404
        %5560 = vmatpush.bf16.msra.mxu0 %v5401
        %5561 = vmatpush.bf16.msra.mxu0 %v5398
        %5562 = vmatpush.bf16.msra.mxu0 %v5395
        %5563 = vmatmul.bf16.gmra.mxu0 %v3801
        %v5564 = vpop.f32.mrf.mxu0
        %v5565 = vadd.f32 %v5552, %v5564
        %v5566 = vpop.f32.mrf.mxu0
        %5567 = vdwg.mxu0
        %5568 = vmatpush.bf16.msra.mxu0 %v5369
        %5569 = vmatpush.bf16.msra.mxu0 %v5366
        %5570 = vmatpush.bf16.msra.mxu0 %v5363
        %5571 = vmatpush.bf16.msra.mxu0 %v5360
        %5572 = vmatpush.bf16.msra.mxu0 %v5357
        %5573 = vmatpush.bf16.msra.mxu0 %v5354
        %5574 = vmatpush.bf16.msra.mxu0 %v5351
        %5575 = vmatpush.bf16.msra.mxu0 %v5348
        %5576 = vmatmul.bf16.gmra.mxu0 %v3799
        %v5577 = vpop.f32.mrf.mxu0
        %v5578 = vadd.f32 %v5103, %v5577
        %v5579 = vpop.f32.mrf.mxu0
        %5580 = vdwg.mxu0
        %5581 = vmatpush.bf16.msra.mxu0 %v5393
        %5582 = vmatpush.bf16.msra.mxu0 %v5390
        %5583 = vmatpush.bf16.msra.mxu0 %v5387
        %5584 = vmatpush.bf16.msra.mxu0 %v5384
        %5585 = vmatpush.bf16.msra.mxu0 %v5381
        %5586 = vmatpush.bf16.msra.mxu0 %v5378
        %5587 = vmatpush.bf16.msra.mxu0 %v5375
        %5588 = vmatpush.bf16.msra.mxu0 %v5372
        %5589 = vmatmul.bf16.gmra.mxu0 %v3800
        %v5590 = vpop.f32.mrf.mxu0
        %v5591 = vadd.f32 %v5578, %v5590
        %v5592 = vpop.f32.mrf.mxu0
        %5593 = vdwg.mxu0
        %5594 = vmatpush.bf16.msra.mxu0 %v5417
        %5595 = vmatpush.bf16.msra.mxu0 %v5414
        %5596 = vmatpush.bf16.msra.mxu0 %v5411
        %5597 = vmatpush.bf16.msra.mxu0 %v5408
        %5598 = vmatpush.bf16.msra.mxu0 %v5405
        %5599 = vmatpush.bf16.msra.mxu0 %v5402
        %5600 = vmatpush.bf16.msra.mxu0 %v5399
        %5601 = vmatpush.bf16.msra.mxu0 %v5396
        %5602 = vmatmul.bf16.gmra.mxu0 %v3801
        %v5603 = vpop.f32.mrf.mxu0
        %v5604 = vadd.f32 %v5591, %v5603
        %v5605 = vpop.f32.mrf.mxu0
        %5606 = vdwg.mxu0
        %v5607 = vld [vmem:[%s8 + $0x18] sm:$0xff]
        %v5608 = vld [vmem:[%s8 + $0x20] sm:$0xf]
        %v5609 = vld [vmem:[%s8 + $0x48] sm:$0xff]
        %v5610 = vld [vmem:[%s8 + $0x50] sm:$0xf]
        %v5611 = vld [vmem:[%s8 + $0x78] sm:$0xff]
        %v5612 = vld [vmem:[%s8 + $0x80] sm:$0xf]
        %v5613 = vld [vmem:[%s8 + $0xa8] sm:$0xff]
        %v5614 = vld [vmem:[%s8 + $0xb0] sm:$0xf]
        %v5615 = vld [vmem:[%s8 + $0xd8] sm:$0xff]
        %v5616 = vld [vmem:[%s8 + $0xe0] sm:$0xf]
        %v5617 = vld [vmem:[%s8 + $0x108] sm:$0xff]
        %v5618 = vld [vmem:[%s8 + $0x110] sm:$0xf]
        %v5619 = vld [vmem:[%s8 + $0x138] sm:$0xff]
        %v5620 = vld [vmem:[%s8 + $0x140] sm:$0xf]
        %v5621 = vld [vmem:[%s8 + $0x168] sm:$0xff]
        %v5622 = vld [vmem:[%s8 + $0x170] sm:$0xf]
        %v5623 = vld [vmem:[%s8 + $0x198] sm:$0xff]
        %v5624 = vld [vmem:[%s8 + $0x1a0] sm:$0xf]
        %v5625 = vld [vmem:[%s8 + $0x1c8] sm:$0xff]
        %v5626 = vld [vmem:[%s8 + $0x1d0] sm:$0xf]
        %v5627 = vld [vmem:[%s8 + $0x1f8] sm:$0xff]
        %v5628 = vld [vmem:[%s8 + $0x200] sm:$0xf]
        %v5629 = vld [vmem:[%s8 + $0x228] sm:$0xff]
        %v5630 = vld [vmem:[%s8 + $0x230] sm:$0xf]
        %v5631 = vld [vmem:[%s8 + $0x258] sm:$0xff]
        %v5632 = vld [vmem:[%s8 + $0x260] sm:$0xf]
        %v5633 = vld [vmem:[%s8 + $0x288] sm:$0xff]
        %v5634 = vld [vmem:[%s8 + $0x290] sm:$0xf]
        %v5635 = vld [vmem:[%s8 + $0x2b8] sm:$0xff]
        %v5636 = vld [vmem:[%s8 + $0x2c0] sm:$0xf]
        %v5637 = vld [vmem:[%s8 + $0x2e8] sm:$0xff]
        %v5638 = vld [vmem:[%s8 + $0x2f0] sm:$0xf]
        %v5639 = vld [vmem:[%s8 + $0x318] sm:$0xff]
        %v5640 = vld [vmem:[%s8 + $0x320] sm:$0xf]
        %v5641 = vld [vmem:[%s8 + $0x348] sm:$0xff]
        %v5642 = vld [vmem:[%s8 + $0x350] sm:$0xf]
        %v5643 = vld [vmem:[%s8 + $0x378] sm:$0xff]
        %v5644 = vld [vmem:[%s8 + $0x380] sm:$0xf]
        %v5645 = vld [vmem:[%s8 + $0x3a8] sm:$0xff]
        %v5646 = vld [vmem:[%s8 + $0x3b0] sm:$0xf]
        %v5647 = vld [vmem:[%s8 + $0x3d8] sm:$0xff]
        %v5648 = vld [vmem:[%s8 + $0x3e0] sm:$0xf]
        %v5649 = vld [vmem:[%s8 + $0x408] sm:$0xff]
        %v5650 = vld [vmem:[%s8 + $0x410] sm:$0xf]
        %v5651 = vld [vmem:[%s8 + $0x438] sm:$0xff]
        %v5652 = vld [vmem:[%s8 + $0x440] sm:$0xf]
        %v5653 = vld [vmem:[%s8 + $0x468] sm:$0xff]
        %v5654 = vld [vmem:[%s8 + $0x470] sm:$0xf]
        %v5655 = vld [vmem:[%s8 + $0x498] sm:$0xff]
        %v5656 = vld [vmem:[%s8 + $0x4a0] sm:$0xf]
        %v5657 = vld [vmem:[%s8 + $0x4c8] sm:$0xff]
        %v5658 = vld [vmem:[%s8 + $0x4d0] sm:$0xf]
        %v5659 = vld [vmem:[%s8 + $0x4f8] sm:$0xff]
        %v5660 = vld [vmem:[%s8 + $0x500] sm:$0xf]
        %v5661 = vld [vmem:[%s8 + $0x528] sm:$0xff]
        %v5662 = vld [vmem:[%s8 + $0x530] sm:$0xf]
        %v5663 = vld [vmem:[%s8 + $0x558] sm:$0xff]
        %v5664 = vld [vmem:[%s8 + $0x560] sm:$0xf]
        %v5665 = vld [vmem:[%s8 + $0x588] sm:$0xff]
        %v5666 = vld [vmem:[%s8 + $0x590] sm:$0xf]
        %v5667 = vld [vmem:[%s8 + $0x5b8] sm:$0xff]
        %v5668 = vld [vmem:[%s8 + $0x5c0] sm:$0xf]
        %v5669 = vld [vmem:[%s8 + $0x5e8] sm:$0xff]
        %v5670 = vld [vmem:[%s8 + $0x5f0] sm:$0xf]
        %v5671 = vld [vmem:[%s8 + $0x618] sm:$0xff]
        %v5672 = vld [vmem:[%s8 + $0x620] sm:$0xf]
        %v5673 = vld [vmem:[%s8 + $0x648] sm:$0xff]
        %v5674 = vld [vmem:[%s8 + $0x650] sm:$0xf]
        %v5675 = vld [vmem:[%s8 + $0x678] sm:$0xff]
        %v5676 = vld [vmem:[%s8 + $0x680] sm:$0xf]
        %v5677 = vld [vmem:[%s8 + $0x6a8] sm:$0xff]
        %v5678 = vld [vmem:[%s8 + $0x6b0] sm:$0xf]
        %v5679 = vld [vmem:[%s8 + $0x6d8] sm:$0xff]
        %v5680 = vld [vmem:[%s8 + $0x6e0] sm:$0xf]
        %v5681 = vld [vmem:[%s8 + $0x708] sm:$0xff]
        %v5682 = vld [vmem:[%s8 + $0x710] sm:$0xf]
        %v5683 = vld [vmem:[%s8 + $0x738] sm:$0xff]
        %v5684 = vld [vmem:[%s8 + $0x740] sm:$0xf]
        %v5685 = vld [vmem:[%s8 + $0x768] sm:$0xff]
        %v5686 = vld [vmem:[%s8 + $0x770] sm:$0xf]
        %v5687 = vld [vmem:[%s8 + $0x798] sm:$0xff]
        %v5688 = vld [vmem:[%s8 + $0x7a0] sm:$0xf]
        %v5689 = vld [vmem:[%s8 + $0x7c8] sm:$0xff]
        %v5690 = vld [vmem:[%s8 + $0x7d0] sm:$0xf]
        %v5691 = vld [vmem:[%s8 + $0x7f8] sm:$0xff]
        %v5692 = vld [vmem:[%s8 + $0x800] sm:$0xf]
        %v5693 = vld [vmem:[%s8 + $0x828] sm:$0xff]
        %v5694 = vld [vmem:[%s8 + $0x830] sm:$0xf]
        %v5695 = vld [vmem:[%s8 + $0x858] sm:$0xff]
        %v5696 = vld [vmem:[%s8 + $0x860] sm:$0xf]
        %v5697 = vld [vmem:[%s8 + $0x888] sm:$0xff]
        %v5698 = vld [vmem:[%s8 + $0x890] sm:$0xf]
        %v5699 = vld [vmem:[%s8 + $0x8b8] sm:$0xff]
        %v5700 = vld [vmem:[%s8 + $0x8c0] sm:$0xf]
        %v5701 = vld [vmem:[%s8 + $0x8e8] sm:$0xff]
        %v5702 = vld [vmem:[%s8 + $0x8f0] sm:$0xf]
        %v5703 = vld [vmem:[%s9 + $0x6] sm:$0x7]
        %v5705 = vperm.slane %v5703, 0
        %v5706 = vperm.slane %v5703, 1
        %v5707 = vperm.slane %v5703, 2
        %v5807 = vunpack.c.l.b16 %v5607
        %v5808 = vunpack.c.h.b16 %v5607
        %v5809 = vunpack.c.l.b16 %v5608
        %v5810 = vunpack.c.l.b16 %v5609
        %v5811 = vunpack.c.h.b16 %v5609
        %v5812 = vunpack.c.l.b16 %v5610
        %v5813 = vunpack.c.l.b16 %v5611
        %v5814 = vunpack.c.h.b16 %v5611
        %v5815 = vunpack.c.l.b16 %v5612
        %v5816 = vunpack.c.l.b16 %v5613
        %v5817 = vunpack.c.h.b16 %v5613
        %v5818 = vunpack.c.l.b16 %v5614
        %v5819 = vunpack.c.l.b16 %v5615
        %v5820 = vunpack.c.h.b16 %v5615
        %v5821 = vunpack.c.l.b16 %v5616
        %v5822 = vunpack.c.l.b16 %v5617
        %v5823 = vunpack.c.h.b16 %v5617
        %v5824 = vunpack.c.l.b16 %v5618
        %v5825 = vunpack.c.l.b16 %v5619
        %v5826 = vunpack.c.h.b16 %v5619
        %v5827 = vunpack.c.l.b16 %v5620
        %v5828 = vunpack.c.l.b16 %v5621
        %v5829 = vunpack.c.h.b16 %v5621
        %v5830 = vunpack.c.l.b16 %v5622
        %v5831 = vunpack.c.l.b16 %v5623
        %v5832 = vunpack.c.h.b16 %v5623
        %v5833 = vunpack.c.l.b16 %v5624
        %v5834 = vunpack.c.l.b16 %v5625
        %v5835 = vunpack.c.h.b16 %v5625
        %v5836 = vunpack.c.l.b16 %v5626
        %v5837 = vunpack.c.l.b16 %v5627
        %v5838 = vunpack.c.h.b16 %v5627
        %v5839 = vunpack.c.l.b16 %v5628
        %v5840 = vunpack.c.l.b16 %v5629
        %v5841 = vunpack.c.h.b16 %v5629
        %v5842 = vunpack.c.l.b16 %v5630
        %v5843 = vunpack.c.l.b16 %v5631
        %v5844 = vunpack.c.h.b16 %v5631
        %v5845 = vunpack.c.l.b16 %v5632
        %v5846 = vunpack.c.l.b16 %v5633
        %v5847 = vunpack.c.h.b16 %v5633
        %v5848 = vunpack.c.l.b16 %v5634
        %v5849 = vunpack.c.l.b16 %v5635
        %v5850 = vunpack.c.h.b16 %v5635
        %v5851 = vunpack.c.l.b16 %v5636
        %v5852 = vunpack.c.l.b16 %v5637
        %v5853 = vunpack.c.h.b16 %v5637
        %v5854 = vunpack.c.l.b16 %v5638
        %v5855 = vunpack.c.l.b16 %v5639
        %v5856 = vunpack.c.h.b16 %v5639
        %v5857 = vunpack.c.l.b16 %v5640
        %v5858 = vunpack.c.l.b16 %v5641
        %v5859 = vunpack.c.h.b16 %v5641
        %v5860 = vunpack.c.l.b16 %v5642
        %v5861 = vunpack.c.l.b16 %v5643
        %v5862 = vunpack.c.h.b16 %v5643
        %v5863 = vunpack.c.l.b16 %v5644
        %v5864 = vunpack.c.l.b16 %v5645
        %v5865 = vunpack.c.h.b16 %v5645
        %v5866 = vunpack.c.l.b16 %v5646
        %v5867 = vunpack.c.l.b16 %v5647
        %v5868 = vunpack.c.h.b16 %v5647
        %v5869 = vunpack.c.l.b16 %v5648
        %v5870 = vunpack.c.l.b16 %v5649
        %v5871 = vunpack.c.h.b16 %v5649
        %v5872 = vunpack.c.l.b16 %v5650
        %v5873 = vunpack.c.l.b16 %v5651
        %v5874 = vunpack.c.h.b16 %v5651
        %v5875 = vunpack.c.l.b16 %v5652
        %v5876 = vunpack.c.l.b16 %v5653
        %v5877 = vunpack.c.h.b16 %v5653
        %v5878 = vunpack.c.l.b16 %v5654
        %v5879 = vunpack.c.l.b16 %v5655
        %v5880 = vunpack.c.h.b16 %v5655
        %v5881 = vunpack.c.l.b16 %v5656
        %v5882 = vunpack.c.l.b16 %v5657
        %v5883 = vunpack.c.h.b16 %v5657
        %v5884 = vunpack.c.l.b16 %v5658
        %v5885 = vunpack.c.l.b16 %v5659
        %v5886 = vunpack.c.h.b16 %v5659
        %v5887 = vunpack.c.l.b16 %v5660
        %v5888 = vunpack.c.l.b16 %v5661
        %v5889 = vunpack.c.h.b16 %v5661
        %v5890 = vunpack.c.l.b16 %v5662
        %v5891 = vunpack.c.l.b16 %v5663
        %v5892 = vunpack.c.h.b16 %v5663
        %v5893 = vunpack.c.l.b16 %v5664
        %v5894 = vunpack.c.l.b16 %v5665
        %v5895 = vunpack.c.h.b16 %v5665
        %v5896 = vunpack.c.l.b16 %v5666
        %v5897 = vunpack.c.l.b16 %v5667
        %v5898 = vunpack.c.h.b16 %v5667
        %v5899 = vunpack.c.l.b16 %v5668
        %v5900 = vunpack.c.l.b16 %v5669
        %v5901 = vunpack.c.h.b16 %v5669
        %v5902 = vunpack.c.l.b16 %v5670
        %v5903 = vunpack.c.l.b16 %v5671
        %v5904 = vunpack.c.h.b16 %v5671
        %v5905 = vunpack.c.l.b16 %v5672
        %v5906 = vunpack.c.l.b16 %v5673
        %v5907 = vunpack.c.h.b16 %v5673
        %v5908 = vunpack.c.l.b16 %v5674
        %v5909 = vunpack.c.l.b16 %v5675
        %v5910 = vunpack.c.h.b16 %v5675
        %v5911 = vunpack.c.l.b16 %v5676
        %v5912 = vunpack.c.l.b16 %v5677
        %v5913 = vunpack.c.h.b16 %v5677
        %v5914 = vunpack.c.l.b16 %v5678
        %v5915 = vunpack.c.l.b16 %v5679
        %v5916 = vunpack.c.h.b16 %v5679
        %v5917 = vunpack.c.l.b16 %v5680
        %v5918 = vunpack.c.l.b16 %v5681
        %v5919 = vunpack.c.h.b16 %v5681
        %v5920 = vunpack.c.l.b16 %v5682
        %v5921 = vunpack.c.l.b16 %v5683
        %v5922 = vunpack.c.h.b16 %v5683
        %v5923 = vunpack.c.l.b16 %v5684
        %v5924 = vunpack.c.l.b16 %v5685
        %v5925 = vunpack.c.h.b16 %v5685
        %v5926 = vunpack.c.l.b16 %v5686
        %v5927 = vunpack.c.l.b16 %v5687
        %v5928 = vunpack.c.h.b16 %v5687
        %v5929 = vunpack.c.l.b16 %v5688
        %v5930 = vunpack.c.l.b16 %v5689
        %v5931 = vunpack.c.h.b16 %v5689
        %v5932 = vunpack.c.l.b16 %v5690
        %v5933 = vunpack.c.l.b16 %v5691
        %v5934 = vunpack.c.h.b16 %v5691
        %v5935 = vunpack.c.l.b16 %v5692
        %v5936 = vunpack.c.l.b16 %v5693
        %v5937 = vunpack.c.h.b16 %v5693
        %v5938 = vunpack.c.l.b16 %v5694
        %v5939 = vunpack.c.l.b16 %v5695
        %v5940 = vunpack.c.h.b16 %v5695
        %v5941 = vunpack.c.l.b16 %v5696
        %v5942 = vunpack.c.l.b16 %v5697
        %v5943 = vunpack.c.h.b16 %v5697
        %v5944 = vunpack.c.l.b16 %v5698
        %v5945 = vunpack.c.l.b16 %v5699
        %v5946 = vunpack.c.h.b16 %v5699
        %v5947 = vunpack.c.l.b16 %v5700
        %v5948 = vunpack.c.l.b16 %v5701
        %v5949 = vunpack.c.h.b16 %v5701
        %v5950 = vunpack.c.l.b16 %v5702
        %v5951 = vpack.c.b16 %v5810, %v5807
        %v5952 = vpack.c.b16 %v5811, %v5808
        %v5953 = vpack.c.b16 %v5812, %v5809
        %v5954 = vpack.c.b16 %v5816, %v5813
        %v5955 = vpack.c.b16 %v5817, %v5814
        %v5956 = vpack.c.b16 %v5818, %v5815
        %v5957 = vpack.c.b16 %v5822, %v5819
        %v5958 = vpack.c.b16 %v5823, %v5820
        %v5959 = vpack.c.b16 %v5824, %v5821
        %v5960 = vpack.c.b16 %v5828, %v5825
        %v5961 = vpack.c.b16 %v5829, %v5826
        %v5962 = vpack.c.b16 %v5830, %v5827
        %v5963 = vpack.c.b16 %v5834, %v5831
        %v5964 = vpack.c.b16 %v5835, %v5832
        %v5965 = vpack.c.b16 %v5836, %v5833
        %v5966 = vpack.c.b16 %v5840, %v5837
        %v5967 = vpack.c.b16 %v5841, %v5838
        %v5968 = vpack.c.b16 %v5842, %v5839
        %v5969 = vpack.c.b16 %v5846, %v5843
        %v5970 = vpack.c.b16 %v5847, %v5844
        %v5971 = vpack.c.b16 %v5848, %v5845
        %v5972 = vpack.c.b16 %v5852, %v5849
        %v5973 = vpack.c.b16 %v5853, %v5850
        %v5974 = vpack.c.b16 %v5854, %v5851
        %v5975 = vpack.c.b16 %v5858, %v5855
        %v5976 = vpack.c.b16 %v5859, %v5856
        %v5977 = vpack.c.b16 %v5860, %v5857
        %v5978 = vpack.c.b16 %v5864, %v5861
        %v5979 = vpack.c.b16 %v5865, %v5862
        %v5980 = vpack.c.b16 %v5866, %v5863
        %v5981 = vpack.c.b16 %v5870, %v5867
        %v5982 = vpack.c.b16 %v5871, %v5868
        %v5983 = vpack.c.b16 %v5872, %v5869
        %v5984 = vpack.c.b16 %v5876, %v5873
        %v5985 = vpack.c.b16 %v5877, %v5874
        %v5986 = vpack.c.b16 %v5878, %v5875
        %v5987 = vpack.c.b16 %v5882, %v5879
        %v5988 = vpack.c.b16 %v5883, %v5880
        %v5989 = vpack.c.b16 %v5884, %v5881
        %v5990 = vpack.c.b16 %v5888, %v5885
        %v5991 = vpack.c.b16 %v5889, %v5886
        %v5992 = vpack.c.b16 %v5890, %v5887
        %v5993 = vpack.c.b16 %v5894, %v5891
        %v5994 = vpack.c.b16 %v5895, %v5892
        %v5995 = vpack.c.b16 %v5896, %v5893
        %v5996 = vpack.c.b16 %v5900, %v5897
        %v5997 = vpack.c.b16 %v5901, %v5898
        %v5998 = vpack.c.b16 %v5902, %v5899
        %v5999 = vpack.c.b16 %v5906, %v5903
        %v6000 = vpack.c.b16 %v5907, %v5904
        %v6001 = vpack.c.b16 %v5908, %v5905
        %v6002 = vpack.c.b16 %v5912, %v5909
        %v6003 = vpack.c.b16 %v5913, %v5910
        %v6004 = vpack.c.b16 %v5914, %v5911
        %v6005 = vpack.c.b16 %v5918, %v5915
        %v6006 = vpack.c.b16 %v5919, %v5916
        %v6007 = vpack.c.b16 %v5920, %v5917
        %v6008 = vpack.c.b16 %v5924, %v5921
        %v6009 = vpack.c.b16 %v5925, %v5922
        %v6010 = vpack.c.b16 %v5926, %v5923
        %v6011 = vpack.c.b16 %v5930, %v5927
        %v6012 = vpack.c.b16 %v5931, %v5928
        %v6013 = vpack.c.b16 %v5932, %v5929
        %v6014 = vpack.c.b16 %v5936, %v5933
        %v6015 = vpack.c.b16 %v5937, %v5934
        %v6016 = vpack.c.b16 %v5938, %v5935
        %v6017 = vpack.c.b16 %v5942, %v5939
        %v6018 = vpack.c.b16 %v5943, %v5940
        %v6019 = vpack.c.b16 %v5944, %v5941
        %v6020 = vpack.c.b16 %v5948, %v5945
        %v6021 = vpack.c.b16 %v5949, %v5946
        %v6022 = vpack.c.b16 %v5950, %v5947
        %6095 = vmatpush.bf16.msra.mxu0 %v5972
        %6096 = vmatpush.bf16.msra.mxu0 %v5969
        %6097 = vmatpush.bf16.msra.mxu0 %v5966
        %6098 = vmatpush.bf16.msra.mxu0 %v5963
        %6099 = vmatpush.bf16.msra.mxu0 %v5960
        %6100 = vmatpush.bf16.msra.mxu0 %v5957
        %6101 = vmatpush.bf16.msra.mxu0 %v5954
        %6102 = vmatpush.bf16.msra.mxu0 %v5951
        %6103 = vmatmul.bf16.gmra.mxu0 %v3188
        %v6104 = vpop.f32.mrf.mxu0
        %v6105 = vadd.f32 %v5705, %v6104
        %v6106 = vpop.f32.mrf.mxu0
        %6107 = vdwg.mxu0
        %6108 = vmatpush.bf16.msra.mxu0 %v5996
        %6109 = vmatpush.bf16.msra.mxu0 %v5993
        %6110 = vmatpush.bf16.msra.mxu0 %v5990
        %6111 = vmatpush.bf16.msra.mxu0 %v5987
        %6112 = vmatpush.bf16.msra.mxu0 %v5984
        %6113 = vmatpush.bf16.msra.mxu0 %v5981
        %6114 = vmatpush.bf16.msra.mxu0 %v5978
        %6115 = vmatpush.bf16.msra.mxu0 %v5975
        %6116 = vmatmul.bf16.gmra.mxu0 %v3189
        %v6117 = vpop.f32.mrf.mxu0
        %v6118 = vadd.f32 %v6105, %v6117
        %v6119 = vpop.f32.mrf.mxu0
        %6120 = vdwg.mxu0
        %6121 = vmatpush.bf16.msra.mxu0 %v6020
        %6122 = vmatpush.bf16.msra.mxu0 %v6017
        %6123 = vmatpush.bf16.msra.mxu0 %v6014
        %6124 = vmatpush.bf16.msra.mxu0 %v6011
        %6125 = vmatpush.bf16.msra.mxu0 %v6008
        %6126 = vmatpush.bf16.msra.mxu0 %v6005
        %6127 = vmatpush.bf16.msra.mxu0 %v6002
        %6128 = vmatpush.bf16.msra.mxu0 %v5999
        %6129 = vmatmul.bf16.gmra.mxu0 %v3190
        %v6130 = vpop.f32.mrf.mxu0
        %v6131 = vadd.f32 %v6118, %v6130
        %v6132 = vpop.f32.mrf.mxu0
        %6133 = vdwg.mxu0
        %6134 = vmatpush.bf16.msra.mxu0 %v5973
        %6135 = vmatpush.bf16.msra.mxu0 %v5970
        %6136 = vmatpush.bf16.msra.mxu0 %v5967
        %6137 = vmatpush.bf16.msra.mxu0 %v5964
        %6138 = vmatpush.bf16.msra.mxu0 %v5961
        %6139 = vmatpush.bf16.msra.mxu0 %v5958
        %6140 = vmatpush.bf16.msra.mxu0 %v5955
        %6141 = vmatpush.bf16.msra.mxu0 %v5952
        %6142 = vmatmul.bf16.gmra.mxu0 %v3188
        %v6143 = vpop.f32.mrf.mxu0
        %v6144 = vadd.f32 %v5706, %v6143
        %v6145 = vpop.f32.mrf.mxu0
        %6146 = vdwg.mxu0
        %6147 = vmatpush.bf16.msra.mxu0 %v5997
        %6148 = vmatpush.bf16.msra.mxu0 %v5994
        %6149 = vmatpush.bf16.msra.mxu0 %v5991
        %6150 = vmatpush.bf16.msra.mxu0 %v5988
        %6151 = vmatpush.bf16.msra.mxu0 %v5985
        %6152 = vmatpush.bf16.msra.mxu0 %v5982
        %6153 = vmatpush.bf16.msra.mxu0 %v5979
        %6154 = vmatpush.bf16.msra.mxu0 %v5976
        %6155 = vmatmul.bf16.gmra.mxu0 %v3189
        %v6156 = vpop.f32.mrf.mxu0
        %v6157 = vadd.f32 %v6144, %v6156
        %v6158 = vpop.f32.mrf.mxu0
        %6159 = vdwg.mxu0
        %6160 = vmatpush.bf16.msra.mxu0 %v6021
        %6161 = vmatpush.bf16.msra.mxu0 %v6018
        %6162 = vmatpush.bf16.msra.mxu0 %v6015
        %6163 = vmatpush.bf16.msra.mxu0 %v6012
        %6164 = vmatpush.bf16.msra.mxu0 %v6009
        %6165 = vmatpush.bf16.msra.mxu0 %v6006
        %6166 = vmatpush.bf16.msra.mxu0 %v6003
        %6167 = vmatpush.bf16.msra.mxu0 %v6000
        %6168 = vmatmul.bf16.gmra.mxu0 %v3190
        %v6169 = vpop.f32.mrf.mxu0
        %v6170 = vadd.f32 %v6157, %v6169
        %v6171 = vpop.f32.mrf.mxu0
        %6172 = vdwg.mxu0
        %6173 = vmatpush.bf16.msra.mxu0 %v5974
        %6174 = vmatpush.bf16.msra.mxu0 %v5971
        %6175 = vmatpush.bf16.msra.mxu0 %v5968
        %6176 = vmatpush.bf16.msra.mxu0 %v5965
        %6177 = vmatpush.bf16.msra.mxu0 %v5962
        %6178 = vmatpush.bf16.msra.mxu0 %v5959
        %6179 = vmatpush.bf16.msra.mxu0 %v5956
        %6180 = vmatpush.bf16.msra.mxu0 %v5953
        %6181 = vmatmul.bf16.gmra.mxu0 %v3188
        %v6182 = vpop.f32.mrf.mxu0
        %v6183 = vadd.f32 %v5707, %v6182
        %v6184 = vpop.f32.mrf.mxu0
        %6185 = vdwg.mxu0
        %6186 = vmatpush.bf16.msra.mxu0 %v5998
        %6187 = vmatpush.bf16.msra.mxu0 %v5995
        %6188 = vmatpush.bf16.msra.mxu0 %v5992
        %6189 = vmatpush.bf16.msra.mxu0 %v5989
        %6190 = vmatpush.bf16.msra.mxu0 %v5986
        %6191 = vmatpush.bf16.msra.mxu0 %v5983
        %6192 = vmatpush.bf16.msra.mxu0 %v5980
        %6193 = vmatpush.bf16.msra.mxu0 %v5977
        %6194 = vmatmul.bf16.gmra.mxu0 %v3189
        %v6195 = vpop.f32.mrf.mxu0
        %v6196 = vadd.f32 %v6183, %v6195
        %v6197 = vpop.f32.mrf.mxu0
        %6198 = vdwg.mxu0
        %6199 = vmatpush.bf16.msra.mxu0 %v6022
        %6200 = vmatpush.bf16.msra.mxu0 %v6019
        %6201 = vmatpush.bf16.msra.mxu0 %v6016
        %6202 = vmatpush.bf16.msra.mxu0 %v6013
        %6203 = vmatpush.bf16.msra.mxu0 %v6010
        %6204 = vmatpush.bf16.msra.mxu0 %v6007
        %6205 = vmatpush.bf16.msra.mxu0 %v6004
        %6206 = vmatpush.bf16.msra.mxu0 %v6001
        %6207 = vmatmul.bf16.gmra.mxu0 %v3190
        %v6208 = vpop.f32.mrf.mxu0
        %v6209 = vadd.f32 %v6196, %v6208
        %v6210 = vpop.f32.mrf.mxu0
        %6211 = vdwg.mxu0
        %v6212 = vmax.f32 %v6131, 0.0
        %v6213 = vmax.f32 %v6170, 0.0
        %v6214 = vmax.f32 %v6209, 0.0
        %v6215 = vpack.c.bf16 %v6212, %v6212
        %v6216 = vpack.c.bf16 %v6213, %v6213
        %v6217 = vpack.c.bf16 %v6214, %v6214
        %v6218 = vld [vmem:[%s10 + $0x480] sm:$0xff]
        %v6219 = vld [vmem:[%s10 + $0x488] sm:$0xf]
        %v6220 = vld [vmem:[%s10 + $0x48c] sm:$0xff]
        %v6221 = vld [vmem:[%s10 + $0x494] sm:$0xf]
        %v6222 = vld [vmem:[%s10 + $0x498] sm:$0xff]
        %v6223 = vld [vmem:[%s10 + $0x4a0] sm:$0xf]
        %v6224 = vld [vmem:[%s10 + $0x4a4] sm:$0xff]
        %v6225 = vld [vmem:[%s10 + $0x4ac] sm:$0xf]
        %v6226 = vld [vmem:[%s10 + $0x4b0] sm:$0xff]
        %v6227 = vld [vmem:[%s10 + $0x4b8] sm:$0xf]
        %v6228 = vld [vmem:[%s10 + $0x4bc] sm:$0xff]
        %v6229 = vld [vmem:[%s10 + $0x4c4] sm:$0xf]
        %v6230 = vld [vmem:[%s10 + $0x4c8] sm:$0xff]
        %v6231 = vld [vmem:[%s10 + $0x4d0] sm:$0xf]
        %v6232 = vld [vmem:[%s10 + $0x4d4] sm:$0xff]
        %v6233 = vld [vmem:[%s10 + $0x4dc] sm:$0xf]
        %v6234 = vld [vmem:[%s10 + $0x4e0] sm:$0xff]
        %v6235 = vld [vmem:[%s10 + $0x4e8] sm:$0xf]
        %v6236 = vld [vmem:[%s10 + $0x4ec] sm:$0xff]
        %v6237 = vld [vmem:[%s10 + $0x4f4] sm:$0xf]
        %v6238 = vld [vmem:[%s10 + $0x4f8] sm:$0xff]
        %v6239 = vld [vmem:[%s10 + $0x500] sm:$0xf]
        %v6240 = vld [vmem:[%s10 + $0x504] sm:$0xff]
        %v6241 = vld [vmem:[%s10 + $0x50c] sm:$0xf]
        %v6242 = vld [vmem:[%s10 + $0x510] sm:$0xff]
        %v6243 = vld [vmem:[%s10 + $0x518] sm:$0xf]
        %v6244 = vld [vmem:[%s10 + $0x51c] sm:$0xff]
        %v6245 = vld [vmem:[%s10 + $0x524] sm:$0xf]
        %v6246 = vld [vmem:[%s10 + $0x528] sm:$0xff]
        %v6247 = vld [vmem:[%s10 + $0x530] sm:$0xf]
        %v6248 = vld [vmem:[%s10 + $0x534] sm:$0xff]
        %v6249 = vld [vmem:[%s10 + $0x53c] sm:$0xf]
        %v6250 = vld [vmem:[%s10 + $0x540] sm:$0xff]
        %v6251 = vld [vmem:[%s10 + $0x548] sm:$0xf]
        %v6252 = vld [vmem:[%s10 + $0x54c] sm:$0xff]
        %v6253 = vld [vmem:[%s10 + $0x554] sm:$0xf]
        %v6254 = vld [vmem:[%s10 + $0x558] sm:$0xff]
        %v6255 = vld [vmem:[%s10 + $0x560] sm:$0xf]
        %v6256 = vld [vmem:[%s10 + $0x564] sm:$0xff]
        %v6257 = vld [vmem:[%s10 + $0x56c] sm:$0xf]
        %v6258 = vld [vmem:[%s10 + $0x570] sm:$0xff]
        %v6259 = vld [vmem:[%s10 + $0x578] sm:$0xf]
        %v6260 = vld [vmem:[%s10 + $0x57c] sm:$0xff]
        %v6261 = vld [vmem:[%s10 + $0x584] sm:$0xf]
        %v6262 = vld [vmem:[%s10 + $0x588] sm:$0xff]
        %v6263 = vld [vmem:[%s10 + $0x590] sm:$0xf]
        %v6264 = vld [vmem:[%s10 + $0x594] sm:$0xff]
        %v6265 = vld [vmem:[%s10 + $0x59c] sm:$0xf]
        %v6266 = vld [vmem:[%s10 + $0x5a0] sm:$0xff]
        %v6267 = vld [vmem:[%s10 + $0x5a8] sm:$0xf]
        %v6268 = vld [vmem:[%s10 + $0x5ac] sm:$0xff]
        %v6269 = vld [vmem:[%s10 + $0x5b4] sm:$0xf]
        %v6270 = vld [vmem:[%s10 + $0x5b8] sm:$0xff]
        %v6271 = vld [vmem:[%s10 + $0x5c0] sm:$0xf]
        %v6272 = vld [vmem:[%s10 + $0x5c4] sm:$0xff]
        %v6273 = vld [vmem:[%s10 + $0x5cc] sm:$0xf]
        %v6274 = vld [vmem:[%s10 + $0x5d0] sm:$0xff]
        %v6275 = vld [vmem:[%s10 + $0x5d8] sm:$0xf]
        %v6276 = vld [vmem:[%s10 + $0x5dc] sm:$0xff]
        %v6277 = vld [vmem:[%s10 + $0x5e4] sm:$0xf]
        %v6278 = vld [vmem:[%s10 + $0x5e8] sm:$0xff]
        %v6279 = vld [vmem:[%s10 + $0x5f0] sm:$0xf]
        %v6280 = vld [vmem:[%s10 + $0x5f4] sm:$0xff]
        %v6281 = vld [vmem:[%s10 + $0x5fc] sm:$0xf]
        %v6282 = vld [vmem:[%s10 + $0x600] sm:$0xff]
        %v6283 = vld [vmem:[%s10 + $0x608] sm:$0xf]
        %v6284 = vld [vmem:[%s10 + $0x60c] sm:$0xff]
        %v6285 = vld [vmem:[%s10 + $0x614] sm:$0xf]
        %v6286 = vld [vmem:[%s10 + $0x618] sm:$0xff]
        %v6287 = vld [vmem:[%s10 + $0x620] sm:$0xf]
        %v6288 = vld [vmem:[%s10 + $0x624] sm:$0xff]
        %v6289 = vld [vmem:[%s10 + $0x62c] sm:$0xf]
        %v6290 = vld [vmem:[%s10 + $0x630] sm:$0xff]
        %v6291 = vld [vmem:[%s10 + $0x638] sm:$0xf]
        %v6292 = vld [vmem:[%s10 + $0x63c] sm:$0xff]
        %v6293 = vld [vmem:[%s10 + $0x644] sm:$0xf]
        %v6294 = vld [vmem:[%s10 + $0x648] sm:$0xff]
        %v6295 = vld [vmem:[%s10 + $0x650] sm:$0xf]
        %v6296 = vld [vmem:[%s10 + $0x654] sm:$0xff]
        %v6297 = vld [vmem:[%s10 + $0x65c] sm:$0xf]
        %v6298 = vld [vmem:[%s10 + $0x660] sm:$0xff]
        %v6299 = vld [vmem:[%s10 + $0x668] sm:$0xf]
        %v6300 = vld [vmem:[%s10 + $0x66c] sm:$0xff]
        %v6301 = vld [vmem:[%s10 + $0x674] sm:$0xf]
        %v6302 = vld [vmem:[%s10 + $0x678] sm:$0xff]
        %v6303 = vld [vmem:[%s10 + $0x680] sm:$0xf]
        %v6304 = vld [vmem:[%s10 + $0x684] sm:$0xff]
        %v6305 = vld [vmem:[%s10 + $0x68c] sm:$0xf]
        %v6306 = vld [vmem:[%s10 + $0x690] sm:$0xff]
        %v6307 = vld [vmem:[%s10 + $0x698] sm:$0xf]
        %v6308 = vld [vmem:[%s10 + $0x69c] sm:$0xff]
        %v6309 = vld [vmem:[%s10 + $0x6a4] sm:$0xf]
        %v6310 = vld [vmem:[%s10 + $0x6a8] sm:$0xff]
        %v6311 = vld [vmem:[%s10 + $0x6b0] sm:$0xf]
        %v6312 = vld [vmem:[%s10 + $0x6b4] sm:$0xff]
        %v6313 = vld [vmem:[%s10 + $0x6bc] sm:$0xf]
        %v6410 = vunpack.c.l.b16 %v6218
        %v6411 = vunpack.c.h.b16 %v6218
        %v6412 = vunpack.c.l.b16 %v6219
        %v6413 = vunpack.c.l.b16 %v6220
        %v6414 = vunpack.c.h.b16 %v6220
        %v6415 = vunpack.c.l.b16 %v6221
        %v6416 = vunpack.c.l.b16 %v6222
        %v6417 = vunpack.c.h.b16 %v6222
        %v6418 = vunpack.c.l.b16 %v6223
        %v6419 = vunpack.c.l.b16 %v6224
        %v6420 = vunpack.c.h.b16 %v6224
        %v6421 = vunpack.c.l.b16 %v6225
        %v6422 = vunpack.c.l.b16 %v6226
        %v6423 = vunpack.c.h.b16 %v6226
        %v6424 = vunpack.c.l.b16 %v6227
        %v6425 = vunpack.c.l.b16 %v6228
        %v6426 = vunpack.c.h.b16 %v6228
        %v6427 = vunpack.c.l.b16 %v6229
        %v6428 = vunpack.c.l.b16 %v6230
        %v6429 = vunpack.c.h.b16 %v6230
        %v6430 = vunpack.c.l.b16 %v6231
        %v6431 = vunpack.c.l.b16 %v6232
        %v6432 = vunpack.c.h.b16 %v6232
        %v6433 = vunpack.c.l.b16 %v6233
        %v6434 = vunpack.c.l.b16 %v6234
        %v6435 = vunpack.c.h.b16 %v6234
        %v6436 = vunpack.c.l.b16 %v6235
        %v6437 = vunpack.c.l.b16 %v6236
        %v6438 = vunpack.c.h.b16 %v6236
        %v6439 = vunpack.c.l.b16 %v6237
        %v6440 = vunpack.c.l.b16 %v6238
        %v6441 = vunpack.c.h.b16 %v6238
        %v6442 = vunpack.c.l.b16 %v6239
        %v6443 = vunpack.c.l.b16 %v6240
        %v6444 = vunpack.c.h.b16 %v6240
        %v6445 = vunpack.c.l.b16 %v6241
        %v6446 = vunpack.c.l.b16 %v6242
        %v6447 = vunpack.c.h.b16 %v6242
        %v6448 = vunpack.c.l.b16 %v6243
        %v6449 = vunpack.c.l.b16 %v6244
        %v6450 = vunpack.c.h.b16 %v6244
        %v6451 = vunpack.c.l.b16 %v6245
        %v6452 = vunpack.c.l.b16 %v6246
        %v6453 = vunpack.c.h.b16 %v6246
        %v6454 = vunpack.c.l.b16 %v6247
        %v6455 = vunpack.c.l.b16 %v6248
        %v6456 = vunpack.c.h.b16 %v6248
        %v6457 = vunpack.c.l.b16 %v6249
        %v6458 = vunpack.c.l.b16 %v6250
        %v6459 = vunpack.c.h.b16 %v6250
        %v6460 = vunpack.c.l.b16 %v6251
        %v6461 = vunpack.c.l.b16 %v6252
        %v6462 = vunpack.c.h.b16 %v6252
        %v6463 = vunpack.c.l.b16 %v6253
        %v6464 = vunpack.c.l.b16 %v6254
        %v6465 = vunpack.c.h.b16 %v6254
        %v6466 = vunpack.c.l.b16 %v6255
        %v6467 = vunpack.c.l.b16 %v6256
        %v6468 = vunpack.c.h.b16 %v6256
        %v6469 = vunpack.c.l.b16 %v6257
        %v6470 = vunpack.c.l.b16 %v6258
        %v6471 = vunpack.c.h.b16 %v6258
        %v6472 = vunpack.c.l.b16 %v6259
        %v6473 = vunpack.c.l.b16 %v6260
        %v6474 = vunpack.c.h.b16 %v6260
        %v6475 = vunpack.c.l.b16 %v6261
        %v6476 = vunpack.c.l.b16 %v6262
        %v6477 = vunpack.c.h.b16 %v6262
        %v6478 = vunpack.c.l.b16 %v6263
        %v6479 = vunpack.c.l.b16 %v6264
        %v6480 = vunpack.c.h.b16 %v6264
        %v6481 = vunpack.c.l.b16 %v6265
        %v6482 = vunpack.c.l.b16 %v6266
        %v6483 = vunpack.c.h.b16 %v6266
        %v6484 = vunpack.c.l.b16 %v6267
        %v6485 = vunpack.c.l.b16 %v6268
        %v6486 = vunpack.c.h.b16 %v6268
        %v6487 = vunpack.c.l.b16 %v6269
        %v6488 = vunpack.c.l.b16 %v6270
        %v6489 = vunpack.c.h.b16 %v6270
        %v6490 = vunpack.c.l.b16 %v6271
        %v6491 = vunpack.c.l.b16 %v6272
        %v6492 = vunpack.c.h.b16 %v6272
        %v6493 = vunpack.c.l.b16 %v6273
        %v6494 = vunpack.c.l.b16 %v6274
        %v6495 = vunpack.c.h.b16 %v6274
        %v6496 = vunpack.c.l.b16 %v6275
        %v6497 = vunpack.c.l.b16 %v6276
        %v6498 = vunpack.c.h.b16 %v6276
        %v6499 = vunpack.c.l.b16 %v6277
        %v6500 = vunpack.c.l.b16 %v6278
        %v6501 = vunpack.c.h.b16 %v6278
        %v6502 = vunpack.c.l.b16 %v6279
        %v6503 = vunpack.c.l.b16 %v6280
        %v6504 = vunpack.c.h.b16 %v6280
        %v6505 = vunpack.c.l.b16 %v6281
        %v6506 = vunpack.c.l.b16 %v6282
        %v6507 = vunpack.c.h.b16 %v6282
        %v6508 = vunpack.c.l.b16 %v6283
        %v6509 = vunpack.c.l.b16 %v6284
        %v6510 = vunpack.c.h.b16 %v6284
        %v6511 = vunpack.c.l.b16 %v6285
        %v6512 = vunpack.c.l.b16 %v6286
        %v6513 = vunpack.c.h.b16 %v6286
        %v6514 = vunpack.c.l.b16 %v6287
        %v6515 = vunpack.c.l.b16 %v6288
        %v6516 = vunpack.c.h.b16 %v6288
        %v6517 = vunpack.c.l.b16 %v6289
        %v6518 = vunpack.c.l.b16 %v6290
        %v6519 = vunpack.c.h.b16 %v6290
        %v6520 = vunpack.c.l.b16 %v6291
        %v6521 = vunpack.c.l.b16 %v6292
        %v6522 = vunpack.c.h.b16 %v6292
        %v6523 = vunpack.c.l.b16 %v6293
        %v6524 = vunpack.c.l.b16 %v6294
        %v6525 = vunpack.c.h.b16 %v6294
        %v6526 = vunpack.c.l.b16 %v6295
        %v6527 = vunpack.c.l.b16 %v6296
        %v6528 = vunpack.c.h.b16 %v6296
        %v6529 = vunpack.c.l.b16 %v6297
        %v6530 = vunpack.c.l.b16 %v6298
        %v6531 = vunpack.c.h.b16 %v6298
        %v6532 = vunpack.c.l.b16 %v6299
        %v6533 = vunpack.c.l.b16 %v6300
        %v6534 = vunpack.c.h.b16 %v6300
        %v6535 = vunpack.c.l.b16 %v6301
        %v6536 = vunpack.c.l.b16 %v6302
        %v6537 = vunpack.c.h.b16 %v6302
        %v6538 = vunpack.c.l.b16 %v6303
        %v6539 = vunpack.c.l.b16 %v6304
        %v6540 = vunpack.c.h.b16 %v6304
        %v6541 = vunpack.c.l.b16 %v6305
        %v6542 = vunpack.c.l.b16 %v6306
        %v6543 = vunpack.c.h.b16 %v6306
        %v6544 = vunpack.c.l.b16 %v6307
        %v6545 = vunpack.c.l.b16 %v6308
        %v6546 = vunpack.c.h.b16 %v6308
        %v6547 = vunpack.c.l.b16 %v6309
        %v6548 = vunpack.c.l.b16 %v6310
        %v6549 = vunpack.c.h.b16 %v6310
        %v6550 = vunpack.c.l.b16 %v6311
        %v6551 = vunpack.c.l.b16 %v6312
        %v6552 = vunpack.c.h.b16 %v6312
        %v6553 = vunpack.c.l.b16 %v6313
        %v6554 = vpack.c.b16 %v6413, %v6410
        %v6555 = vpack.c.b16 %v6414, %v6411
        %v6556 = vpack.c.b16 %v6415, %v6412
        %v6557 = vpack.c.b16 %v6419, %v6416
        %v6558 = vpack.c.b16 %v6420, %v6417
        %v6559 = vpack.c.b16 %v6421, %v6418
        %v6560 = vpack.c.b16 %v6425, %v6422
        %v6561 = vpack.c.b16 %v6426, %v6423
        %v6562 = vpack.c.b16 %v6427, %v6424
        %v6563 = vpack.c.b16 %v6431, %v6428
        %v6564 = vpack.c.b16 %v6432, %v6429
        %v6565 = vpack.c.b16 %v6433, %v6430
        %v6566 = vpack.c.b16 %v6437, %v6434
        %v6567 = vpack.c.b16 %v6438, %v6435
        %v6568 = vpack.c.b16 %v6439, %v6436
        %v6569 = vpack.c.b16 %v6443, %v6440
        %v6570 = vpack.c.b16 %v6444, %v6441
        %v6571 = vpack.c.b16 %v6445, %v6442
        %v6572 = vpack.c.b16 %v6449, %v6446
        %v6573 = vpack.c.b16 %v6450, %v6447
        %v6574 = vpack.c.b16 %v6451, %v6448
        %v6575 = vpack.c.b16 %v6455, %v6452
        %v6576 = vpack.c.b16 %v6456, %v6453
        %v6577 = vpack.c.b16 %v6457, %v6454
        %v6578 = vpack.c.b16 %v6461, %v6458
        %v6579 = vpack.c.b16 %v6462, %v6459
        %v6580 = vpack.c.b16 %v6463, %v6460
        %v6581 = vpack.c.b16 %v6467, %v6464
        %v6582 = vpack.c.b16 %v6468, %v6465
        %v6583 = vpack.c.b16 %v6469, %v6466
        %v6584 = vpack.c.b16 %v6473, %v6470
        %v6585 = vpack.c.b16 %v6474, %v6471
        %v6586 = vpack.c.b16 %v6475, %v6472
        %v6587 = vpack.c.b16 %v6479, %v6476
        %v6588 = vpack.c.b16 %v6480, %v6477
        %v6589 = vpack.c.b16 %v6481, %v6478
        %v6590 = vpack.c.b16 %v6485, %v6482
        %v6591 = vpack.c.b16 %v6486, %v6483
        %v6592 = vpack.c.b16 %v6487, %v6484
        %v6593 = vpack.c.b16 %v6491, %v6488
        %v6594 = vpack.c.b16 %v6492, %v6489
        %v6595 = vpack.c.b16 %v6493, %v6490
        %v6596 = vpack.c.b16 %v6497, %v6494
        %v6597 = vpack.c.b16 %v6498, %v6495
        %v6598 = vpack.c.b16 %v6499, %v6496
        %v6599 = vpack.c.b16 %v6503, %v6500
        %v6600 = vpack.c.b16 %v6504, %v6501
        %v6601 = vpack.c.b16 %v6505, %v6502
        %v6602 = vpack.c.b16 %v6509, %v6506
        %v6603 = vpack.c.b16 %v6510, %v6507
        %v6604 = vpack.c.b16 %v6511, %v6508
        %v6605 = vpack.c.b16 %v6515, %v6512
        %v6606 = vpack.c.b16 %v6516, %v6513
        %v6607 = vpack.c.b16 %v6517, %v6514
        %v6608 = vpack.c.b16 %v6521, %v6518
        %v6609 = vpack.c.b16 %v6522, %v6519
        %v6610 = vpack.c.b16 %v6523, %v6520
        %v6611 = vpack.c.b16 %v6527, %v6524
        %v6612 = vpack.c.b16 %v6528, %v6525
        %v6613 = vpack.c.b16 %v6529, %v6526
        %v6614 = vpack.c.b16 %v6533, %v6530
        %v6615 = vpack.c.b16 %v6534, %v6531
        %v6616 = vpack.c.b16 %v6535, %v6532
        %v6617 = vpack.c.b16 %v6539, %v6536
        %v6618 = vpack.c.b16 %v6540, %v6537
        %v6619 = vpack.c.b16 %v6541, %v6538
        %v6620 = vpack.c.b16 %v6545, %v6542
        %v6621 = vpack.c.b16 %v6546, %v6543
        %v6622 = vpack.c.b16 %v6547, %v6544
        %v6623 = vpack.c.b16 %v6551, %v6548
        %v6624 = vpack.c.b16 %v6552, %v6549
        %v6625 = vpack.c.b16 %v6553, %v6550
        %6698 = vmatpush.bf16.msra.mxu0 %v6575
        %6699 = vmatpush.bf16.msra.mxu0 %v6572
        %6700 = vmatpush.bf16.msra.mxu0 %v6569
        %6701 = vmatpush.bf16.msra.mxu0 %v6566
        %6702 = vmatpush.bf16.msra.mxu0 %v6563
        %6703 = vmatpush.bf16.msra.mxu0 %v6560
        %6704 = vmatpush.bf16.msra.mxu0 %v6557
        %6705 = vmatpush.bf16.msra.mxu0 %v6554
        %6706 = vmatmul.bf16.gmra.mxu0 %v6215
        %v6707 = vpop.f32.mrf.mxu0
        %v6708 = vadd.f32 0.0, %v6707
        %v6709 = vpop.f32.mrf.mxu0
        %6710 = vdwg.mxu0
        %6711 = vmatpush.bf16.msra.mxu0 %v6599
        %6712 = vmatpush.bf16.msra.mxu0 %v6596
        %6713 = vmatpush.bf16.msra.mxu0 %v6593
        %6714 = vmatpush.bf16.msra.mxu0 %v6590
        %6715 = vmatpush.bf16.msra.mxu0 %v6587
        %6716 = vmatpush.bf16.msra.mxu0 %v6584
        %6717 = vmatpush.bf16.msra.mxu0 %v6581
        %6718 = vmatpush.bf16.msra.mxu0 %v6578
        %6719 = vmatmul.bf16.gmra.mxu0 %v6216
        %v6720 = vpop.f32.mrf.mxu0
        %v6721 = vadd.f32 %v6708, %v6720
        %v6722 = vpop.f32.mrf.mxu0
        %6723 = vdwg.mxu0
        %6724 = vmatpush.bf16.msra.mxu0 %v6623
        %6725 = vmatpush.bf16.msra.mxu0 %v6620
        %6726 = vmatpush.bf16.msra.mxu0 %v6617
        %6727 = vmatpush.bf16.msra.mxu0 %v6614
        %6728 = vmatpush.bf16.msra.mxu0 %v6611
        %6729 = vmatpush.bf16.msra.mxu0 %v6608
        %6730 = vmatpush.bf16.msra.mxu0 %v6605
        %6731 = vmatpush.bf16.msra.mxu0 %v6602
        %6732 = vmatmul.bf16.gmra.mxu0 %v6217
        %v6733 = vpop.f32.mrf.mxu0
        %v6734 = vadd.f32 %v6721, %v6733
        %v6735 = vpop.f32.mrf.mxu0
        %6736 = vdwg.mxu0
        %6737 = vmatpush.bf16.msra.mxu0 %v6576
        %6738 = vmatpush.bf16.msra.mxu0 %v6573
        %6739 = vmatpush.bf16.msra.mxu0 %v6570
        %6740 = vmatpush.bf16.msra.mxu0 %v6567
        %6741 = vmatpush.bf16.msra.mxu0 %v6564
        %6742 = vmatpush.bf16.msra.mxu0 %v6561
        %6743 = vmatpush.bf16.msra.mxu0 %v6558
        %6744 = vmatpush.bf16.msra.mxu0 %v6555
        %6745 = vmatmul.bf16.gmra.mxu0 %v6215
        %v6746 = vpop.f32.mrf.mxu0
        %v6747 = vadd.f32 0.0, %v6746
        %v6748 = vpop.f32.mrf.mxu0
        %6749 = vdwg.mxu0
        %6750 = vmatpush.bf16.msra.mxu0 %v6600
        %6751 = vmatpush.bf16.msra.mxu0 %v6597
        %6752 = vmatpush.bf16.msra.mxu0 %v6594
        %6753 = vmatpush.bf16.msra.mxu0 %v6591
        %6754 = vmatpush.bf16.msra.mxu0 %v6588
        %6755 = vmatpush.bf16.msra.mxu0 %v6585
        %6756 = vmatpush.bf16.msra.mxu0 %v6582
        %6757 = vmatpush.bf16.msra.mxu0 %v6579
        %6758 = vmatmul.bf16.gmra.mxu0 %v6216
        %v6759 = vpop.f32.mrf.mxu0
        %v6760 = vadd.f32 %v6747, %v6759
        %v6761 = vpop.f32.mrf.mxu0
        %6762 = vdwg.mxu0
        %6763 = vmatpush.bf16.msra.mxu0 %v6624
        %6764 = vmatpush.bf16.msra.mxu0 %v6621
        %6765 = vmatpush.bf16.msra.mxu0 %v6618
        %6766 = vmatpush.bf16.msra.mxu0 %v6615
        %6767 = vmatpush.bf16.msra.mxu0 %v6612
        %6768 = vmatpush.bf16.msra.mxu0 %v6609
        %6769 = vmatpush.bf16.msra.mxu0 %v6606
        %6770 = vmatpush.bf16.msra.mxu0 %v6603
        %6771 = vmatmul.bf16.gmra.mxu0 %v6217
        %v6772 = vpop.f32.mrf.mxu0
        %v6773 = vadd.f32 %v6760, %v6772
        %v6774 = vpop.f32.mrf.mxu0
        %6775 = vdwg.mxu0
        %6776 = vmatpush.bf16.msra.mxu0 %v6577
        %6777 = vmatpush.bf16.msra.mxu0 %v6574
        %6778 = vmatpush.bf16.msra.mxu0 %v6571
        %6779 = vmatpush.bf16.msra.mxu0 %v6568
        %6780 = vmatpush.bf16.msra.mxu0 %v6565
        %6781 = vmatpush.bf16.msra.mxu0 %v6562
        %6782 = vmatpush.bf16.msra.mxu0 %v6559
        %6783 = vmatpush.bf16.msra.mxu0 %v6556
        %6784 = vmatmul.bf16.gmra.mxu0 %v6215
        %v6785 = vpop.f32.mrf.mxu0
        %v6786 = vadd.f32 0.0, %v6785
        %v6787 = vpop.f32.mrf.mxu0
        %6788 = vdwg.mxu0
        %6789 = vmatpush.bf16.msra.mxu0 %v6601
        %6790 = vmatpush.bf16.msra.mxu0 %v6598
        %6791 = vmatpush.bf16.msra.mxu0 %v6595
        %6792 = vmatpush.bf16.msra.mxu0 %v6592
        %6793 = vmatpush.bf16.msra.mxu0 %v6589
        %6794 = vmatpush.bf16.msra.mxu0 %v6586
        %6795 = vmatpush.bf16.msra.mxu0 %v6583
        %6796 = vmatpush.bf16.msra.mxu0 %v6580
        %6797 = vmatmul.bf16.gmra.mxu0 %v6216
        %v6798 = vpop.f32.mrf.mxu0
        %v6799 = vadd.f32 %v6786, %v6798
        %v6800 = vpop.f32.mrf.mxu0
        %6801 = vdwg.mxu0
        %6802 = vmatpush.bf16.msra.mxu0 %v6625
        %6803 = vmatpush.bf16.msra.mxu0 %v6622
        %6804 = vmatpush.bf16.msra.mxu0 %v6619
        %6805 = vmatpush.bf16.msra.mxu0 %v6616
        %6806 = vmatpush.bf16.msra.mxu0 %v6613
        %6807 = vmatpush.bf16.msra.mxu0 %v6610
        %6808 = vmatpush.bf16.msra.mxu0 %v6607
        %6809 = vmatpush.bf16.msra.mxu0 %v6604
        %6810 = vmatmul.bf16.gmra.mxu0 %v6217
        %v6811 = vpop.f32.mrf.mxu0
        %v6812 = vadd.f32 %v6799, %v6811
        %v6813 = vpop.f32.mrf.mxu0
        %6814 = vdwg.mxu0
        %v6815 = vadd.f32 %v5526, %v6734
        %v6816 = vadd.f32 %v5565, %v6773
        %v6817 = vadd.f32 %v5604, %v6812
        %v6818 = vld [vmem:[%s8 + $0x24] sm:$0xff]
        %v6819 = vld [vmem:[%s8 + $0x2c] sm:$0xf]
        %v6820 = vld [vmem:[%s8 + $0x54] sm:$0xff]
        %v6821 = vld [vmem:[%s8 + $0x5c] sm:$0xf]
        %v6822 = vld [vmem:[%s8 + $0x84] sm:$0xff]
        %v6823 = vld [vmem:[%s8 + $0x8c] sm:$0xf]
        %v6824 = vld [vmem:[%s8 + $0xb4] sm:$0xff]
        %v6825 = vld [vmem:[%s8 + $0xbc] sm:$0xf]
        %v6826 = vld [vmem:[%s8 + $0xe4] sm:$0xff]
        %v6827 = vld [vmem:[%s8 + $0xec] sm:$0xf]
        %v6828 = vld [vmem:[%s8 + $0x114] sm:$0xff]
        %v6829 = vld [vmem:[%s8 + $0x11c] sm:$0xf]
        %v6830 = vld [vmem:[%s8 + $0x144] sm:$0xff]
        %v6831 = vld [vmem:[%s8 + $0x14c] sm:$0xf]
        %v6832 = vld [vmem:[%s8 + $0x174] sm:$0xff]
        %v6833 = vld [vmem:[%s8 + $0x17c] sm:$0xf]
        %v6834 = vld [vmem:[%s8 + $0x1a4] sm:$0xff]
        %v6835 = vld [vmem:[%s8 + $0x1ac] sm:$0xf]
        %v6836 = vld [vmem:[%s8 + $0x1d4] sm:$0xff]
        %v6837 = vld [vmem:[%s8 + $0x1dc] sm:$0xf]
        %v6838 = vld [vmem:[%s8 + $0x204] sm:$0xff]
        %v6839 = vld [vmem:[%s8 + $0x20c] sm:$0xf]
        %v6840 = vld [vmem:[%s8 + $0x234] sm:$0xff]
        %v6841 = vld [vmem:[%s8 + $0x23c] sm:$0xf]
        %v6842 = vld [vmem:[%s8 + $0x264] sm:$0xff]
        %v6843 = vld [vmem:[%s8 + $0x26c] sm:$0xf]
        %v6844 = vld [vmem:[%s8 + $0x294] sm:$0xff]
        %v6845 = vld [vmem:[%s8 + $0x29c] sm:$0xf]
        %v6846 = vld [vmem:[%s8 + $0x2c4] sm:$0xff]
        %v6847 = vld [vmem:[%s8 + $0x2cc] sm:$0xf]
        %v6848 = vld [vmem:[%s8 + $0x2f4] sm:$0xff]
        %v6849 = vld [vmem:[%s8 + $0x2fc] sm:$0xf]
        %v6850 = vld [vmem:[%s8 + $0x324] sm:$0xff]
        %v6851 = vld [vmem:[%s8 + $0x32c] sm:$0xf]
        %v6852 = vld [vmem:[%s8 + $0x354] sm:$0xff]
        %v6853 = vld [vmem:[%s8 + $0x35c] sm:$0xf]
        %v6854 = vld [vmem:[%s8 + $0x384] sm:$0xff]
        %v6855 = vld [vmem:[%s8 + $0x38c] sm:$0xf]
        %v6856 = vld [vmem:[%s8 + $0x3b4] sm:$0xff]
        %v6857 = vld [vmem:[%s8 + $0x3bc] sm:$0xf]
        %v6858 = vld [vmem:[%s8 + $0x3e4] sm:$0xff]
        %v6859 = vld [vmem:[%s8 + $0x3ec] sm:$0xf]
        %v6860 = vld [vmem:[%s8 + $0x414] sm:$0xff]
        %v6861 = vld [vmem:[%s8 + $0x41c] sm:$0xf]
        %v6862 = vld [vmem:[%s8 + $0x444] sm:$0xff]
        %v6863 = vld [vmem:[%s8 + $0x44c] sm:$0xf]
        %v6864 = vld [vmem:[%s8 + $0x474] sm:$0xff]
        %v6865 = vld [vmem:[%s8 + $0x47c] sm:$0xf]
        %v6866 = vld [vmem:[%s8 + $0x4a4] sm:$0xff]
        %v6867 = vld [vmem:[%s8 + $0x4ac] sm:$0xf]
        %v6868 = vld [vmem:[%s8 + $0x4d4] sm:$0xff]
        %v6869 = vld [vmem:[%s8 + $0x4dc] sm:$0xf]
        %v6870 = vld [vmem:[%s8 + $0x504] sm:$0xff]
        %v6871 = vld [vmem:[%s8 + $0x50c] sm:$0xf]
        %v6872 = vld [vmem:[%s8 + $0x534] sm:$0xff]
        %v6873 = vld [vmem:[%s8 + $0x53c] sm:$0xf]
        %v6874 = vld [vmem:[%s8 + $0x564] sm:$0xff]
        %v6875 = vld [vmem:[%s8 + $0x56c] sm:$0xf]
        %v6876 = vld [vmem:[%s8 + $0x594] sm:$0xff]
        %v6877 = vld [vmem:[%s8 + $0x59c] sm:$0xf]
        %v6878 = vld [vmem:[%s8 + $0x5c4] sm:$0xff]
        %v6879 = vld [vmem:[%s8 + $0x5cc] sm:$0xf]
        %v6880 = vld [vmem:[%s8 + $0x5f4] sm:$0xff]
        %v6881 = vld [vmem:[%s8 + $0x5fc] sm:$0xf]
        %v6882 = vld [vmem:[%s8 + $0x624] sm:$0xff]
        %v6883 = vld [vmem:[%s8 + $0x62c] sm:$0xf]
        %v6884 = vld [vmem:[%s8 + $0x654] sm:$0xff]
        %v6885 = vld [vmem:[%s8 + $0x65c] sm:$0xf]
        %v6886 = vld [vmem:[%s8 + $0x684] sm:$0xff]
        %v6887 = vld [vmem:[%s8 + $0x68c] sm:$0xf]
        %v6888 = vld [vmem:[%s8 + $0x6b4] sm:$0xff]
        %v6889 = vld [vmem:[%s8 + $0x6bc] sm:$0xf]
        %v6890 = vld [vmem:[%s8 + $0x6e4] sm:$0xff]
        %v6891 = vld [vmem:[%s8 + $0x6ec] sm:$0xf]
        %v6892 = vld [vmem:[%s8 + $0x714] sm:$0xff]
        %v6893 = vld [vmem:[%s8 + $0x71c] sm:$0xf]
        %v6894 = vld [vmem:[%s8 + $0x744] sm:$0xff]
        %v6895 = vld [vmem:[%s8 + $0x74c] sm:$0xf]
        %v6896 = vld [vmem:[%s8 + $0x774] sm:$0xff]
        %v6897 = vld [vmem:[%s8 + $0x77c] sm:$0xf]
        %v6898 = vld [vmem:[%s8 + $0x7a4] sm:$0xff]
        %v6899 = vld [vmem:[%s8 + $0x7ac] sm:$0xf]
        %v6900 = vld [vmem:[%s8 + $0x7d4] sm:$0xff]
        %v6901 = vld [vmem:[%s8 + $0x7dc] sm:$0xf]
        %v6902 = vld [vmem:[%s8 + $0x804] sm:$0xff]
        %v6903 = vld [vmem:[%s8 + $0x80c] sm:$0xf]
        %v6904 = vld [vmem:[%s8 + $0x834] sm:$0xff]
        %v6905 = vld [vmem:[%s8 + $0x83c] sm:$0xf]
        %v6906 = vld [vmem:[%s8 + $0x864] sm:$0xff]
        %v6907 = vld [vmem:[%s8 + $0x86c] sm:$0xf]
        %v6908 = vld [vmem:[%s8 + $0x894] sm:$0xff]
        %v6909 = vld [vmem:[%s8 + $0x89c] sm:$0xf]
        %v6910 = vld [vmem:[%s8 + $0x8c4] sm:$0xff]
        %v6911 = vld [vmem:[%s8 + $0x8cc] sm:$0xf]
        %v6912 = vld [vmem:[%s8 + $0x8f4] sm:$0xff]
        %v6913 = vld [vmem:[%s8 + $0x8fc] sm:$0xf]
        %v6914 = vld [vmem:[%s9 + $0x9] sm:$0x7]
        %v6916 = vperm.slane %v6914, 0
        %v6917 = vperm.slane %v6914, 1
        %v6918 = vperm.slane %v6914, 2
        %v7018 = vunpack.c.l.b16 %v6818
        %v7019 = vunpack.c.h.b16 %v6818
        %v7020 = vunpack.c.l.b16 %v6819
        %v7021 = vunpack.c.l.b16 %v6820
        %v7022 = vunpack.c.h.b16 %v6820
        %v7023 = vunpack.c.l.b16 %v6821
        %v7024 = vunpack.c.l.b16 %v6822
        %v7025 = vunpack.c.h.b16 %v6822
        %v7026 = vunpack.c.l.b16 %v6823
        %v7027 = vunpack.c.l.b16 %v6824
        %v7028 = vunpack.c.h.b16 %v6824
        %v7029 = vunpack.c.l.b16 %v6825
        %v7030 = vunpack.c.l.b16 %v6826
        %v7031 = vunpack.c.h.b16 %v6826
        %v7032 = vunpack.c.l.b16 %v6827
        %v7033 = vunpack.c.l.b16 %v6828
        %v7034 = vunpack.c.h.b16 %v6828
        %v7035 = vunpack.c.l.b16 %v6829
        %v7036 = vunpack.c.l.b16 %v6830
        %v7037 = vunpack.c.h.b16 %v6830
        %v7038 = vunpack.c.l.b16 %v6831
        %v7039 = vunpack.c.l.b16 %v6832
        %v7040 = vunpack.c.h.b16 %v6832
        %v7041 = vunpack.c.l.b16 %v6833
        %v7042 = vunpack.c.l.b16 %v6834
        %v7043 = vunpack.c.h.b16 %v6834
        %v7044 = vunpack.c.l.b16 %v6835
        %v7045 = vunpack.c.l.b16 %v6836
        %v7046 = vunpack.c.h.b16 %v6836
        %v7047 = vunpack.c.l.b16 %v6837
        %v7048 = vunpack.c.l.b16 %v6838
        %v7049 = vunpack.c.h.b16 %v6838
        %v7050 = vunpack.c.l.b16 %v6839
        %v7051 = vunpack.c.l.b16 %v6840
        %v7052 = vunpack.c.h.b16 %v6840
        %v7053 = vunpack.c.l.b16 %v6841
        %v7054 = vunpack.c.l.b16 %v6842
        %v7055 = vunpack.c.h.b16 %v6842
        %v7056 = vunpack.c.l.b16 %v6843
        %v7057 = vunpack.c.l.b16 %v6844
        %v7058 = vunpack.c.h.b16 %v6844
        %v7059 = vunpack.c.l.b16 %v6845
        %v7060 = vunpack.c.l.b16 %v6846
        %v7061 = vunpack.c.h.b16 %v6846
        %v7062 = vunpack.c.l.b16 %v6847
        %v7063 = vunpack.c.l.b16 %v6848
        %v7064 = vunpack.c.h.b16 %v6848
        %v7065 = vunpack.c.l.b16 %v6849
        %v7066 = vunpack.c.l.b16 %v6850
        %v7067 = vunpack.c.h.b16 %v6850
        %v7068 = vunpack.c.l.b16 %v6851
        %v7069 = vunpack.c.l.b16 %v6852
        %v7070 = vunpack.c.h.b16 %v6852
        %v7071 = vunpack.c.l.b16 %v6853
        %v7072 = vunpack.c.l.b16 %v6854
        %v7073 = vunpack.c.h.b16 %v6854
        %v7074 = vunpack.c.l.b16 %v6855
        %v7075 = vunpack.c.l.b16 %v6856
        %v7076 = vunpack.c.h.b16 %v6856
        %v7077 = vunpack.c.l.b16 %v6857
        %v7078 = vunpack.c.l.b16 %v6858
        %v7079 = vunpack.c.h.b16 %v6858
        %v7080 = vunpack.c.l.b16 %v6859
        %v7081 = vunpack.c.l.b16 %v6860
        %v7082 = vunpack.c.h.b16 %v6860
        %v7083 = vunpack.c.l.b16 %v6861
        %v7084 = vunpack.c.l.b16 %v6862
        %v7085 = vunpack.c.h.b16 %v6862
        %v7086 = vunpack.c.l.b16 %v6863
        %v7087 = vunpack.c.l.b16 %v6864
        %v7088 = vunpack.c.h.b16 %v6864
        %v7089 = vunpack.c.l.b16 %v6865
        %v7090 = vunpack.c.l.b16 %v6866
        %v7091 = vunpack.c.h.b16 %v6866
        %v7092 = vunpack.c.l.b16 %v6867
        %v7093 = vunpack.c.l.b16 %v6868
        %v7094 = vunpack.c.h.b16 %v6868
        %v7095 = vunpack.c.l.b16 %v6869
        %v7096 = vunpack.c.l.b16 %v6870
        %v7097 = vunpack.c.h.b16 %v6870
        %v7098 = vunpack.c.l.b16 %v6871
        %v7099 = vunpack.c.l.b16 %v6872
        %v7100 = vunpack.c.h.b16 %v6872
        %v7101 = vunpack.c.l.b16 %v6873
        %v7102 = vunpack.c.l.b16 %v6874
        %v7103 = vunpack.c.h.b16 %v6874
        %v7104 = vunpack.c.l.b16 %v6875
        %v7105 = vunpack.c.l.b16 %v6876
        %v7106 = vunpack.c.h.b16 %v6876
        %v7107 = vunpack.c.l.b16 %v6877
        %v7108 = vunpack.c.l.b16 %v6878
        %v7109 = vunpack.c.h.b16 %v6878
        %v7110 = vunpack.c.l.b16 %v6879
        %v7111 = vunpack.c.l.b16 %v6880
        %v7112 = vunpack.c.h.b16 %v6880
        %v7113 = vunpack.c.l.b16 %v6881
        %v7114 = vunpack.c.l.b16 %v6882
        %v7115 = vunpack.c.h.b16 %v6882
        %v7116 = vunpack.c.l.b16 %v6883
        %v7117 = vunpack.c.l.b16 %v6884
        %v7118 = vunpack.c.h.b16 %v6884
        %v7119 = vunpack.c.l.b16 %v6885
        %v7120 = vunpack.c.l.b16 %v6886
        %v7121 = vunpack.c.h.b16 %v6886
        %v7122 = vunpack.c.l.b16 %v6887
        %v7123 = vunpack.c.l.b16 %v6888
        %v7124 = vunpack.c.h.b16 %v6888
        %v7125 = vunpack.c.l.b16 %v6889
        %v7126 = vunpack.c.l.b16 %v6890
        %v7127 = vunpack.c.h.b16 %v6890
        %v7128 = vunpack.c.l.b16 %v6891
        %v7129 = vunpack.c.l.b16 %v6892
        %v7130 = vunpack.c.h.b16 %v6892
        %v7131 = vunpack.c.l.b16 %v6893
        %v7132 = vunpack.c.l.b16 %v6894
        %v7133 = vunpack.c.h.b16 %v6894
        %v7134 = vunpack.c.l.b16 %v6895
        %v7135 = vunpack.c.l.b16 %v6896
        %v7136 = vunpack.c.h.b16 %v6896
        %v7137 = vunpack.c.l.b16 %v6897
        %v7138 = vunpack.c.l.b16 %v6898
        %v7139 = vunpack.c.h.b16 %v6898
        %v7140 = vunpack.c.l.b16 %v6899
        %v7141 = vunpack.c.l.b16 %v6900
        %v7142 = vunpack.c.h.b16 %v6900
        %v7143 = vunpack.c.l.b16 %v6901
        %v7144 = vunpack.c.l.b16 %v6902
        %v7145 = vunpack.c.h.b16 %v6902
        %v7146 = vunpack.c.l.b16 %v6903
        %v7147 = vunpack.c.l.b16 %v6904
        %v7148 = vunpack.c.h.b16 %v6904
        %v7149 = vunpack.c.l.b16 %v6905
        %v7150 = vunpack.c.l.b16 %v6906
        %v7151 = vunpack.c.h.b16 %v6906
        %v7152 = vunpack.c.l.b16 %v6907
        %v7153 = vunpack.c.l.b16 %v6908
        %v7154 = vunpack.c.h.b16 %v6908
        %v7155 = vunpack.c.l.b16 %v6909
        %v7156 = vunpack.c.l.b16 %v6910
        %v7157 = vunpack.c.h.b16 %v6910
        %v7158 = vunpack.c.l.b16 %v6911
        %v7159 = vunpack.c.l.b16 %v6912
        %v7160 = vunpack.c.h.b16 %v6912
        %v7161 = vunpack.c.l.b16 %v6913
        %v7162 = vpack.c.b16 %v7021, %v7018
        %v7163 = vpack.c.b16 %v7022, %v7019
        %v7164 = vpack.c.b16 %v7023, %v7020
        %v7165 = vpack.c.b16 %v7027, %v7024
        %v7166 = vpack.c.b16 %v7028, %v7025
        %v7167 = vpack.c.b16 %v7029, %v7026
        %v7168 = vpack.c.b16 %v7033, %v7030
        %v7169 = vpack.c.b16 %v7034, %v7031
        %v7170 = vpack.c.b16 %v7035, %v7032
        %v7171 = vpack.c.b16 %v7039, %v7036
        %v7172 = vpack.c.b16 %v7040, %v7037
        %v7173 = vpack.c.b16 %v7041, %v7038
        %v7174 = vpack.c.b16 %v7045, %v7042
        %v7175 = vpack.c.b16 %v7046, %v7043
        %v7176 = vpack.c.b16 %v7047, %v7044
        %v7177 = vpack.c.b16 %v7051, %v7048
        %v7178 = vpack.c.b16 %v7052, %v7049
        %v7179 = vpack.c.b16 %v7053, %v7050
        %v7180 = vpack.c.b16 %v7057, %v7054
        %v7181 = vpack.c.b16 %v7058, %v7055
        %v7182 = vpack.c.b16 %v7059, %v7056
        %v7183 = vpack.c.b16 %v7063, %v7060
        %v7184 = vpack.c.b16 %v7064, %v7061
        %v7185 = vpack.c.b16 %v7065, %v7062
        %v7186 = vpack.c.b16 %v7069, %v7066
        %v7187 = vpack.c.b16 %v7070, %v7067
        %v7188 = vpack.c.b16 %v7071, %v7068
        %v7189 = vpack.c.b16 %v7075, %v7072
        %v7190 = vpack.c.b16 %v7076, %v7073
        %v7191 = vpack.c.b16 %v7077, %v7074
        %v7192 = vpack.c.b16 %v7081, %v7078
        %v7193 = vpack.c.b16 %v7082, %v7079
        %v7194 = vpack.c.b16 %v7083, %v7080
        %v7195 = vpack.c.b16 %v7087, %v7084
        %v7196 = vpack.c.b16 %v7088, %v7085
        %v7197 = vpack.c.b16 %v7089, %v7086
        %v7198 = vpack.c.b16 %v7093, %v7090
        %v7199 = vpack.c.b16 %v7094, %v7091
        %v7200 = vpack.c.b16 %v7095, %v7092
        %v7201 = vpack.c.b16 %v7099, %v7096
        %v7202 = vpack.c.b16 %v7100, %v7097
        %v7203 = vpack.c.b16 %v7101, %v7098
        %v7204 = vpack.c.b16 %v7105, %v7102
        %v7205 = vpack.c.b16 %v7106, %v7103
        %v7206 = vpack.c.b16 %v7107, %v7104
        %v7207 = vpack.c.b16 %v7111, %v7108
        %v7208 = vpack.c.b16 %v7112, %v7109
        %v7209 = vpack.c.b16 %v7113, %v7110
        %v7210 = vpack.c.b16 %v7117, %v7114
        %v7211 = vpack.c.b16 %v7118, %v7115
        %v7212 = vpack.c.b16 %v7119, %v7116
        %v7213 = vpack.c.b16 %v7123, %v7120
        %v7214 = vpack.c.b16 %v7124, %v7121
        %v7215 = vpack.c.b16 %v7125, %v7122
        %v7216 = vpack.c.b16 %v7129, %v7126
        %v7217 = vpack.c.b16 %v7130, %v7127
        %v7218 = vpack.c.b16 %v7131, %v7128
        %v7219 = vpack.c.b16 %v7135, %v7132
        %v7220 = vpack.c.b16 %v7136, %v7133
        %v7221 = vpack.c.b16 %v7137, %v7134
        %v7222 = vpack.c.b16 %v7141, %v7138
        %v7223 = vpack.c.b16 %v7142, %v7139
        %v7224 = vpack.c.b16 %v7143, %v7140
        %v7225 = vpack.c.b16 %v7147, %v7144
        %v7226 = vpack.c.b16 %v7148, %v7145
        %v7227 = vpack.c.b16 %v7149, %v7146
        %v7228 = vpack.c.b16 %v7153, %v7150
        %v7229 = vpack.c.b16 %v7154, %v7151
        %v7230 = vpack.c.b16 %v7155, %v7152
        %v7231 = vpack.c.b16 %v7159, %v7156
        %v7232 = vpack.c.b16 %v7160, %v7157
        %v7233 = vpack.c.b16 %v7161, %v7158
        %7306 = vmatpush.bf16.msra.mxu0 %v7183
        %7307 = vmatpush.bf16.msra.mxu0 %v7180
        %7308 = vmatpush.bf16.msra.mxu0 %v7177
        %7309 = vmatpush.bf16.msra.mxu0 %v7174
        %7310 = vmatpush.bf16.msra.mxu0 %v7171
        %7311 = vmatpush.bf16.msra.mxu0 %v7168
        %7312 = vmatpush.bf16.msra.mxu0 %v7165
        %7313 = vmatpush.bf16.msra.mxu0 %v7162
        %7314 = vmatmul.bf16.gmra.mxu0 %v3188
        %v7315 = vpop.f32.mrf.mxu0
        %v7316 = vadd.f32 %v6916, %v7315
        %v7317 = vpop.f32.mrf.mxu0
        %7318 = vdwg.mxu0
        %7319 = vmatpush.bf16.msra.mxu0 %v7207
        %7320 = vmatpush.bf16.msra.mxu0 %v7204
        %7321 = vmatpush.bf16.msra.mxu0 %v7201
        %7322 = vmatpush.bf16.msra.mxu0 %v7198
        %7323 = vmatpush.bf16.msra.mxu0 %v7195
        %7324 = vmatpush.bf16.msra.mxu0 %v7192
        %7325 = vmatpush.bf16.msra.mxu0 %v7189
        %7326 = vmatpush.bf16.msra.mxu0 %v7186
        %7327 = vmatmul.bf16.gmra.mxu0 %v3189
        %v7328 = vpop.f32.mrf.mxu0
        %v7329 = vadd.f32 %v7316, %v7328
        %v7330 = vpop.f32.mrf.mxu0
        %7331 = vdwg.mxu0
        %7332 = vmatpush.bf16.msra.mxu0 %v7231
        %7333 = vmatpush.bf16.msra.mxu0 %v7228
        %7334 = vmatpush.bf16.msra.mxu0 %v7225
        %7335 = vmatpush.bf16.msra.mxu0 %v7222
        %7336 = vmatpush.bf16.msra.mxu0 %v7219
        %7337 = vmatpush.bf16.msra.mxu0 %v7216
        %7338 = vmatpush.bf16.msra.mxu0 %v7213
        %7339 = vmatpush.bf16.msra.mxu0 %v7210
        %7340 = vmatmul.bf16.gmra.mxu0 %v3190
        %v7341 = vpop.f32.mrf.mxu0
        %v7342 = vadd.f32 %v7329, %v7341
        %v7343 = vpop.f32.mrf.mxu0
        %7344 = vdwg.mxu0
        %7345 = vmatpush.bf16.msra.mxu0 %v7184
        %7346 = vmatpush.bf16.msra.mxu0 %v7181
        %7347 = vmatpush.bf16.msra.mxu0 %v7178
        %7348 = vmatpush.bf16.msra.mxu0 %v7175
        %7349 = vmatpush.bf16.msra.mxu0 %v7172
        %7350 = vmatpush.bf16.msra.mxu0 %v7169
        %7351 = vmatpush.bf16.msra.mxu0 %v7166
        %7352 = vmatpush.bf16.msra.mxu0 %v7163
        %7353 = vmatmul.bf16.gmra.mxu0 %v3188
        %v7354 = vpop.f32.mrf.mxu0
        %v7355 = vadd.f32 %v6917, %v7354
        %v7356 = vpop.f32.mrf.mxu0
        %7357 = vdwg.mxu0
        %7358 = vmatpush.bf16.msra.mxu0 %v7208
        %7359 = vmatpush.bf16.msra.mxu0 %v7205
        %7360 = vmatpush.bf16.msra.mxu0 %v7202
        %7361 = vmatpush.bf16.msra.mxu0 %v7199
        %7362 = vmatpush.bf16.msra.mxu0 %v7196
        %7363 = vmatpush.bf16.msra.mxu0 %v7193
        %7364 = vmatpush.bf16.msra.mxu0 %v7190
        %7365 = vmatpush.bf16.msra.mxu0 %v7187
        %7366 = vmatmul.bf16.gmra.mxu0 %v3189
        %v7367 = vpop.f32.mrf.mxu0
        %v7368 = vadd.f32 %v7355, %v7367
        %v7369 = vpop.f32.mrf.mxu0
        %7370 = vdwg.mxu0
        %7371 = vmatpush.bf16.msra.mxu0 %v7232
        %7372 = vmatpush.bf16.msra.mxu0 %v7229
        %7373 = vmatpush.bf16.msra.mxu0 %v7226
        %7374 = vmatpush.bf16.msra.mxu0 %v7223
        %7375 = vmatpush.bf16.msra.mxu0 %v7220
        %7376 = vmatpush.bf16.msra.mxu0 %v7217
        %7377 = vmatpush.bf16.msra.mxu0 %v7214
        %7378 = vmatpush.bf16.msra.mxu0 %v7211
        %7379 = vmatmul.bf16.gmra.mxu0 %v3190
        %v7380 = vpop.f32.mrf.mxu0
        %v7381 = vadd.f32 %v7368, %v7380
        %v7382 = vpop.f32.mrf.mxu0
        %7383 = vdwg.mxu0
        %7384 = vmatpush.bf16.msra.mxu0 %v7185
        %7385 = vmatpush.bf16.msra.mxu0 %v7182
        %7386 = vmatpush.bf16.msra.mxu0 %v7179
        %7387 = vmatpush.bf16.msra.mxu0 %v7176
        %7388 = vmatpush.bf16.msra.mxu0 %v7173
        %7389 = vmatpush.bf16.msra.mxu0 %v7170
        %7390 = vmatpush.bf16.msra.mxu0 %v7167
        %7391 = vmatpush.bf16.msra.mxu0 %v7164
        %7392 = vmatmul.bf16.gmra.mxu0 %v3188
        %v7393 = vpop.f32.mrf.mxu0
        %v7394 = vadd.f32 %v6918, %v7393
        %v7395 = vpop.f32.mrf.mxu0
        %7396 = vdwg.mxu0
        %7397 = vmatpush.bf16.msra.mxu0 %v7209
        %7398 = vmatpush.bf16.msra.mxu0 %v7206
        %7399 = vmatpush.bf16.msra.mxu0 %v7203
        %7400 = vmatpush.bf16.msra.mxu0 %v7200
        %7401 = vmatpush.bf16.msra.mxu0 %v7197
        %7402 = vmatpush.bf16.msra.mxu0 %v7194
        %7403 = vmatpush.bf16.msra.mxu0 %v7191
        %7404 = vmatpush.bf16.msra.mxu0 %v7188
        %7405 = vmatmul.bf16.gmra.mxu0 %v3189
        %v7406 = vpop.f32.mrf.mxu0
        %v7407 = vadd.f32 %v7394, %v7406
        %v7408 = vpop.f32.mrf.mxu0
        %7409 = vdwg.mxu0
        %7410 = vmatpush.bf16.msra.mxu0 %v7233
        %7411 = vmatpush.bf16.msra.mxu0 %v7230
        %7412 = vmatpush.bf16.msra.mxu0 %v7227
        %7413 = vmatpush.bf16.msra.mxu0 %v7224
        %7414 = vmatpush.bf16.msra.mxu0 %v7221
        %7415 = vmatpush.bf16.msra.mxu0 %v7218
        %7416 = vmatpush.bf16.msra.mxu0 %v7215
        %7417 = vmatpush.bf16.msra.mxu0 %v7212
        %7418 = vmatmul.bf16.gmra.mxu0 %v3190
        %v7419 = vpop.f32.mrf.mxu0
        %v7420 = vadd.f32 %v7407, %v7419
        %v7421 = vpop.f32.mrf.mxu0
        %7422 = vdwg.mxu0
        %v7423 = vmax.f32 %v7342, 0.0
        %v7424 = vmax.f32 %v7381, 0.0
        %v7425 = vmax.f32 %v7420, 0.0
        %v7426 = vpack.c.bf16 %v7423, %v7423
        %v7427 = vpack.c.bf16 %v7424, %v7424
        %v7428 = vpack.c.bf16 %v7425, %v7425
        %v7429 = vld [vmem:[%s10 + $0x6c0] sm:$0xff]
        %v7430 = vld [vmem:[%s10 + $0x6c8] sm:$0xf]
        %v7431 = vld [vmem:[%s10 + $0x6cc] sm:$0xff]
        %v7432 = vld [vmem:[%s10 + $0x6d4] sm:$0xf]
        %v7433 = vld [vmem:[%s10 + $0x6d8] sm:$0xff]
        %v7434 = vld [vmem:[%s10 + $0x6e0] sm:$0xf]
        %v7435 = vld [vmem:[%s10 + $0x6e4] sm:$0xff]
        %v7436 = vld [vmem:[%s10 + $0x6ec] sm:$0xf]
        %v7437 = vld [vmem:[%s10 + $0x6f0] sm:$0xff]
        %v7438 = vld [vmem:[%s10 + $0x6f8] sm:$0xf]
        %v7439 = vld [vmem:[%s10 + $0x6fc] sm:$0xff]
        %v7440 = vld [vmem:[%s10 + $0x704] sm:$0xf]
        %v7441 = vld [vmem:[%s10 + $0x708] sm:$0xff]
        %v7442 = vld [vmem:[%s10 + $0x710] sm:$0xf]
        %v7443 = vld [vmem:[%s10 + $0x714] sm:$0xff]
        %v7444 = vld [vmem:[%s10 + $0x71c] sm:$0xf]
        %v7445 = vld [vmem:[%s10 + $0x720] sm:$0xff]
        %v7446 = vld [vmem:[%s10 + $0x728] sm:$0xf]
        %v7447 = vld [vmem:[%s10 + $0x72c] sm:$0xff]
        %v7448 = vld [vmem:[%s10 + $0x734] sm:$0xf]
        %v7449 = vld [vmem:[%s10 + $0x738] sm:$0xff]
        %v7450 = vld [vmem:[%s10 + $0x740] sm:$0xf]
        %v7451 = vld [vmem:[%s10 + $0x744] sm:$0xff]
        %v7452 = vld [vmem:[%s10 + $0x74c] sm:$0xf]
        %v7453 = vld [vmem:[%s10 + $0x750] sm:$0xff]
        %v7454 = vld [vmem:[%s10 + $0x758] sm:$0xf]
        %v7455 = vld [vmem:[%s10 + $0x75c] sm:$0xff]
        %v7456 = vld [vmem:[%s10 + $0x764] sm:$0xf]
        %v7457 = vld [vmem:[%s10 + $0x768] sm:$0xff]
        %v7458 = vld [vmem:[%s10 + $0x770] sm:$0xf]
        %v7459 = vld [vmem:[%s10 + $0x774] sm:$0xff]
        %v7460 = vld [vmem:[%s10 + $0x77c] sm:$0xf]
        %v7461 = vld [vmem:[%s10 + $0x780] sm:$0xff]
        %v7462 = vld [vmem:[%s10 + $0x788] sm:$0xf]
        %v7463 = vld [vmem:[%s10 + $0x78c] sm:$0xff]
        %v7464 = vld [vmem:[%s10 + $0x794] sm:$0xf]
        %v7465 = vld [vmem:[%s10 + $0x798] sm:$0xff]
        %v7466 = vld [vmem:[%s10 + $0x7a0] sm:$0xf]
        %v7467 = vld [vmem:[%s10 + $0x7a4] sm:$0xff]
        %v7468 = vld [vmem:[%s10 + $0x7ac] sm:$0xf]
        %v7469 = vld [vmem:[%s10 + $0x7b0] sm:$0xff]
        %v7470 = vld [vmem:[%s10 + $0x7b8] sm:$0xf]
        %v7471 = vld [vmem:[%s10 + $0x7bc] sm:$0xff]
        %v7472 = vld [vmem:[%s10 + $0x7c4] sm:$0xf]
        %v7473 = vld [vmem:[%s10 + $0x7c8] sm:$0xff]
        %v7474 = vld [vmem:[%s10 + $0x7d0] sm:$0xf]
        %v7475 = vld [vmem:[%s10 + $0x7d4] sm:$0xff]
        %v7476 = vld [vmem:[%s10 + $0x7dc] sm:$0xf]
        %v7477 = vld [vmem:[%s10 + $0x7e0] sm:$0xff]
        %v7478 = vld [vmem:[%s10 + $0x7e8] sm:$0xf]
        %v7479 = vld [vmem:[%s10 + $0x7ec] sm:$0xff]
        %v7480 = vld [vmem:[%s10 + $0x7f4] sm:$0xf]
        %v7481 = vld [vmem:[%s10 + $0x7f8] sm:$0xff]
        %v7482 = vld [vmem:[%s10 + $0x800] sm:$0xf]
        %v7483 = vld [vmem:[%s10 + $0x804] sm:$0xff]
        %v7484 = vld [vmem:[%s10 + $0x80c] sm:$0xf]
        %v7485 = vld [vmem:[%s10 + $0x810] sm:$0xff]
        %v7486 = vld [vmem:[%s10 + $0x818] sm:$0xf]
        %v7487 = vld [vmem:[%s10 + $0x81c] sm:$0xff]
        %v7488 = vld [vmem:[%s10 + $0x824] sm:$0xf]
        %v7489 = vld [vmem:[%s10 + $0x828] sm:$0xff]
        %v7490 = vld [vmem:[%s10 + $0x830] sm:$0xf]
        %v7491 = vld [vmem:[%s10 + $0x834] sm:$0xff]
        %v7492 = vld [vmem:[%s10 + $0x83c] sm:$0xf]
        %v7493 = vld [vmem:[%s10 + $0x840] sm:$0xff]
        %v7494 = vld [vmem:[%s10 + $0x848] sm:$0xf]
        %v7495 = vld [vmem:[%s10 + $0x84c] sm:$0xff]
        %v7496 = vld [vmem:[%s10 + $0x854] sm:$0xf]
        %v7497 = vld [vmem:[%s10 + $0x858] sm:$0xff]
        %v7498 = vld [vmem:[%s10 + $0x860] sm:$0xf]
        %v7499 = vld [vmem:[%s10 + $0x864] sm:$0xff]
        %v7500 = vld [vmem:[%s10 + $0x86c] sm:$0xf]
        %v7501 = vld [vmem:[%s10 + $0x870] sm:$0xff]
        %v7502 = vld [vmem:[%s10 + $0x878] sm:$0xf]
        %v7503 = vld [vmem:[%s10 + $0x87c] sm:$0xff]
        %v7504 = vld [vmem:[%s10 + $0x884] sm:$0xf]
        %v7505 = vld [vmem:[%s10 + $0x888] sm:$0xff]
        %v7506 = vld [vmem:[%s10 + $0x890] sm:$0xf]
        %v7507 = vld [vmem:[%s10 + $0x894] sm:$0xff]
        %v7508 = vld [vmem:[%s10 + $0x89c] sm:$0xf]
        %v7509 = vld [vmem:[%s10 + $0x8a0] sm:$0xff]
        %v7510 = vld [vmem:[%s10 + $0x8a8] sm:$0xf]
        %v7511 = vld [vmem:[%s10 + $0x8ac] sm:$0xff]
        %v7512 = vld [vmem:[%s10 + $0x8b4] sm:$0xf]
        %v7513 = vld [vmem:[%s10 + $0x8b8] sm:$0xff]
        %v7514 = vld [vmem:[%s10 + $0x8c0] sm:$0xf]
        %v7515 = vld [vmem:[%s10 + $0x8c4] sm:$0xff]
        %v7516 = vld [vmem:[%s10 + $0x8cc] sm:$0xf]
        %v7517 = vld [vmem:[%s10 + $0x8d0] sm:$0xff]
        %v7518 = vld [vmem:[%s10 + $0x8d8] sm:$0xf]
        %v7519 = vld [vmem:[%s10 + $0x8dc] sm:$0xff]
        %v7520 = vld [vmem:[%s10 + $0x8e4] sm:$0xf]
        %v7521 = vld [vmem:[%s10 + $0x8e8] sm:$0xff]
        %v7522 = vld [vmem:[%s10 + $0x8f0] sm:$0xf]
        %v7523 = vld [vmem:[%s10 + $0x8f4] sm:$0xff]
        %v7524 = vld [vmem:[%s10 + $0x8fc] sm:$0xf]
        %v7621 = vunpack.c.l.b16 %v7429
        %v7622 = vunpack.c.h.b16 %v7429
        %v7623 = vunpack.c.l.b16 %v7430
        %v7624 = vunpack.c.l.b16 %v7431
        %v7625 = vunpack.c.h.b16 %v7431
        %v7626 = vunpack.c.l.b16 %v7432
        %v7627 = vunpack.c.l.b16 %v7433
        %v7628 = vunpack.c.h.b16 %v7433
        %v7629 = vunpack.c.l.b16 %v7434
        %v7630 = vunpack.c.l.b16 %v7435
        %v7631 = vunpack.c.h.b16 %v7435
        %v7632 = vunpack.c.l.b16 %v7436
        %v7633 = vunpack.c.l.b16 %v7437
        %v7634 = vunpack.c.h.b16 %v7437
        %v7635 = vunpack.c.l.b16 %v7438
        %v7636 = vunpack.c.l.b16 %v7439
        %v7637 = vunpack.c.h.b16 %v7439
        %v7638 = vunpack.c.l.b16 %v7440
        %v7639 = vunpack.c.l.b16 %v7441
        %v7640 = vunpack.c.h.b16 %v7441
        %v7641 = vunpack.c.l.b16 %v7442
        %v7642 = vunpack.c.l.b16 %v7443
        %v7643 = vunpack.c.h.b16 %v7443
        %v7644 = vunpack.c.l.b16 %v7444
        %v7645 = vunpack.c.l.b16 %v7445
        %v7646 = vunpack.c.h.b16 %v7445
        %v7647 = vunpack.c.l.b16 %v7446
        %v7648 = vunpack.c.l.b16 %v7447
        %v7649 = vunpack.c.h.b16 %v7447
        %v7650 = vunpack.c.l.b16 %v7448
        %v7651 = vunpack.c.l.b16 %v7449
        %v7652 = vunpack.c.h.b16 %v7449
        %v7653 = vunpack.c.l.b16 %v7450
        %v7654 = vunpack.c.l.b16 %v7451
        %v7655 = vunpack.c.h.b16 %v7451
        %v7656 = vunpack.c.l.b16 %v7452
        %v7657 = vunpack.c.l.b16 %v7453
        %v7658 = vunpack.c.h.b16 %v7453
        %v7659 = vunpack.c.l.b16 %v7454
        %v7660 = vunpack.c.l.b16 %v7455
        %v7661 = vunpack.c.h.b16 %v7455
        %v7662 = vunpack.c.l.b16 %v7456
        %v7663 = vunpack.c.l.b16 %v7457
        %v7664 = vunpack.c.h.b16 %v7457
        %v7665 = vunpack.c.l.b16 %v7458
        %v7666 = vunpack.c.l.b16 %v7459
        %v7667 = vunpack.c.h.b16 %v7459
        %v7668 = vunpack.c.l.b16 %v7460
        %v7669 = vunpack.c.l.b16 %v7461
        %v7670 = vunpack.c.h.b16 %v7461
        %v7671 = vunpack.c.l.b16 %v7462
        %v7672 = vunpack.c.l.b16 %v7463
        %v7673 = vunpack.c.h.b16 %v7463
        %v7674 = vunpack.c.l.b16 %v7464
        %v7675 = vunpack.c.l.b16 %v7465
        %v7676 = vunpack.c.h.b16 %v7465
        %v7677 = vunpack.c.l.b16 %v7466
        %v7678 = vunpack.c.l.b16 %v7467
        %v7679 = vunpack.c.h.b16 %v7467
        %v7680 = vunpack.c.l.b16 %v7468
        %v7681 = vunpack.c.l.b16 %v7469
        %v7682 = vunpack.c.h.b16 %v7469
        %v7683 = vunpack.c.l.b16 %v7470
        %v7684 = vunpack.c.l.b16 %v7471
        %v7685 = vunpack.c.h.b16 %v7471
        %v7686 = vunpack.c.l.b16 %v7472
        %v7687 = vunpack.c.l.b16 %v7473
        %v7688 = vunpack.c.h.b16 %v7473
        %v7689 = vunpack.c.l.b16 %v7474
        %v7690 = vunpack.c.l.b16 %v7475
        %v7691 = vunpack.c.h.b16 %v7475
        %v7692 = vunpack.c.l.b16 %v7476
        %v7693 = vunpack.c.l.b16 %v7477
        %v7694 = vunpack.c.h.b16 %v7477
        %v7695 = vunpack.c.l.b16 %v7478
        %v7696 = vunpack.c.l.b16 %v7479
        %v7697 = vunpack.c.h.b16 %v7479
        %v7698 = vunpack.c.l.b16 %v7480
        %v7699 = vunpack.c.l.b16 %v7481
        %v7700 = vunpack.c.h.b16 %v7481
        %v7701 = vunpack.c.l.b16 %v7482
        %v7702 = vunpack.c.l.b16 %v7483
        %v7703 = vunpack.c.h.b16 %v7483
        %v7704 = vunpack.c.l.b16 %v7484
        %v7705 = vunpack.c.l.b16 %v7485
        %v7706 = vunpack.c.h.b16 %v7485
        %v7707 = vunpack.c.l.b16 %v7486
        %v7708 = vunpack.c.l.b16 %v7487
        %v7709 = vunpack.c.h.b16 %v7487
        %v7710 = vunpack.c.l.b16 %v7488
        %v7711 = vunpack.c.l.b16 %v7489
        %v7712 = vunpack.c.h.b16 %v7489
        %v7713 = vunpack.c.l.b16 %v7490
        %v7714 = vunpack.c.l.b16 %v7491
        %v7715 = vunpack.c.h.b16 %v7491
        %v7716 = vunpack.c.l.b16 %v7492
        %v7717 = vunpack.c.l.b16 %v7493
        %v7718 = vunpack.c.h.b16 %v7493
        %v7719 = vunpack.c.l.b16 %v7494
        %v7720 = vunpack.c.l.b16 %v7495
        %v7721 = vunpack.c.h.b16 %v7495
        %v7722 = vunpack.c.l.b16 %v7496
        %v7723 = vunpack.c.l.b16 %v7497
        %v7724 = vunpack.c.h.b16 %v7497
        %v7725 = vunpack.c.l.b16 %v7498
        %v7726 = vunpack.c.l.b16 %v7499
        %v7727 = vunpack.c.h.b16 %v7499
        %v7728 = vunpack.c.l.b16 %v7500
        %v7729 = vunpack.c.l.b16 %v7501
        %v7730 = vunpack.c.h.b16 %v7501
        %v7731 = vunpack.c.l.b16 %v7502
        %v7732 = vunpack.c.l.b16 %v7503
        %v7733 = vunpack.c.h.b16 %v7503
        %v7734 = vunpack.c.l.b16 %v7504
        %v7735 = vunpack.c.l.b16 %v7505
        %v7736 = vunpack.c.h.b16 %v7505
        %v7737 = vunpack.c.l.b16 %v7506
        %v7738 = vunpack.c.l.b16 %v7507
        %v7739 = vunpack.c.h.b16 %v7507
        %v7740 = vunpack.c.l.b16 %v7508
        %v7741 = vunpack.c.l.b16 %v7509
        %v7742 = vunpack.c.h.b16 %v7509
        %v7743 = vunpack.c.l.b16 %v7510
        %v7744 = vunpack.c.l.b16 %v7511
        %v7745 = vunpack.c.h.b16 %v7511
        %v7746 = vunpack.c.l.b16 %v7512
        %v7747 = vunpack.c.l.b16 %v7513
        %v7748 = vunpack.c.h.b16 %v7513
        %v7749 = vunpack.c.l.b16 %v7514
        %v7750 = vunpack.c.l.b16 %v7515
        %v7751 = vunpack.c.h.b16 %v7515
        %v7752 = vunpack.c.l.b16 %v7516
        %v7753 = vunpack.c.l.b16 %v7517
        %v7754 = vunpack.c.h.b16 %v7517
        %v7755 = vunpack.c.l.b16 %v7518
        %v7756 = vunpack.c.l.b16 %v7519
        %v7757 = vunpack.c.h.b16 %v7519
        %v7758 = vunpack.c.l.b16 %v7520
        %v7759 = vunpack.c.l.b16 %v7521
        %v7760 = vunpack.c.h.b16 %v7521
        %v7761 = vunpack.c.l.b16 %v7522
        %v7762 = vunpack.c.l.b16 %v7523
        %v7763 = vunpack.c.h.b16 %v7523
        %v7764 = vunpack.c.l.b16 %v7524
        %v7765 = vpack.c.b16 %v7624, %v7621
        %v7766 = vpack.c.b16 %v7625, %v7622
        %v7767 = vpack.c.b16 %v7626, %v7623
        %v7768 = vpack.c.b16 %v7630, %v7627
        %v7769 = vpack.c.b16 %v7631, %v7628
        %v7770 = vpack.c.b16 %v7632, %v7629
        %v7771 = vpack.c.b16 %v7636, %v7633
        %v7772 = vpack.c.b16 %v7637, %v7634
        %v7773 = vpack.c.b16 %v7638, %v7635
        %v7774 = vpack.c.b16 %v7642, %v7639
        %v7775 = vpack.c.b16 %v7643, %v7640
        %v7776 = vpack.c.b16 %v7644, %v7641
        %v7777 = vpack.c.b16 %v7648, %v7645
        %v7778 = vpack.c.b16 %v7649, %v7646
        %v7779 = vpack.c.b16 %v7650, %v7647
        %v7780 = vpack.c.b16 %v7654, %v7651
        %v7781 = vpack.c.b16 %v7655, %v7652
        %v7782 = vpack.c.b16 %v7656, %v7653
        %v7783 = vpack.c.b16 %v7660, %v7657
        %v7784 = vpack.c.b16 %v7661, %v7658
        %v7785 = vpack.c.b16 %v7662, %v7659
        %v7786 = vpack.c.b16 %v7666, %v7663
        %v7787 = vpack.c.b16 %v7667, %v7664
        %v7788 = vpack.c.b16 %v7668, %v7665
        %v7789 = vpack.c.b16 %v7672, %v7669
        %v7790 = vpack.c.b16 %v7673, %v7670
        %v7791 = vpack.c.b16 %v7674, %v7671
        %v7792 = vpack.c.b16 %v7678, %v7675
        %v7793 = vpack.c.b16 %v7679, %v7676
        %v7794 = vpack.c.b16 %v7680, %v7677
        %v7795 = vpack.c.b16 %v7684, %v7681
        %v7796 = vpack.c.b16 %v7685, %v7682
        %v7797 = vpack.c.b16 %v7686, %v7683
        %v7798 = vpack.c.b16 %v7690, %v7687
        %v7799 = vpack.c.b16 %v7691, %v7688
        %v7800 = vpack.c.b16 %v7692, %v7689
        %v7801 = vpack.c.b16 %v7696, %v7693
        %v7802 = vpack.c.b16 %v7697, %v7694
        %v7803 = vpack.c.b16 %v7698, %v7695
        %v7804 = vpack.c.b16 %v7702, %v7699
        %v7805 = vpack.c.b16 %v7703, %v7700
        %v7806 = vpack.c.b16 %v7704, %v7701
        %v7807 = vpack.c.b16 %v7708, %v7705
        %v7808 = vpack.c.b16 %v7709, %v7706
        %v7809 = vpack.c.b16 %v7710, %v7707
        %v7810 = vpack.c.b16 %v7714, %v7711
        %v7811 = vpack.c.b16 %v7715, %v7712
        %v7812 = vpack.c.b16 %v7716, %v7713
        %v7813 = vpack.c.b16 %v7720, %v7717
        %v7814 = vpack.c.b16 %v7721, %v7718
        %v7815 = vpack.c.b16 %v7722, %v7719
        %v7816 = vpack.c.b16 %v7726, %v7723
        %v7817 = vpack.c.b16 %v7727, %v7724
        %v7818 = vpack.c.b16 %v7728, %v7725
        %v7819 = vpack.c.b16 %v7732, %v7729
        %v7820 = vpack.c.b16 %v7733, %v7730
        %v7821 = vpack.c.b16 %v7734, %v7731
        %v7822 = vpack.c.b16 %v7738, %v7735
        %v7823 = vpack.c.b16 %v7739, %v7736
        %v7824 = vpack.c.b16 %v7740, %v7737
        %v7825 = vpack.c.b16 %v7744, %v7741
        %v7826 = vpack.c.b16 %v7745, %v7742
        %v7827 = vpack.c.b16 %v7746, %v7743
        %v7828 = vpack.c.b16 %v7750, %v7747
        %v7829 = vpack.c.b16 %v7751, %v7748
        %v7830 = vpack.c.b16 %v7752, %v7749
        %v7831 = vpack.c.b16 %v7756, %v7753
        %v7832 = vpack.c.b16 %v7757, %v7754
        %v7833 = vpack.c.b16 %v7758, %v7755
        %v7834 = vpack.c.b16 %v7762, %v7759
        %v7835 = vpack.c.b16 %v7763, %v7760
        %v7836 = vpack.c.b16 %v7764, %v7761
        %7909 = vmatpush.bf16.msra.mxu0 %v7786
        %7910 = vmatpush.bf16.msra.mxu0 %v7783
        %7911 = vmatpush.bf16.msra.mxu0 %v7780
        %7912 = vmatpush.bf16.msra.mxu0 %v7777
        %7913 = vmatpush.bf16.msra.mxu0 %v7774
        %7914 = vmatpush.bf16.msra.mxu0 %v7771
        %7915 = vmatpush.bf16.msra.mxu0 %v7768
        %7916 = vmatpush.bf16.msra.mxu0 %v7765
        %7917 = vmatmul.bf16.gmra.mxu0 %v7426
        %v7918 = vpop.f32.mrf.mxu0
        %v7919 = vadd.f32 0.0, %v7918
        %v7920 = vpop.f32.mrf.mxu0
        %7921 = vdwg.mxu0
        %7922 = vmatpush.bf16.msra.mxu0 %v7810
        %7923 = vmatpush.bf16.msra.mxu0 %v7807
        %7924 = vmatpush.bf16.msra.mxu0 %v7804
        %7925 = vmatpush.bf16.msra.mxu0 %v7801
        %7926 = vmatpush.bf16.msra.mxu0 %v7798
        %7927 = vmatpush.bf16.msra.mxu0 %v7795
        %7928 = vmatpush.bf16.msra.mxu0 %v7792
        %7929 = vmatpush.bf16.msra.mxu0 %v7789
        %7930 = vmatmul.bf16.gmra.mxu0 %v7427
        %v7931 = vpop.f32.mrf.mxu0
        %v7932 = vadd.f32 %v7919, %v7931
        %v7933 = vpop.f32.mrf.mxu0
        %7934 = vdwg.mxu0
        %7935 = vmatpush.bf16.msra.mxu0 %v7834
        %7936 = vmatpush.bf16.msra.mxu0 %v7831
        %7937 = vmatpush.bf16.msra.mxu0 %v7828
        %7938 = vmatpush.bf16.msra.mxu0 %v7825
        %7939 = vmatpush.bf16.msra.mxu0 %v7822
        %7940 = vmatpush.bf16.msra.mxu0 %v7819
        %7941 = vmatpush.bf16.msra.mxu0 %v7816
        %7942 = vmatpush.bf16.msra.mxu0 %v7813
        %7943 = vmatmul.bf16.gmra.mxu0 %v7428
        %v7944 = vpop.f32.mrf.mxu0
        %v7945 = vadd.f32 %v7932, %v7944
        %v7946 = vpop.f32.mrf.mxu0
        %7947 = vdwg.mxu0
        %7948 = vmatpush.bf16.msra.mxu0 %v7787
        %7949 = vmatpush.bf16.msra.mxu0 %v7784
        %7950 = vmatpush.bf16.msra.mxu0 %v7781
        %7951 = vmatpush.bf16.msra.mxu0 %v7778
        %7952 = vmatpush.bf16.msra.mxu0 %v7775
        %7953 = vmatpush.bf16.msra.mxu0 %v7772
        %7954 = vmatpush.bf16.msra.mxu0 %v7769
        %7955 = vmatpush.bf16.msra.mxu0 %v7766
        %7956 = vmatmul.bf16.gmra.mxu0 %v7426
        %v7957 = vpop.f32.mrf.mxu0
        %v7958 = vadd.f32 0.0, %v7957
        %v7959 = vpop.f32.mrf.mxu0
        %7960 = vdwg.mxu0
        %7961 = vmatpush.bf16.msra.mxu0 %v7811
        %7962 = vmatpush.bf16.msra.mxu0 %v7808
        %7963 = vmatpush.bf16.msra.mxu0 %v7805
        %7964 = vmatpush.bf16.msra.mxu0 %v7802
        %7965 = vmatpush.bf16.msra.mxu0 %v7799
        %7966 = vmatpush.bf16.msra.mxu0 %v7796
        %7967 = vmatpush.bf16.msra.mxu0 %v7793
        %7968 = vmatpush.bf16.msra.mxu0 %v7790
        %7969 = vmatmul.bf16.gmra.mxu0 %v7427
        %v7970 = vpop.f32.mrf.mxu0
        %v7971 = vadd.f32 %v7958, %v7970
        %v7972 = vpop.f32.mrf.mxu0
        %7973 = vdwg.mxu0
        %7974 = vmatpush.bf16.msra.mxu0 %v7835
        %7975 = vmatpush.bf16.msra.mxu0 %v7832
        %7976 = vmatpush.bf16.msra.mxu0 %v7829
        %7977 = vmatpush.bf16.msra.mxu0 %v7826
        %7978 = vmatpush.bf16.msra.mxu0 %v7823
        %7979 = vmatpush.bf16.msra.mxu0 %v7820
        %7980 = vmatpush.bf16.msra.mxu0 %v7817
        %7981 = vmatpush.bf16.msra.mxu0 %v7814
        %7982 = vmatmul.bf16.gmra.mxu0 %v7428
        %v7983 = vpop.f32.mrf.mxu0
        %v7984 = vadd.f32 %v7971, %v7983
        %v7985 = vpop.f32.mrf.mxu0
        %7986 = vdwg.mxu0
        %7987 = vmatpush.bf16.msra.mxu0 %v7788
        %7988 = vmatpush.bf16.msra.mxu0 %v7785
        %7989 = vmatpush.bf16.msra.mxu0 %v7782
        %7990 = vmatpush.bf16.msra.mxu0 %v7779
        %7991 = vmatpush.bf16.msra.mxu0 %v7776
        %7992 = vmatpush.bf16.msra.mxu0 %v7773
        %7993 = vmatpush.bf16.msra.mxu0 %v7770
        %7994 = vmatpush.bf16.msra.mxu0 %v7767
        %7995 = vmatmul.bf16.gmra.mxu0 %v7426
        %v7996 = vpop.f32.mrf.mxu0
        %v7997 = vadd.f32 0.0, %v7996
        %v7998 = vpop.f32.mrf.mxu0
        %7999 = vdwg.mxu0
        %8000 = vmatpush.bf16.msra.mxu0 %v7812
        %8001 = vmatpush.bf16.msra.mxu0 %v7809
        %8002 = vmatpush.bf16.msra.mxu0 %v7806
        %8003 = vmatpush.bf16.msra.mxu0 %v7803
        %8004 = vmatpush.bf16.msra.mxu0 %v7800
        %8005 = vmatpush.bf16.msra.mxu0 %v7797
        %8006 = vmatpush.bf16.msra.mxu0 %v7794
        %8007 = vmatpush.bf16.msra.mxu0 %v7791
        %8008 = vmatmul.bf16.gmra.mxu0 %v7427
        %v8009 = vpop.f32.mrf.mxu0
        %v8010 = vadd.f32 %v7997, %v8009
        %v8011 = vpop.f32.mrf.mxu0
        %8012 = vdwg.mxu0
        %8013 = vmatpush.bf16.msra.mxu0 %v7836
        %8014 = vmatpush.bf16.msra.mxu0 %v7833
        %8015 = vmatpush.bf16.msra.mxu0 %v7830
        %8016 = vmatpush.bf16.msra.mxu0 %v7827
        %8017 = vmatpush.bf16.msra.mxu0 %v7824
        %8018 = vmatpush.bf16.msra.mxu0 %v7821
        %8019 = vmatpush.bf16.msra.mxu0 %v7818
        %8020 = vmatpush.bf16.msra.mxu0 %v7815
        %8021 = vmatmul.bf16.gmra.mxu0 %v7428
        %v8022 = vpop.f32.mrf.mxu0
        %v8023 = vadd.f32 %v8010, %v8022
        %v8024 = vpop.f32.mrf.mxu0
        %8025 = vdwg.mxu0
        %v8026 = vadd.f32 %v6815, %v7945
        %v8027 = vadd.f32 %v6816, %v7984
        %v8028 = vadd.f32 %v6817, %v8023
        %v8029 = vld [vmem:[%s11] sm:$0x7]
        %v8031 = vperm.slane %v8029, 0
        %v8032 = vperm.slane %v8029, 1
        %v8033 = vperm.slane %v8029, 2
        %v8037 = vadd.f32 %v8026, %v8031
        %v8038 = vadd.f32 %v8027, %v8032
        %v8039 = vadd.f32 %v8028, %v8033
        %v8040 = vadd.f32 %v3185, %v8037
        %v8041 = vadd.f32 %v3186, %v8038
        %v8042 = vadd.f32 %v3187, %v8039
        %v8043 = vld [vmem:[%s12] sm:$0x7]
        %v8044 = vld [vmem:[%s13] sm:$0x7]
        %v8045 = vadd.f32 %v8040, %v8041
        %v8046 = vadd.f32 %v8045, %v8042
        %8047 = vadd.xlane.f32.xlu0 %v8046
        %v8048 = vpop.xlane.xlu0 %8047
        %v8049 = vmul.f32 %v8048, %v3141
        %v8050 = vsub.f32 %v8040, %v8049
        %v8051 = vsub.f32 %v8041, %v8049
        %v8052 = vsub.f32 %v8042, %v8049
        %v8053 = vmul.f32 %v8050, %v8050
        %v8054 = vmul.f32 %v8051, %v8051
        %v8055 = vmul.f32 %v8052, %v8052
        %v8056 = vadd.f32 %v8053, %v8054
        %v8057 = vadd.f32 %v8056, %v8055
        %8058 = vadd.xlane.f32.xlu0 %v8057
        %v8059 = vpop.xlane.xlu0 %8058
        %v8060 = vmul.f32 %v8059, %v3141
        %v8061 = vadd.f32 %v8060, 1e-05
        %v8062 = vrsqrt.pop %v8061
        %v8063 = vmul.f32 %v8062, %v8061
        %v8064 = vmul.f32 %v8063, %v8062
        %v8065 = vmul.f32 0.5, %v8064
        %v8066 = vsub.f32 1.5, %v8065
        %v8067 = vmul.f32 %v8062, %v8066
        %vm8068 = vweird.f32 %v8061
        %vm8069 = vweird.f32 %v8062
        %vm8070 = vmor %vm8068, %vm8069
        %v8071 = vsel %vm8070, %v8062, %v8067
        %v8072 = vmul.f32 %v8050, %v8071
        %v8073 = vmul.f32 %v8051, %v8071
        %v8074 = vmul.f32 %v8052, %v8071
        %v8076 = vperm.slane %v8043, 0
        %v8077 = vperm.slane %v8043, 1
        %v8078 = vperm.slane %v8043, 2
        %v8082 = vmul.f32 %v8072, %v8076
        %v8083 = vmul.f32 %v8073, %v8077
        %v8084 = vmul.f32 %v8074, %v8078
        %v8086 = vperm.slane %v8044, 0
        %v8087 = vperm.slane %v8044, 1
        %v8088 = vperm.slane %v8044, 2
        %v8092 = vadd.f32 %v8082, %v8086
        %v8093 = vadd.f32 %v8083, %v8087
        %v8094 = vadd.f32 %v8084, %v8088
        %v8095 = vld [vmem:[%s14] sm:$0x7]
        %v8096 = vld [vmem:[%s15] sm:$0x7]
        %v8097 = vadd.f32 %v8092, %v8093
        %v8098 = vadd.f32 %v8097, %v8094
        %8099 = vadd.xlane.f32.xlu0 %v8098
        %v8100 = vpop.xlane.xlu0 %8099
        %v8101 = vmul.f32 %v8100, %v3141
        %v8102 = vsub.f32 %v8092, %v8101
        %v8103 = vsub.f32 %v8093, %v8101
        %v8104 = vsub.f32 %v8094, %v8101
        %v8105 = vmul.f32 %v8102, %v8102
        %v8106 = vmul.f32 %v8103, %v8103
        %v8107 = vmul.f32 %v8104, %v8104
        %v8108 = vadd.f32 %v8105, %v8106
        %v8109 = vadd.f32 %v8108, %v8107
        %8110 = vadd.xlane.f32.xlu0 %v8109
        %v8111 = vpop.xlane.xlu0 %8110
        %v8112 = vmul.f32 %v8111, %v3141
        %v8113 = vadd.f32 %v8112, 1e-05
        %v8114 = vrsqrt.pop %v8113
        %v8115 = vmul.f32 %v8114, %v8113
        %v8116 = vmul.f32 %v8115, %v8114
        %v8117 = vmul.f32 0.5, %v8116
        %v8118 = vsub.f32 1.5, %v8117
        %v8119 = vmul.f32 %v8114, %v8118
        %vm8120 = vweird.f32 %v8113
        %vm8121 = vweird.f32 %v8114
        %vm8122 = vmor %vm8120, %vm8121
        %v8123 = vsel %vm8122, %v8114, %v8119
        %v8124 = vmul.f32 %v8102, %v8123
        %v8125 = vmul.f32 %v8103, %v8123
        %v8126 = vmul.f32 %v8104, %v8123
        %v8128 = vperm.slane %v8095, 0
        %v8129 = vperm.slane %v8095, 1
        %v8130 = vperm.slane %v8095, 2
        %v8134 = vmul.f32 %v8124, %v8128
        %v8135 = vmul.f32 %v8125, %v8129
        %v8136 = vmul.f32 %v8126, %v8130
        %v8138 = vperm.slane %v8096, 0
        %v8139 = vperm.slane %v8096, 1
        %v8140 = vperm.slane %v8096, 2
        %v8144 = vadd.f32 %v8134, %v8138
        %v8145 = vadd.f32 %v8135, %v8139
        %v8146 = vadd.f32 %v8136, %v8140
        %v8147 = vpack.c.bf16 %v8144, %v8144
        %v8148 = vpack.c.bf16 %v8145, %v8145
        %v8149 = vpack.c.bf16 %v8146, %v8146
        %v8150 = vld [vmem:[%s16] sm:$0xf]
        %v8151 = vld [vmem:[%s16 + $0x4] sm:$0xf]
        %v8152 = vld [vmem:[%s16 + $0x8] sm:$0xf]
        %v8153 = vld [vmem:[%s16 + $0xc] sm:$0xf]
        %v8154 = vld [vmem:[%s16 + $0x10] sm:$0xf]
        %v8155 = vld [vmem:[%s16 + $0x14] sm:$0xf]
        %v8156 = vld [vmem:[%s16 + $0x18] sm:$0xf]
        %v8157 = vld [vmem:[%s16 + $0x1c] sm:$0xf]
        %v8158 = vld [vmem:[%s16 + $0x20] sm:$0xf]
        %v8159 = vld [vmem:[%s16 + $0x24] sm:$0xf]
        %v8160 = vld [vmem:[%s16 + $0x28] sm:$0xf]
        %v8161 = vld [vmem:[%s16 + $0x2c] sm:$0xf]
        %v8162 = vld [vmem:[%s16 + $0x30] sm:$0xf]
        %v8163 = vld [vmem:[%s16 + $0x34] sm:$0xf]
        %v8164 = vld [vmem:[%s16 + $0x38] sm:$0xf]
        %v8165 = vld [vmem:[%s16 + $0x3c] sm:$0xf]
        %v8166 = vld [vmem:[%s16 + $0x40] sm:$0xf]
        %v8167 = vld [vmem:[%s16 + $0x44] sm:$0xf]
        %v8168 = vld [vmem:[%s16 + $0x48] sm:$0xf]
        %v8169 = vld [vmem:[%s16 + $0x4c] sm:$0xf]
        %v8170 = vld [vmem:[%s16 + $0x50] sm:$0xf]
        %v8171 = vld [vmem:[%s16 + $0x54] sm:$0xf]
        %v8172 = vld [vmem:[%s16 + $0x58] sm:$0xf]
        %v8173 = vld [vmem:[%s16 + $0x5c] sm:$0xf]
        %v8174 = vld [vmem:[%s16 + $0x60] sm:$0xf]
        %v8175 = vld [vmem:[%s16 + $0x64] sm:$0xf]
        %v8176 = vld [vmem:[%s16 + $0x68] sm:$0xf]
        %v8177 = vld [vmem:[%s16 + $0x6c] sm:$0xf]
        %v8178 = vld [vmem:[%s16 + $0x70] sm:$0xf]
        %v8179 = vld [vmem:[%s16 + $0x74] sm:$0xf]
        %v8180 = vld [vmem:[%s16 + $0x78] sm:$0xf]
        %v8181 = vld [vmem:[%s16 + $0x7c] sm:$0xf]
        %v8182 = vld [vmem:[%s16 + $0x80] sm:$0xf]
        %v8183 = vld [vmem:[%s16 + $0x84] sm:$0xf]
        %v8184 = vld [vmem:[%s16 + $0x88] sm:$0xf]
        %v8185 = vld [vmem:[%s16 + $0x8c] sm:$0xf]
        %v8186 = vld [vmem:[%s16 + $0x90] sm:$0xf]
        %v8187 = vld [vmem:[%s16 + $0x94] sm:$0xf]
        %v8188 = vld [vmem:[%s16 + $0x98] sm:$0xf]
        %v8189 = vld [vmem:[%s16 + $0x9c] sm:$0xf]
        %v8190 = vld [vmem:[%s16 + $0xa0] sm:$0xf]
        %v8191 = vld [vmem:[%s16 + $0xa4] sm:$0xf]
        %v8192 = vld [vmem:[%s16 + $0xa8] sm:$0xf]
        %v8193 = vld [vmem:[%s16 + $0xac] sm:$0xf]
        %v8194 = vld [vmem:[%s16 + $0xb0] sm:$0xf]
        %v8195 = vld [vmem:[%s16 + $0xb4] sm:$0xf]
        %v8196 = vld [vmem:[%s16 + $0xb8] sm:$0xf]
        %v8197 = vld [vmem:[%s16 + $0xbc] sm:$0xf]
        %v8198 = vld [vmem:[%s17] sm:$0x1]
        %v8200 = vperm.slane %v8198, 0
        %v8250 = vunpack.c.l.b16 %v8150
        %v8251 = vunpack.c.l.b16 %v8151
        %v8252 = vunpack.c.l.b16 %v8152
        %v8253 = vunpack.c.l.b16 %v8153
        %v8254 = vunpack.c.l.b16 %v8154
        %v8255 = vunpack.c.l.b16 %v8155
        %v8256 = vunpack.c.l.b16 %v8156
        %v8257 = vunpack.c.l.b16 %v8157
        %v8258 = vunpack.c.l.b16 %v8158
        %v8259 = vunpack.c.l.b16 %v8159
        %v8260 = vunpack.c.l.b16 %v8160
        %v8261 = vunpack.c.l.b16 %v8161
        %v8262 = vunpack.c.l.b16 %v8162
        %v8263 = vunpack.c.l.b16 %v8163
        %v8264 = vunpack.c.l.b16 %v8164
        %v8265 = vunpack.c.l.b16 %v8165
        %v8266 = vunpack.c.l.b16 %v8166
        %v8267 = vunpack.c.l.b16 %v8167
        %v8268 = vunpack.c.l.b16 %v8168
        %v8269 = vunpack.c.l.b16 %v8169
        %v8270 = vunpack.c.l.b16 %v8170
        %v8271 = vunpack.c.l.b16 %v8171
        %v8272 = vunpack.c.l.b16 %v8172
        %v8273 = vunpack.c.l.b16 %v8173
        %v8274 = vunpack.c.l.b16 %v8174
        %v8275 = vunpack.c.l.b16 %v8175
        %v8276 = vunpack.c.l.b16 %v8176
        %v8277 = vunpack.c.l.b16 %v8177
        %v8278 = vunpack.c.l.b16 %v8178
        %v8279 = vunpack.c.l.b16 %v8179
        %v8280 = vunpack.c.l.b16 %v8180
        %v8281 = vunpack.c.l.b16 %v8181
        %v8282 = vunpack.c.l.b16 %v8182
        %v8283 = vunpack.c.l.b16 %v8183
        %v8284 = vunpack.c.l.b16 %v8184
        %v8285 = vunpack.c.l.b16 %v8185
        %v8286 = vunpack.c.l.b16 %v8186
        %v8287 = vunpack.c.l.b16 %v8187
        %v8288 = vunpack.c.l.b16 %v8188
        %v8289 = vunpack.c.l.b16 %v8189
        %v8290 = vunpack.c.l.b16 %v8190
        %v8291 = vunpack.c.l.b16 %v8191
        %v8292 = vunpack.c.l.b16 %v8192
        %v8293 = vunpack.c.l.b16 %v8193
        %v8294 = vunpack.c.l.b16 %v8194
        %v8295 = vunpack.c.l.b16 %v8195
        %v8296 = vunpack.c.l.b16 %v8196
        %v8297 = vunpack.c.l.b16 %v8197
        %v8298 = vpack.c.b16 %v8251, %v8250
        %v8299 = vpack.c.b16 %v8253, %v8252
        %v8300 = vpack.c.b16 %v8255, %v8254
        %v8301 = vpack.c.b16 %v8257, %v8256
        %v8302 = vpack.c.b16 %v8259, %v8258
        %v8303 = vpack.c.b16 %v8261, %v8260
        %v8304 = vpack.c.b16 %v8263, %v8262
        %v8305 = vpack.c.b16 %v8265, %v8264
        %v8306 = vpack.c.b16 %v8267, %v8266
        %v8307 = vpack.c.b16 %v8269, %v8268
        %v8308 = vpack.c.b16 %v8271, %v8270
        %v8309 = vpack.c.b16 %v8273, %v8272
        %v8310 = vpack.c.b16 %v8275, %v8274
        %v8311 = vpack.c.b16 %v8277, %v8276
        %v8312 = vpack.c.b16 %v8279, %v8278
        %v8313 = vpack.c.b16 %v8281, %v8280
        %v8314 = vpack.c.b16 %v8283, %v8282
        %v8315 = vpack.c.b16 %v8285, %v8284
        %v8316 = vpack.c.b16 %v8287, %v8286
        %v8317 = vpack.c.b16 %v8289, %v8288
        %v8318 = vpack.c.b16 %v8291, %v8290
        %v8319 = vpack.c.b16 %v8293, %v8292
        %v8320 = vpack.c.b16 %v8295, %v8294
        %v8321 = vpack.c.b16 %v8297, %v8296
        %8346 = vmatpush.bf16.msra.mxu0 %v8305
        %8347 = vmatpush.bf16.msra.mxu0 %v8304
        %8348 = vmatpush.bf16.msra.mxu0 %v8303
        %8349 = vmatpush.bf16.msra.mxu0 %v8302
        %8350 = vmatpush.bf16.msra.mxu0 %v8301
        %8351 = vmatpush.bf16.msra.mxu0 %v8300
        %8352 = vmatpush.bf16.msra.mxu0 %v8299
        %8353 = vmatpush.bf16.msra.mxu0 %v8298
        %8354 = vmatmul.bf16.gmra.mxu0 %v8147
        %v8355 = vpop.f32.mrf.mxu0
        %v8356 = vadd.f32 %v8200, %v8355
        %v8357 = vpop.f32.mrf.mxu0
        %8358 = vdwg.mxu0
        %8359 = vmatpush.bf16.msra.mxu0 %v8313
        %8360 = vmatpush.bf16.msra.mxu0 %v8312
        %8361 = vmatpush.bf16.msra.mxu0 %v8311
        %8362 = vmatpush.bf16.msra.mxu0 %v8310
        %8363 = vmatpush.bf16.msra.mxu0 %v8309
        %8364 = vmatpush.bf16.msra.mxu0 %v8308
        %8365 = vmatpush.bf16.msra.mxu0 %v8307
        %8366 = vmatpush.bf16.msra.mxu0 %v8306
        %8367 = vmatmul.bf16.gmra.mxu0 %v8148
        %v8368 = vpop.f32.mrf.mxu0
        %v8369 = vadd.f32 %v8356, %v8368
        %v8370 = vpop.f32.mrf.mxu0
        %8371 = vdwg.mxu0
        %8372 = vmatpush.bf16.msra.mxu0 %v8321
        %8373 = vmatpush.bf16.msra.mxu0 %v8320
        %8374 = vmatpush.bf16.msra.mxu0 %v8319
        %8375 = vmatpush.bf16.msra.mxu0 %v8318
        %8376 = vmatpush.bf16.msra.mxu0 %v8317
        %8377 = vmatpush.bf16.msra.mxu0 %v8316
        %8378 = vmatpush.bf16.msra.mxu0 %v8315
        %8379 = vmatpush.bf16.msra.mxu0 %v8314
        %8380 = vmatmul.bf16.gmra.mxu0 %v8149
        %v8381 = vpop.f32.mrf.mxu0
        %v8382 = vadd.f32 %v8369, %v8381
        %v8383 = vpop.f32.mrf.mxu0
        %8384 = vdwg.mxu0
        %8385 = vst [vmem:[%s568] sm:$0xff] %v8382
        %s8386 = sand.u32 %s423, 1
        %s8387 = scalar_lea.sflag [#allocation3], %s8386
        %s8388 = sand.u32 %s423, 1
        %s8389 = smul.addr %s8388, 8
        %s8390 = scalar_lea.vmem [#allocation2], %s8389
        // Predicated region
        $region93: #{gpt_forward.1} parent=91 // pred_check
          %p8391 = pneg %p433
        $region94: #{gpt_forward.1} parent=91 // pred_check_branch
          %8393 = sbr.rel (%p8391) target = $region96
        $region95: #{gpt_forward.1} parent=91 // pred_region
          %8395 = vsyncadd %s8387, 0
          %s8396 = smul.addr %s32, 8
          %s8397 = scalar_lea.hbm %s18, %s8396
          %s8399 = sshll.u32 %s8390, 4
          %s8400 = int_to_ptr.vmem [resolvable:$true] %s8399
          %s8401 = sshll.u32 %s8397, 4
          %s8402 = int_to_ptr.hbm [resolvable:$true] %s8401
          %8404 = dma.vmem_to_hbm [thread:$0]  %s8400, 128, %s8402, %s8387
        $region96: #{gpt_forward.1} parent=91 // pred_fallthru
          _
      $region92: #{gpt_forward.1} parent=5 // pred_fallthru
        _
      %p8405 = scmp.le.s32.totalorder 2, %s27
      // Predicated region
      $region97: #{gpt_forward.1} parent=5 // pred_check
        %p8406 = pneg %p8405
      $region98: #{gpt_forward.1} parent=5 // pred_check_branch
        %8408 = sbr.rel (%p8406) target = $region100
      $region99: #{gpt_forward.1} parent=5 // pred_region
        %s8409 = ssub.s32 %s27, 2
        // Predicated region
        $region101: #{gpt_forward.1} parent=99 // pred_check
          %p8410 = pneg %p439
        $region102: #{gpt_forward.1} parent=99 // pred_check_branch
          %8412 = sbr.rel (%p8410) target = $region104
        $region103: #{gpt_forward.1} parent=99 // pred_region
          %s8413 = sand.u32 %s424, 1
          %s8414 = scalar_lea.sflag [#allocation3], %s8413
          %s8415 = sand.u32 %s424, 1
          %s8416 = smul.addr %s8415, 8
          %s8417 = scalar_lea.vmem [#allocation2], %s8416
          %8419 = dma.done %s8414, 128
        $region104: #{gpt_forward.1} parent=99 // pred_fallthru
          _
      $region100: #{gpt_forward.1} parent=5 // pred_fallthru
        _
    $region6: #{gpt_forward.1} parent=1 // loop_footer
      %s31 = sadd.s32 1, %s27
    $region7: #{gpt_forward.1} parent=1 // loop_footer_branch
      %26 = sbr.rel target = $region3
    $region8: #{gpt_forward.1} parent=1 // loop_exit
      _
    %8420 = vsyncpa [#allocation3], 1
    %s8421 = scalar_lea.sflag [#allocation3], 1
    %8422 = vsyncpa %s8421, 1

</llo_original>
